<compile_context>
chip_gen: v7x
topology: tpu7x:2x2x1
jax: 0.10.0
libtpu: 0.0.40
codegen_flags: <defaults>
</compile_context>

<pallas_src>
import functools

import jax
import jax.numpy as jnp
import numpy as np
from jax.experimental import pallas as pl
from jax.experimental.pallas import tpu as pltpu


# ----------------------------------------------------------------------------
# Pallas kernels
# ----------------------------------------------------------------------------
def _gemm_bias_act_kernel(w_ref, p_ref, b_ref, o_ref, *, act):
    """Fused (O, K) @ (K, N) + bias(O,1) + activation.  N = B*Ho*Wo is lane-dense."""
    acc = jnp.dot(w_ref[...], p_ref[...], preferred_element_type=jnp.float32)
    acc = acc + b_ref[...]                       # (O, 1) broadcast over lanes
    if act == "relu":
        acc = jnp.maximum(acc, 0.0)
    elif act == "tanh":
        acc = jnp.tanh(acc)
    o_ref[...] = acc.astype(o_ref.dtype)


def _pool_kernel(a_ref, b_ref, c_ref, d_ref, o_ref, *, mode):
    a, b, c, d = a_ref[...], b_ref[...], c_ref[...], d_ref[...]
    if mode == "max":
        o_ref[...] = jnp.maximum(jnp.maximum(a, b), jnp.maximum(c, d))
    else:  # avg
        o_ref[...] = (a + b + c + d) * 0.25


def _fc_stack_kernel(x_ref, *refs):
    """Five fused Linear layers: relu, relu, none(latent), relu, none."""
    o_ref = refs[-1]
    h = x_ref[...]
    acts = ("relu", "relu", "none", "relu", "none")
    for idx, act in enumerate(acts):
        w = refs[2 * idx][...]          # (in, out)
        b = refs[2 * idx + 1][...]      # (1, out)
        h = jnp.dot(h, w, preferred_element_type=jnp.float32) + b
        if act == "relu":
            h = jnp.maximum(h, 0.0)
    o_ref[...] = h.astype(o_ref.dtype)


# ----------------------------------------------------------------------------
# Pallas wrappers (single full-array block, no padding, no tiling)
# ----------------------------------------------------------------------------
def gemm_bias_act(w, patches, b, act="none"):
    """act(w @ patches + b[:, None]); w:(O,K), patches:(K,N) -> (O,N)."""
    O, K = w.shape
    _, N = patches.shape
    cost = pl.CostEstimate(
        flops=2 * O * K * N,
        transcendentals=(O * N if act == "tanh" else 0),
        bytes_accessed=4 * (O * K + K * N + O * N + O),
    )
    return pl.pallas_call(
        functools.partial(_gemm_bias_act_kernel, act=act),
        out_shape=jax.ShapeDtypeStruct((O, N), jnp.float32),
        grid=(1,),
        in_specs=[
            pl.BlockSpec((O, K), lambda i: (0, 0)),
            pl.BlockSpec((K, N), lambda i: (0, 0)),
            pl.BlockSpec((O, 1), lambda i: (0, 0)),
        ],
        out_specs=pl.BlockSpec((O, N), lambda i: (0, 0)),
        compiler_params=pltpu.CompilerParams(dimension_semantics=("arbitrary",)),
        cost_estimate=cost,
    )(w, patches, b.reshape(O, 1))


def pool2x2_cbhw(a, mode):
    """2x2 stride-2 max/avg pool on (C, B, H, W), lane-dense flattening."""
    C, B, H, W = a.shape
    Ho, Wo = H // 2, W // 2
    N = B * Ho * Wo
    quads = [a[:, :, qi::2, qj::2].reshape(C, N) for qi in (0, 1) for qj in (0, 1)]
    cost = pl.CostEstimate(flops=3 * C * N, transcendentals=0,
                           bytes_accessed=4 * 5 * C * N)
    out = pl.pallas_call(
        functools.partial(_pool_kernel, mode=mode),
        out_shape=jax.ShapeDtypeStruct((C, N), jnp.float32),
        grid=(1,),
        in_specs=[pl.BlockSpec((C, N), lambda i: (0, 0))] * 4,
        out_specs=pl.BlockSpec((C, N), lambda i: (0, 0)),
        cost_estimate=cost,
    )(*quads)
    return out.reshape(C, B, Ho, Wo)


def fc_stack(x, p, names=("e_fc1", "e_fc2", "e_fc3", "d_fc1", "d_fc2")):
    """All 5 Linear layers of the bottleneck fused into one VMEM-resident kernel."""
    Bsz = x.shape[0]
    args = [x]
    in_specs = [pl.BlockSpec(x.shape, lambda i: (0, 0))]
    flops = 0
    bytes_acc = x.size * 4
    for n in names:
        w = p[n + "_w"].T                      # (in, out)
        b = p[n + "_b"].reshape(1, -1)         # (1, out)
        args += [w, b]
        in_specs += [pl.BlockSpec(w.shape, lambda i: (0, 0)),
                     pl.BlockSpec(b.shape, lambda i: (0, 0))]
        flops += 2 * Bsz * w.shape[0] * w.shape[1]
        bytes_acc += (w.size + b.size) * 4
    out_dim = p[names[-1] + "_w"].shape[0]
    bytes_acc += Bsz * out_dim * 4
    cost = pl.CostEstimate(flops=int(flops), transcendentals=0,
                           bytes_accessed=int(bytes_acc))
    return pl.pallas_call(
        _fc_stack_kernel,
        out_shape=jax.ShapeDtypeStruct((Bsz, out_dim), jnp.float32),
        grid=(1,),
        in_specs=in_specs,
        out_specs=pl.BlockSpec((Bsz, out_dim), lambda i: (0, 0)),
        cost_estimate=cost,
    )(*args)


# ----------------------------------------------------------------------------
# Conv layers in (C, B, H, W) layout built on the lane-dense Pallas GEMM kernel
# ----------------------------------------------------------------------------
def conv2d_cbhw(a, w, b, padding=0, act="none"):
    """PyTorch Conv2d (stride=1). a:(C,B,H,W), w:(O,C,k,k) -> (O,B,Ho,Wo)."""
    C, B, H, W = a.shape
    O, _, k, _ = w.shape
    if padding:
        a = jnp.pad(a, ((0, 0), (0, 0), (padding, padding), (padding, padding)))
    Hp, Wp = a.shape[2], a.shape[3]
    Ho, Wo = Hp - k + 1, Wp - k + 1
    cols = [a[:, :, di:di + Ho, dj:dj + Wo] for di in range(k) for dj in range(k)]
    patches = jnp.stack(cols, axis=1)                    # (C, k*k, B, Ho, Wo)
    patches = patches.reshape(C * k * k, B * Ho * Wo)    # rows match w.reshape(O, C*k*k)
    wmat = w.reshape(O, C * k * k)
    y = gemm_bias_act(wmat, patches, b, act=act)         # (O, B*Ho*Wo) lane-dense
    return y.reshape(O, B, Ho, Wo)


def _dilate(a, s):
    """Insert (s-1) zeros between elements along H and W (pad+reshape, no scatter)."""
    if s == 1:
        return a
    C, B, H, W = a.shape
    a = a[:, :, :, None, :, None]                                   # (C,B,H,1,W,1)
    a = jnp.pad(a, ((0, 0), (0, 0), (0, 0), (0, s - 1), (0, 0), (0, s - 1)))
    a = a.reshape(C, B, H * s, W * s)
    return a[:, :, : (H - 1) * s + 1, : (W - 1) * s + 1]


def conv_transpose2d_cbhw(a, w, b, stride=1, padding=0, act="none"):
    """PyTorch ConvTranspose2d. a:(Cin,B,H,W), w:(Cin,Cout,k,k)."""
    _, Cout, k, _ = w.shape
    ad = _dilate(a, stride)
    w_conv = jnp.flip(w, axis=(2, 3)).transpose(1, 0, 2, 3)   # (Cout, Cin, k, k)
    return conv2d_cbhw(ad, w_conv, b, padding=k - 1 - padding, act=act)


# ----------------------------------------------------------------------------
# Parameters (deterministic, PyTorch-like uniform(-1/sqrt(fan_in), +1/sqrt(fan_in)))
# ----------------------------------------------------------------------------
def make_params(seed=0, latent=10):
    key = jax.random.PRNGKey(seed)
    p = {}

    def add(name, wshape, bias_size, fan_in):
        nonlocal key
        key, kw, kb = jax.random.split(key, 3)
        bound = 1.0 / np.sqrt(fan_in)
        p[name + "_w"] = jax.random.uniform(kw, wshape, jnp.float32, -bound, bound)
        p[name + "_b"] = jax.random.uniform(kb, (bias_size,), jnp.float32, -bound, bound)

    # Encoder convs: weight (O, C, k, k)
    add("e_c1_1", (6, 1, 5, 5), 6, 1 * 5 * 5)
    add("e_c1_2", (6, 6, 3, 3), 6, 6 * 3 * 3)
    add("e_c2_1", (16, 6, 5, 5), 16, 6 * 5 * 5)
    add("e_c2_2", (16, 16, 3, 3), 16, 16 * 3 * 3)
    # FC layers: weight (out, in)
    add("e_fc1", (120, 256), 120, 256)
    add("e_fc2", (84, 120), 84, 120)
    add("e_fc3", (latent, 84), latent, 84)
    add("d_fc1", (96, latent), 96, latent)
    add("d_fc2", (96, 96), 96, 96)
    # Decoder transposed convs: weight (Cin, Cout, k, k), fan_in = Cout*k*k
    add("d_ct1_1", (6, 6, 3, 3), 6, 6 * 3 * 3)
    add("d_ct1_2", (6, 6, 5, 5), 6, 6 * 5 * 5)
    add("d_ct2_1", (6, 6, 5, 5), 6, 6 * 5 * 5)
    add("d_ct2_2", (6, 6, 4, 4), 6, 6 * 4 * 4)
    add("d_ct3_1", (6, 6, 3, 3), 6, 6 * 3 * 3)
    add("d_ct3_2", (6, 1, 3, 3), 1, 1 * 3 * 3)
    return p


# ----------------------------------------------------------------------------
# Forward pass (mirrors EncoderDecoder.forward)
# ----------------------------------------------------------------------------
def encoder_decoder(x, p):
    B = x.shape[0]
    a = jnp.transpose(x, (1, 0, 2, 3))                                    # (1,B,28,28)

    # ---- Encoder ----
    a = conv2d_cbhw(a, p["e_c1_1_w"], p["e_c1_1_b"], 0, "relu")           # (6,B,24,24)
    a = conv2d_cbhw(a, p["e_c1_2_w"], p["e_c1_2_b"], 1, "relu")           # (6,B,24,24)
    a = pool2x2_cbhw(a, "max")                                            # (6,B,12,12)
    a = conv2d_cbhw(a, p["e_c2_1_w"], p["e_c2_1_b"], 0, "relu")           # (16,B,8,8)
    a = conv2d_cbhw(a, p["e_c2_2_w"], p["e_c2_2_b"], 1, "relu")           # (16,B,8,8)
    a = pool2x2_cbhw(a, "avg")                                            # (16,B,4,4)

    # ---- Bottleneck: flatten (PyTorch order), 5 fused Linear layers ----
    h = jnp.transpose(a, (1, 0, 2, 3)).reshape(B, 256)                    # (B,256)
    h = fc_stack(h, p)                                                    # (B,96)
    a = jnp.transpose(h.reshape(B, 6, 4, 4), (1, 0, 2, 3))                # (6,B,4,4)

    # ---- Decoder ----
    a = conv_transpose2d_cbhw(a, p["d_ct1_1_w"], p["d_ct1_1_b"], 3, 0, "relu")  # (6,B,12,12)
    a = conv_transpose2d_cbhw(a, p["d_ct1_2_w"], p["d_ct1_2_b"], 2, 1, "relu")  # (6,B,25,25)
    a = conv_transpose2d_cbhw(a, p["d_ct2_1_w"], p["d_ct2_1_b"], 1, 1, "relu")  # (6,B,27,27)
    a = conv_transpose2d_cbhw(a, p["d_ct2_2_w"], p["d_ct2_2_b"], 1, 1, "relu")  # (6,B,28,28)
    a = conv_transpose2d_cbhw(a, p["d_ct3_1_w"], p["d_ct3_1_b"], 1, 1, "relu")  # (6,B,28,28)
    a = conv_transpose2d_cbhw(a, p["d_ct3_2_w"], p["d_ct3_2_b"], 1, 1, "tanh")  # (1,B,28,28)
    return jnp.transpose(a, (1, 0, 2, 3))                                 # (B,1,28,28)


if __name__ == "__main__":
    B = 2
    # Linear(256, ...) after two 2x2 pools implies a 28x28 single-channel input.
    x = jax.random.normal(jax.random.PRNGKey(0), (B, 1, 28, 28), jnp.float32)
    params = make_params(seed=0, latent=10)

    fwd = jax.jit(encoder_decoder)
    out = fwd(x, params)
    jax.block_until_ready(out)

    assert out.shape == (B, 1, 28, 28), out.shape
    assert out.dtype == jnp.float32
    assert bool(jnp.all(jnp.isfinite(out)))
    assert bool(jnp.all(jnp.abs(out) <= 1.0 + 1e-6))  # Tanh output range
    print("KERNEL_OK")
</pallas_src>

<mosaic_0001>
module attributes {stable_mosaic.version = 11 : i64} {
  func.func @_gemm_bias_act_kernel(%arg0: i32, %arg1: memref<6x25xf32, #tpu.memory_space<vmem>>, %arg2: memref<25x1152xf32, #tpu.memory_space<vmem>>, %arg3: memref<6x1xf32, #tpu.memory_space<vmem>>, %arg4: memref<6x1152xf32, #tpu.memory_space<vmem>>) attributes {dimension_semantics = [#tpu.dimension_semantics<arbitrary>], iteration_bounds = array<i64: 1>, scalar_prefetch = 0 : i64, scratch_operands = 0 : i64, tpu.core_type = #tpu.core_type<tc>, window_params = [{pipeline_mode = #tpu.pipeline_mode<synchronous>, transform_indices = @transform_0, window_bounds = array<i64: 6, 25>}, {pipeline_mode = #tpu.pipeline_mode<synchronous>, transform_indices = @transform_1, window_bounds = array<i64: 25, 1152>}, {pipeline_mode = #tpu.pipeline_mode<synchronous>, transform_indices = @transform_2, window_bounds = array<i64: 6, 1>}, {pipeline_mode = #tpu.pipeline_mode<synchronous>, transform_indices = @transform_3, window_bounds = array<i64: 6, 1152>}]} {
    %c0 = arith.constant 0 : index
    %c0_0 = arith.constant 0 : index
    %0 = vector.load %arg1[%c0, %c0_0] : memref<6x25xf32, #tpu.memory_space<vmem>>, vector<6x25xf32>
    %c0_1 = arith.constant 0 : index
    %c0_2 = arith.constant 0 : index
    %1 = vector.load %arg2[%c0_1, %c0_2] : memref<25x1152xf32, #tpu.memory_space<vmem>>, vector<25x1152xf32>
    %cst = arith.constant dense<0.000000e+00> : vector<6x1152xf32>
    %2 = tpu.matmul %0, %1, %cst {dimension_numbers = #tpu.dot_dimension_numbers<[1], [0], [0], [1], [0, 0, 1, 1], [], []>} : vector<6x25xf32>, vector<25x1152xf32>, vector<6x1152xf32> -> vector<6x1152xf32>
    %c0_3 = arith.constant 0 : index
    %c0_4 = arith.constant 0 : index
    %3 = vector.load %arg3[%c0_3, %c0_4] : memref<6x1xf32, #tpu.memory_space<vmem>>, vector<6x1xf32>
    %4 = vector.broadcast %3 : vector<6x1xf32> to vector<6x1152xf32>
    %5 = arith.addf %2, %4 : vector<6x1152xf32>
    %cst_5 = arith.constant 0.000000e+00 : f32
    %6 = vector.broadcast %cst_5 : f32 to vector<6x1152xf32>
    %7 = arith.maximumf %5, %6 : vector<6x1152xf32>
    %c0_6 = arith.constant 0 : index
    %c0_7 = arith.constant 0 : index
    %8 = vector.load %arg4[%c0_6, %c0_7] : memref<6x1152xf32, #tpu.memory_space<vmem>>, vector<6x1152xf32>
    tpu.vector_store %arg4[%c0_6, %c0_7], %7 {strides = array<i32>} : memref<6x1152xf32, #tpu.memory_space<vmem>>, vector<6x1152xf32>,
    return
  }
  func.func @transform_0(%arg0: i32) -> (i32, i32) {
    %c0_i32 = arith.constant 0 : i32
    %c0_i32_0 = arith.constant 0 : i32
    %c0_i32_1 = arith.constant 0 : i32
    return %c0_i32, %c0_i32_0 : i32, i32
  }
  func.func @transform_1(%arg0: i32) -> (i32, i32) {
    %c0_i32 = arith.constant 0 : i32
    %c0_i32_0 = arith.constant 0 : i32
    %c0_i32_1 = arith.constant 0 : i32
    return %c0_i32, %c0_i32_0 : i32, i32
  }
  func.func @transform_2(%arg0: i32) -> (i32, i32) {
    %c0_i32 = arith.constant 0 : i32
    %c0_i32_0 = arith.constant 0 : i32
    %c0_i32_1 = arith.constant 0 : i32
    return %c0_i32, %c0_i32_0 : i32, i32
  }
  func.func @transform_3(%arg0: i32) -> (i32, i32) {
    %c0_i32 = arith.constant 0 : i32
    %c0_i32_0 = arith.constant 0 : i32
    %c0_i32_1 = arith.constant 0 : i32
    return %c0_i32, %c0_i32_0 : i32, i32
  }
}

module attributes {stable_mosaic.version = 11 : i64} {
  func.func @_gemm_bias_act_kernel(%arg0: i32, %arg1: memref<6x54xf32, #tpu.memory_space<vmem>>, %arg2: memref<54x1152xf32, #tpu.memory_space<vmem>>, %arg3: memref<6x1xf32, #tpu.memory_space<vmem>>, %arg4: memref<6x1152xf32, #tpu.memory_space<vmem>>) attributes {dimension_semantics = [#tpu.dimension_semantics<arbitrary>], iteration_bounds = array<i64: 1>, scalar_prefetch = 0 : i64, scratch_operands = 0 : i64, tpu.core_type = #tpu.core_type<tc>, window_params = [{pipeline_mode = #tpu.pipeline_mode<synchronous>, transform_indices = @transform_0, window_bounds = array<i64: 6, 54>}, {pipeline_mode = #tpu.pipeline_mode<synchronous>, transform_indices = @transform_1, window_bounds = array<i64: 54, 1152>}, {pipeline_mode = #tpu.pipeline_mode<synchronous>, transform_indices = @transform_2, window_bounds = array<i64: 6, 1>}, {pipeline_mode = #tpu.pipeline_mode<synchronous>, transform_indices = @transform_3, window_bounds = array<i64: 6, 1152>}]} {
    %c0 = arith.constant 0 : index
    %c0_0 = arith.constant 0 : index
    %0 = vector.load %arg1[%c0, %c0_0] : memref<6x54xf32, #tpu.memory_space<vmem>>, vector<6x54xf32>
    %c0_1 = arith.constant 0 : index
    %c0_2 = arith.constant 0 : index
    %1 = vector.load %arg2[%c0_1, %c0_2] : memref<54x1152xf32, #tpu.memory_space<vmem>>, vector<54x1152xf32>
    %cst = arith.constant dense<0.000000e+00> : vector<6x1152xf32>
    %2 = tpu.matmul %0, %1, %cst {dimension_numbers = #tpu.dot_dimension_numbers<[1], [0], [0], [1], [0, 0, 1, 1], [], []>} : vector<6x54xf32>, vector<54x1152xf32>, vector<6x1152xf32> -> vector<6x1152xf32>
    %c0_3 = arith.constant 0 : index
    %c0_4 = arith.constant 0 : index
    %3 = vector.load %arg3[%c0_3, %c0_4] : memref<6x1xf32, #tpu.memory_space<vmem>>, vector<6x1xf32>
    %4 = vector.broadcast %3 : vector<6x1xf32> to vector<6x1152xf32>
    %5 = arith.addf %2, %4 : vector<6x1152xf32>
    %cst_5 = arith.constant 0.000000e+00 : f32
    %6 = vector.broadcast %cst_5 : f32 to vector<6x1152xf32>
    %7 = arith.maximumf %5, %6 : vector<6x1152xf32>
    %c0_6 = arith.constant 0 : index
    %c0_7 = arith.constant 0 : index
    %8 = vector.load %arg4[%c0_6, %c0_7] : memref<6x1152xf32, #tpu.memory_space<vmem>>, vector<6x1152xf32>
    tpu.vector_store %arg4[%c0_6, %c0_7], %7 {strides = array<i32>} : memref<6x1152xf32, #tpu.memory_space<vmem>>, vector<6x1152xf32>,
    return
  }
  func.func @transform_0(%arg0: i32) -> (i32, i32) {
    %c0_i32 = arith.constant 0 : i32
    %c0_i32_0 = arith.constant 0 : i32
    %c0_i32_1 = arith.constant 0 : i32
    return %c0_i32, %c0_i32_0 : i32, i32
  }
  func.func @transform_1(%arg0: i32) -> (i32, i32) {
    %c0_i32 = arith.constant 0 : i32
    %c0_i32_0 = arith.constant 0 : i32
    %c0_i32_1 = arith.constant 0 : i32
    return %c0_i32, %c0_i32_0 : i32, i32
  }
  func.func @transform_2(%arg0: i32) -> (i32, i32) {
    %c0_i32 = arith.constant 0 : i32
    %c0_i32_0 = arith.constant 0 : i32
    %c0_i32_1 = arith.constant 0 : i32
    return %c0_i32, %c0_i32_0 : i32, i32
  }
  func.func @transform_3(%arg0: i32) -> (i32, i32) {
    %c0_i32 = arith.constant 0 : i32
    %c0_i32_0 = arith.constant 0 : i32
    %c0_i32_1 = arith.constant 0 : i32
    return %c0_i32, %c0_i32_0 : i32, i32
  }
}

module attributes {stable_mosaic.version = 11 : i64} {
  func.func @_pool_kernel(%arg0: i32, %arg1: memref<6x288xf32, #tpu.memory_space<vmem>>, %arg2: memref<6x288xf32, #tpu.memory_space<vmem>>, %arg3: memref<6x288xf32, #tpu.memory_space<vmem>>, %arg4: memref<6x288xf32, #tpu.memory_space<vmem>>, %arg5: memref<6x288xf32, #tpu.memory_space<vmem>>) attributes {dimension_semantics = [#tpu.dimension_semantics<arbitrary>], iteration_bounds = array<i64: 1>, scalar_prefetch = 0 : i64, scratch_operands = 0 : i64, tpu.core_type = #tpu.core_type<tc>, window_params = [{pipeline_mode = #tpu.pipeline_mode<synchronous>, transform_indices = @transform_0, window_bounds = array<i64: 6, 288>}, {pipeline_mode = #tpu.pipeline_mode<synchronous>, transform_indices = @transform_1, window_bounds = array<i64: 6, 288>}, {pipeline_mode = #tpu.pipeline_mode<synchronous>, transform_indices = @transform_2, window_bounds = array<i64: 6, 288>}, {pipeline_mode = #tpu.pipeline_mode<synchronous>, transform_indices = @transform_3, window_bounds = array<i64: 6, 288>}, {pipeline_mode = #tpu.pipeline_mode<synchronous>, transform_indices = @transform_4, window_bounds = array<i64: 6, 288>}]} {
    %c0 = arith.constant 0 : index
    %c0_0 = arith.constant 0 : index
    %0 = vector.load %arg1[%c0, %c0_0] : memref<6x288xf32, #tpu.memory_space<vmem>>, vector<6x288xf32>
    %c0_1 = arith.constant 0 : index
    %c0_2 = arith.constant 0 : index
    %1 = vector.load %arg2[%c0_1, %c0_2] : memref<6x288xf32, #tpu.memory_space<vmem>>, vector<6x288xf32>
    %c0_3 = arith.constant 0 : index
    %c0_4 = arith.constant 0 : index
    %2 = vector.load %arg3[%c0_3, %c0_4] : memref<6x288xf32, #tpu.memory_space<vmem>>, vector<6x288xf32>
    %c0_5 = arith.constant 0 : index
    %c0_6 = arith.constant 0 : index
    %3 = vector.load %arg4[%c0_5, %c0_6] : memref<6x288xf32, #tpu.memory_space<vmem>>, vector<6x288xf32>
    %4 = arith.maximumf %0, %1 : vector<6x288xf32>
    %5 = arith.maximumf %2, %3 : vector<6x288xf32>
    %6 = arith.maximumf %4, %5 : vector<6x288xf32>
    %c0_7 = arith.constant 0 : index
    %c0_8 = arith.constant 0 : index
    %7 = vector.load %arg5[%c0_7, %c0_8] : memref<6x288xf32, #tpu.memory_space<vmem>>, vector<6x288xf32>
    tpu.vector_store %arg5[%c0_7, %c0_8], %6 {strides = array<i32>} : memref<6x288xf32, #tpu.memory_space<vmem>>, vector<6x288xf32>,
    return
  }
  func.func @transform_0(%arg0: i32) -> (i32, i32) {
    %c0_i32 = arith.constant 0 : i32
    %c0_i32_0 = arith.constant 0 : i32
    %c0_i32_1 = arith.constant 0 : i32
    return %c0_i32, %c0_i32_0 : i32, i32
  }
  func.func @transform_1(%arg0: i32) -> (i32, i32) {
    %c0_i32 = arith.constant 0 : i32
    %c0_i32_0 = arith.constant 0 : i32
    %c0_i32_1 = arith.constant 0 : i32
    return %c0_i32, %c0_i32_0 : i32, i32
  }
  func.func @transform_2(%arg0: i32) -> (i32, i32) {
    %c0_i32 = arith.constant 0 : i32
    %c0_i32_0 = arith.constant 0 : i32
    %c0_i32_1 = arith.constant 0 : i32
    return %c0_i32, %c0_i32_0 : i32, i32
  }
  func.func @transform_3(%arg0: i32) -> (i32, i32) {
    %c0_i32 = arith.constant 0 : i32
    %c0_i32_0 = arith.constant 0 : i32
    %c0_i32_1 = arith.constant 0 : i32
    return %c0_i32, %c0_i32_0 : i32, i32
  }
  func.func @transform_4(%arg0: i32) -> (i32, i32) {
    %c0_i32 = arith.constant 0 : i32
    %c0_i32_0 = arith.constant 0 : i32
    %c0_i32_1 = arith.constant 0 : i32
    return %c0_i32, %c0_i32_0 : i32, i32
  }
}

module attributes {stable_mosaic.version = 11 : i64} {
  func.func @_gemm_bias_act_kernel(%arg0: i32, %arg1: memref<16x150xf32, #tpu.memory_space<vmem>>, %arg2: memref<150x128xf32, #tpu.memory_space<vmem>>, %arg3: memref<16x1xf32, #tpu.memory_space<vmem>>, %arg4: memref<16x128xf32, #tpu.memory_space<vmem>>) attributes {dimension_semantics = [#tpu.dimension_semantics<arbitrary>], iteration_bounds = array<i64: 1>, scalar_prefetch = 0 : i64, scratch_operands = 0 : i64, tpu.core_type = #tpu.core_type<tc>, window_params = [{pipeline_mode = #tpu.pipeline_mode<synchronous>, transform_indices = @transform_0, window_bounds = array<i64: 16, 150>}, {pipeline_mode = #tpu.pipeline_mode<synchronous>, transform_indices = @transform_1, window_bounds = array<i64: 150, 128>}, {pipeline_mode = #tpu.pipeline_mode<synchronous>, transform_indices = @transform_2, window_bounds = array<i64: 16, 1>}, {pipeline_mode = #tpu.pipeline_mode<synchronous>, transform_indices = @transform_3, window_bounds = array<i64: 16, 128>}]} {
    %c0 = arith.constant 0 : index
    %c0_0 = arith.constant 0 : index
    %0 = vector.load %arg1[%c0, %c0_0] : memref<16x150xf32, #tpu.memory_space<vmem>>, vector<16x150xf32>
    %c0_1 = arith.constant 0 : index
    %c0_2 = arith.constant 0 : index
    %1 = vector.load %arg2[%c0_1, %c0_2] : memref<150x128xf32, #tpu.memory_space<vmem>>, vector<150x128xf32>
    %cst = arith.constant dense<0.000000e+00> : vector<16x128xf32>
    %2 = tpu.matmul %0, %1, %cst {dimension_numbers = #tpu.dot_dimension_numbers<[1], [0], [0], [1], [0, 0, 1, 1], [], []>} : vector<16x150xf32>, vector<150x128xf32>, vector<16x128xf32> -> vector<16x128xf32>
    %c0_3 = arith.constant 0 : index
    %c0_4 = arith.constant 0 : index
    %3 = vector.load %arg3[%c0_3, %c0_4] : memref<16x1xf32, #tpu.memory_space<vmem>>, vector<16x1xf32>
    %4 = vector.broadcast %3 : vector<16x1xf32> to vector<16x128xf32>
    %5 = arith.addf %2, %4 : vector<16x128xf32>
    %cst_5 = arith.constant 0.000000e+00 : f32
    %6 = vector.broadcast %cst_5 : f32 to vector<16x128xf32>
    %7 = arith.maximumf %5, %6 : vector<16x128xf32>
    %c0_6 = arith.constant 0 : index
    %c0_7 = arith.constant 0 : index
    %8 = vector.load %arg4[%c0_6, %c0_7] : memref<16x128xf32, #tpu.memory_space<vmem>>, vector<16x128xf32>
    tpu.vector_store %arg4[%c0_6, %c0_7], %7 {strides = array<i32>} : memref<16x128xf32, #tpu.memory_space<vmem>>, vector<16x128xf32>,
    return
  }
  func.func @transform_0(%arg0: i32) -> (i32, i32) {
    %c0_i32 = arith.constant 0 : i32
    %c0_i32_0 = arith.constant 0 : i32
    %c0_i32_1 = arith.constant 0 : i32
    return %c0_i32, %c0_i32_0 : i32, i32
  }
  func.func @transform_1(%arg0: i32) -> (i32, i32) {
    %c0_i32 = arith.constant 0 : i32
    %c0_i32_0 = arith.constant 0 : i32
    %c0_i32_1 = arith.constant 0 : i32
    return %c0_i32, %c0_i32_0 : i32, i32
  }
  func.func @transform_2(%arg0: i32) -> (i32, i32) {
    %c0_i32 = arith.constant 0 : i32
    %c0_i32_0 = arith.constant 0 : i32
    %c0_i32_1 = arith.constant 0 : i32
    return %c0_i32, %c0_i32_0 : i32, i32
  }
  func.func @transform_3(%arg0: i32) -> (i32, i32) {
    %c0_i32 = arith.constant 0 : i32
    %c0_i32_0 = arith.constant 0 : i32
    %c0_i32_1 = arith.constant 0 : i32
    return %c0_i32, %c0_i32_0 : i32, i32
  }
}

module attributes {stable_mosaic.version = 11 : i64} {
  func.func @_gemm_bias_act_kernel(%arg0: i32, %arg1: memref<16x144xf32, #tpu.memory_space<vmem>>, %arg2: memref<144x128xf32, #tpu.memory_space<vmem>>, %arg3: memref<16x1xf32, #tpu.memory_space<vmem>>, %arg4: memref<16x128xf32, #tpu.memory_space<vmem>>) attributes {dimension_semantics = [#tpu.dimension_semantics<arbitrary>], iteration_bounds = array<i64: 1>, scalar_prefetch = 0 : i64, scratch_operands = 0 : i64, tpu.core_type = #tpu.core_type<tc>, window_params = [{pipeline_mode = #tpu.pipeline_mode<synchronous>, transform_indices = @transform_0, window_bounds = array<i64: 16, 144>}, {pipeline_mode = #tpu.pipeline_mode<synchronous>, transform_indices = @transform_1, window_bounds = array<i64: 144, 128>}, {pipeline_mode = #tpu.pipeline_mode<synchronous>, transform_indices = @transform_2, window_bounds = array<i64: 16, 1>}, {pipeline_mode = #tpu.pipeline_mode<synchronous>, transform_indices = @transform_3, window_bounds = array<i64: 16, 128>}]} {
    %c0 = arith.constant 0 : index
    %c0_0 = arith.constant 0 : index
    %0 = vector.load %arg1[%c0, %c0_0] : memref<16x144xf32, #tpu.memory_space<vmem>>, vector<16x144xf32>
    %c0_1 = arith.constant 0 : index
    %c0_2 = arith.constant 0 : index
    %1 = vector.load %arg2[%c0_1, %c0_2] : memref<144x128xf32, #tpu.memory_space<vmem>>, vector<144x128xf32>
    %cst = arith.constant dense<0.000000e+00> : vector<16x128xf32>
    %2 = tpu.matmul %0, %1, %cst {dimension_numbers = #tpu.dot_dimension_numbers<[1], [0], [0], [1], [0, 0, 1, 1], [], []>} : vector<16x144xf32>, vector<144x128xf32>, vector<16x128xf32> -> vector<16x128xf32>
    %c0_3 = arith.constant 0 : index
    %c0_4 = arith.constant 0 : index
    %3 = vector.load %arg3[%c0_3, %c0_4] : memref<16x1xf32, #tpu.memory_space<vmem>>, vector<16x1xf32>
    %4 = vector.broadcast %3 : vector<16x1xf32> to vector<16x128xf32>
    %5 = arith.addf %2, %4 : vector<16x128xf32>
    %cst_5 = arith.constant 0.000000e+00 : f32
    %6 = vector.broadcast %cst_5 : f32 to vector<16x128xf32>
    %7 = arith.maximumf %5, %6 : vector<16x128xf32>
    %c0_6 = arith.constant 0 : index
    %c0_7 = arith.constant 0 : index
    %8 = vector.load %arg4[%c0_6, %c0_7] : memref<16x128xf32, #tpu.memory_space<vmem>>, vector<16x128xf32>
    tpu.vector_store %arg4[%c0_6, %c0_7], %7 {strides = array<i32>} : memref<16x128xf32, #tpu.memory_space<vmem>>, vector<16x128xf32>,
    return
  }
  func.func @transform_0(%arg0: i32) -> (i32, i32) {
    %c0_i32 = arith.constant 0 : i32
    %c0_i32_0 = arith.constant 0 : i32
    %c0_i32_1 = arith.constant 0 : i32
    return %c0_i32, %c0_i32_0 : i32, i32
  }
  func.func @transform_1(%arg0: i32) -> (i32, i32) {
    %c0_i32 = arith.constant 0 : i32
    %c0_i32_0 = arith.constant 0 : i32
    %c0_i32_1 = arith.constant 0 : i32
    return %c0_i32, %c0_i32_0 : i32, i32
  }
  func.func @transform_2(%arg0: i32) -> (i32, i32) {
    %c0_i32 = arith.constant 0 : i32
    %c0_i32_0 = arith.constant 0 : i32
    %c0_i32_1 = arith.constant 0 : i32
    return %c0_i32, %c0_i32_0 : i32, i32
  }
  func.func @transform_3(%arg0: i32) -> (i32, i32) {
    %c0_i32 = arith.constant 0 : i32
    %c0_i32_0 = arith.constant 0 : i32
    %c0_i32_1 = arith.constant 0 : i32
    return %c0_i32, %c0_i32_0 : i32, i32
  }
}

module attributes {stable_mosaic.version = 11 : i64} {
  func.func @_pool_kernel(%arg0: i32, %arg1: memref<16x32xf32, #tpu.memory_space<vmem>>, %arg2: memref<16x32xf32, #tpu.memory_space<vmem>>, %arg3: memref<16x32xf32, #tpu.memory_space<vmem>>, %arg4: memref<16x32xf32, #tpu.memory_space<vmem>>, %arg5: memref<16x32xf32, #tpu.memory_space<vmem>>) attributes {dimension_semantics = [#tpu.dimension_semantics<arbitrary>], iteration_bounds = array<i64: 1>, scalar_prefetch = 0 : i64, scratch_operands = 0 : i64, tpu.core_type = #tpu.core_type<tc>, window_params = [{pipeline_mode = #tpu.pipeline_mode<synchronous>, transform_indices = @transform_0, window_bounds = array<i64: 16, 32>}, {pipeline_mode = #tpu.pipeline_mode<synchronous>, transform_indices = @transform_1, window_bounds = array<i64: 16, 32>}, {pipeline_mode = #tpu.pipeline_mode<synchronous>, transform_indices = @transform_2, window_bounds = array<i64: 16, 32>}, {pipeline_mode = #tpu.pipeline_mode<synchronous>, transform_indices = @transform_3, window_bounds = array<i64: 16, 32>}, {pipeline_mode = #tpu.pipeline_mode<synchronous>, transform_indices = @transform_4, window_bounds = array<i64: 16, 32>}]} {
    %c0 = arith.constant 0 : index
    %c0_0 = arith.constant 0 : index
    %0 = vector.load %arg1[%c0, %c0_0] : memref<16x32xf32, #tpu.memory_space<vmem>>, vector<16x32xf32>
    %c0_1 = arith.constant 0 : index
    %c0_2 = arith.constant 0 : index
    %1 = vector.load %arg2[%c0_1, %c0_2] : memref<16x32xf32, #tpu.memory_space<vmem>>, vector<16x32xf32>
    %c0_3 = arith.constant 0 : index
    %c0_4 = arith.constant 0 : index
    %2 = vector.load %arg3[%c0_3, %c0_4] : memref<16x32xf32, #tpu.memory_space<vmem>>, vector<16x32xf32>
    %c0_5 = arith.constant 0 : index
    %c0_6 = arith.constant 0 : index
    %3 = vector.load %arg4[%c0_5, %c0_6] : memref<16x32xf32, #tpu.memory_space<vmem>>, vector<16x32xf32>
    %4 = arith.addf %0, %1 : vector<16x32xf32>
    %5 = arith.addf %4, %2 : vector<16x32xf32>
    %6 = arith.addf %5, %3 : vector<16x32xf32>
    %cst = arith.constant 2.500000e-01 : f32
    %7 = vector.broadcast %cst : f32 to vector<16x32xf32>
    %8 = arith.mulf %6, %7 : vector<16x32xf32>
    %c0_7 = arith.constant 0 : index
    %c0_8 = arith.constant 0 : index
    %9 = vector.load %arg5[%c0_7, %c0_8] : memref<16x32xf32, #tpu.memory_space<vmem>>, vector<16x32xf32>
    tpu.vector_store %arg5[%c0_7, %c0_8], %8 {strides = array<i32>} : memref<16x32xf32, #tpu.memory_space<vmem>>, vector<16x32xf32>,
    return
  }
  func.func @transform_0(%arg0: i32) -> (i32, i32) {
    %c0_i32 = arith.constant 0 : i32
    %c0_i32_0 = arith.constant 0 : i32
    %c0_i32_1 = arith.constant 0 : i32
    return %c0_i32, %c0_i32_0 : i32, i32
  }
  func.func @transform_1(%arg0: i32) -> (i32, i32) {
    %c0_i32 = arith.constant 0 : i32
    %c0_i32_0 = arith.constant 0 : i32
    %c0_i32_1 = arith.constant 0 : i32
    return %c0_i32, %c0_i32_0 : i32, i32
  }
  func.func @transform_2(%arg0: i32) -> (i32, i32) {
    %c0_i32 = arith.constant 0 : i32
    %c0_i32_0 = arith.constant 0 : i32
    %c0_i32_1 = arith.constant 0 : i32
    return %c0_i32, %c0_i32_0 : i32, i32
  }
  func.func @transform_3(%arg0: i32) -> (i32, i32) {
    %c0_i32 = arith.constant 0 : i32
    %c0_i32_0 = arith.constant 0 : i32
    %c0_i32_1 = arith.constant 0 : i32
    return %c0_i32, %c0_i32_0 : i32, i32
  }
  func.func @transform_4(%arg0: i32) -> (i32, i32) {
    %c0_i32 = arith.constant 0 : i32
    %c0_i32_0 = arith.constant 0 : i32
    %c0_i32_1 = arith.constant 0 : i32
    return %c0_i32, %c0_i32_0 : i32, i32
  }
}

module attributes {stable_mosaic.version = 11 : i64} {
  func.func @_fc_stack_kernel(%arg0: i32, %arg1: memref<2x256xf32, #tpu.memory_space<vmem>>, %arg2: memref<256x120xf32, #tpu.memory_space<vmem>>, %arg3: memref<1x120xf32, #tpu.memory_space<vmem>>, %arg4: memref<120x84xf32, #tpu.memory_space<vmem>>, %arg5: memref<1x84xf32, #tpu.memory_space<vmem>>, %arg6: memref<84x10xf32, #tpu.memory_space<vmem>>, %arg7: memref<1x10xf32, #tpu.memory_space<vmem>>, %arg8: memref<10x96xf32, #tpu.memory_space<vmem>>, %arg9: memref<1x96xf32, #tpu.memory_space<vmem>>, %arg10: memref<96x96xf32, #tpu.memory_space<vmem>>, %arg11: memref<1x96xf32, #tpu.memory_space<vmem>>, %arg12: memref<2x96xf32, #tpu.memory_space<vmem>>) attributes {dimension_semantics = [#tpu.dimension_semantics<arbitrary>], iteration_bounds = array<i64: 1>, scalar_prefetch = 0 : i64, scratch_operands = 0 : i64, tpu.core_type = #tpu.core_type<tc>, window_params = [{pipeline_mode = #tpu.pipeline_mode<synchronous>, transform_indices = @transform_0, window_bounds = array<i64: 2, 256>}, {pipeline_mode = #tpu.pipeline_mode<synchronous>, transform_indices = @transform_1, window_bounds = array<i64: 256, 120>}, {pipeline_mode = #tpu.pipeline_mode<synchronous>, transform_indices = @transform_2, window_bounds = array<i64: 1, 120>}, {pipeline_mode = #tpu.pipeline_mode<synchronous>, transform_indices = @transform_3, window_bounds = array<i64: 120, 84>}, {pipeline_mode = #tpu.pipeline_mode<synchronous>, transform_indices = @transform_4, window_bounds = array<i64: 1, 84>}, {pipeline_mode = #tpu.pipeline_mode<synchronous>, transform_indices = @transform_5, window_bounds = array<i64: 84, 10>}, {pipeline_mode = #tpu.pipeline_mode<synchronous>, transform_indices = @transform_6, window_bounds = array<i64: 1, 10>}, {pipeline_mode = #tpu.pipeline_mode<synchronous>, transform_indices = @transform_7, window_bounds = array<i64: 10, 96>}, {pipeline_mode = #tpu.pipeline_mode<synchronous>, transform_indices = @transform_8, window_bounds = array<i64: 1, 96>}, {pipeline_mode = #tpu.pipeline_mode<synchronous>, transform_indices = @transform_9, window_bounds = array<i64: 96, 96>}, {pipeline_mode = #tpu.pipeline_mode<synchronous>, transform_indices = @transform_10, window_bounds = array<i64: 1, 96>}, {pipeline_mode = #tpu.pipeline_mode<synchronous>, transform_indices = @transform_11, window_bounds = array<i64: 2, 96>}]} {
    %c0 = arith.constant 0 : index
    %c0_0 = arith.constant 0 : index
    %0 = vector.load %arg1[%c0, %c0_0] : memref<2x256xf32, #tpu.memory_space<vmem>>, vector<2x256xf32>
    %c0_1 = arith.constant 0 : index
    %c0_2 = arith.constant 0 : index
    %1 = vector.load %arg2[%c0_1, %c0_2] : memref<256x120xf32, #tpu.memory_space<vmem>>, vector<256x120xf32>
    %c0_3 = arith.constant 0 : index
    %c0_4 = arith.constant 0 : index
    %2 = vector.load %arg3[%c0_3, %c0_4] : memref<1x120xf32, #tpu.memory_space<vmem>>, vector<1x120xf32>
    %cst = arith.constant dense<0.000000e+00> : vector<2x120xf32>
    %3 = tpu.matmul %0, %1, %cst {dimension_numbers = #tpu.dot_dimension_numbers<[1], [0], [0], [1], [0, 0, 1, 1], [], []>} : vector<2x256xf32>, vector<256x120xf32>, vector<2x120xf32> -> vector<2x120xf32>
    %4 = vector.broadcast %2 : vector<1x120xf32> to vector<2x120xf32>
    %5 = arith.addf %3, %4 : vector<2x120xf32>
    %cst_5 = arith.constant 0.000000e+00 : f32
    %6 = vector.broadcast %cst_5 : f32 to vector<2x120xf32>
    %7 = arith.maximumf %5, %6 : vector<2x120xf32>
    %c0_6 = arith.constant 0 : index
    %c0_7 = arith.constant 0 : index
    %8 = vector.load %arg4[%c0_6, %c0_7] : memref<120x84xf32, #tpu.memory_space<vmem>>, vector<120x84xf32>
    %c0_8 = arith.constant 0 : index
    %c0_9 = arith.constant 0 : index
    %9 = vector.load %arg5[%c0_8, %c0_9] : memref<1x84xf32, #tpu.memory_space<vmem>>, vector<1x84xf32>
    %cst_10 = arith.constant dense<0.000000e+00> : vector<2x84xf32>
    %10 = tpu.matmul %7, %8, %cst_10 {dimension_numbers = #tpu.dot_dimension_numbers<[1], [0], [0], [1], [0, 0, 1, 1], [], []>} : vector<2x120xf32>, vector<120x84xf32>, vector<2x84xf32> -> vector<2x84xf32>
    %11 = vector.broadcast %9 : vector<1x84xf32> to vector<2x84xf32>
    %12 = arith.addf %10, %11 : vector<2x84xf32>
    %cst_11 = arith.constant 0.000000e+00 : f32
    %13 = vector.broadcast %cst_11 : f32 to vector<2x84xf32>
    %14 = arith.maximumf %12, %13 : vector<2x84xf32>
    %c0_12 = arith.constant 0 : index
    %c0_13 = arith.constant 0 : index
    %15 = vector.load %arg6[%c0_12, %c0_13] : memref<84x10xf32, #tpu.memory_space<vmem>>, vector<84x10xf32>
    %c0_14 = arith.constant 0 : index
    %c0_15 = arith.constant 0 : index
    %16 = vector.load %arg7[%c0_14, %c0_15] : memref<1x10xf32, #tpu.memory_space<vmem>>, vector<1x10xf32>
    %cst_16 = arith.constant dense<0.000000e+00> : vector<2x10xf32>
    %17 = tpu.matmul %14, %15, %cst_16 {dimension_numbers = #tpu.dot_dimension_numbers<[1], [0], [0], [1], [0, 0, 1, 1], [], []>} : vector<2x84xf32>, vector<84x10xf32>, vector<2x10xf32> -> vector<2x10xf32>
    %18 = vector.broadcast %16 : vector<1x10xf32> to vector<2x10xf32>
    %19 = arith.addf %17, %18 : vector<2x10xf32>
    %c0_17 = arith.constant 0 : index
    %c0_18 = arith.constant 0 : index
    %20 = vector.load %arg8[%c0_17, %c0_18] : memref<10x96xf32, #tpu.memory_space<vmem>>, vector<10x96xf32>
    %c0_19 = arith.constant 0 : index
    %c0_20 = arith.constant 0 : index
    %21 = vector.load %arg9[%c0_19, %c0_20] : memref<1x96xf32, #tpu.memory_space<vmem>>, vector<1x96xf32>
    %cst_21 = arith.constant dense<0.000000e+00> : vector<2x96xf32>
    %22 = tpu.matmul %19, %20, %cst_21 {dimension_numbers = #tpu.dot_dimension_numbers<[1], [0], [0], [1], [0, 0, 1, 1], [], []>} : vector<2x10xf32>, vector<10x96xf32>, vector<2x96xf32> -> vector<2x96xf32>
    %23 = vector.broadcast %21 : vector<1x96xf32> to vector<2x96xf32>
    %24 = arith.addf %22, %23 : vector<2x96xf32>
    %cst_22 = arith.constant 0.000000e+00 : f32
    %25 = vector.broadcast %cst_22 : f32 to vector<2x96xf32>
    %26 = arith.maximumf %24, %25 : vector<2x96xf32>
    %c0_23 = arith.constant 0 : index
    %c0_24 = arith.constant 0 : index
    %27 = vector.load %arg10[%c0_23, %c0_24] : memref<96x96xf32, #tpu.memory_space<vmem>>, vector<96x96xf32>
    %c0_25 = arith.constant 0 : index
    %c0_26 = arith.constant 0 : index
    %28 = vector.load %arg11[%c0_25, %c0_26] : memref<1x96xf32, #tpu.memory_space<vmem>>, vector<1x96xf32>
    %cst_27 = arith.constant dense<0.000000e+00> : vector<2x96xf32>
    %29 = tpu.matmul %26, %27, %cst_27 {dimension_numbers = #tpu.dot_dimension_numbers<[1], [0], [0], [1], [0, 0, 1, 1], [], []>} : vector<2x96xf32>, vector<96x96xf32>, vector<2x96xf32> -> vector<2x96xf32>
    %30 = vector.broadcast %28 : vector<1x96xf32> to vector<2x96xf32>
    %31 = arith.addf %29, %30 : vector<2x96xf32>
    %c0_28 = arith.constant 0 : index
    %c0_29 = arith.constant 0 : index
    %32 = vector.load %arg12[%c0_28, %c0_29] : memref<2x96xf32, #tpu.memory_space<vmem>>, vector<2x96xf32>
    tpu.vector_store %arg12[%c0_28, %c0_29], %31 {strides = array<i32>} : memref<2x96xf32, #tpu.memory_space<vmem>>, vector<2x96xf32>,
    return
  }
  func.func @transform_0(%arg0: i32) -> (i32, i32) {
    %c0_i32 = arith.constant 0 : i32
    %c0_i32_0 = arith.constant 0 : i32
    %c0_i32_1 = arith.constant 0 : i32
    return %c0_i32, %c0_i32_0 : i32, i32
  }
  func.func @transform_1(%arg0: i32) -> (i32, i32) {
    %c0_i32 = arith.constant 0 : i32
    %c0_i32_0 = arith.constant 0 : i32
    %c0_i32_1 = arith.constant 0 : i32
    return %c0_i32, %c0_i32_0 : i32, i32
  }
  func.func @transform_2(%arg0: i32) -> (i32, i32) {
    %c0_i32 = arith.constant 0 : i32
    %c0_i32_0 = arith.constant 0 : i32
    %c0_i32_1 = arith.constant 0 : i32
    return %c0_i32, %c0_i32_0 : i32, i32
  }
  func.func @transform_3(%arg0: i32) -> (i32, i32) {
    %c0_i32 = arith.constant 0 : i32
    %c0_i32_0 = arith.constant 0 : i32
    %c0_i32_1 = arith.constant 0 : i32
    return %c0_i32, %c0_i32_0 : i32, i32
  }
  func.func @transform_4(%arg0: i32) -> (i32, i32) {
    %c0_i32 = arith.constant 0 : i32
    %c0_i32_0 = arith.constant 0 : i32
    %c0_i32_1 = arith.constant 0 : i32
    return %c0_i32, %c0_i32_0 : i32, i32
  }
  func.func @transform_5(%arg0: i32) -> (i32, i32) {
    %c0_i32 = arith.constant 0 : i32
    %c0_i32_0 = arith.constant 0 : i32
    %c0_i32_1 = arith.constant 0 : i32
    return %c0_i32, %c0_i32_0 : i32, i32
  }
  func.func @transform_6(%arg0: i32) -> (i32, i32) {
    %c0_i32 = arith.constant 0 : i32
    %c0_i32_0 = arith.constant 0 : i32
    %c0_i32_1 = arith.constant 0 : i32
    return %c0_i32, %c0_i32_0 : i32, i32
  }
  func.func @transform_7(%arg0: i32) -> (i32, i32) {
    %c0_i32 = arith.constant 0 : i32
    %c0_i32_0 = arith.constant 0 : i32
    %c0_i32_1 = arith.constant 0 : i32
    return %c0_i32, %c0_i32_0 : i32, i32
  }
  func.func @transform_8(%arg0: i32) -> (i32, i32) {
    %c0_i32 = arith.constant 0 : i32
    %c0_i32_0 = arith.constant 0 : i32
    %c0_i32_1 = arith.constant 0 : i32
    return %c0_i32, %c0_i32_0 : i32, i32
  }
  func.func @transform_9(%arg0: i32) -> (i32, i32) {
    %c0_i32 = arith.constant 0 : i32
    %c0_i32_0 = arith.constant 0 : i32
    %c0_i32_1 = arith.constant 0 : i32
    return %c0_i32, %c0_i32_0 : i32, i32
  }
  func.func @transform_10(%arg0: i32) -> (i32, i32) {
    %c0_i32 = arith.constant 0 : i32
    %c0_i32_0 = arith.constant 0 : i32
    %c0_i32_1 = arith.constant 0 : i32
    return %c0_i32, %c0_i32_0 : i32, i32
  }
  func.func @transform_11(%arg0: i32) -> (i32, i32) {
    %c0_i32 = arith.constant 0 : i32
    %c0_i32_0 = arith.constant 0 : i32
    %c0_i32_1 = arith.constant 0 : i32
    return %c0_i32, %c0_i32_0 : i32, i32
  }
}

module attributes {stable_mosaic.version = 11 : i64} {
  func.func @_gemm_bias_act_kernel(%arg0: i32, %arg1: memref<6x54xf32, #tpu.memory_space<vmem>>, %arg2: memref<54x288xf32, #tpu.memory_space<vmem>>, %arg3: memref<6x1xf32, #tpu.memory_space<vmem>>, %arg4: memref<6x288xf32, #tpu.memory_space<vmem>>) attributes {dimension_semantics = [#tpu.dimension_semantics<arbitrary>], iteration_bounds = array<i64: 1>, scalar_prefetch = 0 : i64, scratch_operands = 0 : i64, tpu.core_type = #tpu.core_type<tc>, window_params = [{pipeline_mode = #tpu.pipeline_mode<synchronous>, transform_indices = @transform_0, window_bounds = array<i64: 6, 54>}, {pipeline_mode = #tpu.pipeline_mode<synchronous>, transform_indices = @transform_1, window_bounds = array<i64: 54, 288>}, {pipeline_mode = #tpu.pipeline_mode<synchronous>, transform_indices = @transform_2, window_bounds = array<i64: 6, 1>}, {pipeline_mode = #tpu.pipeline_mode<synchronous>, transform_indices = @transform_3, window_bounds = array<i64: 6, 288>}]} {
    %c0 = arith.constant 0 : index
    %c0_0 = arith.constant 0 : index
    %0 = vector.load %arg1[%c0, %c0_0] : memref<6x54xf32, #tpu.memory_space<vmem>>, vector<6x54xf32>
    %c0_1 = arith.constant 0 : index
    %c0_2 = arith.constant 0 : index
    %1 = vector.load %arg2[%c0_1, %c0_2] : memref<54x288xf32, #tpu.memory_space<vmem>>, vector<54x288xf32>
    %cst = arith.constant dense<0.000000e+00> : vector<6x288xf32>
    %2 = tpu.matmul %0, %1, %cst {dimension_numbers = #tpu.dot_dimension_numbers<[1], [0], [0], [1], [0, 0, 1, 1], [], []>} : vector<6x54xf32>, vector<54x288xf32>, vector<6x288xf32> -> vector<6x288xf32>
    %c0_3 = arith.constant 0 : index
    %c0_4 = arith.constant 0 : index
    %3 = vector.load %arg3[%c0_3, %c0_4] : memref<6x1xf32, #tpu.memory_space<vmem>>, vector<6x1xf32>
    %4 = vector.broadcast %3 : vector<6x1xf32> to vector<6x288xf32>
    %5 = arith.addf %2, %4 : vector<6x288xf32>
    %cst_5 = arith.constant 0.000000e+00 : f32
    %6 = vector.broadcast %cst_5 : f32 to vector<6x288xf32>
    %7 = arith.maximumf %5, %6 : vector<6x288xf32>
    %c0_6 = arith.constant 0 : index
    %c0_7 = arith.constant 0 : index
    %8 = vector.load %arg4[%c0_6, %c0_7] : memref<6x288xf32, #tpu.memory_space<vmem>>, vector<6x288xf32>
    tpu.vector_store %arg4[%c0_6, %c0_7], %7 {strides = array<i32>} : memref<6x288xf32, #tpu.memory_space<vmem>>, vector<6x288xf32>,
    return
  }
  func.func @transform_0(%arg0: i32) -> (i32, i32) {
    %c0_i32 = arith.constant 0 : i32
    %c0_i32_0 = arith.constant 0 : i32
    %c0_i32_1 = arith.constant 0 : i32
    return %c0_i32, %c0_i32_0 : i32, i32
  }
  func.func @transform_1(%arg0: i32) -> (i32, i32) {
    %c0_i32 = arith.constant 0 : i32
    %c0_i32_0 = arith.constant 0 : i32
    %c0_i32_1 = arith.constant 0 : i32
    return %c0_i32, %c0_i32_0 : i32, i32
  }
  func.func @transform_2(%arg0: i32) -> (i32, i32) {
    %c0_i32 = arith.constant 0 : i32
    %c0_i32_0 = arith.constant 0 : i32
    %c0_i32_1 = arith.constant 0 : i32
    return %c0_i32, %c0_i32_0 : i32, i32
  }
  func.func @transform_3(%arg0: i32) -> (i32, i32) {
    %c0_i32 = arith.constant 0 : i32
    %c0_i32_0 = arith.constant 0 : i32
    %c0_i32_1 = arith.constant 0 : i32
    return %c0_i32, %c0_i32_0 : i32, i32
  }
}

module attributes {stable_mosaic.version = 11 : i64} {
  func.func @_gemm_bias_act_kernel(%arg0: i32, %arg1: memref<6x150xf32, #tpu.memory_space<vmem>>, %arg2: memref<150x1250xf32, #tpu.memory_space<vmem>>, %arg3: memref<6x1xf32, #tpu.memory_space<vmem>>, %arg4: memref<6x1250xf32, #tpu.memory_space<vmem>>) attributes {dimension_semantics = [#tpu.dimension_semantics<arbitrary>], iteration_bounds = array<i64: 1>, scalar_prefetch = 0 : i64, scratch_operands = 0 : i64, tpu.core_type = #tpu.core_type<tc>, window_params = [{pipeline_mode = #tpu.pipeline_mode<synchronous>, transform_indices = @transform_0, window_bounds = array<i64: 6, 150>}, {pipeline_mode = #tpu.pipeline_mode<synchronous>, transform_indices = @transform_1, window_bounds = array<i64: 150, 1250>}, {pipeline_mode = #tpu.pipeline_mode<synchronous>, transform_indices = @transform_2, window_bounds = array<i64: 6, 1>}, {pipeline_mode = #tpu.pipeline_mode<synchronous>, transform_indices = @transform_3, window_bounds = array<i64: 6, 1250>}]} {
    %c0 = arith.constant 0 : index
    %c0_0 = arith.constant 0 : index
    %0 = vector.load %arg1[%c0, %c0_0] : memref<6x150xf32, #tpu.memory_space<vmem>>, vector<6x150xf32>
    %c0_1 = arith.constant 0 : index
    %c0_2 = arith.constant 0 : index
    %1 = vector.load %arg2[%c0_1, %c0_2] : memref<150x1250xf32, #tpu.memory_space<vmem>>, vector<150x1250xf32>
    %cst = arith.constant dense<0.000000e+00> : vector<6x1250xf32>
    %2 = tpu.matmul %0, %1, %cst {dimension_numbers = #tpu.dot_dimension_numbers<[1], [0], [0], [1], [0, 0, 1, 1], [], []>} : vector<6x150xf32>, vector<150x1250xf32>, vector<6x1250xf32> -> vector<6x1250xf32>
    %c0_3 = arith.constant 0 : index
    %c0_4 = arith.constant 0 : index
    %3 = vector.load %arg3[%c0_3, %c0_4] : memref<6x1xf32, #tpu.memory_space<vmem>>, vector<6x1xf32>
    %4 = vector.broadcast %3 : vector<6x1xf32> to vector<6x1250xf32>
    %5 = arith.addf %2, %4 : vector<6x1250xf32>
    %cst_5 = arith.constant 0.000000e+00 : f32
    %6 = vector.broadcast %cst_5 : f32 to vector<6x1250xf32>
    %7 = arith.maximumf %5, %6 : vector<6x1250xf32>
    %c0_6 = arith.constant 0 : index
    %c0_7 = arith.constant 0 : index
    %8 = vector.load %arg4[%c0_6, %c0_7] : memref<6x1250xf32, #tpu.memory_space<vmem>>, vector<6x1250xf32>
    tpu.vector_store %arg4[%c0_6, %c0_7], %7 {strides = array<i32>} : memref<6x1250xf32, #tpu.memory_space<vmem>>, vector<6x1250xf32>,
    return
  }
  func.func @transform_0(%arg0: i32) -> (i32, i32) {
    %c0_i32 = arith.constant 0 : i32
    %c0_i32_0 = arith.constant 0 : i32
    %c0_i32_1 = arith.constant 0 : i32
    return %c0_i32, %c0_i32_0 : i32, i32
  }
  func.func @transform_1(%arg0: i32) -> (i32, i32) {
    %c0_i32 = arith.constant 0 : i32
    %c0_i32_0 = arith.constant 0 : i32
    %c0_i32_1 = arith.constant 0 : i32
    return %c0_i32, %c0_i32_0 : i32, i32
  }
  func.func @transform_2(%arg0: i32) -> (i32, i32) {
    %c0_i32 = arith.constant 0 : i32
    %c0_i32_0 = arith.constant 0 : i32
    %c0_i32_1 = arith.constant 0 : i32
    return %c0_i32, %c0_i32_0 : i32, i32
  }
  func.func @transform_3(%arg0: i32) -> (i32, i32) {
    %c0_i32 = arith.constant 0 : i32
    %c0_i32_0 = arith.constant 0 : i32
    %c0_i32_1 = arith.constant 0 : i32
    return %c0_i32, %c0_i32_0 : i32, i32
  }
}

module attributes {stable_mosaic.version = 11 : i64} {
  func.func @_gemm_bias_act_kernel(%arg0: i32, %arg1: memref<6x150xf32, #tpu.memory_space<vmem>>, %arg2: memref<150x1458xf32, #tpu.memory_space<vmem>>, %arg3: memref<6x1xf32, #tpu.memory_space<vmem>>, %arg4: memref<6x1458xf32, #tpu.memory_space<vmem>>) attributes {dimension_semantics = [#tpu.dimension_semantics<arbitrary>], iteration_bounds = array<i64: 1>, scalar_prefetch = 0 : i64, scratch_operands = 0 : i64, tpu.core_type = #tpu.core_type<tc>, window_params = [{pipeline_mode = #tpu.pipeline_mode<synchronous>, transform_indices = @transform_0, window_bounds = array<i64: 6, 150>}, {pipeline_mode = #tpu.pipeline_mode<synchronous>, transform_indices = @transform_1, window_bounds = array<i64: 150, 1458>}, {pipeline_mode = #tpu.pipeline_mode<synchronous>, transform_indices = @transform_2, window_bounds = array<i64: 6, 1>}, {pipeline_mode = #tpu.pipeline_mode<synchronous>, transform_indices = @transform_3, window_bounds = array<i64: 6, 1458>}]} {
    %c0 = arith.constant 0 : index
    %c0_0 = arith.constant 0 : index
    %0 = vector.load %arg1[%c0, %c0_0] : memref<6x150xf32, #tpu.memory_space<vmem>>, vector<6x150xf32>
    %c0_1 = arith.constant 0 : index
    %c0_2 = arith.constant 0 : index
    %1 = vector.load %arg2[%c0_1, %c0_2] : memref<150x1458xf32, #tpu.memory_space<vmem>>, vector<150x1458xf32>
    %cst = arith.constant dense<0.000000e+00> : vector<6x1458xf32>
    %2 = tpu.matmul %0, %1, %cst {dimension_numbers = #tpu.dot_dimension_numbers<[1], [0], [0], [1], [0, 0, 1, 1], [], []>} : vector<6x150xf32>, vector<150x1458xf32>, vector<6x1458xf32> -> vector<6x1458xf32>
    %c0_3 = arith.constant 0 : index
    %c0_4 = arith.constant 0 : index
    %3 = vector.load %arg3[%c0_3, %c0_4] : memref<6x1xf32, #tpu.memory_space<vmem>>, vector<6x1xf32>
    %4 = vector.broadcast %3 : vector<6x1xf32> to vector<6x1458xf32>
    %5 = arith.addf %2, %4 : vector<6x1458xf32>
    %cst_5 = arith.constant 0.000000e+00 : f32
    %6 = vector.broadcast %cst_5 : f32 to vector<6x1458xf32>
    %7 = arith.maximumf %5, %6 : vector<6x1458xf32>
    %c0_6 = arith.constant 0 : index
    %c0_7 = arith.constant 0 : index
    %8 = vector.load %arg4[%c0_6, %c0_7] : memref<6x1458xf32, #tpu.memory_space<vmem>>, vector<6x1458xf32>
    tpu.vector_store %arg4[%c0_6, %c0_7], %7 {strides = array<i32>} : memref<6x1458xf32, #tpu.memory_space<vmem>>, vector<6x1458xf32>,
    return
  }
  func.func @transform_0(%arg0: i32) -> (i32, i32) {
    %c0_i32 = arith.constant 0 : i32
    %c0_i32_0 = arith.constant 0 : i32
    %c0_i32_1 = arith.constant 0 : i32
    return %c0_i32, %c0_i32_0 : i32, i32
  }
  func.func @transform_1(%arg0: i32) -> (i32, i32) {
    %c0_i32 = arith.constant 0 : i32
    %c0_i32_0 = arith.constant 0 : i32
    %c0_i32_1 = arith.constant 0 : i32
    return %c0_i32, %c0_i32_0 : i32, i32
  }
  func.func @transform_2(%arg0: i32) -> (i32, i32) {
    %c0_i32 = arith.constant 0 : i32
    %c0_i32_0 = arith.constant 0 : i32
    %c0_i32_1 = arith.constant 0 : i32
    return %c0_i32, %c0_i32_0 : i32, i32
  }
  func.func @transform_3(%arg0: i32) -> (i32, i32) {
    %c0_i32 = arith.constant 0 : i32
    %c0_i32_0 = arith.constant 0 : i32
    %c0_i32_1 = arith.constant 0 : i32
    return %c0_i32, %c0_i32_0 : i32, i32
  }
}

module attributes {stable_mosaic.version = 11 : i64} {
  func.func @_gemm_bias_act_kernel(%arg0: i32, %arg1: memref<6x96xf32, #tpu.memory_space<vmem>>, %arg2: memref<96x1568xf32, #tpu.memory_space<vmem>>, %arg3: memref<6x1xf32, #tpu.memory_space<vmem>>, %arg4: memref<6x1568xf32, #tpu.memory_space<vmem>>) attributes {dimension_semantics = [#tpu.dimension_semantics<arbitrary>], iteration_bounds = array<i64: 1>, scalar_prefetch = 0 : i64, scratch_operands = 0 : i64, tpu.core_type = #tpu.core_type<tc>, window_params = [{pipeline_mode = #tpu.pipeline_mode<synchronous>, transform_indices = @transform_0, window_bounds = array<i64: 6, 96>}, {pipeline_mode = #tpu.pipeline_mode<synchronous>, transform_indices = @transform_1, window_bounds = array<i64: 96, 1568>}, {pipeline_mode = #tpu.pipeline_mode<synchronous>, transform_indices = @transform_2, window_bounds = array<i64: 6, 1>}, {pipeline_mode = #tpu.pipeline_mode<synchronous>, transform_indices = @transform_3, window_bounds = array<i64: 6, 1568>}]} {
    %c0 = arith.constant 0 : index
    %c0_0 = arith.constant 0 : index
    %0 = vector.load %arg1[%c0, %c0_0] : memref<6x96xf32, #tpu.memory_space<vmem>>, vector<6x96xf32>
    %c0_1 = arith.constant 0 : index
    %c0_2 = arith.constant 0 : index
    %1 = vector.load %arg2[%c0_1, %c0_2] : memref<96x1568xf32, #tpu.memory_space<vmem>>, vector<96x1568xf32>
    %cst = arith.constant dense<0.000000e+00> : vector<6x1568xf32>
    %2 = tpu.matmul %0, %1, %cst {dimension_numbers = #tpu.dot_dimension_numbers<[1], [0], [0], [1], [0, 0, 1, 1], [], []>} : vector<6x96xf32>, vector<96x1568xf32>, vector<6x1568xf32> -> vector<6x1568xf32>
    %c0_3 = arith.constant 0 : index
    %c0_4 = arith.constant 0 : index
    %3 = vector.load %arg3[%c0_3, %c0_4] : memref<6x1xf32, #tpu.memory_space<vmem>>, vector<6x1xf32>
    %4 = vector.broadcast %3 : vector<6x1xf32> to vector<6x1568xf32>
    %5 = arith.addf %2, %4 : vector<6x1568xf32>
    %cst_5 = arith.constant 0.000000e+00 : f32
    %6 = vector.broadcast %cst_5 : f32 to vector<6x1568xf32>
    %7 = arith.maximumf %5, %6 : vector<6x1568xf32>
    %c0_6 = arith.constant 0 : index
    %c0_7 = arith.constant 0 : index
    %8 = vector.load %arg4[%c0_6, %c0_7] : memref<6x1568xf32, #tpu.memory_space<vmem>>, vector<6x1568xf32>
    tpu.vector_store %arg4[%c0_6, %c0_7], %7 {strides = array<i32>} : memref<6x1568xf32, #tpu.memory_space<vmem>>, vector<6x1568xf32>,
    return
  }
  func.func @transform_0(%arg0: i32) -> (i32, i32) {
    %c0_i32 = arith.constant 0 : i32
    %c0_i32_0 = arith.constant 0 : i32
    %c0_i32_1 = arith.constant 0 : i32
    return %c0_i32, %c0_i32_0 : i32, i32
  }
  func.func @transform_1(%arg0: i32) -> (i32, i32) {
    %c0_i32 = arith.constant 0 : i32
    %c0_i32_0 = arith.constant 0 : i32
    %c0_i32_1 = arith.constant 0 : i32
    return %c0_i32, %c0_i32_0 : i32, i32
  }
  func.func @transform_2(%arg0: i32) -> (i32, i32) {
    %c0_i32 = arith.constant 0 : i32
    %c0_i32_0 = arith.constant 0 : i32
    %c0_i32_1 = arith.constant 0 : i32
    return %c0_i32, %c0_i32_0 : i32, i32
  }
  func.func @transform_3(%arg0: i32) -> (i32, i32) {
    %c0_i32 = arith.constant 0 : i32
    %c0_i32_0 = arith.constant 0 : i32
    %c0_i32_1 = arith.constant 0 : i32
    return %c0_i32, %c0_i32_0 : i32, i32
  }
}

module attributes {stable_mosaic.version = 11 : i64} {
  func.func @_gemm_bias_act_kernel(%arg0: i32, %arg1: memref<6x54xf32, #tpu.memory_space<vmem>>, %arg2: memref<54x1568xf32, #tpu.memory_space<vmem>>, %arg3: memref<6x1xf32, #tpu.memory_space<vmem>>, %arg4: memref<6x1568xf32, #tpu.memory_space<vmem>>) attributes {dimension_semantics = [#tpu.dimension_semantics<arbitrary>], iteration_bounds = array<i64: 1>, scalar_prefetch = 0 : i64, scratch_operands = 0 : i64, tpu.core_type = #tpu.core_type<tc>, window_params = [{pipeline_mode = #tpu.pipeline_mode<synchronous>, transform_indices = @transform_0, window_bounds = array<i64: 6, 54>}, {pipeline_mode = #tpu.pipeline_mode<synchronous>, transform_indices = @transform_1, window_bounds = array<i64: 54, 1568>}, {pipeline_mode = #tpu.pipeline_mode<synchronous>, transform_indices = @transform_2, window_bounds = array<i64: 6, 1>}, {pipeline_mode = #tpu.pipeline_mode<synchronous>, transform_indices = @transform_3, window_bounds = array<i64: 6, 1568>}]} {
    %c0 = arith.constant 0 : index
    %c0_0 = arith.constant 0 : index
    %0 = vector.load %arg1[%c0, %c0_0] : memref<6x54xf32, #tpu.memory_space<vmem>>, vector<6x54xf32>
    %c0_1 = arith.constant 0 : index
    %c0_2 = arith.constant 0 : index
    %1 = vector.load %arg2[%c0_1, %c0_2] : memref<54x1568xf32, #tpu.memory_space<vmem>>, vector<54x1568xf32>
    %cst = arith.constant dense<0.000000e+00> : vector<6x1568xf32>
    %2 = tpu.matmul %0, %1, %cst {dimension_numbers = #tpu.dot_dimension_numbers<[1], [0], [0], [1], [0, 0, 1, 1], [], []>} : vector<6x54xf32>, vector<54x1568xf32>, vector<6x1568xf32> -> vector<6x1568xf32>
    %c0_3 = arith.constant 0 : index
    %c0_4 = arith.constant 0 : index
    %3 = vector.load %arg3[%c0_3, %c0_4] : memref<6x1xf32, #tpu.memory_space<vmem>>, vector<6x1xf32>
    %4 = vector.broadcast %3 : vector<6x1xf32> to vector<6x1568xf32>
    %5 = arith.addf %2, %4 : vector<6x1568xf32>
    %cst_5 = arith.constant 0.000000e+00 : f32
    %6 = vector.broadcast %cst_5 : f32 to vector<6x1568xf32>
    %7 = arith.maximumf %5, %6 : vector<6x1568xf32>
    %c0_6 = arith.constant 0 : index
    %c0_7 = arith.constant 0 : index
    %8 = vector.load %arg4[%c0_6, %c0_7] : memref<6x1568xf32, #tpu.memory_space<vmem>>, vector<6x1568xf32>
    tpu.vector_store %arg4[%c0_6, %c0_7], %7 {strides = array<i32>} : memref<6x1568xf32, #tpu.memory_space<vmem>>, vector<6x1568xf32>,
    return
  }
  func.func @transform_0(%arg0: i32) -> (i32, i32) {
    %c0_i32 = arith.constant 0 : i32
    %c0_i32_0 = arith.constant 0 : i32
    %c0_i32_1 = arith.constant 0 : i32
    return %c0_i32, %c0_i32_0 : i32, i32
  }
  func.func @transform_1(%arg0: i32) -> (i32, i32) {
    %c0_i32 = arith.constant 0 : i32
    %c0_i32_0 = arith.constant 0 : i32
    %c0_i32_1 = arith.constant 0 : i32
    return %c0_i32, %c0_i32_0 : i32, i32
  }
  func.func @transform_2(%arg0: i32) -> (i32, i32) {
    %c0_i32 = arith.constant 0 : i32
    %c0_i32_0 = arith.constant 0 : i32
    %c0_i32_1 = arith.constant 0 : i32
    return %c0_i32, %c0_i32_0 : i32, i32
  }
  func.func @transform_3(%arg0: i32) -> (i32, i32) {
    %c0_i32 = arith.constant 0 : i32
    %c0_i32_0 = arith.constant 0 : i32
    %c0_i32_1 = arith.constant 0 : i32
    return %c0_i32, %c0_i32_0 : i32, i32
  }
}

module attributes {stable_mosaic.version = 11 : i64} {
  func.func @_gemm_bias_act_kernel(%arg0: i32, %arg1: memref<1x54xf32, #tpu.memory_space<vmem>>, %arg2: memref<54x1568xf32, #tpu.memory_space<vmem>>, %arg3: memref<1x1xf32, #tpu.memory_space<vmem>>, %arg4: memref<1x1568xf32, #tpu.memory_space<vmem>>) attributes {dimension_semantics = [#tpu.dimension_semantics<arbitrary>], iteration_bounds = array<i64: 1>, scalar_prefetch = 0 : i64, scratch_operands = 0 : i64, tpu.core_type = #tpu.core_type<tc>, window_params = [{pipeline_mode = #tpu.pipeline_mode<synchronous>, transform_indices = @transform_0, window_bounds = array<i64: 1, 54>}, {pipeline_mode = #tpu.pipeline_mode<synchronous>, transform_indices = @transform_1, window_bounds = array<i64: 54, 1568>}, {pipeline_mode = #tpu.pipeline_mode<synchronous>, transform_indices = @transform_2, window_bounds = array<i64: 1, 1>}, {pipeline_mode = #tpu.pipeline_mode<synchronous>, transform_indices = @transform_3, window_bounds = array<i64: 1, 1568>}]} {
    %c0 = arith.constant 0 : index
    %c0_0 = arith.constant 0 : index
    %0 = vector.load %arg1[%c0, %c0_0] : memref<1x54xf32, #tpu.memory_space<vmem>>, vector<1x54xf32>
    %c0_1 = arith.constant 0 : index
    %c0_2 = arith.constant 0 : index
    %1 = vector.load %arg2[%c0_1, %c0_2] : memref<54x1568xf32, #tpu.memory_space<vmem>>, vector<54x1568xf32>
    %cst = arith.constant dense<0.000000e+00> : vector<1x1568xf32>
    %2 = tpu.matmul %0, %1, %cst {dimension_numbers = #tpu.dot_dimension_numbers<[1], [0], [0], [1], [0, 0, 1, 1], [], []>} : vector<1x54xf32>, vector<54x1568xf32>, vector<1x1568xf32> -> vector<1x1568xf32>
    %c0_3 = arith.constant 0 : index
    %c0_4 = arith.constant 0 : index
    %3 = vector.load %arg3[%c0_3, %c0_4] : memref<1x1xf32, #tpu.memory_space<vmem>>, vector<1x1xf32>
    %4 = vector.broadcast %3 : vector<1x1xf32> to vector<1x1568xf32>
    %5 = arith.addf %2, %4 : vector<1x1568xf32>
    %6 = math.tanh %5 : vector<1x1568xf32>
    %c0_5 = arith.constant 0 : index
    %c0_6 = arith.constant 0 : index
    %7 = vector.load %arg4[%c0_5, %c0_6] : memref<1x1568xf32, #tpu.memory_space<vmem>>, vector<1x1568xf32>
    tpu.vector_store %arg4[%c0_5, %c0_6], %6 {strides = array<i32>} : memref<1x1568xf32, #tpu.memory_space<vmem>>, vector<1x1568xf32>,
    return
  }
  func.func @transform_0(%arg0: i32) -> (i32, i32) {
    %c0_i32 = arith.constant 0 : i32
    %c0_i32_0 = arith.constant 0 : i32
    %c0_i32_1 = arith.constant 0 : i32
    return %c0_i32, %c0_i32_0 : i32, i32
  }
  func.func @transform_1(%arg0: i32) -> (i32, i32) {
    %c0_i32 = arith.constant 0 : i32
    %c0_i32_0 = arith.constant 0 : i32
    %c0_i32_1 = arith.constant 0 : i32
    return %c0_i32, %c0_i32_0 : i32, i32
  }
  func.func @transform_2(%arg0: i32) -> (i32, i32) {
    %c0_i32 = arith.constant 0 : i32
    %c0_i32_0 = arith.constant 0 : i32
    %c0_i32_1 = arith.constant 0 : i32
    return %c0_i32, %c0_i32_0 : i32, i32
  }
  func.func @transform_3(%arg0: i32) -> (i32, i32) {
    %c0_i32 = arith.constant 0 : i32
    %c0_i32_0 = arith.constant 0 : i32
    %c0_i32_1 = arith.constant 0 : i32
    return %c0_i32, %c0_i32_0 : i32, i32
  }
}

</mosaic_0001>

<llo_original>
// kernel: encoder_decoder.13
$region0: #{encoder_decoder.13}
  #allocation0 [shape = 'u32[]', space=smem, size = 0x4, offset = 0x4, fixed_abs, tag = 'smem constant byte address 0x4 - core index']
  #allocation1 [shape = 'u32[144,128]{1,0:T(1,128)}', space=vmem, size = 0x12000, scoped, tag = 'internal scratch']
  %s0 = inlined_call_operand.vmem [shape: f32[6,25], index: 0, kind: input, shape index: {}]
  %s1 = inlined_call_operand.vmem [shape: f32[25,1152], index: 1, kind: input, shape index: {}]
  %s2 = inlined_call_operand.vmem [shape: f32[6,1], index: 2, kind: input, shape index: {}]
  %s3 = inlined_call_operand.vmem [shape: f32[6,1152], index: 3, kind: output, shape index: {}]
  %s4 = sld [smem:[#allocation0]]
  $region22: #{encoder_decoder.13} parent=0
    _
  %s6 = ssub.s32 1, %s4
  %s7 = scalar_select 0, %s6, %s4
  // Predicated region
  $region2: #{encoder_decoder.13} parent=0 // pred_check
    _
  $region3: #{encoder_decoder.13} parent=0 // pred_check_branch
    %9 = sbr.rel (0) target = $region5
  $region4: #{encoder_decoder.13} parent=0 // pred_region
    _
  $region5: #{encoder_decoder.13} parent=0 // pred_fallthru
    _
  // Predicated region
  $region6: #{encoder_decoder.13} parent=0 // pred_check
    _
  $region7: #{encoder_decoder.13} parent=0 // pred_check_branch
    %11 = sbr.rel (0) target = $region9
  $region8: #{encoder_decoder.13} parent=0 // pred_region
    _
  $region9: #{encoder_decoder.13} parent=0 // pred_fallthru
    _
  // Predicated region
  $region10: #{encoder_decoder.13} parent=0 // pred_check
    _
  $region11: #{encoder_decoder.13} parent=0 // pred_check_branch
    %13 = sbr.rel (0) target = $region13
  $region12: #{encoder_decoder.13} parent=0 // pred_region
    _
  $region13: #{encoder_decoder.13} parent=0 // pred_fallthru
    _
  %v14 = vld [vmem:[%s0] sm:$0x3f]
  %v15 = vld [vmem:[%s1] sm:$0xff]
  %v16 = vld [vmem:[%s1 + $0x8] sm:$0xff]
  %v17 = vld [vmem:[%s1 + $0x10] sm:$0xff]
  %v18 = vld [vmem:[%s1 + $0x18] sm:$0xff]
  %v19 = vld [vmem:[%s1 + $0x20] sm:$0xff]
  %v20 = vld [vmem:[%s1 + $0x28] sm:$0xff]
  %v21 = vld [vmem:[%s1 + $0x30] sm:$0xff]
  %v22 = vld [vmem:[%s1 + $0x38] sm:$0xff]
  %v23 = vld [vmem:[%s1 + $0x40] sm:$0xff]
  %v24 = vld [vmem:[%s1 + $0x48] sm:$0xff]
  %v25 = vld [vmem:[%s1 + $0x50] sm:$0xff]
  %v26 = vld [vmem:[%s1 + $0x58] sm:$0xff]
  %v27 = vld [vmem:[%s1 + $0x60] sm:$0xff]
  %v28 = vld [vmem:[%s1 + $0x68] sm:$0xff]
  %v29 = vld [vmem:[%s1 + $0x70] sm:$0xff]
  %v30 = vld [vmem:[%s1 + $0x78] sm:$0xff]
  %v31 = vld [vmem:[%s1 + $0x80] sm:$0xff]
  %v32 = vld [vmem:[%s1 + $0x88] sm:$0xff]
  %v33 = vld [vmem:[%s1 + $0x90] sm:$0xff]
  %v34 = vld [vmem:[%s1 + $0x98] sm:$0xff]
  %v35 = vld [vmem:[%s1 + $0xa0] sm:$0xff]
  %v36 = vld [vmem:[%s1 + $0xa8] sm:$0xff]
  %v37 = vld [vmem:[%s1 + $0xb0] sm:$0xff]
  %v38 = vld [vmem:[%s1 + $0xb8] sm:$0xff]
  %v39 = vld [vmem:[%s1 + $0xc0] sm:$0xff]
  %v40 = vld [vmem:[%s1 + $0xc8] sm:$0xff]
  %v41 = vld [vmem:[%s1 + $0xd0] sm:$0xff]
  %v42 = vld [vmem:[%s1 + $0xd8] sm:$0x1]
  %v43 = vld [vmem:[%s1 + $0xe0] sm:$0x1]
  %v44 = vld [vmem:[%s1 + $0xe8] sm:$0x1]
  %v45 = vld [vmem:[%s1 + $0xf0] sm:$0x1]
  %v46 = vld [vmem:[%s1 + $0xf8] sm:$0x1]
  %v47 = vld [vmem:[%s1 + $0x100] sm:$0x1]
  %v48 = vld [vmem:[%s1 + $0x108] sm:$0x1]
  %v49 = vld [vmem:[%s1 + $0x110] sm:$0x1]
  %v50 = vld [vmem:[%s1 + $0x118] sm:$0x1]
  %v51 = vld [vmem:[%s2] sm:$0x3f]
  %53 = vset.pattern.permute.xlu0 0
  %54 = vperm.xlu0 %53, %v51
  %v55 = vpop.permute.xlu0 %54
  %vm57 = vcmask 203776
  %v59 = vsel %vm57, %v14, 0
  %vm61 = vcmask 1040384
  %v63 = vsel %vm61, %v42, 0
  %v66 = vsel %vm61, %v43, 0
  %v69 = vsel %vm61, %v44, 0
  %v72 = vsel %vm61, %v45, 0
  %v75 = vsel %vm61, %v46, 0
  %v78 = vsel %vm61, %v47, 0
  %v81 = vsel %vm61, %v48, 0
  %v84 = vsel %vm61, %v49, 0
  %v87 = vsel %vm61, %v50, 0
  %89 = vmatprep.subr.mxu0 %v16
  %90 = vmatpush1.msra.mxu0 %v15
  %91 = vmatprep.subr.mxu0 %v25
  %92 = vmatpush1.msra.mxu0 %v24
  %93 = vmatprep.subr.mxu0 %v34
  %94 = vmatpush1.msra.mxu0 %v33
  %95 = vmatprep.subr.mxu0 %v66
  %96 = vmatpush1.msra.mxu0 %v63
  %97 = vmatprep.subr.mxu0 0.0
  %98 = vmatpush1.msra.mxu0 0.0
  %99 = vmatprep.subr.mxu0 0.0
  %100 = vmatpush1.msra.mxu0 0.0
  %101 = vmatprep.subr.mxu0 0.0
  %102 = vmatpush1.msra.mxu0 0.0
  %103 = vmatprep.subr.mxu0 0.0
  %104 = vmatpush1.msra.mxu0 0.0
  %105 = vmatprep.subr.mxu0 0.0
  %106 = vmatpush1.msra.mxu0 0.0
  %107 = vmatprep.subr.mxu0 0.0
  %108 = vmatpush1.msra.mxu0 0.0
  %109 = vmatprep.subr.mxu0 0.0
  %110 = vmatpush1.msra.mxu0 0.0
  %111 = vmatprep.subr.mxu0 0.0
  %112 = vmatpush1.msra.mxu0 0.0
  %113 = vmatprep.subr.mxu0 0.0
  %114 = vmatpush1.msra.mxu0 0.0
  %115 = vmatprep.subr.mxu0 0.0
  %116 = vmatpush1.msra.mxu0 0.0
  %117 = vmatprep.subr.mxu0 0.0
  %118 = vmatpush1.msra.mxu0 0.0
  %119 = vmatprep.subr.mxu0 0.0
  %120 = vmatpush1.msra.mxu0 0.0
  %121 = vmatprep.subr.mxu0 0.0
  %122 = vmatpush1.msra.mxu0 0.0
  %123 = vmatprep.subr.mxu0 0.0
  %124 = vmatpush1.msra.mxu0 0.0
  %125 = vmatprep.subr.mxu0 0.0
  %126 = vmatpush1.msra.mxu0 0.0
  %127 = vmatprep.subr.mxu0 0.0
  %128 = vmatpush1.msra.mxu0 0.0
  %129 = vmatprep.subr.mxu0 0.0
  %130 = vmatpush1.msra.mxu0 0.0
  %131 = vmatprep.subr.mxu0 0.0
  %132 = vmatpush1.msra.mxu0 0.0
  %133 = vmatprep.subr.mxu0 0.0
  %134 = vmatpush1.msra.mxu0 0.0
  %135 = vmatprep.subr.mxu0 0.0
  %136 = vmatpush1.msra.mxu0 0.0
  %137 = vmatprep.subr.mxu0 0.0
  %138 = vmatpush1.msra.mxu0 0.0
  %139 = vmatprep.subr.mxu0 0.0
  %140 = vmatpush1.msra.mxu0 0.0
  %141 = vmatprep.subr.mxu0 0.0
  %142 = vmatpush1.msra.mxu0 0.0
  %143 = vmatprep.subr.mxu0 0.0
  %144 = vmatpush1.msra.mxu0 0.0
  %145 = vmatprep.subr.mxu0 0.0
  %146 = vmatpush1.msra.mxu0 0.0
  %147 = vmatprep.subr.mxu0 0.0
  %148 = vmatpush1.msra.mxu0 0.0
  %149 = vmatprep.subr.mxu0 0.0
  %150 = vmatpush1.msra.mxu0 0.0
  %151 = vmatprep.subr.mxu0 0.0
  %152 = vmatpush1.msra.mxu0 0.0
  %153 = vmatprep.mubr.f32.mxu0 0.0
  %154 = vmatmul.mubr.f32.gmra.mrb[0].mxu0 %v59
  %v155 = vpop.f32.mrb[0].mxu0
  %v156 = vadd.f32 %v55, %v155
  %v157 = vpop.f32.mrb[0].mxu0
  %v158 = vadd.f32 %v55, %v157
  %159 = vdwg.mxu0
  %160 = vmatprep.subr.mxu0 %v18
  %161 = vmatpush1.msra.mxu0 %v17
  %162 = vmatprep.subr.mxu0 %v27
  %163 = vmatpush1.msra.mxu0 %v26
  %164 = vmatprep.subr.mxu0 %v36
  %165 = vmatpush1.msra.mxu0 %v35
  %166 = vmatprep.subr.mxu0 %v72
  %167 = vmatpush1.msra.mxu0 %v69
  %168 = vmatprep.subr.mxu0 0.0
  %169 = vmatpush1.msra.mxu0 0.0
  %170 = vmatprep.subr.mxu0 0.0
  %171 = vmatpush1.msra.mxu0 0.0
  %172 = vmatprep.subr.mxu0 0.0
  %173 = vmatpush1.msra.mxu0 0.0
  %174 = vmatprep.subr.mxu0 0.0
  %175 = vmatpush1.msra.mxu0 0.0
  %176 = vmatprep.subr.mxu0 0.0
  %177 = vmatpush1.msra.mxu0 0.0
  %178 = vmatprep.subr.mxu0 0.0
  %179 = vmatpush1.msra.mxu0 0.0
  %180 = vmatprep.subr.mxu0 0.0
  %181 = vmatpush1.msra.mxu0 0.0
  %182 = vmatprep.subr.mxu0 0.0
  %183 = vmatpush1.msra.mxu0 0.0
  %184 = vmatprep.subr.mxu0 0.0
  %185 = vmatpush1.msra.mxu0 0.0
  %186 = vmatprep.subr.mxu0 0.0
  %187 = vmatpush1.msra.mxu0 0.0
  %188 = vmatprep.subr.mxu0 0.0
  %189 = vmatpush1.msra.mxu0 0.0
  %190 = vmatprep.subr.mxu0 0.0
  %191 = vmatpush1.msra.mxu0 0.0
  %192 = vmatprep.subr.mxu0 0.0
  %193 = vmatpush1.msra.mxu0 0.0
  %194 = vmatprep.subr.mxu0 0.0
  %195 = vmatpush1.msra.mxu0 0.0
  %196 = vmatprep.subr.mxu0 0.0
  %197 = vmatpush1.msra.mxu0 0.0
  %198 = vmatprep.subr.mxu0 0.0
  %199 = vmatpush1.msra.mxu0 0.0
  %200 = vmatprep.subr.mxu0 0.0
  %201 = vmatpush1.msra.mxu0 0.0
  %202 = vmatprep.subr.mxu0 0.0
  %203 = vmatpush1.msra.mxu0 0.0
  %204 = vmatprep.subr.mxu0 0.0
  %205 = vmatpush1.msra.mxu0 0.0
  %206 = vmatprep.subr.mxu0 0.0
  %207 = vmatpush1.msra.mxu0 0.0
  %208 = vmatprep.subr.mxu0 0.0
  %209 = vmatpush1.msra.mxu0 0.0
  %210 = vmatprep.subr.mxu0 0.0
  %211 = vmatpush1.msra.mxu0 0.0
  %212 = vmatprep.subr.mxu0 0.0
  %213 = vmatpush1.msra.mxu0 0.0
  %214 = vmatprep.subr.mxu0 0.0
  %215 = vmatpush1.msra.mxu0 0.0
  %216 = vmatprep.subr.mxu0 0.0
  %217 = vmatpush1.msra.mxu0 0.0
  %218 = vmatprep.subr.mxu0 0.0
  %219 = vmatpush1.msra.mxu0 0.0
  %220 = vmatprep.subr.mxu0 0.0
  %221 = vmatpush1.msra.mxu0 0.0
  %222 = vmatprep.subr.mxu0 0.0
  %223 = vmatpush1.msra.mxu0 0.0
  %224 = vmatprep.mubr.f32.mxu0 0.0
  %225 = vmatmul.mubr.f32.gmra.mrb[0].mxu0 %v59
  %v226 = vpop.f32.mrb[0].mxu0
  %v227 = vadd.f32 %v55, %v226
  %v228 = vpop.f32.mrb[0].mxu0
  %v229 = vadd.f32 %v55, %v228
  %230 = vdwg.mxu0
  %231 = vmatprep.subr.mxu0 %v20
  %232 = vmatpush1.msra.mxu0 %v19
  %233 = vmatprep.subr.mxu0 %v29
  %234 = vmatpush1.msra.mxu0 %v28
  %235 = vmatprep.subr.mxu0 %v38
  %236 = vmatpush1.msra.mxu0 %v37
  %237 = vmatprep.subr.mxu0 %v78
  %238 = vmatpush1.msra.mxu0 %v75
  %239 = vmatprep.subr.mxu0 0.0
  %240 = vmatpush1.msra.mxu0 0.0
  %241 = vmatprep.subr.mxu0 0.0
  %242 = vmatpush1.msra.mxu0 0.0
  %243 = vmatprep.subr.mxu0 0.0
  %244 = vmatpush1.msra.mxu0 0.0
  %245 = vmatprep.subr.mxu0 0.0
  %246 = vmatpush1.msra.mxu0 0.0
  %247 = vmatprep.subr.mxu0 0.0
  %248 = vmatpush1.msra.mxu0 0.0
  %249 = vmatprep.subr.mxu0 0.0
  %250 = vmatpush1.msra.mxu0 0.0
  %251 = vmatprep.subr.mxu0 0.0
  %252 = vmatpush1.msra.mxu0 0.0
  %253 = vmatprep.subr.mxu0 0.0
  %254 = vmatpush1.msra.mxu0 0.0
  %255 = vmatprep.subr.mxu0 0.0
  %256 = vmatpush1.msra.mxu0 0.0
  %257 = vmatprep.subr.mxu0 0.0
  %258 = vmatpush1.msra.mxu0 0.0
  %259 = vmatprep.subr.mxu0 0.0
  %260 = vmatpush1.msra.mxu0 0.0
  %261 = vmatprep.subr.mxu0 0.0
  %262 = vmatpush1.msra.mxu0 0.0
  %263 = vmatprep.subr.mxu0 0.0
  %264 = vmatpush1.msra.mxu0 0.0
  %265 = vmatprep.subr.mxu0 0.0
  %266 = vmatpush1.msra.mxu0 0.0
  %267 = vmatprep.subr.mxu0 0.0
  %268 = vmatpush1.msra.mxu0 0.0
  %269 = vmatprep.subr.mxu0 0.0
  %270 = vmatpush1.msra.mxu0 0.0
  %271 = vmatprep.subr.mxu0 0.0
  %272 = vmatpush1.msra.mxu0 0.0
  %273 = vmatprep.subr.mxu0 0.0
  %274 = vmatpush1.msra.mxu0 0.0
  %275 = vmatprep.subr.mxu0 0.0
  %276 = vmatpush1.msra.mxu0 0.0
  %277 = vmatprep.subr.mxu0 0.0
  %278 = vmatpush1.msra.mxu0 0.0
  %279 = vmatprep.subr.mxu0 0.0
  %280 = vmatpush1.msra.mxu0 0.0
  %281 = vmatprep.subr.mxu0 0.0
  %282 = vmatpush1.msra.mxu0 0.0
  %283 = vmatprep.subr.mxu0 0.0
  %284 = vmatpush1.msra.mxu0 0.0
  %285 = vmatprep.subr.mxu0 0.0
  %286 = vmatpush1.msra.mxu0 0.0
  %287 = vmatprep.subr.mxu0 0.0
  %288 = vmatpush1.msra.mxu0 0.0
  %289 = vmatprep.subr.mxu0 0.0
  %290 = vmatpush1.msra.mxu0 0.0
  %291 = vmatprep.subr.mxu0 0.0
  %292 = vmatpush1.msra.mxu0 0.0
  %293 = vmatprep.subr.mxu0 0.0
  %294 = vmatpush1.msra.mxu0 0.0
  %295 = vmatprep.mubr.f32.mxu0 0.0
  %296 = vmatmul.mubr.f32.gmra.mrb[0].mxu0 %v59
  %v297 = vpop.f32.mrb[0].mxu0
  %v298 = vadd.f32 %v55, %v297
  %v299 = vpop.f32.mrb[0].mxu0
  %v300 = vadd.f32 %v55, %v299
  %301 = vdwg.mxu0
  %302 = vmatprep.subr.mxu0 %v22
  %303 = vmatpush1.msra.mxu0 %v21
  %304 = vmatprep.subr.mxu0 %v31
  %305 = vmatpush1.msra.mxu0 %v30
  %306 = vmatprep.subr.mxu0 %v40
  %307 = vmatpush1.msra.mxu0 %v39
  %308 = vmatprep.subr.mxu0 %v84
  %309 = vmatpush1.msra.mxu0 %v81
  %310 = vmatprep.subr.mxu0 0.0
  %311 = vmatpush1.msra.mxu0 0.0
  %312 = vmatprep.subr.mxu0 0.0
  %313 = vmatpush1.msra.mxu0 0.0
  %314 = vmatprep.subr.mxu0 0.0
  %315 = vmatpush1.msra.mxu0 0.0
  %316 = vmatprep.subr.mxu0 0.0
  %317 = vmatpush1.msra.mxu0 0.0
  %318 = vmatprep.subr.mxu0 0.0
  %319 = vmatpush1.msra.mxu0 0.0
  %320 = vmatprep.subr.mxu0 0.0
  %321 = vmatpush1.msra.mxu0 0.0
  %322 = vmatprep.subr.mxu0 0.0
  %323 = vmatpush1.msra.mxu0 0.0
  %324 = vmatprep.subr.mxu0 0.0
  %325 = vmatpush1.msra.mxu0 0.0
  %326 = vmatprep.subr.mxu0 0.0
  %327 = vmatpush1.msra.mxu0 0.0
  %328 = vmatprep.subr.mxu0 0.0
  %329 = vmatpush1.msra.mxu0 0.0
  %330 = vmatprep.subr.mxu0 0.0
  %331 = vmatpush1.msra.mxu0 0.0
  %332 = vmatprep.subr.mxu0 0.0
  %333 = vmatpush1.msra.mxu0 0.0
  %334 = vmatprep.subr.mxu0 0.0
  %335 = vmatpush1.msra.mxu0 0.0
  %336 = vmatprep.subr.mxu0 0.0
  %337 = vmatpush1.msra.mxu0 0.0
  %338 = vmatprep.subr.mxu0 0.0
  %339 = vmatpush1.msra.mxu0 0.0
  %340 = vmatprep.subr.mxu0 0.0
  %341 = vmatpush1.msra.mxu0 0.0
  %342 = vmatprep.subr.mxu0 0.0
  %343 = vmatpush1.msra.mxu0 0.0
  %344 = vmatprep.subr.mxu0 0.0
  %345 = vmatpush1.msra.mxu0 0.0
  %346 = vmatprep.subr.mxu0 0.0
  %347 = vmatpush1.msra.mxu0 0.0
  %348 = vmatprep.subr.mxu0 0.0
  %349 = vmatpush1.msra.mxu0 0.0
  %350 = vmatprep.subr.mxu0 0.0
  %351 = vmatpush1.msra.mxu0 0.0
  %352 = vmatprep.subr.mxu0 0.0
  %353 = vmatpush1.msra.mxu0 0.0
  %354 = vmatprep.subr.mxu0 0.0
  %355 = vmatpush1.msra.mxu0 0.0
  %356 = vmatprep.subr.mxu0 0.0
  %357 = vmatpush1.msra.mxu0 0.0
  %358 = vmatprep.subr.mxu0 0.0
  %359 = vmatpush1.msra.mxu0 0.0
  %360 = vmatprep.subr.mxu0 0.0
  %361 = vmatpush1.msra.mxu0 0.0
  %362 = vmatprep.subr.mxu0 0.0
  %363 = vmatpush1.msra.mxu0 0.0
  %364 = vmatprep.subr.mxu0 0.0
  %365 = vmatpush1.msra.mxu0 0.0
  %366 = vmatprep.mubr.f32.mxu0 0.0
  %367 = vmatmul.mubr.f32.gmra.mrb[0].mxu0 %v59
  %v368 = vpop.f32.mrb[0].mxu0
  %v369 = vadd.f32 %v55, %v368
  %v370 = vpop.f32.mrb[0].mxu0
  %v371 = vadd.f32 %v55, %v370
  %372 = vdwg.mxu0
  %373 = vmatprep.subr.mxu0 0.0
  %374 = vmatpush1.msra.mxu0 %v23
  %375 = vmatprep.subr.mxu0 0.0
  %376 = vmatpush1.msra.mxu0 %v32
  %377 = vmatprep.subr.mxu0 0.0
  %378 = vmatpush1.msra.mxu0 %v41
  %379 = vmatprep.subr.mxu0 0.0
  %380 = vmatpush1.msra.mxu0 %v87
  %381 = vmatprep.subr.mxu0 0.0
  %382 = vmatpush1.msra.mxu0 0.0
  %383 = vmatprep.subr.mxu0 0.0
  %384 = vmatpush1.msra.mxu0 0.0
  %385 = vmatprep.subr.mxu0 0.0
  %386 = vmatpush1.msra.mxu0 0.0
  %387 = vmatprep.subr.mxu0 0.0
  %388 = vmatpush1.msra.mxu0 0.0
  %389 = vmatprep.subr.mxu0 0.0
  %390 = vmatpush1.msra.mxu0 0.0
  %391 = vmatprep.subr.mxu0 0.0
  %392 = vmatpush1.msra.mxu0 0.0
  %393 = vmatprep.subr.mxu0 0.0
  %394 = vmatpush1.msra.mxu0 0.0
  %395 = vmatprep.subr.mxu0 0.0
  %396 = vmatpush1.msra.mxu0 0.0
  %397 = vmatprep.subr.mxu0 0.0
  %398 = vmatpush1.msra.mxu0 0.0
  %399 = vmatprep.subr.mxu0 0.0
  %400 = vmatpush1.msra.mxu0 0.0
  %401 = vmatprep.subr.mxu0 0.0
  %402 = vmatpush1.msra.mxu0 0.0
  %403 = vmatprep.subr.mxu0 0.0
  %404 = vmatpush1.msra.mxu0 0.0
  %405 = vmatprep.subr.mxu0 0.0
  %406 = vmatpush1.msra.mxu0 0.0
  %407 = vmatprep.subr.mxu0 0.0
  %408 = vmatpush1.msra.mxu0 0.0
  %409 = vmatprep.subr.mxu0 0.0
  %410 = vmatpush1.msra.mxu0 0.0
  %411 = vmatprep.subr.mxu0 0.0
  %412 = vmatpush1.msra.mxu0 0.0
  %413 = vmatprep.subr.mxu0 0.0
  %414 = vmatpush1.msra.mxu0 0.0
  %415 = vmatprep.subr.mxu0 0.0
  %416 = vmatpush1.msra.mxu0 0.0
  %417 = vmatprep.subr.mxu0 0.0
  %418 = vmatpush1.msra.mxu0 0.0
  %419 = vmatprep.subr.mxu0 0.0
  %420 = vmatpush1.msra.mxu0 0.0
  %421 = vmatprep.subr.mxu0 0.0
  %422 = vmatpush1.msra.mxu0 0.0
  %423 = vmatprep.subr.mxu0 0.0
  %424 = vmatpush1.msra.mxu0 0.0
  %425 = vmatprep.subr.mxu0 0.0
  %426 = vmatpush1.msra.mxu0 0.0
  %427 = vmatprep.subr.mxu0 0.0
  %428 = vmatpush1.msra.mxu0 0.0
  %429 = vmatprep.subr.mxu0 0.0
  %430 = vmatpush1.msra.mxu0 0.0
  %431 = vmatprep.subr.mxu0 0.0
  %432 = vmatpush1.msra.mxu0 0.0
  %433 = vmatprep.subr.mxu0 0.0
  %434 = vmatpush1.msra.mxu0 0.0
  %435 = vmatprep.subr.mxu0 0.0
  %436 = vmatpush1.msra.mxu0 0.0
  %437 = vmatprep.mubr.f32.mxu0 0.0
  %438 = vmatmul.mubr.f32.gmra.mrb[0].mxu0 %v59
  %v439 = vpop.f32.mrb[0].mxu0
  %v440 = vadd.f32 %v55, %v439
  %v441 = vpop.f32.mrb[0].mxu0
  %442 = vdwg.mxu0
  %v443 = vmax.f32 %v156, 0.0
  %v444 = vmax.f32 %v158, 0.0
  %v445 = vmax.f32 %v227, 0.0
  %v446 = vmax.f32 %v229, 0.0
  %v447 = vmax.f32 %v298, 0.0
  %v448 = vmax.f32 %v300, 0.0
  %v449 = vmax.f32 %v369, 0.0
  %v450 = vmax.f32 %v371, 0.0
  %v451 = vmax.f32 %v440, 0.0
  %452 = vst [vmem:[%s3] sm:$0x3f] %v443
  %453 = vst [vmem:[%s3 + $0x8] sm:$0x3f] %v444
  %454 = vst [vmem:[%s3 + $0x10] sm:$0x3f] %v445
  %455 = vst [vmem:[%s3 + $0x18] sm:$0x3f] %v446
  %456 = vst [vmem:[%s3 + $0x20] sm:$0x3f] %v447
  %457 = vst [vmem:[%s3 + $0x28] sm:$0x3f] %v448
  %458 = vst [vmem:[%s3 + $0x30] sm:$0x3f] %v449
  %459 = vst [vmem:[%s3 + $0x38] sm:$0x3f] %v450
  %460 = vst [vmem:[%s3 + $0x40] sm:$0x3f] %v451
  // Predicated region
  $region14: #{encoder_decoder.13} parent=0 // pred_check
    _
  $region15: #{encoder_decoder.13} parent=0 // pred_check_branch
    %462 = sbr.rel (0) target = $region17
  $region16: #{encoder_decoder.13} parent=0 // pred_region
    _
  $region17: #{encoder_decoder.13} parent=0 // pred_fallthru
    _
  // Predicated region
  $region18: #{encoder_decoder.13} parent=0 // pred_check
    _
  $region19: #{encoder_decoder.13} parent=0 // pred_check_branch
    %464 = sbr.rel (0) target = $region21
  $region20: #{encoder_decoder.13} parent=0 // pred_region
    _
  $region21: #{encoder_decoder.13} parent=0 // pred_fallthru
    _

// kernel: encoder_decoder.14
$region0: #{encoder_decoder.14}
  #allocation0 [shape = 'u32[]', space=smem, size = 0x4, offset = 0x4, fixed_abs, tag = 'smem constant byte address 0x4 - core index']
  #allocation1 [shape = 'u32[144,128]{1,0:T(1,128)}', space=vmem, size = 0x12000, scoped, tag = 'internal scratch']
  %s0 = inlined_call_operand.vmem [shape: f32[6,54], index: 0, kind: input, shape index: {}]
  %s1 = inlined_call_operand.vmem [shape: f32[54,1152], index: 1, kind: input, shape index: {}]
  %s2 = inlined_call_operand.vmem [shape: f32[6,1], index: 2, kind: input, shape index: {}]
  %s3 = inlined_call_operand.vmem [shape: f32[6,1152], index: 3, kind: output, shape index: {}]
  %s4 = sld [smem:[#allocation0]]
  $region22: #{encoder_decoder.14} parent=0
    _
  %s6 = ssub.s32 1, %s4
  %s7 = scalar_select 0, %s6, %s4
  // Predicated region
  $region2: #{encoder_decoder.14} parent=0 // pred_check
    _
  $region3: #{encoder_decoder.14} parent=0 // pred_check_branch
    %9 = sbr.rel (0) target = $region5
  $region4: #{encoder_decoder.14} parent=0 // pred_region
    _
  $region5: #{encoder_decoder.14} parent=0 // pred_fallthru
    _
  // Predicated region
  $region6: #{encoder_decoder.14} parent=0 // pred_check
    _
  $region7: #{encoder_decoder.14} parent=0 // pred_check_branch
    %11 = sbr.rel (0) target = $region9
  $region8: #{encoder_decoder.14} parent=0 // pred_region
    _
  $region9: #{encoder_decoder.14} parent=0 // pred_fallthru
    _
  // Predicated region
  $region10: #{encoder_decoder.14} parent=0 // pred_check
    _
  $region11: #{encoder_decoder.14} parent=0 // pred_check_branch
    %13 = sbr.rel (0) target = $region13
  $region12: #{encoder_decoder.14} parent=0 // pred_region
    _
  $region13: #{encoder_decoder.14} parent=0 // pred_fallthru
    _
  %v14 = vld [vmem:[%s0] sm:$0x3f]
  %v15 = vld [vmem:[%s1] sm:$0xff]
  %v16 = vld [vmem:[%s1 + $0x8] sm:$0xff]
  %v17 = vld [vmem:[%s1 + $0x10] sm:$0xff]
  %v18 = vld [vmem:[%s1 + $0x18] sm:$0xff]
  %v19 = vld [vmem:[%s1 + $0x20] sm:$0xff]
  %v20 = vld [vmem:[%s1 + $0x28] sm:$0xff]
  %v21 = vld [vmem:[%s1 + $0x30] sm:$0xff]
  %v22 = vld [vmem:[%s1 + $0x38] sm:$0xff]
  %v23 = vld [vmem:[%s1 + $0x40] sm:$0xff]
  %v24 = vld [vmem:[%s1 + $0x48] sm:$0xff]
  %v25 = vld [vmem:[%s1 + $0x50] sm:$0xff]
  %v26 = vld [vmem:[%s1 + $0x58] sm:$0xff]
  %v27 = vld [vmem:[%s1 + $0x60] sm:$0xff]
  %v28 = vld [vmem:[%s1 + $0x68] sm:$0xff]
  %v29 = vld [vmem:[%s1 + $0x70] sm:$0xff]
  %v30 = vld [vmem:[%s1 + $0x78] sm:$0xff]
  %v31 = vld [vmem:[%s1 + $0x80] sm:$0xff]
  %v32 = vld [vmem:[%s1 + $0x88] sm:$0xff]
  %v33 = vld [vmem:[%s1 + $0x90] sm:$0xff]
  %v34 = vld [vmem:[%s1 + $0x98] sm:$0xff]
  %v35 = vld [vmem:[%s1 + $0xa0] sm:$0xff]
  %v36 = vld [vmem:[%s1 + $0xa8] sm:$0xff]
  %v37 = vld [vmem:[%s1 + $0xb0] sm:$0xff]
  %v38 = vld [vmem:[%s1 + $0xb8] sm:$0xff]
  %v39 = vld [vmem:[%s1 + $0xc0] sm:$0xff]
  %v40 = vld [vmem:[%s1 + $0xc8] sm:$0xff]
  %v41 = vld [vmem:[%s1 + $0xd0] sm:$0xff]
  %v42 = vld [vmem:[%s1 + $0xd8] sm:$0xff]
  %v43 = vld [vmem:[%s1 + $0xe0] sm:$0xff]
  %v44 = vld [vmem:[%s1 + $0xe8] sm:$0xff]
  %v45 = vld [vmem:[%s1 + $0xf0] sm:$0xff]
  %v46 = vld [vmem:[%s1 + $0xf8] sm:$0xff]
  %v47 = vld [vmem:[%s1 + $0x100] sm:$0xff]
  %v48 = vld [vmem:[%s1 + $0x108] sm:$0xff]
  %v49 = vld [vmem:[%s1 + $0x110] sm:$0xff]
  %v50 = vld [vmem:[%s1 + $0x118] sm:$0xff]
  %v51 = vld [vmem:[%s1 + $0x120] sm:$0xff]
  %v52 = vld [vmem:[%s1 + $0x128] sm:$0xff]
  %v53 = vld [vmem:[%s1 + $0x130] sm:$0xff]
  %v54 = vld [vmem:[%s1 + $0x138] sm:$0xff]
  %v55 = vld [vmem:[%s1 + $0x140] sm:$0xff]
  %v56 = vld [vmem:[%s1 + $0x148] sm:$0xff]
  %v57 = vld [vmem:[%s1 + $0x150] sm:$0xff]
  %v58 = vld [vmem:[%s1 + $0x158] sm:$0xff]
  %v59 = vld [vmem:[%s1 + $0x160] sm:$0xff]
  %v60 = vld [vmem:[%s1 + $0x168] sm:$0xff]
  %v61 = vld [vmem:[%s1 + $0x170] sm:$0xff]
  %v62 = vld [vmem:[%s1 + $0x178] sm:$0xff]
  %v63 = vld [vmem:[%s1 + $0x180] sm:$0xff]
  %v64 = vld [vmem:[%s1 + $0x188] sm:$0xff]
  %v65 = vld [vmem:[%s1 + $0x190] sm:$0xff]
  %v66 = vld [vmem:[%s1 + $0x198] sm:$0xff]
  %v67 = vld [vmem:[%s1 + $0x1a0] sm:$0xff]
  %v68 = vld [vmem:[%s1 + $0x1a8] sm:$0xff]
  %v69 = vld [vmem:[%s1 + $0x1b0] sm:$0x3f]
  %v70 = vld [vmem:[%s1 + $0x1b8] sm:$0x3f]
  %v71 = vld [vmem:[%s1 + $0x1c0] sm:$0x3f]
  %v72 = vld [vmem:[%s1 + $0x1c8] sm:$0x3f]
  %v73 = vld [vmem:[%s1 + $0x1d0] sm:$0x3f]
  %v74 = vld [vmem:[%s1 + $0x1d8] sm:$0x3f]
  %v75 = vld [vmem:[%s1 + $0x1e0] sm:$0x3f]
  %v76 = vld [vmem:[%s1 + $0x1e8] sm:$0x3f]
  %v77 = vld [vmem:[%s1 + $0x1f0] sm:$0x3f]
  %v78 = vld [vmem:[%s2] sm:$0x3f]
  %80 = vset.pattern.permute.xlu0 0
  %81 = vperm.xlu0 %80, %v78
  %v82 = vpop.permute.xlu0 %81
  %vm84 = vcmask 441344
  %v86 = vsel %vm84, %v14, 0
  %vm88 = vcmask 1045504
  %v90 = vsel %vm88, %v69, 0
  %v93 = vsel %vm88, %v70, 0
  %v96 = vsel %vm88, %v71, 0
  %v99 = vsel %vm88, %v72, 0
  %v102 = vsel %vm88, %v73, 0
  %v105 = vsel %vm88, %v74, 0
  %v108 = vsel %vm88, %v75, 0
  %v111 = vsel %vm88, %v76, 0
  %v114 = vsel %vm88, %v77, 0
  %116 = vmatprep.subr.mxu0 %v16
  %117 = vmatpush1.msra.mxu0 %v15
  %118 = vmatprep.subr.mxu0 %v25
  %119 = vmatpush1.msra.mxu0 %v24
  %120 = vmatprep.subr.mxu0 %v34
  %121 = vmatpush1.msra.mxu0 %v33
  %122 = vmatprep.subr.mxu0 %v43
  %123 = vmatpush1.msra.mxu0 %v42
  %124 = vmatprep.subr.mxu0 %v52
  %125 = vmatpush1.msra.mxu0 %v51
  %126 = vmatprep.subr.mxu0 %v61
  %127 = vmatpush1.msra.mxu0 %v60
  %128 = vmatprep.subr.mxu0 %v93
  %129 = vmatpush1.msra.mxu0 %v90
  %130 = vmatprep.subr.mxu0 0.0
  %131 = vmatpush1.msra.mxu0 0.0
  %132 = vmatprep.subr.mxu0 0.0
  %133 = vmatpush1.msra.mxu0 0.0
  %134 = vmatprep.subr.mxu0 0.0
  %135 = vmatpush1.msra.mxu0 0.0
  %136 = vmatprep.subr.mxu0 0.0
  %137 = vmatpush1.msra.mxu0 0.0
  %138 = vmatprep.subr.mxu0 0.0
  %139 = vmatpush1.msra.mxu0 0.0
  %140 = vmatprep.subr.mxu0 0.0
  %141 = vmatpush1.msra.mxu0 0.0
  %142 = vmatprep.subr.mxu0 0.0
  %143 = vmatpush1.msra.mxu0 0.0
  %144 = vmatprep.subr.mxu0 0.0
  %145 = vmatpush1.msra.mxu0 0.0
  %146 = vmatprep.subr.mxu0 0.0
  %147 = vmatpush1.msra.mxu0 0.0
  %148 = vmatprep.subr.mxu0 0.0
  %149 = vmatpush1.msra.mxu0 0.0
  %150 = vmatprep.subr.mxu0 0.0
  %151 = vmatpush1.msra.mxu0 0.0
  %152 = vmatprep.subr.mxu0 0.0
  %153 = vmatpush1.msra.mxu0 0.0
  %154 = vmatprep.subr.mxu0 0.0
  %155 = vmatpush1.msra.mxu0 0.0
  %156 = vmatprep.subr.mxu0 0.0
  %157 = vmatpush1.msra.mxu0 0.0
  %158 = vmatprep.subr.mxu0 0.0
  %159 = vmatpush1.msra.mxu0 0.0
  %160 = vmatprep.subr.mxu0 0.0
  %161 = vmatpush1.msra.mxu0 0.0
  %162 = vmatprep.subr.mxu0 0.0
  %163 = vmatpush1.msra.mxu0 0.0
  %164 = vmatprep.subr.mxu0 0.0
  %165 = vmatpush1.msra.mxu0 0.0
  %166 = vmatprep.subr.mxu0 0.0
  %167 = vmatpush1.msra.mxu0 0.0
  %168 = vmatprep.subr.mxu0 0.0
  %169 = vmatpush1.msra.mxu0 0.0
  %170 = vmatprep.subr.mxu0 0.0
  %171 = vmatpush1.msra.mxu0 0.0
  %172 = vmatprep.subr.mxu0 0.0
  %173 = vmatpush1.msra.mxu0 0.0
  %174 = vmatprep.subr.mxu0 0.0
  %175 = vmatpush1.msra.mxu0 0.0
  %176 = vmatprep.subr.mxu0 0.0
  %177 = vmatpush1.msra.mxu0 0.0
  %178 = vmatprep.subr.mxu0 0.0
  %179 = vmatpush1.msra.mxu0 0.0
  %180 = vmatprep.mubr.f32.mxu0 0.0
  %181 = vmatmul.mubr.f32.gmra.mrb[0].mxu0 %v86
  %v182 = vpop.f32.mrb[0].mxu0
  %v183 = vadd.f32 %v82, %v182
  %v184 = vpop.f32.mrb[0].mxu0
  %v185 = vadd.f32 %v82, %v184
  %186 = vdwg.mxu0
  %187 = vmatprep.subr.mxu0 %v18
  %188 = vmatpush1.msra.mxu0 %v17
  %189 = vmatprep.subr.mxu0 %v27
  %190 = vmatpush1.msra.mxu0 %v26
  %191 = vmatprep.subr.mxu0 %v36
  %192 = vmatpush1.msra.mxu0 %v35
  %193 = vmatprep.subr.mxu0 %v45
  %194 = vmatpush1.msra.mxu0 %v44
  %195 = vmatprep.subr.mxu0 %v54
  %196 = vmatpush1.msra.mxu0 %v53
  %197 = vmatprep.subr.mxu0 %v63
  %198 = vmatpush1.msra.mxu0 %v62
  %199 = vmatprep.subr.mxu0 %v99
  %200 = vmatpush1.msra.mxu0 %v96
  %201 = vmatprep.subr.mxu0 0.0
  %202 = vmatpush1.msra.mxu0 0.0
  %203 = vmatprep.subr.mxu0 0.0
  %204 = vmatpush1.msra.mxu0 0.0
  %205 = vmatprep.subr.mxu0 0.0
  %206 = vmatpush1.msra.mxu0 0.0
  %207 = vmatprep.subr.mxu0 0.0
  %208 = vmatpush1.msra.mxu0 0.0
  %209 = vmatprep.subr.mxu0 0.0
  %210 = vmatpush1.msra.mxu0 0.0
  %211 = vmatprep.subr.mxu0 0.0
  %212 = vmatpush1.msra.mxu0 0.0
  %213 = vmatprep.subr.mxu0 0.0
  %214 = vmatpush1.msra.mxu0 0.0
  %215 = vmatprep.subr.mxu0 0.0
  %216 = vmatpush1.msra.mxu0 0.0
  %217 = vmatprep.subr.mxu0 0.0
  %218 = vmatpush1.msra.mxu0 0.0
  %219 = vmatprep.subr.mxu0 0.0
  %220 = vmatpush1.msra.mxu0 0.0
  %221 = vmatprep.subr.mxu0 0.0
  %222 = vmatpush1.msra.mxu0 0.0
  %223 = vmatprep.subr.mxu0 0.0
  %224 = vmatpush1.msra.mxu0 0.0
  %225 = vmatprep.subr.mxu0 0.0
  %226 = vmatpush1.msra.mxu0 0.0
  %227 = vmatprep.subr.mxu0 0.0
  %228 = vmatpush1.msra.mxu0 0.0
  %229 = vmatprep.subr.mxu0 0.0
  %230 = vmatpush1.msra.mxu0 0.0
  %231 = vmatprep.subr.mxu0 0.0
  %232 = vmatpush1.msra.mxu0 0.0
  %233 = vmatprep.subr.mxu0 0.0
  %234 = vmatpush1.msra.mxu0 0.0
  %235 = vmatprep.subr.mxu0 0.0
  %236 = vmatpush1.msra.mxu0 0.0
  %237 = vmatprep.subr.mxu0 0.0
  %238 = vmatpush1.msra.mxu0 0.0
  %239 = vmatprep.subr.mxu0 0.0
  %240 = vmatpush1.msra.mxu0 0.0
  %241 = vmatprep.subr.mxu0 0.0
  %242 = vmatpush1.msra.mxu0 0.0
  %243 = vmatprep.subr.mxu0 0.0
  %244 = vmatpush1.msra.mxu0 0.0
  %245 = vmatprep.subr.mxu0 0.0
  %246 = vmatpush1.msra.mxu0 0.0
  %247 = vmatprep.subr.mxu0 0.0
  %248 = vmatpush1.msra.mxu0 0.0
  %249 = vmatprep.subr.mxu0 0.0
  %250 = vmatpush1.msra.mxu0 0.0
  %251 = vmatprep.mubr.f32.mxu0 0.0
  %252 = vmatmul.mubr.f32.gmra.mrb[0].mxu0 %v86
  %v253 = vpop.f32.mrb[0].mxu0
  %v254 = vadd.f32 %v82, %v253
  %v255 = vpop.f32.mrb[0].mxu0
  %v256 = vadd.f32 %v82, %v255
  %257 = vdwg.mxu0
  %258 = vmatprep.subr.mxu0 %v20
  %259 = vmatpush1.msra.mxu0 %v19
  %260 = vmatprep.subr.mxu0 %v29
  %261 = vmatpush1.msra.mxu0 %v28
  %262 = vmatprep.subr.mxu0 %v38
  %263 = vmatpush1.msra.mxu0 %v37
  %264 = vmatprep.subr.mxu0 %v47
  %265 = vmatpush1.msra.mxu0 %v46
  %266 = vmatprep.subr.mxu0 %v56
  %267 = vmatpush1.msra.mxu0 %v55
  %268 = vmatprep.subr.mxu0 %v65
  %269 = vmatpush1.msra.mxu0 %v64
  %270 = vmatprep.subr.mxu0 %v105
  %271 = vmatpush1.msra.mxu0 %v102
  %272 = vmatprep.subr.mxu0 0.0
  %273 = vmatpush1.msra.mxu0 0.0
  %274 = vmatprep.subr.mxu0 0.0
  %275 = vmatpush1.msra.mxu0 0.0
  %276 = vmatprep.subr.mxu0 0.0
  %277 = vmatpush1.msra.mxu0 0.0
  %278 = vmatprep.subr.mxu0 0.0
  %279 = vmatpush1.msra.mxu0 0.0
  %280 = vmatprep.subr.mxu0 0.0
  %281 = vmatpush1.msra.mxu0 0.0
  %282 = vmatprep.subr.mxu0 0.0
  %283 = vmatpush1.msra.mxu0 0.0
  %284 = vmatprep.subr.mxu0 0.0
  %285 = vmatpush1.msra.mxu0 0.0
  %286 = vmatprep.subr.mxu0 0.0
  %287 = vmatpush1.msra.mxu0 0.0
  %288 = vmatprep.subr.mxu0 0.0
  %289 = vmatpush1.msra.mxu0 0.0
  %290 = vmatprep.subr.mxu0 0.0
  %291 = vmatpush1.msra.mxu0 0.0
  %292 = vmatprep.subr.mxu0 0.0
  %293 = vmatpush1.msra.mxu0 0.0
  %294 = vmatprep.subr.mxu0 0.0
  %295 = vmatpush1.msra.mxu0 0.0
  %296 = vmatprep.subr.mxu0 0.0
  %297 = vmatpush1.msra.mxu0 0.0
  %298 = vmatprep.subr.mxu0 0.0
  %299 = vmatpush1.msra.mxu0 0.0
  %300 = vmatprep.subr.mxu0 0.0
  %301 = vmatpush1.msra.mxu0 0.0
  %302 = vmatprep.subr.mxu0 0.0
  %303 = vmatpush1.msra.mxu0 0.0
  %304 = vmatprep.subr.mxu0 0.0
  %305 = vmatpush1.msra.mxu0 0.0
  %306 = vmatprep.subr.mxu0 0.0
  %307 = vmatpush1.msra.mxu0 0.0
  %308 = vmatprep.subr.mxu0 0.0
  %309 = vmatpush1.msra.mxu0 0.0
  %310 = vmatprep.subr.mxu0 0.0
  %311 = vmatpush1.msra.mxu0 0.0
  %312 = vmatprep.subr.mxu0 0.0
  %313 = vmatpush1.msra.mxu0 0.0
  %314 = vmatprep.subr.mxu0 0.0
  %315 = vmatpush1.msra.mxu0 0.0
  %316 = vmatprep.subr.mxu0 0.0
  %317 = vmatpush1.msra.mxu0 0.0
  %318 = vmatprep.subr.mxu0 0.0
  %319 = vmatpush1.msra.mxu0 0.0
  %320 = vmatprep.subr.mxu0 0.0
  %321 = vmatpush1.msra.mxu0 0.0
  %322 = vmatprep.mubr.f32.mxu0 0.0
  %323 = vmatmul.mubr.f32.gmra.mrb[0].mxu0 %v86
  %v324 = vpop.f32.mrb[0].mxu0
  %v325 = vadd.f32 %v82, %v324
  %v326 = vpop.f32.mrb[0].mxu0
  %v327 = vadd.f32 %v82, %v326
  %328 = vdwg.mxu0
  %329 = vmatprep.subr.mxu0 %v22
  %330 = vmatpush1.msra.mxu0 %v21
  %331 = vmatprep.subr.mxu0 %v31
  %332 = vmatpush1.msra.mxu0 %v30
  %333 = vmatprep.subr.mxu0 %v40
  %334 = vmatpush1.msra.mxu0 %v39
  %335 = vmatprep.subr.mxu0 %v49
  %336 = vmatpush1.msra.mxu0 %v48
  %337 = vmatprep.subr.mxu0 %v58
  %338 = vmatpush1.msra.mxu0 %v57
  %339 = vmatprep.subr.mxu0 %v67
  %340 = vmatpush1.msra.mxu0 %v66
  %341 = vmatprep.subr.mxu0 %v111
  %342 = vmatpush1.msra.mxu0 %v108
  %343 = vmatprep.subr.mxu0 0.0
  %344 = vmatpush1.msra.mxu0 0.0
  %345 = vmatprep.subr.mxu0 0.0
  %346 = vmatpush1.msra.mxu0 0.0
  %347 = vmatprep.subr.mxu0 0.0
  %348 = vmatpush1.msra.mxu0 0.0
  %349 = vmatprep.subr.mxu0 0.0
  %350 = vmatpush1.msra.mxu0 0.0
  %351 = vmatprep.subr.mxu0 0.0
  %352 = vmatpush1.msra.mxu0 0.0
  %353 = vmatprep.subr.mxu0 0.0
  %354 = vmatpush1.msra.mxu0 0.0
  %355 = vmatprep.subr.mxu0 0.0
  %356 = vmatpush1.msra.mxu0 0.0
  %357 = vmatprep.subr.mxu0 0.0
  %358 = vmatpush1.msra.mxu0 0.0
  %359 = vmatprep.subr.mxu0 0.0
  %360 = vmatpush1.msra.mxu0 0.0
  %361 = vmatprep.subr.mxu0 0.0
  %362 = vmatpush1.msra.mxu0 0.0
  %363 = vmatprep.subr.mxu0 0.0
  %364 = vmatpush1.msra.mxu0 0.0
  %365 = vmatprep.subr.mxu0 0.0
  %366 = vmatpush1.msra.mxu0 0.0
  %367 = vmatprep.subr.mxu0 0.0
  %368 = vmatpush1.msra.mxu0 0.0
  %369 = vmatprep.subr.mxu0 0.0
  %370 = vmatpush1.msra.mxu0 0.0
  %371 = vmatprep.subr.mxu0 0.0
  %372 = vmatpush1.msra.mxu0 0.0
  %373 = vmatprep.subr.mxu0 0.0
  %374 = vmatpush1.msra.mxu0 0.0
  %375 = vmatprep.subr.mxu0 0.0
  %376 = vmatpush1.msra.mxu0 0.0
  %377 = vmatprep.subr.mxu0 0.0
  %378 = vmatpush1.msra.mxu0 0.0
  %379 = vmatprep.subr.mxu0 0.0
  %380 = vmatpush1.msra.mxu0 0.0
  %381 = vmatprep.subr.mxu0 0.0
  %382 = vmatpush1.msra.mxu0 0.0
  %383 = vmatprep.subr.mxu0 0.0
  %384 = vmatpush1.msra.mxu0 0.0
  %385 = vmatprep.subr.mxu0 0.0
  %386 = vmatpush1.msra.mxu0 0.0
  %387 = vmatprep.subr.mxu0 0.0
  %388 = vmatpush1.msra.mxu0 0.0
  %389 = vmatprep.subr.mxu0 0.0
  %390 = vmatpush1.msra.mxu0 0.0
  %391 = vmatprep.subr.mxu0 0.0
  %392 = vmatpush1.msra.mxu0 0.0
  %393 = vmatprep.mubr.f32.mxu0 0.0
  %394 = vmatmul.mubr.f32.gmra.mrb[0].mxu0 %v86
  %v395 = vpop.f32.mrb[0].mxu0
  %v396 = vadd.f32 %v82, %v395
  %v397 = vpop.f32.mrb[0].mxu0
  %v398 = vadd.f32 %v82, %v397
  %399 = vdwg.mxu0
  %400 = vmatprep.subr.mxu0 0.0
  %401 = vmatpush1.msra.mxu0 %v23
  %402 = vmatprep.subr.mxu0 0.0
  %403 = vmatpush1.msra.mxu0 %v32
  %404 = vmatprep.subr.mxu0 0.0
  %405 = vmatpush1.msra.mxu0 %v41
  %406 = vmatprep.subr.mxu0 0.0
  %407 = vmatpush1.msra.mxu0 %v50
  %408 = vmatprep.subr.mxu0 0.0
  %409 = vmatpush1.msra.mxu0 %v59
  %410 = vmatprep.subr.mxu0 0.0
  %411 = vmatpush1.msra.mxu0 %v68
  %412 = vmatprep.subr.mxu0 0.0
  %413 = vmatpush1.msra.mxu0 %v114
  %414 = vmatprep.subr.mxu0 0.0
  %415 = vmatpush1.msra.mxu0 0.0
  %416 = vmatprep.subr.mxu0 0.0
  %417 = vmatpush1.msra.mxu0 0.0
  %418 = vmatprep.subr.mxu0 0.0
  %419 = vmatpush1.msra.mxu0 0.0
  %420 = vmatprep.subr.mxu0 0.0
  %421 = vmatpush1.msra.mxu0 0.0
  %422 = vmatprep.subr.mxu0 0.0
  %423 = vmatpush1.msra.mxu0 0.0
  %424 = vmatprep.subr.mxu0 0.0
  %425 = vmatpush1.msra.mxu0 0.0
  %426 = vmatprep.subr.mxu0 0.0
  %427 = vmatpush1.msra.mxu0 0.0
  %428 = vmatprep.subr.mxu0 0.0
  %429 = vmatpush1.msra.mxu0 0.0
  %430 = vmatprep.subr.mxu0 0.0
  %431 = vmatpush1.msra.mxu0 0.0
  %432 = vmatprep.subr.mxu0 0.0
  %433 = vmatpush1.msra.mxu0 0.0
  %434 = vmatprep.subr.mxu0 0.0
  %435 = vmatpush1.msra.mxu0 0.0
  %436 = vmatprep.subr.mxu0 0.0
  %437 = vmatpush1.msra.mxu0 0.0
  %438 = vmatprep.subr.mxu0 0.0
  %439 = vmatpush1.msra.mxu0 0.0
  %440 = vmatprep.subr.mxu0 0.0
  %441 = vmatpush1.msra.mxu0 0.0
  %442 = vmatprep.subr.mxu0 0.0
  %443 = vmatpush1.msra.mxu0 0.0
  %444 = vmatprep.subr.mxu0 0.0
  %445 = vmatpush1.msra.mxu0 0.0
  %446 = vmatprep.subr.mxu0 0.0
  %447 = vmatpush1.msra.mxu0 0.0
  %448 = vmatprep.subr.mxu0 0.0
  %449 = vmatpush1.msra.mxu0 0.0
  %450 = vmatprep.subr.mxu0 0.0
  %451 = vmatpush1.msra.mxu0 0.0
  %452 = vmatprep.subr.mxu0 0.0
  %453 = vmatpush1.msra.mxu0 0.0
  %454 = vmatprep.subr.mxu0 0.0
  %455 = vmatpush1.msra.mxu0 0.0
  %456 = vmatprep.subr.mxu0 0.0
  %457 = vmatpush1.msra.mxu0 0.0
  %458 = vmatprep.subr.mxu0 0.0
  %459 = vmatpush1.msra.mxu0 0.0
  %460 = vmatprep.subr.mxu0 0.0
  %461 = vmatpush1.msra.mxu0 0.0
  %462 = vmatprep.subr.mxu0 0.0
  %463 = vmatpush1.msra.mxu0 0.0
  %464 = vmatprep.mubr.f32.mxu0 0.0
  %465 = vmatmul.mubr.f32.gmra.mrb[0].mxu0 %v86
  %v466 = vpop.f32.mrb[0].mxu0
  %v467 = vadd.f32 %v82, %v466
  %v468 = vpop.f32.mrb[0].mxu0
  %469 = vdwg.mxu0
  %v470 = vmax.f32 %v183, 0.0
  %v471 = vmax.f32 %v185, 0.0
  %v472 = vmax.f32 %v254, 0.0
  %v473 = vmax.f32 %v256, 0.0
  %v474 = vmax.f32 %v325, 0.0
  %v475 = vmax.f32 %v327, 0.0
  %v476 = vmax.f32 %v396, 0.0
  %v477 = vmax.f32 %v398, 0.0
  %v478 = vmax.f32 %v467, 0.0
  %479 = vst [vmem:[%s3] sm:$0x3f] %v470
  %480 = vst [vmem:[%s3 + $0x8] sm:$0x3f] %v471
  %481 = vst [vmem:[%s3 + $0x10] sm:$0x3f] %v472
  %482 = vst [vmem:[%s3 + $0x18] sm:$0x3f] %v473
  %483 = vst [vmem:[%s3 + $0x20] sm:$0x3f] %v474
  %484 = vst [vmem:[%s3 + $0x28] sm:$0x3f] %v475
  %485 = vst [vmem:[%s3 + $0x30] sm:$0x3f] %v476
  %486 = vst [vmem:[%s3 + $0x38] sm:$0x3f] %v477
  %487 = vst [vmem:[%s3 + $0x40] sm:$0x3f] %v478
  // Predicated region
  $region14: #{encoder_decoder.14} parent=0 // pred_check
    _
  $region15: #{encoder_decoder.14} parent=0 // pred_check_branch
    %489 = sbr.rel (0) target = $region17
  $region16: #{encoder_decoder.14} parent=0 // pred_region
    _
  $region17: #{encoder_decoder.14} parent=0 // pred_fallthru
    _
  // Predicated region
  $region18: #{encoder_decoder.14} parent=0 // pred_check
    _
  $region19: #{encoder_decoder.14} parent=0 // pred_check_branch
    %491 = sbr.rel (0) target = $region21
  $region20: #{encoder_decoder.14} parent=0 // pred_region
    _
  $region21: #{encoder_decoder.14} parent=0 // pred_fallthru
    _

// kernel: encoder_decoder.15
$region0: #{encoder_decoder.15}
  #allocation0 [shape = 'u32[]', space=smem, size = 0x4, offset = 0x4, fixed_abs, tag = 'smem constant byte address 0x4 - core index']
  #allocation1 [shape = 'u32[144,128]{1,0:T(1,128)}', space=vmem, size = 0x12000, scoped, tag = 'internal scratch']
  %s0 = inlined_call_operand.vmem [shape: f32[6,288], index: 0, kind: input, shape index: {}]
  %s1 = inlined_call_operand.vmem [shape: f32[6,288], index: 1, kind: input, shape index: {}]
  %s2 = inlined_call_operand.vmem [shape: f32[6,288], index: 2, kind: input, shape index: {}]
  %s3 = inlined_call_operand.vmem [shape: f32[6,288], index: 3, kind: input, shape index: {}]
  %s4 = inlined_call_operand.vmem [shape: f32[6,288], index: 4, kind: output, shape index: {}]
  %s5 = sld [smem:[#allocation0]]
  $region26: #{encoder_decoder.15} parent=0
    _
  %s7 = ssub.s32 1, %s5
  %s8 = scalar_select 0, %s7, %s5
  // Predicated region
  $region2: #{encoder_decoder.15} parent=0 // pred_check
    _
  $region3: #{encoder_decoder.15} parent=0 // pred_check_branch
    %10 = sbr.rel (0) target = $region5
  $region4: #{encoder_decoder.15} parent=0 // pred_region
    _
  $region5: #{encoder_decoder.15} parent=0 // pred_fallthru
    _
  // Predicated region
  $region6: #{encoder_decoder.15} parent=0 // pred_check
    _
  $region7: #{encoder_decoder.15} parent=0 // pred_check_branch
    %12 = sbr.rel (0) target = $region9
  $region8: #{encoder_decoder.15} parent=0 // pred_region
    _
  $region9: #{encoder_decoder.15} parent=0 // pred_fallthru
    _
  // Predicated region
  $region10: #{encoder_decoder.15} parent=0 // pred_check
    _
  $region11: #{encoder_decoder.15} parent=0 // pred_check_branch
    %14 = sbr.rel (0) target = $region13
  $region12: #{encoder_decoder.15} parent=0 // pred_region
    _
  $region13: #{encoder_decoder.15} parent=0 // pred_fallthru
    _
  // Predicated region
  $region14: #{encoder_decoder.15} parent=0 // pred_check
    _
  $region15: #{encoder_decoder.15} parent=0 // pred_check_branch
    %16 = sbr.rel (0) target = $region17
  $region16: #{encoder_decoder.15} parent=0 // pred_region
    _
  $region17: #{encoder_decoder.15} parent=0 // pred_fallthru
    _
  %v17 = vld [vmem:[%s0] sm:$0x3f]
  %v18 = vld [vmem:[%s0 + $0x8] sm:$0x3f]
  %v19 = vld [vmem:[%s0 + $0x10] sm:$0x3f]
  %v20 = vld [vmem:[%s1] sm:$0x3f]
  %v21 = vld [vmem:[%s1 + $0x8] sm:$0x3f]
  %v22 = vld [vmem:[%s1 + $0x10] sm:$0x3f]
  %v23 = vld [vmem:[%s2] sm:$0x3f]
  %v24 = vld [vmem:[%s2 + $0x8] sm:$0x3f]
  %v25 = vld [vmem:[%s2 + $0x10] sm:$0x3f]
  %v26 = vld [vmem:[%s3] sm:$0x3f]
  %v27 = vld [vmem:[%s3 + $0x8] sm:$0x3f]
  %v28 = vld [vmem:[%s3 + $0x10] sm:$0x3f]
  %v29 = vmax.f32 %v17, %v20
  %v30 = vmax.f32 %v18, %v21
  %v31 = vmax.f32 %v19, %v22
  %v32 = vmax.f32 %v23, %v26
  %v33 = vmax.f32 %v24, %v27
  %v34 = vmax.f32 %v25, %v28
  %v35 = vmax.f32 %v29, %v32
  %v36 = vmax.f32 %v30, %v33
  %v37 = vmax.f32 %v31, %v34
  %38 = vst [vmem:[%s4] sm:$0x3f] %v35
  %39 = vst [vmem:[%s4 + $0x8] sm:$0x3f] %v36
  %vm40 = vcmask 259072
  %41 = vst.msk [vmem:[%s4 + $0x10] sm:$0x3f] %vm40, %v37
  // Predicated region
  $region18: #{encoder_decoder.15} parent=0 // pred_check
    _
  $region19: #{encoder_decoder.15} parent=0 // pred_check_branch
    %43 = sbr.rel (0) target = $region21
  $region20: #{encoder_decoder.15} parent=0 // pred_region
    _
  $region21: #{encoder_decoder.15} parent=0 // pred_fallthru
    _
  // Predicated region
  $region22: #{encoder_decoder.15} parent=0 // pred_check
    _
  $region23: #{encoder_decoder.15} parent=0 // pred_check_branch
    %45 = sbr.rel (0) target = $region25
  $region24: #{encoder_decoder.15} parent=0 // pred_region
    _
  $region25: #{encoder_decoder.15} parent=0 // pred_fallthru
    _

// kernel: encoder_decoder.16
$region0: #{encoder_decoder.16}
  #allocation0 [shape = 'u32[]', space=smem, size = 0x4, offset = 0x4, fixed_abs, tag = 'smem constant byte address 0x4 - core index']
  #allocation1 [shape = 'u32[144,128]{1,0:T(1,128)}', space=vmem, size = 0x12000, scoped, tag = 'internal scratch']
  %s0 = inlined_call_operand.vmem [shape: f32[16,150], index: 0, kind: input, shape index: {}]
  %s1 = inlined_call_operand.vmem [shape: f32[150,128], index: 1, kind: input, shape index: {}]
  %s2 = inlined_call_operand.vmem [shape: f32[16,1], index: 2, kind: input, shape index: {}]
  %s3 = inlined_call_operand.vmem [shape: f32[16,128], index: 3, kind: output, shape index: {}]
  %s4 = sld [smem:[#allocation0]]
  $region22: #{encoder_decoder.16} parent=0
    _
  %s6 = ssub.s32 1, %s4
  %s7 = scalar_select 0, %s6, %s4
  // Predicated region
  $region2: #{encoder_decoder.16} parent=0 // pred_check
    _
  $region3: #{encoder_decoder.16} parent=0 // pred_check_branch
    %9 = sbr.rel (0) target = $region5
  $region4: #{encoder_decoder.16} parent=0 // pred_region
    _
  $region5: #{encoder_decoder.16} parent=0 // pred_fallthru
    _
  // Predicated region
  $region6: #{encoder_decoder.16} parent=0 // pred_check
    _
  $region7: #{encoder_decoder.16} parent=0 // pred_check_branch
    %11 = sbr.rel (0) target = $region9
  $region8: #{encoder_decoder.16} parent=0 // pred_region
    _
  $region9: #{encoder_decoder.16} parent=0 // pred_fallthru
    _
  // Predicated region
  $region10: #{encoder_decoder.16} parent=0 // pred_check
    _
  $region11: #{encoder_decoder.16} parent=0 // pred_check_branch
    %13 = sbr.rel (0) target = $region13
  $region12: #{encoder_decoder.16} parent=0 // pred_region
    _
  $region13: #{encoder_decoder.16} parent=0 // pred_fallthru
    _
  %v14 = vld [vmem:[%s0] sm:$0xff]
  %v15 = vld [vmem:[%s0 + $0x8] sm:$0xff]
  %v16 = vld [vmem:[%s0 + $0x10] sm:$0xff]
  %v17 = vld [vmem:[%s0 + $0x18] sm:$0xff]
  %v18 = vld [vmem:[%s1] sm:$0xff]
  %v19 = vld [vmem:[%s1 + $0x8] sm:$0xff]
  %v20 = vld [vmem:[%s1 + $0x10] sm:$0xff]
  %v21 = vld [vmem:[%s1 + $0x18] sm:$0xff]
  %v22 = vld [vmem:[%s1 + $0x20] sm:$0xff]
  %v23 = vld [vmem:[%s1 + $0x28] sm:$0xff]
  %v24 = vld [vmem:[%s1 + $0x30] sm:$0xff]
  %v25 = vld [vmem:[%s1 + $0x38] sm:$0xff]
  %v26 = vld [vmem:[%s1 + $0x40] sm:$0xff]
  %v27 = vld [vmem:[%s1 + $0x48] sm:$0xff]
  %v28 = vld [vmem:[%s1 + $0x50] sm:$0xff]
  %v29 = vld [vmem:[%s1 + $0x58] sm:$0xff]
  %v30 = vld [vmem:[%s1 + $0x60] sm:$0xff]
  %v31 = vld [vmem:[%s1 + $0x68] sm:$0xff]
  %v32 = vld [vmem:[%s1 + $0x70] sm:$0xff]
  %v33 = vld [vmem:[%s1 + $0x78] sm:$0xff]
  %v34 = vld [vmem:[%s1 + $0x80] sm:$0xff]
  %v35 = vld [vmem:[%s1 + $0x88] sm:$0xff]
  %v36 = vld [vmem:[%s1 + $0x90] sm:$0x3f]
  %v37 = vld [vmem:[%s2] sm:$0xff]
  %v38 = vld [vmem:[%s2 + $0x8] sm:$0xff]
  %40 = vset.pattern.permute.xlu0 0
  %41 = vperm.xlu0 %40, %v37
  %v42 = vpop.permute.xlu0 %41
  %45 = vset.pattern.permute.xlu0 0
  %46 = vperm.xlu0 %45, %v38
  %v47 = vpop.permute.xlu0 %46
  %vm49 = vcmask 179200
  %v51 = vsel %vm49, %v15, 0
  %v54 = vsel %vm49, %v17, 0
  %vm56 = vcmask 1045504
  %v58 = vsel %vm56, %v36, 0
  %60 = vmatprep.subr.mxu0 0.0
  %61 = vmatpush1.msra.mxu0 %v18
  %62 = vmatprep.subr.mxu0 0.0
  %63 = vmatpush1.msra.mxu0 %v19
  %64 = vmatprep.subr.mxu0 0.0
  %65 = vmatpush1.msra.mxu0 %v20
  %66 = vmatprep.subr.mxu0 0.0
  %67 = vmatpush1.msra.mxu0 %v21
  %68 = vmatprep.subr.mxu0 0.0
  %69 = vmatpush1.msra.mxu0 %v22
  %70 = vmatprep.subr.mxu0 0.0
  %71 = vmatpush1.msra.mxu0 %v23
  %72 = vmatprep.subr.mxu0 0.0
  %73 = vmatpush1.msra.mxu0 %v24
  %74 = vmatprep.subr.mxu0 0.0
  %75 = vmatpush1.msra.mxu0 %v25
  %76 = vmatprep.subr.mxu0 0.0
  %77 = vmatpush1.msra.mxu0 %v26
  %78 = vmatprep.subr.mxu0 0.0
  %79 = vmatpush1.msra.mxu0 %v27
  %80 = vmatprep.subr.mxu0 0.0
  %81 = vmatpush1.msra.mxu0 %v28
  %82 = vmatprep.subr.mxu0 0.0
  %83 = vmatpush1.msra.mxu0 %v29
  %84 = vmatprep.subr.mxu0 0.0
  %85 = vmatpush1.msra.mxu0 %v30
  %86 = vmatprep.subr.mxu0 0.0
  %87 = vmatpush1.msra.mxu0 %v31
  %88 = vmatprep.subr.mxu0 0.0
  %89 = vmatpush1.msra.mxu0 %v32
  %90 = vmatprep.subr.mxu0 0.0
  %91 = vmatpush1.msra.mxu0 %v33
  %92 = vmatprep.subr.mxu0 0.0
  %93 = vmatpush1.msra.mxu0 %v34
  %94 = vmatprep.subr.mxu0 0.0
  %95 = vmatpush1.msra.mxu0 %v35
  %96 = vmatprep.subr.mxu0 0.0
  %97 = vmatpush1.msra.mxu0 %v58
  %98 = vmatprep.subr.mxu0 0.0
  %99 = vmatpush1.msra.mxu0 0.0
  %100 = vmatprep.subr.mxu0 0.0
  %101 = vmatpush1.msra.mxu0 0.0
  %102 = vmatprep.subr.mxu0 0.0
  %103 = vmatpush1.msra.mxu0 0.0
  %104 = vmatprep.subr.mxu0 0.0
  %105 = vmatpush1.msra.mxu0 0.0
  %106 = vmatprep.subr.mxu0 0.0
  %107 = vmatpush1.msra.mxu0 0.0
  %108 = vmatprep.subr.mxu0 0.0
  %109 = vmatpush1.msra.mxu0 0.0
  %110 = vmatprep.subr.mxu0 0.0
  %111 = vmatpush1.msra.mxu0 0.0
  %112 = vmatprep.subr.mxu0 0.0
  %113 = vmatpush1.msra.mxu0 0.0
  %114 = vmatprep.subr.mxu0 0.0
  %115 = vmatpush1.msra.mxu0 0.0
  %116 = vmatprep.subr.mxu0 0.0
  %117 = vmatpush1.msra.mxu0 0.0
  %118 = vmatprep.subr.mxu0 0.0
  %119 = vmatpush1.msra.mxu0 0.0
  %120 = vmatprep.subr.mxu0 0.0
  %121 = vmatpush1.msra.mxu0 0.0
  %122 = vmatprep.subr.mxu0 0.0
  %123 = vmatpush1.msra.mxu0 0.0
  %124 = vmatprep.mubr.f32.mxu0 %v51
  %125 = vmatmul.mubr.f32.gmra.mrb[0].mxu0 %v14
  %v126 = vpop.f32.mrb[0].mxu0
  %v127 = vadd.f32 %v42, %v126
  %v128 = vpop.f32.mrb[0].mxu0
  %129 = vmatprep.mubr.f32.mxu0 %v54
  %130 = vmatmul.mubr.f32.gmra.mrb[0].mxu0 %v16
  %v131 = vpop.f32.mrb[0].mxu0
  %v132 = vadd.f32 %v47, %v131
  %v133 = vpop.f32.mrb[0].mxu0
  %134 = vdwg.mxu0
  %v135 = vmax.f32 %v127, 0.0
  %v136 = vmax.f32 %v132, 0.0
  %137 = vst [vmem:[%s3] sm:$0xff] %v135
  %138 = vst [vmem:[%s3 + $0x8] sm:$0xff] %v136
  // Predicated region
  $region14: #{encoder_decoder.16} parent=0 // pred_check
    _
  $region15: #{encoder_decoder.16} parent=0 // pred_check_branch
    %140 = sbr.rel (0) target = $region17
  $region16: #{encoder_decoder.16} parent=0 // pred_region
    _
  $region17: #{encoder_decoder.16} parent=0 // pred_fallthru
    _
  // Predicated region
  $region18: #{encoder_decoder.16} parent=0 // pred_check
    _
  $region19: #{encoder_decoder.16} parent=0 // pred_check_branch
    %142 = sbr.rel (0) target = $region21
  $region20: #{encoder_decoder.16} parent=0 // pred_region
    _
  $region21: #{encoder_decoder.16} parent=0 // pred_fallthru
    _

// kernel: encoder_decoder.17
$region0: #{encoder_decoder.17}
  #allocation0 [shape = 'u32[]', space=smem, size = 0x4, offset = 0x4, fixed_abs, tag = 'smem constant byte address 0x4 - core index']
  #allocation1 [shape = 'u32[144,128]{1,0:T(1,128)}', space=vmem, size = 0x12000, scoped, tag = 'internal scratch']
  %s0 = inlined_call_operand.vmem [shape: f32[16,144], index: 0, kind: input, shape index: {}]
  %s1 = inlined_call_operand.vmem [shape: f32[144,128], index: 1, kind: input, shape index: {}]
  %s2 = inlined_call_operand.vmem [shape: f32[16,1], index: 2, kind: input, shape index: {}]
  %s3 = inlined_call_operand.vmem [shape: f32[16,128], index: 3, kind: output, shape index: {}]
  %s4 = sld [smem:[#allocation0]]
  $region22: #{encoder_decoder.17} parent=0
    _
  %s6 = ssub.s32 1, %s4
  %s7 = scalar_select 0, %s6, %s4
  // Predicated region
  $region2: #{encoder_decoder.17} parent=0 // pred_check
    _
  $region3: #{encoder_decoder.17} parent=0 // pred_check_branch
    %9 = sbr.rel (0) target = $region5
  $region4: #{encoder_decoder.17} parent=0 // pred_region
    _
  $region5: #{encoder_decoder.17} parent=0 // pred_fallthru
    _
  // Predicated region
  $region6: #{encoder_decoder.17} parent=0 // pred_check
    _
  $region7: #{encoder_decoder.17} parent=0 // pred_check_branch
    %11 = sbr.rel (0) target = $region9
  $region8: #{encoder_decoder.17} parent=0 // pred_region
    _
  $region9: #{encoder_decoder.17} parent=0 // pred_fallthru
    _
  // Predicated region
  $region10: #{encoder_decoder.17} parent=0 // pred_check
    _
  $region11: #{encoder_decoder.17} parent=0 // pred_check_branch
    %13 = sbr.rel (0) target = $region13
  $region12: #{encoder_decoder.17} parent=0 // pred_region
    _
  $region13: #{encoder_decoder.17} parent=0 // pred_fallthru
    _
  %v14 = vld [vmem:[%s0] sm:$0xff]
  %v15 = vld [vmem:[%s0 + $0x8] sm:$0xff]
  %v16 = vld [vmem:[%s0 + $0x10] sm:$0xff]
  %v17 = vld [vmem:[%s0 + $0x18] sm:$0xff]
  %v18 = vld [vmem:[%s1] sm:$0xff]
  %v19 = vld [vmem:[%s1 + $0x8] sm:$0xff]
  %v20 = vld [vmem:[%s1 + $0x10] sm:$0xff]
  %v21 = vld [vmem:[%s1 + $0x18] sm:$0xff]
  %v22 = vld [vmem:[%s1 + $0x20] sm:$0xff]
  %v23 = vld [vmem:[%s1 + $0x28] sm:$0xff]
  %v24 = vld [vmem:[%s1 + $0x30] sm:$0xff]
  %v25 = vld [vmem:[%s1 + $0x38] sm:$0xff]
  %v26 = vld [vmem:[%s1 + $0x40] sm:$0xff]
  %v27 = vld [vmem:[%s1 + $0x48] sm:$0xff]
  %v28 = vld [vmem:[%s1 + $0x50] sm:$0xff]
  %v29 = vld [vmem:[%s1 + $0x58] sm:$0xff]
  %v30 = vld [vmem:[%s1 + $0x60] sm:$0xff]
  %v31 = vld [vmem:[%s1 + $0x68] sm:$0xff]
  %v32 = vld [vmem:[%s1 + $0x70] sm:$0xff]
  %v33 = vld [vmem:[%s1 + $0x78] sm:$0xff]
  %v34 = vld [vmem:[%s1 + $0x80] sm:$0xff]
  %v35 = vld [vmem:[%s1 + $0x88] sm:$0xff]
  %v36 = vld [vmem:[%s2] sm:$0xff]
  %v37 = vld [vmem:[%s2 + $0x8] sm:$0xff]
  %39 = vset.pattern.permute.xlu0 0
  %40 = vperm.xlu0 %39, %v36
  %v41 = vpop.permute.xlu0 %40
  %44 = vset.pattern.permute.xlu0 0
  %45 = vperm.xlu0 %44, %v37
  %v46 = vpop.permute.xlu0 %45
  %vm48 = vcmask 130048
  %v50 = vsel %vm48, %v15, 0
  %v53 = vsel %vm48, %v17, 0
  %55 = vmatprep.subr.mxu0 0.0
  %56 = vmatpush1.msra.mxu0 %v18
  %57 = vmatprep.subr.mxu0 0.0
  %58 = vmatpush1.msra.mxu0 %v19
  %59 = vmatprep.subr.mxu0 0.0
  %60 = vmatpush1.msra.mxu0 %v20
  %61 = vmatprep.subr.mxu0 0.0
  %62 = vmatpush1.msra.mxu0 %v21
  %63 = vmatprep.subr.mxu0 0.0
  %64 = vmatpush1.msra.mxu0 %v22
  %65 = vmatprep.subr.mxu0 0.0
  %66 = vmatpush1.msra.mxu0 %v23
  %67 = vmatprep.subr.mxu0 0.0
  %68 = vmatpush1.msra.mxu0 %v24
  %69 = vmatprep.subr.mxu0 0.0
  %70 = vmatpush1.msra.mxu0 %v25
  %71 = vmatprep.subr.mxu0 0.0
  %72 = vmatpush1.msra.mxu0 %v26
  %73 = vmatprep.subr.mxu0 0.0
  %74 = vmatpush1.msra.mxu0 %v27
  %75 = vmatprep.subr.mxu0 0.0
  %76 = vmatpush1.msra.mxu0 %v28
  %77 = vmatprep.subr.mxu0 0.0
  %78 = vmatpush1.msra.mxu0 %v29
  %79 = vmatprep.subr.mxu0 0.0
  %80 = vmatpush1.msra.mxu0 %v30
  %81 = vmatprep.subr.mxu0 0.0
  %82 = vmatpush1.msra.mxu0 %v31
  %83 = vmatprep.subr.mxu0 0.0
  %84 = vmatpush1.msra.mxu0 %v32
  %85 = vmatprep.subr.mxu0 0.0
  %86 = vmatpush1.msra.mxu0 %v33
  %87 = vmatprep.subr.mxu0 0.0
  %88 = vmatpush1.msra.mxu0 %v34
  %89 = vmatprep.subr.mxu0 0.0
  %90 = vmatpush1.msra.mxu0 %v35
  %91 = vmatprep.subr.mxu0 0.0
  %92 = vmatpush1.msra.mxu0 0.0
  %93 = vmatprep.subr.mxu0 0.0
  %94 = vmatpush1.msra.mxu0 0.0
  %95 = vmatprep.subr.mxu0 0.0
  %96 = vmatpush1.msra.mxu0 0.0
  %97 = vmatprep.subr.mxu0 0.0
  %98 = vmatpush1.msra.mxu0 0.0
  %99 = vmatprep.subr.mxu0 0.0
  %100 = vmatpush1.msra.mxu0 0.0
  %101 = vmatprep.subr.mxu0 0.0
  %102 = vmatpush1.msra.mxu0 0.0
  %103 = vmatprep.subr.mxu0 0.0
  %104 = vmatpush1.msra.mxu0 0.0
  %105 = vmatprep.subr.mxu0 0.0
  %106 = vmatpush1.msra.mxu0 0.0
  %107 = vmatprep.subr.mxu0 0.0
  %108 = vmatpush1.msra.mxu0 0.0
  %109 = vmatprep.subr.mxu0 0.0
  %110 = vmatpush1.msra.mxu0 0.0
  %111 = vmatprep.subr.mxu0 0.0
  %112 = vmatpush1.msra.mxu0 0.0
  %113 = vmatprep.subr.mxu0 0.0
  %114 = vmatpush1.msra.mxu0 0.0
  %115 = vmatprep.subr.mxu0 0.0
  %116 = vmatpush1.msra.mxu0 0.0
  %117 = vmatprep.subr.mxu0 0.0
  %118 = vmatpush1.msra.mxu0 0.0
  %119 = vmatprep.mubr.f32.mxu0 %v50
  %120 = vmatmul.mubr.f32.gmra.mrb[0].mxu0 %v14
  %v121 = vpop.f32.mrb[0].mxu0
  %v122 = vadd.f32 %v41, %v121
  %v123 = vpop.f32.mrb[0].mxu0
  %124 = vmatprep.mubr.f32.mxu0 %v53
  %125 = vmatmul.mubr.f32.gmra.mrb[0].mxu0 %v16
  %v126 = vpop.f32.mrb[0].mxu0
  %v127 = vadd.f32 %v46, %v126
  %v128 = vpop.f32.mrb[0].mxu0
  %129 = vdwg.mxu0
  %v130 = vmax.f32 %v122, 0.0
  %v131 = vmax.f32 %v127, 0.0
  %132 = vst [vmem:[%s3] sm:$0xff] %v130
  %133 = vst [vmem:[%s3 + $0x8] sm:$0xff] %v131
  // Predicated region
  $region14: #{encoder_decoder.17} parent=0 // pred_check
    _
  $region15: #{encoder_decoder.17} parent=0 // pred_check_branch
    %135 = sbr.rel (0) target = $region17
  $region16: #{encoder_decoder.17} parent=0 // pred_region
    _
  $region17: #{encoder_decoder.17} parent=0 // pred_fallthru
    _
  // Predicated region
  $region18: #{encoder_decoder.17} parent=0 // pred_check
    _
  $region19: #{encoder_decoder.17} parent=0 // pred_check_branch
    %137 = sbr.rel (0) target = $region21
  $region20: #{encoder_decoder.17} parent=0 // pred_region
    _
  $region21: #{encoder_decoder.17} parent=0 // pred_fallthru
    _

// kernel: encoder_decoder.18
$region0: #{encoder_decoder.18}
  #allocation0 [shape = 'u32[]', space=smem, size = 0x4, offset = 0x4, fixed_abs, tag = 'smem constant byte address 0x4 - core index']
  #allocation1 [shape = 'u32[144,128]{1,0:T(1,128)}', space=vmem, size = 0x12000, scoped, tag = 'internal scratch']
  %s0 = inlined_call_operand.vmem [shape: f32[16,32], index: 0, kind: input, shape index: {}]
  %s1 = inlined_call_operand.vmem [shape: f32[16,32], index: 1, kind: input, shape index: {}]
  %s2 = inlined_call_operand.vmem [shape: f32[16,32], index: 2, kind: input, shape index: {}]
  %s3 = inlined_call_operand.vmem [shape: f32[16,32], index: 3, kind: input, shape index: {}]
  %s4 = inlined_call_operand.vmem [shape: f32[16,32], index: 4, kind: output, shape index: {}]
  %s5 = sld [smem:[#allocation0]]
  $region26: #{encoder_decoder.18} parent=0
    _
  %s7 = ssub.s32 1, %s5
  %s8 = scalar_select 0, %s7, %s5
  // Predicated region
  $region2: #{encoder_decoder.18} parent=0 // pred_check
    _
  $region3: #{encoder_decoder.18} parent=0 // pred_check_branch
    %10 = sbr.rel (0) target = $region5
  $region4: #{encoder_decoder.18} parent=0 // pred_region
    _
  $region5: #{encoder_decoder.18} parent=0 // pred_fallthru
    _
  // Predicated region
  $region6: #{encoder_decoder.18} parent=0 // pred_check
    _
  $region7: #{encoder_decoder.18} parent=0 // pred_check_branch
    %12 = sbr.rel (0) target = $region9
  $region8: #{encoder_decoder.18} parent=0 // pred_region
    _
  $region9: #{encoder_decoder.18} parent=0 // pred_fallthru
    _
  // Predicated region
  $region10: #{encoder_decoder.18} parent=0 // pred_check
    _
  $region11: #{encoder_decoder.18} parent=0 // pred_check_branch
    %14 = sbr.rel (0) target = $region13
  $region12: #{encoder_decoder.18} parent=0 // pred_region
    _
  $region13: #{encoder_decoder.18} parent=0 // pred_fallthru
    _
  // Predicated region
  $region14: #{encoder_decoder.18} parent=0 // pred_check
    _
  $region15: #{encoder_decoder.18} parent=0 // pred_check_branch
    %16 = sbr.rel (0) target = $region17
  $region16: #{encoder_decoder.18} parent=0 // pred_region
    _
  $region17: #{encoder_decoder.18} parent=0 // pred_fallthru
    _
  %v17 = vld [vmem:[%s0] sm:$0xff]
  %v18 = vld [vmem:[%s0 + $0x8] sm:$0xff]
  %v19 = vld [vmem:[%s1] sm:$0xff]
  %v20 = vld [vmem:[%s1 + $0x8] sm:$0xff]
  %v21 = vld [vmem:[%s2] sm:$0xff]
  %v22 = vld [vmem:[%s2 + $0x8] sm:$0xff]
  %v23 = vld [vmem:[%s3] sm:$0xff]
  %v24 = vld [vmem:[%s3 + $0x8] sm:$0xff]
  %v25 = vadd.f32 %v17, %v19
  %v26 = vadd.f32 %v18, %v20
  %v27 = vadd.f32 %v25, %v21
  %v28 = vadd.f32 %v26, %v22
  %v29 = vadd.f32 %v27, %v23
  %v30 = vadd.f32 %v28, %v24
  %v31 = vmul.f32 %v29, 0.25
  %v32 = vmul.f32 %v30, 0.25
  %vm33 = vcmask 261120
  %34 = vst.msk [vmem:[%s4] sm:$0xff] %vm33, %v31
  %35 = vst.msk [vmem:[%s4 + $0x8] sm:$0xff] %vm33, %v32
  // Predicated region
  $region18: #{encoder_decoder.18} parent=0 // pred_check
    _
  $region19: #{encoder_decoder.18} parent=0 // pred_check_branch
    %37 = sbr.rel (0) target = $region21
  $region20: #{encoder_decoder.18} parent=0 // pred_region
    _
  $region21: #{encoder_decoder.18} parent=0 // pred_fallthru
    _
  // Predicated region
  $region22: #{encoder_decoder.18} parent=0 // pred_check
    _
  $region23: #{encoder_decoder.18} parent=0 // pred_check_branch
    %39 = sbr.rel (0) target = $region25
  $region24: #{encoder_decoder.18} parent=0 // pred_region
    _
  $region25: #{encoder_decoder.18} parent=0 // pred_fallthru
    _

// kernel: encoder_decoder.19
$region0: #{encoder_decoder.19}
  #allocation0 [shape = 'u32[]', space=smem, size = 0x4, offset = 0x4, fixed_abs, tag = 'smem constant byte address 0x4 - core index']
  #allocation1 [shape = 'u32[144,128]{1,0:T(1,128)}', space=vmem, size = 0x12000, scoped, tag = 'internal scratch']
  %s0 = inlined_call_operand.vmem [shape: f32[2,256], index: 0, kind: input, shape index: {}]
  %s1 = inlined_call_operand.vmem [shape: f32[256,120], index: 1, kind: input, shape index: {}]
  %s2 = inlined_call_operand.vmem [shape: f32[1,120], index: 2, kind: input, shape index: {}]
  %s3 = inlined_call_operand.vmem [shape: f32[120,84], index: 3, kind: input, shape index: {}]
  %s4 = inlined_call_operand.vmem [shape: f32[1,84], index: 4, kind: input, shape index: {}]
  %s5 = inlined_call_operand.vmem [shape: f32[84,10], index: 5, kind: input, shape index: {}]
  %s6 = inlined_call_operand.vmem [shape: f32[1,10], index: 6, kind: input, shape index: {}]
  %s7 = inlined_call_operand.vmem [shape: f32[10,96], index: 7, kind: input, shape index: {}]
  %s8 = inlined_call_operand.vmem [shape: f32[1,96], index: 8, kind: input, shape index: {}]
  %s9 = inlined_call_operand.vmem [shape: f32[96,96], index: 9, kind: input, shape index: {}]
  %s10 = inlined_call_operand.vmem [shape: f32[1,96], index: 10, kind: input, shape index: {}]
  %s11 = inlined_call_operand.vmem [shape: f32[2,96], index: 11, kind: output, shape index: {}]
  %s12 = sld [smem:[#allocation0]]
  $region54: #{encoder_decoder.19} parent=0
    _
  %s14 = ssub.s32 1, %s12
  %s15 = scalar_select 0, %s14, %s12
  // Predicated region
  $region2: #{encoder_decoder.19} parent=0 // pred_check
    _
  $region3: #{encoder_decoder.19} parent=0 // pred_check_branch
    %17 = sbr.rel (0) target = $region5
  $region4: #{encoder_decoder.19} parent=0 // pred_region
    _
  $region5: #{encoder_decoder.19} parent=0 // pred_fallthru
    _
  // Predicated region
  $region6: #{encoder_decoder.19} parent=0 // pred_check
    _
  $region7: #{encoder_decoder.19} parent=0 // pred_check_branch
    %19 = sbr.rel (0) target = $region9
  $region8: #{encoder_decoder.19} parent=0 // pred_region
    _
  $region9: #{encoder_decoder.19} parent=0 // pred_fallthru
    _
  // Predicated region
  $region10: #{encoder_decoder.19} parent=0 // pred_check
    _
  $region11: #{encoder_decoder.19} parent=0 // pred_check_branch
    %21 = sbr.rel (0) target = $region13
  $region12: #{encoder_decoder.19} parent=0 // pred_region
    _
  $region13: #{encoder_decoder.19} parent=0 // pred_fallthru
    _
  // Predicated region
  $region14: #{encoder_decoder.19} parent=0 // pred_check
    _
  $region15: #{encoder_decoder.19} parent=0 // pred_check_branch
    %23 = sbr.rel (0) target = $region17
  $region16: #{encoder_decoder.19} parent=0 // pred_region
    _
  $region17: #{encoder_decoder.19} parent=0 // pred_fallthru
    _
  // Predicated region
  $region18: #{encoder_decoder.19} parent=0 // pred_check
    _
  $region19: #{encoder_decoder.19} parent=0 // pred_check_branch
    %25 = sbr.rel (0) target = $region21
  $region20: #{encoder_decoder.19} parent=0 // pred_region
    _
  $region21: #{encoder_decoder.19} parent=0 // pred_fallthru
    _
  // Predicated region
  $region22: #{encoder_decoder.19} parent=0 // pred_check
    _
  $region23: #{encoder_decoder.19} parent=0 // pred_check_branch
    %27 = sbr.rel (0) target = $region25
  $region24: #{encoder_decoder.19} parent=0 // pred_region
    _
  $region25: #{encoder_decoder.19} parent=0 // pred_fallthru
    _
  // Predicated region
  $region26: #{encoder_decoder.19} parent=0 // pred_check
    _
  $region27: #{encoder_decoder.19} parent=0 // pred_check_branch
    %29 = sbr.rel (0) target = $region29
  $region28: #{encoder_decoder.19} parent=0 // pred_region
    _
  $region29: #{encoder_decoder.19} parent=0 // pred_fallthru
    _
  // Predicated region
  $region30: #{encoder_decoder.19} parent=0 // pred_check
    _
  $region31: #{encoder_decoder.19} parent=0 // pred_check_branch
    %31 = sbr.rel (0) target = $region33
  $region32: #{encoder_decoder.19} parent=0 // pred_region
    _
  $region33: #{encoder_decoder.19} parent=0 // pred_fallthru
    _
  // Predicated region
  $region34: #{encoder_decoder.19} parent=0 // pred_check
    _
  $region35: #{encoder_decoder.19} parent=0 // pred_check_branch
    %33 = sbr.rel (0) target = $region37
  $region36: #{encoder_decoder.19} parent=0 // pred_region
    _
  $region37: #{encoder_decoder.19} parent=0 // pred_fallthru
    _
  // Predicated region
  $region38: #{encoder_decoder.19} parent=0 // pred_check
    _
  $region39: #{encoder_decoder.19} parent=0 // pred_check_branch
    %35 = sbr.rel (0) target = $region41
  $region40: #{encoder_decoder.19} parent=0 // pred_region
    _
  $region41: #{encoder_decoder.19} parent=0 // pred_fallthru
    _
  // Predicated region
  $region42: #{encoder_decoder.19} parent=0 // pred_check
    _
  $region43: #{encoder_decoder.19} parent=0 // pred_check_branch
    %37 = sbr.rel (0) target = $region45
  $region44: #{encoder_decoder.19} parent=0 // pred_region
    _
  $region45: #{encoder_decoder.19} parent=0 // pred_fallthru
    _
  %v38 = vld [vmem:[%s0] sm:$0xf]
  %v39 = vld [vmem:[%s1] sm:$0xff]
  %v40 = vld [vmem:[%s1 + $0x8] sm:$0xff]
  %v41 = vld [vmem:[%s1 + $0x10] sm:$0xff]
  %v42 = vld [vmem:[%s1 + $0x18] sm:$0xff]
  %v43 = vld [vmem:[%s1 + $0x20] sm:$0xff]
  %v44 = vld [vmem:[%s1 + $0x28] sm:$0xff]
  %v45 = vld [vmem:[%s1 + $0x30] sm:$0xff]
  %v46 = vld [vmem:[%s1 + $0x38] sm:$0xff]
  %v47 = vld [vmem:[%s1 + $0x40] sm:$0xff]
  %v48 = vld [vmem:[%s1 + $0x48] sm:$0xff]
  %v49 = vld [vmem:[%s1 + $0x50] sm:$0xff]
  %v50 = vld [vmem:[%s1 + $0x58] sm:$0xff]
  %v51 = vld [vmem:[%s1 + $0x60] sm:$0xff]
  %v52 = vld [vmem:[%s1 + $0x68] sm:$0xff]
  %v53 = vld [vmem:[%s1 + $0x70] sm:$0xff]
  %v54 = vld [vmem:[%s1 + $0x78] sm:$0xff]
  %v55 = vld [vmem:[%s1 + $0x80] sm:$0xff]
  %v56 = vld [vmem:[%s1 + $0x88] sm:$0xff]
  %v57 = vld [vmem:[%s1 + $0x90] sm:$0xff]
  %v58 = vld [vmem:[%s1 + $0x98] sm:$0xff]
  %v59 = vld [vmem:[%s1 + $0xa0] sm:$0xff]
  %v60 = vld [vmem:[%s1 + $0xa8] sm:$0xff]
  %v61 = vld [vmem:[%s1 + $0xb0] sm:$0xff]
  %v62 = vld [vmem:[%s1 + $0xb8] sm:$0xff]
  %v63 = vld [vmem:[%s1 + $0xc0] sm:$0xff]
  %v64 = vld [vmem:[%s1 + $0xc8] sm:$0xff]
  %v65 = vld [vmem:[%s1 + $0xd0] sm:$0xff]
  %v66 = vld [vmem:[%s1 + $0xd8] sm:$0xff]
  %v67 = vld [vmem:[%s1 + $0xe0] sm:$0xff]
  %v68 = vld [vmem:[%s1 + $0xe8] sm:$0xff]
  %v69 = vld [vmem:[%s1 + $0xf0] sm:$0xff]
  %v70 = vld [vmem:[%s1 + $0xf8] sm:$0xff]
  %v71 = vld [vmem:[%s2] sm:$0x1]
  %v73 = vlaneseq
  %v74 = vshrl.u32 %v73, 7
  %v75 = vsub.s32 0, %v74
  %v76 = vrot.slane %v71, %v75
  %v80 = vunpack.c.l.s4 1983009808
  %v81 = vunpack.c.0.s8 %v80
  %v82 = vlaneseq
  %v83 = vshrl.u32 %v82, 7
  %v84 = vsub.s32 %v81, %v83
  %v85 = vrot.slane %v38, %v84
  %v86 = vcombine.high %v85, %v85
  %89 = vmatprep.subr.mxu0 0.0
  %90 = vmatpush1.msra.mxu0 %v39
  %91 = vmatprep.subr.mxu0 0.0
  %92 = vmatpush1.msra.mxu0 %v40
  %93 = vmatprep.subr.mxu0 0.0
  %94 = vmatpush1.msra.mxu0 %v41
  %95 = vmatprep.subr.mxu0 0.0
  %96 = vmatpush1.msra.mxu0 %v42
  %97 = vmatprep.subr.mxu0 0.0
  %98 = vmatpush1.msra.mxu0 %v43
  %99 = vmatprep.subr.mxu0 0.0
  %100 = vmatpush1.msra.mxu0 %v44
  %101 = vmatprep.subr.mxu0 0.0
  %102 = vmatpush1.msra.mxu0 %v45
  %103 = vmatprep.subr.mxu0 0.0
  %104 = vmatpush1.msra.mxu0 %v46
  %105 = vmatprep.subr.mxu0 0.0
  %106 = vmatpush1.msra.mxu0 %v47
  %107 = vmatprep.subr.mxu0 0.0
  %108 = vmatpush1.msra.mxu0 %v48
  %109 = vmatprep.subr.mxu0 0.0
  %110 = vmatpush1.msra.mxu0 %v49
  %111 = vmatprep.subr.mxu0 0.0
  %112 = vmatpush1.msra.mxu0 %v50
  %113 = vmatprep.subr.mxu0 0.0
  %114 = vmatpush1.msra.mxu0 %v51
  %115 = vmatprep.subr.mxu0 0.0
  %116 = vmatpush1.msra.mxu0 %v52
  %117 = vmatprep.subr.mxu0 0.0
  %118 = vmatpush1.msra.mxu0 %v53
  %119 = vmatprep.subr.mxu0 0.0
  %120 = vmatpush1.msra.mxu0 %v54
  %121 = vmatprep.subr.mxu0 0.0
  %122 = vmatpush1.msra.mxu0 %v55
  %123 = vmatprep.subr.mxu0 0.0
  %124 = vmatpush1.msra.mxu0 %v56
  %125 = vmatprep.subr.mxu0 0.0
  %126 = vmatpush1.msra.mxu0 %v57
  %127 = vmatprep.subr.mxu0 0.0
  %128 = vmatpush1.msra.mxu0 %v58
  %129 = vmatprep.subr.mxu0 0.0
  %130 = vmatpush1.msra.mxu0 %v59
  %131 = vmatprep.subr.mxu0 0.0
  %132 = vmatpush1.msra.mxu0 %v60
  %133 = vmatprep.subr.mxu0 0.0
  %134 = vmatpush1.msra.mxu0 %v61
  %135 = vmatprep.subr.mxu0 0.0
  %136 = vmatpush1.msra.mxu0 %v62
  %137 = vmatprep.subr.mxu0 0.0
  %138 = vmatpush1.msra.mxu0 %v63
  %139 = vmatprep.subr.mxu0 0.0
  %140 = vmatpush1.msra.mxu0 %v64
  %141 = vmatprep.subr.mxu0 0.0
  %142 = vmatpush1.msra.mxu0 %v65
  %143 = vmatprep.subr.mxu0 0.0
  %144 = vmatpush1.msra.mxu0 %v66
  %145 = vmatprep.subr.mxu0 0.0
  %146 = vmatpush1.msra.mxu0 %v67
  %147 = vmatprep.subr.mxu0 0.0
  %148 = vmatpush1.msra.mxu0 %v68
  %149 = vmatprep.subr.mxu0 0.0
  %150 = vmatpush1.msra.mxu0 %v69
  %151 = vmatprep.subr.mxu0 0.0
  %152 = vmatpush1.msra.mxu0 %v70
  %153 = vmatprep.mubr.f32.mxu0 %v86
  %154 = vmatmul.mubr.f32.gmra.mrb[0].mxu0 %v85
  %v155 = vpop.f32.mrb[0].mxu0
  %v156 = vadd.f32 %v76, %v155
  %v157 = vpop.f32.mrb[0].mxu0
  %158 = vdwg.mxu0
  %v159 = vmax.f32 %v156, 0.0
  %v160 = vld [vmem:[%s3] sm:$0xff]
  %v161 = vld [vmem:[%s3 + $0x8] sm:$0xff]
  %v162 = vld [vmem:[%s3 + $0x10] sm:$0xff]
  %v163 = vld [vmem:[%s3 + $0x18] sm:$0xff]
  %v164 = vld [vmem:[%s3 + $0x20] sm:$0xff]
  %v165 = vld [vmem:[%s3 + $0x28] sm:$0xff]
  %v166 = vld [vmem:[%s3 + $0x30] sm:$0xff]
  %v167 = vld [vmem:[%s3 + $0x38] sm:$0xff]
  %v168 = vld [vmem:[%s3 + $0x40] sm:$0xff]
  %v169 = vld [vmem:[%s3 + $0x48] sm:$0xff]
  %v170 = vld [vmem:[%s3 + $0x50] sm:$0xff]
  %v171 = vld [vmem:[%s3 + $0x58] sm:$0xff]
  %v172 = vld [vmem:[%s3 + $0x60] sm:$0xff]
  %v173 = vld [vmem:[%s3 + $0x68] sm:$0xff]
  %v174 = vld [vmem:[%s3 + $0x70] sm:$0xff]
  %v175 = vld [vmem:[%s4] sm:$0x1]
  %v177 = vlaneseq
  %v178 = vshrl.u32 %v177, 7
  %v179 = vsub.s32 0, %v178
  %v180 = vrot.slane %v175, %v179
  %vm182 = vcmask 982016
  %v184 = vsel %vm182, %v159, 0
  %186 = vmatprep.subr.mxu0 0.0
  %187 = vmatpush1.msra.mxu0 %v160
  %188 = vmatprep.subr.mxu0 0.0
  %189 = vmatpush1.msra.mxu0 %v161
  %190 = vmatprep.subr.mxu0 0.0
  %191 = vmatpush1.msra.mxu0 %v162
  %192 = vmatprep.subr.mxu0 0.0
  %193 = vmatpush1.msra.mxu0 %v163
  %194 = vmatprep.subr.mxu0 0.0
  %195 = vmatpush1.msra.mxu0 %v164
  %196 = vmatprep.subr.mxu0 0.0
  %197 = vmatpush1.msra.mxu0 %v165
  %198 = vmatprep.subr.mxu0 0.0
  %199 = vmatpush1.msra.mxu0 %v166
  %200 = vmatprep.subr.mxu0 0.0
  %201 = vmatpush1.msra.mxu0 %v167
  %202 = vmatprep.subr.mxu0 0.0
  %203 = vmatpush1.msra.mxu0 %v168
  %204 = vmatprep.subr.mxu0 0.0
  %205 = vmatpush1.msra.mxu0 %v169
  %206 = vmatprep.subr.mxu0 0.0
  %207 = vmatpush1.msra.mxu0 %v170
  %208 = vmatprep.subr.mxu0 0.0
  %209 = vmatpush1.msra.mxu0 %v171
  %210 = vmatprep.subr.mxu0 0.0
  %211 = vmatpush1.msra.mxu0 %v172
  %212 = vmatprep.subr.mxu0 0.0
  %213 = vmatpush1.msra.mxu0 %v173
  %214 = vmatprep.subr.mxu0 0.0
  %215 = vmatpush1.msra.mxu0 %v174
  %216 = vmatprep.subr.mxu0 0.0
  %217 = vmatpush1.msra.mxu0 0.0
  %218 = vmatprep.subr.mxu0 0.0
  %219 = vmatpush1.msra.mxu0 0.0
  %220 = vmatprep.subr.mxu0 0.0
  %221 = vmatpush1.msra.mxu0 0.0
  %222 = vmatprep.subr.mxu0 0.0
  %223 = vmatpush1.msra.mxu0 0.0
  %224 = vmatprep.subr.mxu0 0.0
  %225 = vmatpush1.msra.mxu0 0.0
  %226 = vmatprep.subr.mxu0 0.0
  %227 = vmatpush1.msra.mxu0 0.0
  %228 = vmatprep.subr.mxu0 0.0
  %229 = vmatpush1.msra.mxu0 0.0
  %230 = vmatprep.subr.mxu0 0.0
  %231 = vmatpush1.msra.mxu0 0.0
  %232 = vmatprep.subr.mxu0 0.0
  %233 = vmatpush1.msra.mxu0 0.0
  %234 = vmatprep.subr.mxu0 0.0
  %235 = vmatpush1.msra.mxu0 0.0
  %236 = vmatprep.subr.mxu0 0.0
  %237 = vmatpush1.msra.mxu0 0.0
  %238 = vmatprep.subr.mxu0 0.0
  %239 = vmatpush1.msra.mxu0 0.0
  %240 = vmatprep.subr.mxu0 0.0
  %241 = vmatpush1.msra.mxu0 0.0
  %242 = vmatprep.subr.mxu0 0.0
  %243 = vmatpush1.msra.mxu0 0.0
  %244 = vmatprep.subr.mxu0 0.0
  %245 = vmatpush1.msra.mxu0 0.0
  %246 = vmatprep.subr.mxu0 0.0
  %247 = vmatpush1.msra.mxu0 0.0
  %248 = vmatprep.subr.mxu0 0.0
  %249 = vmatpush1.msra.mxu0 0.0
  %250 = vmatprep.mubr.f32.mxu0 0.0
  %251 = vmatmul.mubr.f32.gmra.mrb[0].mxu0 %v184
  %v252 = vpop.f32.mrb[0].mxu0
  %v253 = vadd.f32 %v180, %v252
  %v254 = vpop.f32.mrb[0].mxu0
  %255 = vdwg.mxu0
  %v256 = vmax.f32 %v253, 0.0
  %v257 = vld [vmem:[%s5] sm:$0xff]
  %v258 = vld [vmem:[%s5 + $0x8] sm:$0xff]
  %v259 = vld [vmem:[%s5 + $0x10] sm:$0xff]
  %v260 = vld [vmem:[%s5 + $0x18] sm:$0xff]
  %v261 = vld [vmem:[%s5 + $0x20] sm:$0xff]
  %v262 = vld [vmem:[%s5 + $0x28] sm:$0xff]
  %v263 = vld [vmem:[%s5 + $0x30] sm:$0xff]
  %v264 = vld [vmem:[%s5 + $0x38] sm:$0xff]
  %v265 = vld [vmem:[%s5 + $0x40] sm:$0xff]
  %v266 = vld [vmem:[%s5 + $0x48] sm:$0xff]
  %v267 = vld [vmem:[%s5 + $0x50] sm:$0xf]
  %v268 = vld [vmem:[%s6] sm:$0x1]
  %v270 = vlaneseq
  %v271 = vshrl.u32 %v270, 7
  %v272 = vsub.s32 0, %v271
  %v273 = vrot.slane %v268, %v272
  %vm275 = vcmask 687104
  %v277 = vsel %vm275, %v256, 0
  %vm279 = vcmask 1043456
  %v281 = vsel %vm279, %v267, 0
  %283 = vmatprep.subr.mxu0 0.0
  %284 = vmatpush1.msra.mxu0 %v257
  %285 = vmatprep.subr.mxu0 0.0
  %286 = vmatpush1.msra.mxu0 %v258
  %287 = vmatprep.subr.mxu0 0.0
  %288 = vmatpush1.msra.mxu0 %v259
  %289 = vmatprep.subr.mxu0 0.0
  %290 = vmatpush1.msra.mxu0 %v260
  %291 = vmatprep.subr.mxu0 0.0
  %292 = vmatpush1.msra.mxu0 %v261
  %293 = vmatprep.subr.mxu0 0.0
  %294 = vmatpush1.msra.mxu0 %v262
  %295 = vmatprep.subr.mxu0 0.0
  %296 = vmatpush1.msra.mxu0 %v263
  %297 = vmatprep.subr.mxu0 0.0
  %298 = vmatpush1.msra.mxu0 %v264
  %299 = vmatprep.subr.mxu0 0.0
  %300 = vmatpush1.msra.mxu0 %v265
  %301 = vmatprep.subr.mxu0 0.0
  %302 = vmatpush1.msra.mxu0 %v266
  %303 = vmatprep.subr.mxu0 0.0
  %304 = vmatpush1.msra.mxu0 %v281
  %305 = vmatprep.subr.mxu0 0.0
  %306 = vmatpush1.msra.mxu0 0.0
  %307 = vmatprep.subr.mxu0 0.0
  %308 = vmatpush1.msra.mxu0 0.0
  %309 = vmatprep.subr.mxu0 0.0
  %310 = vmatpush1.msra.mxu0 0.0
  %311 = vmatprep.subr.mxu0 0.0
  %312 = vmatpush1.msra.mxu0 0.0
  %313 = vmatprep.subr.mxu0 0.0
  %314 = vmatpush1.msra.mxu0 0.0
  %315 = vmatprep.subr.mxu0 0.0
  %316 = vmatpush1.msra.mxu0 0.0
  %317 = vmatprep.subr.mxu0 0.0
  %318 = vmatpush1.msra.mxu0 0.0
  %319 = vmatprep.subr.mxu0 0.0
  %320 = vmatpush1.msra.mxu0 0.0
  %321 = vmatprep.subr.mxu0 0.0
  %322 = vmatpush1.msra.mxu0 0.0
  %323 = vmatprep.subr.mxu0 0.0
  %324 = vmatpush1.msra.mxu0 0.0
  %325 = vmatprep.subr.mxu0 0.0
  %326 = vmatpush1.msra.mxu0 0.0
  %327 = vmatprep.subr.mxu0 0.0
  %328 = vmatpush1.msra.mxu0 0.0
  %329 = vmatprep.subr.mxu0 0.0
  %330 = vmatpush1.msra.mxu0 0.0
  %331 = vmatprep.subr.mxu0 0.0
  %332 = vmatpush1.msra.mxu0 0.0
  %333 = vmatprep.subr.mxu0 0.0
  %334 = vmatpush1.msra.mxu0 0.0
  %335 = vmatprep.subr.mxu0 0.0
  %336 = vmatpush1.msra.mxu0 0.0
  %337 = vmatprep.subr.mxu0 0.0
  %338 = vmatpush1.msra.mxu0 0.0
  %339 = vmatprep.subr.mxu0 0.0
  %340 = vmatpush1.msra.mxu0 0.0
  %341 = vmatprep.subr.mxu0 0.0
  %342 = vmatpush1.msra.mxu0 0.0
  %343 = vmatprep.subr.mxu0 0.0
  %344 = vmatpush1.msra.mxu0 0.0
  %345 = vmatprep.subr.mxu0 0.0
  %346 = vmatpush1.msra.mxu0 0.0
  %347 = vmatprep.mubr.f32.mxu0 0.0
  %348 = vmatmul.mubr.f32.gmra.mrb[0].mxu0 %v277
  %v349 = vpop.f32.mrb[0].mxu0
  %v350 = vadd.f32 %v273, %v349
  %v351 = vpop.f32.mrb[0].mxu0
  %352 = vdwg.mxu0
  %v353 = vld [vmem:[%s7] sm:$0xff]
  %v354 = vld [vmem:[%s7 + $0x8] sm:$0x3]
  %v355 = vld [vmem:[%s8] sm:$0x1]
  %v357 = vlaneseq
  %v358 = vshrl.u32 %v357, 7
  %v359 = vsub.s32 0, %v358
  %v360 = vrot.slane %v355, %v359
  %vm362 = vcmask 80896
  %v364 = vsel %vm362, %v350, 0
  %vm366 = vcmask 1041408
  %v368 = vsel %vm366, %v354, 0
  %370 = vmatprep.subr.mxu0 0.0
  %371 = vmatpush1.msra.mxu0 %v353
  %372 = vmatprep.subr.mxu0 0.0
  %373 = vmatpush1.msra.mxu0 %v368
  %374 = vmatprep.subr.mxu0 0.0
  %375 = vmatpush1.msra.mxu0 0.0
  %376 = vmatprep.subr.mxu0 0.0
  %377 = vmatpush1.msra.mxu0 0.0
  %378 = vmatprep.subr.mxu0 0.0
  %379 = vmatpush1.msra.mxu0 0.0
  %380 = vmatprep.subr.mxu0 0.0
  %381 = vmatpush1.msra.mxu0 0.0
  %382 = vmatprep.subr.mxu0 0.0
  %383 = vmatpush1.msra.mxu0 0.0
  %384 = vmatprep.subr.mxu0 0.0
  %385 = vmatpush1.msra.mxu0 0.0
  %386 = vmatprep.subr.mxu0 0.0
  %387 = vmatpush1.msra.mxu0 0.0
  %388 = vmatprep.subr.mxu0 0.0
  %389 = vmatpush1.msra.mxu0 0.0
  %390 = vmatprep.subr.mxu0 0.0
  %391 = vmatpush1.msra.mxu0 0.0
  %392 = vmatprep.subr.mxu0 0.0
  %393 = vmatpush1.msra.mxu0 0.0
  %394 = vmatprep.subr.mxu0 0.0
  %395 = vmatpush1.msra.mxu0 0.0
  %396 = vmatprep.subr.mxu0 0.0
  %397 = vmatpush1.msra.mxu0 0.0
  %398 = vmatprep.subr.mxu0 0.0
  %399 = vmatpush1.msra.mxu0 0.0
  %400 = vmatprep.subr.mxu0 0.0
  %401 = vmatpush1.msra.mxu0 0.0
  %402 = vmatprep.subr.mxu0 0.0
  %403 = vmatpush1.msra.mxu0 0.0
  %404 = vmatprep.subr.mxu0 0.0
  %405 = vmatpush1.msra.mxu0 0.0
  %406 = vmatprep.subr.mxu0 0.0
  %407 = vmatpush1.msra.mxu0 0.0
  %408 = vmatprep.subr.mxu0 0.0
  %409 = vmatpush1.msra.mxu0 0.0
  %410 = vmatprep.subr.mxu0 0.0
  %411 = vmatpush1.msra.mxu0 0.0
  %412 = vmatprep.subr.mxu0 0.0
  %413 = vmatpush1.msra.mxu0 0.0
  %414 = vmatprep.subr.mxu0 0.0
  %415 = vmatpush1.msra.mxu0 0.0
  %416 = vmatprep.subr.mxu0 0.0
  %417 = vmatpush1.msra.mxu0 0.0
  %418 = vmatprep.subr.mxu0 0.0
  %419 = vmatpush1.msra.mxu0 0.0
  %420 = vmatprep.subr.mxu0 0.0
  %421 = vmatpush1.msra.mxu0 0.0
  %422 = vmatprep.subr.mxu0 0.0
  %423 = vmatpush1.msra.mxu0 0.0
  %424 = vmatprep.subr.mxu0 0.0
  %425 = vmatpush1.msra.mxu0 0.0
  %426 = vmatprep.subr.mxu0 0.0
  %427 = vmatpush1.msra.mxu0 0.0
  %428 = vmatprep.subr.mxu0 0.0
  %429 = vmatpush1.msra.mxu0 0.0
  %430 = vmatprep.subr.mxu0 0.0
  %431 = vmatpush1.msra.mxu0 0.0
  %432 = vmatprep.subr.mxu0 0.0
  %433 = vmatpush1.msra.mxu0 0.0
  %434 = vmatprep.mubr.f32.mxu0 0.0
  %435 = vmatmul.mubr.f32.gmra.mrb[0].mxu0 %v364
  %v436 = vpop.f32.mrb[0].mxu0
  %v437 = vadd.f32 %v360, %v436
  %v438 = vpop.f32.mrb[0].mxu0
  %439 = vdwg.mxu0
  %v440 = vmax.f32 %v437, 0.0
  %v441 = vld [vmem:[%s9] sm:$0xff]
  %v442 = vld [vmem:[%s9 + $0x8] sm:$0xff]
  %v443 = vld [vmem:[%s9 + $0x10] sm:$0xff]
  %v444 = vld [vmem:[%s9 + $0x18] sm:$0xff]
  %v445 = vld [vmem:[%s9 + $0x20] sm:$0xff]
  %v446 = vld [vmem:[%s9 + $0x28] sm:$0xff]
  %v447 = vld [vmem:[%s9 + $0x30] sm:$0xff]
  %v448 = vld [vmem:[%s9 + $0x38] sm:$0xff]
  %v449 = vld [vmem:[%s9 + $0x40] sm:$0xff]
  %v450 = vld [vmem:[%s9 + $0x48] sm:$0xff]
  %v451 = vld [vmem:[%s9 + $0x50] sm:$0xff]
  %v452 = vld [vmem:[%s9 + $0x58] sm:$0xff]
  %v453 = vld [vmem:[%s10] sm:$0x1]
  %v455 = vlaneseq
  %v456 = vshrl.u32 %v455, 7
  %v457 = vsub.s32 0, %v456
  %v458 = vrot.slane %v453, %v457
  %vm460 = vcmask 785408
  %v462 = vsel %vm460, %v440, 0
  %464 = vmatprep.subr.mxu0 0.0
  %465 = vmatpush1.msra.mxu0 %v441
  %466 = vmatprep.subr.mxu0 0.0
  %467 = vmatpush1.msra.mxu0 %v442
  %468 = vmatprep.subr.mxu0 0.0
  %469 = vmatpush1.msra.mxu0 %v443
  %470 = vmatprep.subr.mxu0 0.0
  %471 = vmatpush1.msra.mxu0 %v444
  %472 = vmatprep.subr.mxu0 0.0
  %473 = vmatpush1.msra.mxu0 %v445
  %474 = vmatprep.subr.mxu0 0.0
  %475 = vmatpush1.msra.mxu0 %v446
  %476 = vmatprep.subr.mxu0 0.0
  %477 = vmatpush1.msra.mxu0 %v447
  %478 = vmatprep.subr.mxu0 0.0
  %479 = vmatpush1.msra.mxu0 %v448
  %480 = vmatprep.subr.mxu0 0.0
  %481 = vmatpush1.msra.mxu0 %v449
  %482 = vmatprep.subr.mxu0 0.0
  %483 = vmatpush1.msra.mxu0 %v450
  %484 = vmatprep.subr.mxu0 0.0
  %485 = vmatpush1.msra.mxu0 %v451
  %486 = vmatprep.subr.mxu0 0.0
  %487 = vmatpush1.msra.mxu0 %v452
  %488 = vmatprep.subr.mxu0 0.0
  %489 = vmatpush1.msra.mxu0 0.0
  %490 = vmatprep.subr.mxu0 0.0
  %491 = vmatpush1.msra.mxu0 0.0
  %492 = vmatprep.subr.mxu0 0.0
  %493 = vmatpush1.msra.mxu0 0.0
  %494 = vmatprep.subr.mxu0 0.0
  %495 = vmatpush1.msra.mxu0 0.0
  %496 = vmatprep.subr.mxu0 0.0
  %497 = vmatpush1.msra.mxu0 0.0
  %498 = vmatprep.subr.mxu0 0.0
  %499 = vmatpush1.msra.mxu0 0.0
  %500 = vmatprep.subr.mxu0 0.0
  %501 = vmatpush1.msra.mxu0 0.0
  %502 = vmatprep.subr.mxu0 0.0
  %503 = vmatpush1.msra.mxu0 0.0
  %504 = vmatprep.subr.mxu0 0.0
  %505 = vmatpush1.msra.mxu0 0.0
  %506 = vmatprep.subr.mxu0 0.0
  %507 = vmatpush1.msra.mxu0 0.0
  %508 = vmatprep.subr.mxu0 0.0
  %509 = vmatpush1.msra.mxu0 0.0
  %510 = vmatprep.subr.mxu0 0.0
  %511 = vmatpush1.msra.mxu0 0.0
  %512 = vmatprep.subr.mxu0 0.0
  %513 = vmatpush1.msra.mxu0 0.0
  %514 = vmatprep.subr.mxu0 0.0
  %515 = vmatpush1.msra.mxu0 0.0
  %516 = vmatprep.subr.mxu0 0.0
  %517 = vmatpush1.msra.mxu0 0.0
  %518 = vmatprep.subr.mxu0 0.0
  %519 = vmatpush1.msra.mxu0 0.0
  %520 = vmatprep.subr.mxu0 0.0
  %521 = vmatpush1.msra.mxu0 0.0
  %522 = vmatprep.subr.mxu0 0.0
  %523 = vmatpush1.msra.mxu0 0.0
  %524 = vmatprep.subr.mxu0 0.0
  %525 = vmatpush1.msra.mxu0 0.0
  %526 = vmatprep.subr.mxu0 0.0
  %527 = vmatpush1.msra.mxu0 0.0
  %528 = vmatprep.mubr.f32.mxu0 0.0
  %529 = vmatmul.mubr.f32.gmra.mrb[0].mxu0 %v462
  %v530 = vpop.f32.mrb[0].mxu0
  %v531 = vadd.f32 %v458, %v530
  %v532 = vpop.f32.mrb[0].mxu0
  %533 = vdwg.mxu0
  %vm534 = vcmask 779264
  %535 = vst.msk [vmem:[%s11] sm:$0x3] %vm534, %v531
  // Predicated region
  $region46: #{encoder_decoder.19} parent=0 // pred_check
    _
  $region47: #{encoder_decoder.19} parent=0 // pred_check_branch
    %537 = sbr.rel (0) target = $region49
  $region48: #{encoder_decoder.19} parent=0 // pred_region
    _
  $region49: #{encoder_decoder.19} parent=0 // pred_fallthru
    _
  // Predicated region
  $region50: #{encoder_decoder.19} parent=0 // pred_check
    _
  $region51: #{encoder_decoder.19} parent=0 // pred_check_branch
    %539 = sbr.rel (0) target = $region53
  $region52: #{encoder_decoder.19} parent=0 // pred_region
    _
  $region53: #{encoder_decoder.19} parent=0 // pred_fallthru
    _

// kernel: encoder_decoder.20
$region0: #{encoder_decoder.20}
  #allocation0 [shape = 'u32[]', space=smem, size = 0x4, offset = 0x4, fixed_abs, tag = 'smem constant byte address 0x4 - core index']
  #allocation1 [shape = 'u32[144,128]{1,0:T(1,128)}', space=vmem, size = 0x12000, scoped, tag = 'internal scratch']
  %s0 = inlined_call_operand.vmem [shape: f32[6,54], index: 0, kind: input, shape index: {}]
  %s1 = inlined_call_operand.vmem [shape: f32[54,288], index: 1, kind: input, shape index: {}]
  %s2 = inlined_call_operand.vmem [shape: f32[6,1], index: 2, kind: input, shape index: {}]
  %s3 = inlined_call_operand.vmem [shape: f32[6,288], index: 3, kind: output, shape index: {}]
  %s4 = sld [smem:[#allocation0]]
  $region22: #{encoder_decoder.20} parent=0
    _
  %s6 = ssub.s32 1, %s4
  %s7 = scalar_select 0, %s6, %s4
  // Predicated region
  $region2: #{encoder_decoder.20} parent=0 // pred_check
    _
  $region3: #{encoder_decoder.20} parent=0 // pred_check_branch
    %9 = sbr.rel (0) target = $region5
  $region4: #{encoder_decoder.20} parent=0 // pred_region
    _
  $region5: #{encoder_decoder.20} parent=0 // pred_fallthru
    _
  // Predicated region
  $region6: #{encoder_decoder.20} parent=0 // pred_check
    _
  $region7: #{encoder_decoder.20} parent=0 // pred_check_branch
    %11 = sbr.rel (0) target = $region9
  $region8: #{encoder_decoder.20} parent=0 // pred_region
    _
  $region9: #{encoder_decoder.20} parent=0 // pred_fallthru
    _
  // Predicated region
  $region10: #{encoder_decoder.20} parent=0 // pred_check
    _
  $region11: #{encoder_decoder.20} parent=0 // pred_check_branch
    %13 = sbr.rel (0) target = $region13
  $region12: #{encoder_decoder.20} parent=0 // pred_region
    _
  $region13: #{encoder_decoder.20} parent=0 // pred_fallthru
    _
  %v14 = vld [vmem:[%s0] sm:$0x3f]
  %v15 = vld [vmem:[%s1] sm:$0xff]
  %v16 = vld [vmem:[%s1 + $0x8] sm:$0xff]
  %v17 = vld [vmem:[%s1 + $0x10] sm:$0xff]
  %v18 = vld [vmem:[%s1 + $0x18] sm:$0xff]
  %v19 = vld [vmem:[%s1 + $0x20] sm:$0xff]
  %v20 = vld [vmem:[%s1 + $0x28] sm:$0xff]
  %v21 = vld [vmem:[%s1 + $0x30] sm:$0xff]
  %v22 = vld [vmem:[%s1 + $0x38] sm:$0xff]
  %v23 = vld [vmem:[%s1 + $0x40] sm:$0xff]
  %v24 = vld [vmem:[%s1 + $0x48] sm:$0xff]
  %v25 = vld [vmem:[%s1 + $0x50] sm:$0xff]
  %v26 = vld [vmem:[%s1 + $0x58] sm:$0xff]
  %v27 = vld [vmem:[%s1 + $0x60] sm:$0xff]
  %v28 = vld [vmem:[%s1 + $0x68] sm:$0xff]
  %v29 = vld [vmem:[%s1 + $0x70] sm:$0xff]
  %v30 = vld [vmem:[%s1 + $0x78] sm:$0xff]
  %v31 = vld [vmem:[%s1 + $0x80] sm:$0xff]
  %v32 = vld [vmem:[%s1 + $0x88] sm:$0xff]
  %v33 = vld [vmem:[%s1 + $0x90] sm:$0x3f]
  %v34 = vld [vmem:[%s1 + $0x98] sm:$0x3f]
  %v35 = vld [vmem:[%s1 + $0xa0] sm:$0x3f]
  %v36 = vld [vmem:[%s2] sm:$0x3f]
  %38 = vset.pattern.permute.xlu0 0
  %39 = vperm.xlu0 %38, %v36
  %v40 = vpop.permute.xlu0 %39
  %vm42 = vcmask 441344
  %v44 = vsel %vm42, %v14, 0
  %vm46 = vcmask 1045504
  %v48 = vsel %vm46, %v33, 0
  %v51 = vsel %vm46, %v34, 0
  %v54 = vsel %vm46, %v35, 0
  %56 = vmatprep.subr.mxu0 %v16
  %57 = vmatpush1.msra.mxu0 %v15
  %58 = vmatprep.subr.mxu0 %v19
  %59 = vmatpush1.msra.mxu0 %v18
  %60 = vmatprep.subr.mxu0 %v22
  %61 = vmatpush1.msra.mxu0 %v21
  %62 = vmatprep.subr.mxu0 %v25
  %63 = vmatpush1.msra.mxu0 %v24
  %64 = vmatprep.subr.mxu0 %v28
  %65 = vmatpush1.msra.mxu0 %v27
  %66 = vmatprep.subr.mxu0 %v31
  %67 = vmatpush1.msra.mxu0 %v30
  %68 = vmatprep.subr.mxu0 %v51
  %69 = vmatpush1.msra.mxu0 %v48
  %70 = vmatprep.subr.mxu0 0.0
  %71 = vmatpush1.msra.mxu0 0.0
  %72 = vmatprep.subr.mxu0 0.0
  %73 = vmatpush1.msra.mxu0 0.0
  %74 = vmatprep.subr.mxu0 0.0
  %75 = vmatpush1.msra.mxu0 0.0
  %76 = vmatprep.subr.mxu0 0.0
  %77 = vmatpush1.msra.mxu0 0.0
  %78 = vmatprep.subr.mxu0 0.0
  %79 = vmatpush1.msra.mxu0 0.0
  %80 = vmatprep.subr.mxu0 0.0
  %81 = vmatpush1.msra.mxu0 0.0
  %82 = vmatprep.subr.mxu0 0.0
  %83 = vmatpush1.msra.mxu0 0.0
  %84 = vmatprep.subr.mxu0 0.0
  %85 = vmatpush1.msra.mxu0 0.0
  %86 = vmatprep.subr.mxu0 0.0
  %87 = vmatpush1.msra.mxu0 0.0
  %88 = vmatprep.subr.mxu0 0.0
  %89 = vmatpush1.msra.mxu0 0.0
  %90 = vmatprep.subr.mxu0 0.0
  %91 = vmatpush1.msra.mxu0 0.0
  %92 = vmatprep.subr.mxu0 0.0
  %93 = vmatpush1.msra.mxu0 0.0
  %94 = vmatprep.subr.mxu0 0.0
  %95 = vmatpush1.msra.mxu0 0.0
  %96 = vmatprep.subr.mxu0 0.0
  %97 = vmatpush1.msra.mxu0 0.0
  %98 = vmatprep.subr.mxu0 0.0
  %99 = vmatpush1.msra.mxu0 0.0
  %100 = vmatprep.subr.mxu0 0.0
  %101 = vmatpush1.msra.mxu0 0.0
  %102 = vmatprep.subr.mxu0 0.0
  %103 = vmatpush1.msra.mxu0 0.0
  %104 = vmatprep.subr.mxu0 0.0
  %105 = vmatpush1.msra.mxu0 0.0
  %106 = vmatprep.subr.mxu0 0.0
  %107 = vmatpush1.msra.mxu0 0.0
  %108 = vmatprep.subr.mxu0 0.0
  %109 = vmatpush1.msra.mxu0 0.0
  %110 = vmatprep.subr.mxu0 0.0
  %111 = vmatpush1.msra.mxu0 0.0
  %112 = vmatprep.subr.mxu0 0.0
  %113 = vmatpush1.msra.mxu0 0.0
  %114 = vmatprep.subr.mxu0 0.0
  %115 = vmatpush1.msra.mxu0 0.0
  %116 = vmatprep.subr.mxu0 0.0
  %117 = vmatpush1.msra.mxu0 0.0
  %118 = vmatprep.subr.mxu0 0.0
  %119 = vmatpush1.msra.mxu0 0.0
  %120 = vmatprep.mubr.f32.mxu0 0.0
  %121 = vmatmul.mubr.f32.gmra.mrb[0].mxu0 %v44
  %v122 = vpop.f32.mrb[0].mxu0
  %v123 = vadd.f32 %v40, %v122
  %v124 = vpop.f32.mrb[0].mxu0
  %v125 = vadd.f32 %v40, %v124
  %126 = vdwg.mxu0
  %127 = vmatprep.subr.mxu0 0.0
  %128 = vmatpush1.msra.mxu0 %v17
  %129 = vmatprep.subr.mxu0 0.0
  %130 = vmatpush1.msra.mxu0 %v20
  %131 = vmatprep.subr.mxu0 0.0
  %132 = vmatpush1.msra.mxu0 %v23
  %133 = vmatprep.subr.mxu0 0.0
  %134 = vmatpush1.msra.mxu0 %v26
  %135 = vmatprep.subr.mxu0 0.0
  %136 = vmatpush1.msra.mxu0 %v29
  %137 = vmatprep.subr.mxu0 0.0
  %138 = vmatpush1.msra.mxu0 %v32
  %139 = vmatprep.subr.mxu0 0.0
  %140 = vmatpush1.msra.mxu0 %v54
  %141 = vmatprep.subr.mxu0 0.0
  %142 = vmatpush1.msra.mxu0 0.0
  %143 = vmatprep.subr.mxu0 0.0
  %144 = vmatpush1.msra.mxu0 0.0
  %145 = vmatprep.subr.mxu0 0.0
  %146 = vmatpush1.msra.mxu0 0.0
  %147 = vmatprep.subr.mxu0 0.0
  %148 = vmatpush1.msra.mxu0 0.0
  %149 = vmatprep.subr.mxu0 0.0
  %150 = vmatpush1.msra.mxu0 0.0
  %151 = vmatprep.subr.mxu0 0.0
  %152 = vmatpush1.msra.mxu0 0.0
  %153 = vmatprep.subr.mxu0 0.0
  %154 = vmatpush1.msra.mxu0 0.0
  %155 = vmatprep.subr.mxu0 0.0
  %156 = vmatpush1.msra.mxu0 0.0
  %157 = vmatprep.subr.mxu0 0.0
  %158 = vmatpush1.msra.mxu0 0.0
  %159 = vmatprep.subr.mxu0 0.0
  %160 = vmatpush1.msra.mxu0 0.0
  %161 = vmatprep.subr.mxu0 0.0
  %162 = vmatpush1.msra.mxu0 0.0
  %163 = vmatprep.subr.mxu0 0.0
  %164 = vmatpush1.msra.mxu0 0.0
  %165 = vmatprep.subr.mxu0 0.0
  %166 = vmatpush1.msra.mxu0 0.0
  %167 = vmatprep.subr.mxu0 0.0
  %168 = vmatpush1.msra.mxu0 0.0
  %169 = vmatprep.subr.mxu0 0.0
  %170 = vmatpush1.msra.mxu0 0.0
  %171 = vmatprep.subr.mxu0 0.0
  %172 = vmatpush1.msra.mxu0 0.0
  %173 = vmatprep.subr.mxu0 0.0
  %174 = vmatpush1.msra.mxu0 0.0
  %175 = vmatprep.subr.mxu0 0.0
  %176 = vmatpush1.msra.mxu0 0.0
  %177 = vmatprep.subr.mxu0 0.0
  %178 = vmatpush1.msra.mxu0 0.0
  %179 = vmatprep.subr.mxu0 0.0
  %180 = vmatpush1.msra.mxu0 0.0
  %181 = vmatprep.subr.mxu0 0.0
  %182 = vmatpush1.msra.mxu0 0.0
  %183 = vmatprep.subr.mxu0 0.0
  %184 = vmatpush1.msra.mxu0 0.0
  %185 = vmatprep.subr.mxu0 0.0
  %186 = vmatpush1.msra.mxu0 0.0
  %187 = vmatprep.subr.mxu0 0.0
  %188 = vmatpush1.msra.mxu0 0.0
  %189 = vmatprep.subr.mxu0 0.0
  %190 = vmatpush1.msra.mxu0 0.0
  %191 = vmatprep.mubr.f32.mxu0 0.0
  %192 = vmatmul.mubr.f32.gmra.mrb[0].mxu0 %v44
  %v193 = vpop.f32.mrb[0].mxu0
  %v194 = vadd.f32 %v40, %v193
  %v195 = vpop.f32.mrb[0].mxu0
  %196 = vdwg.mxu0
  %v197 = vmax.f32 %v123, 0.0
  %v198 = vmax.f32 %v125, 0.0
  %v199 = vmax.f32 %v194, 0.0
  %200 = vst [vmem:[%s3] sm:$0x3f] %v197
  %201 = vst [vmem:[%s3 + $0x8] sm:$0x3f] %v198
  %vm202 = vcmask 259072
  %203 = vst.msk [vmem:[%s3 + $0x10] sm:$0x3f] %vm202, %v199
  // Predicated region
  $region14: #{encoder_decoder.20} parent=0 // pred_check
    _
  $region15: #{encoder_decoder.20} parent=0 // pred_check_branch
    %205 = sbr.rel (0) target = $region17
  $region16: #{encoder_decoder.20} parent=0 // pred_region
    _
  $region17: #{encoder_decoder.20} parent=0 // pred_fallthru
    _
  // Predicated region
  $region18: #{encoder_decoder.20} parent=0 // pred_check
    _
  $region19: #{encoder_decoder.20} parent=0 // pred_check_branch
    %207 = sbr.rel (0) target = $region21
  $region20: #{encoder_decoder.20} parent=0 // pred_region
    _
  $region21: #{encoder_decoder.20} parent=0 // pred_fallthru
    _

// kernel: encoder_decoder.21
$region0: #{encoder_decoder.21}
  #allocation0 [shape = 'u32[]', space=smem, size = 0x4, offset = 0x4, fixed_abs, tag = 'smem constant byte address 0x4 - core index']
  #allocation1 [shape = 'u32[144,128]{1,0:T(1,128)}', space=vmem, size = 0x12000, scoped, tag = 'internal scratch']
  %s0 = inlined_call_operand.vmem [shape: f32[6,150], index: 0, kind: input, shape index: {}]
  %s1 = inlined_call_operand.vmem [shape: f32[150,1250], index: 1, kind: input, shape index: {}]
  %s2 = inlined_call_operand.vmem [shape: f32[6,1], index: 2, kind: input, shape index: {}]
  %s3 = inlined_call_operand.vmem [shape: f32[6,1250], index: 3, kind: output, shape index: {}]
  %s4 = sld [smem:[#allocation0]]
  $region22: #{encoder_decoder.21} parent=0
    _
  %s6 = ssub.s32 1, %s4
  %s7 = scalar_select 0, %s6, %s4
  // Predicated region
  $region2: #{encoder_decoder.21} parent=0 // pred_check
    _
  $region3: #{encoder_decoder.21} parent=0 // pred_check_branch
    %9 = sbr.rel (0) target = $region5
  $region4: #{encoder_decoder.21} parent=0 // pred_region
    _
  $region5: #{encoder_decoder.21} parent=0 // pred_fallthru
    _
  // Predicated region
  $region6: #{encoder_decoder.21} parent=0 // pred_check
    _
  $region7: #{encoder_decoder.21} parent=0 // pred_check_branch
    %11 = sbr.rel (0) target = $region9
  $region8: #{encoder_decoder.21} parent=0 // pred_region
    _
  $region9: #{encoder_decoder.21} parent=0 // pred_fallthru
    _
  // Predicated region
  $region10: #{encoder_decoder.21} parent=0 // pred_check
    _
  $region11: #{encoder_decoder.21} parent=0 // pred_check_branch
    %13 = sbr.rel (0) target = $region13
  $region12: #{encoder_decoder.21} parent=0 // pred_region
    _
  $region13: #{encoder_decoder.21} parent=0 // pred_fallthru
    _
  %v14 = vld [vmem:[%s0] sm:$0x3f]
  %v15 = vld [vmem:[%s0 + $0x8] sm:$0x3f]
  %v16 = vld [vmem:[%s1] sm:$0xff]
  %v17 = vld [vmem:[%s1 + $0x8] sm:$0xff]
  %v18 = vld [vmem:[%s1 + $0x10] sm:$0xff]
  %v19 = vld [vmem:[%s1 + $0x18] sm:$0xff]
  %v20 = vld [vmem:[%s1 + $0x20] sm:$0xff]
  %v21 = vld [vmem:[%s1 + $0x28] sm:$0xff]
  %v22 = vld [vmem:[%s1 + $0x30] sm:$0xff]
  %v23 = vld [vmem:[%s1 + $0x38] sm:$0xff]
  %v24 = vld [vmem:[%s1 + $0x40] sm:$0xff]
  %v25 = vld [vmem:[%s1 + $0x48] sm:$0xff]
  %v26 = vld [vmem:[%s1 + $0x50] sm:$0xff]
  %v27 = vld [vmem:[%s1 + $0x58] sm:$0xff]
  %v28 = vld [vmem:[%s1 + $0x60] sm:$0xff]
  %v29 = vld [vmem:[%s1 + $0x68] sm:$0xff]
  %v30 = vld [vmem:[%s1 + $0x70] sm:$0xff]
  %v31 = vld [vmem:[%s1 + $0x78] sm:$0xff]
  %v32 = vld [vmem:[%s1 + $0x80] sm:$0xff]
  %v33 = vld [vmem:[%s1 + $0x88] sm:$0xff]
  %v34 = vld [vmem:[%s1 + $0x90] sm:$0xff]
  %v35 = vld [vmem:[%s1 + $0x98] sm:$0xff]
  %v36 = vld [vmem:[%s1 + $0xa0] sm:$0xff]
  %v37 = vld [vmem:[%s1 + $0xa8] sm:$0xff]
  %v38 = vld [vmem:[%s1 + $0xb0] sm:$0xff]
  %v39 = vld [vmem:[%s1 + $0xb8] sm:$0xff]
  %v40 = vld [vmem:[%s1 + $0xc0] sm:$0xff]
  %v41 = vld [vmem:[%s1 + $0xc8] sm:$0xff]
  %v42 = vld [vmem:[%s1 + $0xd0] sm:$0xff]
  %v43 = vld [vmem:[%s1 + $0xd8] sm:$0xff]
  %v44 = vld [vmem:[%s1 + $0xe0] sm:$0xff]
  %v45 = vld [vmem:[%s1 + $0xe8] sm:$0xff]
  %v46 = vld [vmem:[%s1 + $0xf0] sm:$0xff]
  %v47 = vld [vmem:[%s1 + $0xf8] sm:$0xff]
  %v48 = vld [vmem:[%s1 + $0x100] sm:$0xff]
  %v49 = vld [vmem:[%s1 + $0x108] sm:$0xff]
  %v50 = vld [vmem:[%s1 + $0x110] sm:$0xff]
  %v51 = vld [vmem:[%s1 + $0x118] sm:$0xff]
  %v52 = vld [vmem:[%s1 + $0x120] sm:$0xff]
  %v53 = vld [vmem:[%s1 + $0x128] sm:$0xff]
  %v54 = vld [vmem:[%s1 + $0x130] sm:$0xff]
  %v55 = vld [vmem:[%s1 + $0x138] sm:$0xff]
  %v56 = vld [vmem:[%s1 + $0x140] sm:$0xff]
  %v57 = vld [vmem:[%s1 + $0x148] sm:$0xff]
  %v58 = vld [vmem:[%s1 + $0x150] sm:$0xff]
  %v59 = vld [vmem:[%s1 + $0x158] sm:$0xff]
  %v60 = vld [vmem:[%s1 + $0x160] sm:$0xff]
  %v61 = vld [vmem:[%s1 + $0x168] sm:$0xff]
  %v62 = vld [vmem:[%s1 + $0x170] sm:$0xff]
  %v63 = vld [vmem:[%s1 + $0x178] sm:$0xff]
  %v64 = vld [vmem:[%s1 + $0x180] sm:$0xff]
  %v65 = vld [vmem:[%s1 + $0x188] sm:$0xff]
  %v66 = vld [vmem:[%s1 + $0x190] sm:$0xff]
  %v67 = vld [vmem:[%s1 + $0x198] sm:$0xff]
  %v68 = vld [vmem:[%s1 + $0x1a0] sm:$0xff]
  %v69 = vld [vmem:[%s1 + $0x1a8] sm:$0xff]
  %v70 = vld [vmem:[%s1 + $0x1b0] sm:$0xff]
  %v71 = vld [vmem:[%s1 + $0x1b8] sm:$0xff]
  %v72 = vld [vmem:[%s1 + $0x1c0] sm:$0xff]
  %v73 = vld [vmem:[%s1 + $0x1c8] sm:$0xff]
  %v74 = vld [vmem:[%s1 + $0x1d0] sm:$0xff]
  %v75 = vld [vmem:[%s1 + $0x1d8] sm:$0xff]
  %v76 = vld [vmem:[%s1 + $0x1e0] sm:$0xff]
  %v77 = vld [vmem:[%s1 + $0x1e8] sm:$0xff]
  %v78 = vld [vmem:[%s1 + $0x1f0] sm:$0xff]
  %v79 = vld [vmem:[%s1 + $0x1f8] sm:$0xff]
  %v80 = vld [vmem:[%s1 + $0x200] sm:$0xff]
  %v81 = vld [vmem:[%s1 + $0x208] sm:$0xff]
  %v82 = vld [vmem:[%s1 + $0x210] sm:$0xff]
  %v83 = vld [vmem:[%s1 + $0x218] sm:$0xff]
  %v84 = vld [vmem:[%s1 + $0x220] sm:$0xff]
  %v85 = vld [vmem:[%s1 + $0x228] sm:$0xff]
  %v86 = vld [vmem:[%s1 + $0x230] sm:$0xff]
  %v87 = vld [vmem:[%s1 + $0x238] sm:$0xff]
  %v88 = vld [vmem:[%s1 + $0x240] sm:$0xff]
  %v89 = vld [vmem:[%s1 + $0x248] sm:$0xff]
  %v90 = vld [vmem:[%s1 + $0x250] sm:$0xff]
  %v91 = vld [vmem:[%s1 + $0x258] sm:$0xff]
  %v92 = vld [vmem:[%s1 + $0x260] sm:$0xff]
  %v93 = vld [vmem:[%s1 + $0x268] sm:$0xff]
  %v94 = vld [vmem:[%s1 + $0x270] sm:$0xff]
  %v95 = vld [vmem:[%s1 + $0x278] sm:$0xff]
  %v96 = vld [vmem:[%s1 + $0x280] sm:$0xff]
  %v97 = vld [vmem:[%s1 + $0x288] sm:$0xff]
  %v98 = vld [vmem:[%s1 + $0x290] sm:$0xff]
  %v99 = vld [vmem:[%s1 + $0x298] sm:$0xff]
  %v100 = vld [vmem:[%s1 + $0x2a0] sm:$0xff]
  %v101 = vld [vmem:[%s1 + $0x2a8] sm:$0xff]
  %v102 = vld [vmem:[%s1 + $0x2b0] sm:$0xff]
  %v103 = vld [vmem:[%s1 + $0x2b8] sm:$0xff]
  %v104 = vld [vmem:[%s1 + $0x2c0] sm:$0xff]
  %v105 = vld [vmem:[%s1 + $0x2c8] sm:$0xff]
  %v106 = vld [vmem:[%s1 + $0x2d0] sm:$0xff]
  %v107 = vld [vmem:[%s1 + $0x2d8] sm:$0xff]
  %v108 = vld [vmem:[%s1 + $0x2e0] sm:$0xff]
  %v109 = vld [vmem:[%s1 + $0x2e8] sm:$0xff]
  %v110 = vld [vmem:[%s1 + $0x2f0] sm:$0xff]
  %v111 = vld [vmem:[%s1 + $0x2f8] sm:$0xff]
  %v112 = vld [vmem:[%s1 + $0x300] sm:$0xff]
  %v113 = vld [vmem:[%s1 + $0x308] sm:$0xff]
  %v114 = vld [vmem:[%s1 + $0x310] sm:$0xff]
  %v115 = vld [vmem:[%s1 + $0x318] sm:$0xff]
  %v116 = vld [vmem:[%s1 + $0x320] sm:$0xff]
  %v117 = vld [vmem:[%s1 + $0x328] sm:$0xff]
  %v118 = vld [vmem:[%s1 + $0x330] sm:$0xff]
  %v119 = vld [vmem:[%s1 + $0x338] sm:$0xff]
  %v120 = vld [vmem:[%s1 + $0x340] sm:$0xff]
  %v121 = vld [vmem:[%s1 + $0x348] sm:$0xff]
  %v122 = vld [vmem:[%s1 + $0x350] sm:$0xff]
  %v123 = vld [vmem:[%s1 + $0x358] sm:$0xff]
  %v124 = vld [vmem:[%s1 + $0x360] sm:$0xff]
  %v125 = vld [vmem:[%s1 + $0x368] sm:$0xff]
  %v126 = vld [vmem:[%s1 + $0x370] sm:$0xff]
  %v127 = vld [vmem:[%s1 + $0x378] sm:$0xff]
  %v128 = vld [vmem:[%s1 + $0x380] sm:$0xff]
  %v129 = vld [vmem:[%s1 + $0x388] sm:$0xff]
  %v130 = vld [vmem:[%s1 + $0x390] sm:$0xff]
  %v131 = vld [vmem:[%s1 + $0x398] sm:$0xff]
  %v132 = vld [vmem:[%s1 + $0x3a0] sm:$0xff]
  %v133 = vld [vmem:[%s1 + $0x3a8] sm:$0xff]
  %v134 = vld [vmem:[%s1 + $0x3b0] sm:$0xff]
  %v135 = vld [vmem:[%s1 + $0x3b8] sm:$0xff]
  %v136 = vld [vmem:[%s1 + $0x3c0] sm:$0xff]
  %v137 = vld [vmem:[%s1 + $0x3c8] sm:$0xff]
  %v138 = vld [vmem:[%s1 + $0x3d0] sm:$0xff]
  %v139 = vld [vmem:[%s1 + $0x3d8] sm:$0xff]
  %v140 = vld [vmem:[%s1 + $0x3e0] sm:$0xff]
  %v141 = vld [vmem:[%s1 + $0x3e8] sm:$0xff]
  %v142 = vld [vmem:[%s1 + $0x3f0] sm:$0xff]
  %v143 = vld [vmem:[%s1 + $0x3f8] sm:$0xff]
  %v144 = vld [vmem:[%s1 + $0x400] sm:$0xff]
  %v145 = vld [vmem:[%s1 + $0x408] sm:$0xff]
  %v146 = vld [vmem:[%s1 + $0x410] sm:$0xff]
  %v147 = vld [vmem:[%s1 + $0x418] sm:$0xff]
  %v148 = vld [vmem:[%s1 + $0x420] sm:$0xff]
  %v149 = vld [vmem:[%s1 + $0x428] sm:$0xff]
  %v150 = vld [vmem:[%s1 + $0x430] sm:$0xff]
  %v151 = vld [vmem:[%s1 + $0x438] sm:$0xff]
  %v152 = vld [vmem:[%s1 + $0x440] sm:$0xff]
  %v153 = vld [vmem:[%s1 + $0x448] sm:$0xff]
  %v154 = vld [vmem:[%s1 + $0x450] sm:$0xff]
  %v155 = vld [vmem:[%s1 + $0x458] sm:$0xff]
  %v156 = vld [vmem:[%s1 + $0x460] sm:$0xff]
  %v157 = vld [vmem:[%s1 + $0x468] sm:$0xff]
  %v158 = vld [vmem:[%s1 + $0x470] sm:$0xff]
  %v159 = vld [vmem:[%s1 + $0x478] sm:$0xff]
  %v160 = vld [vmem:[%s1 + $0x480] sm:$0xff]
  %v161 = vld [vmem:[%s1 + $0x488] sm:$0xff]
  %v162 = vld [vmem:[%s1 + $0x490] sm:$0xff]
  %v163 = vld [vmem:[%s1 + $0x498] sm:$0xff]
  %v164 = vld [vmem:[%s1 + $0x4a0] sm:$0xff]
  %v165 = vld [vmem:[%s1 + $0x4a8] sm:$0xff]
  %v166 = vld [vmem:[%s1 + $0x4b0] sm:$0xff]
  %v167 = vld [vmem:[%s1 + $0x4b8] sm:$0xff]
  %v168 = vld [vmem:[%s1 + $0x4c0] sm:$0xff]
  %v169 = vld [vmem:[%s1 + $0x4c8] sm:$0xff]
  %v170 = vld [vmem:[%s1 + $0x4d0] sm:$0xff]
  %v171 = vld [vmem:[%s1 + $0x4d8] sm:$0xff]
  %v172 = vld [vmem:[%s1 + $0x4e0] sm:$0xff]
  %v173 = vld [vmem:[%s1 + $0x4e8] sm:$0xff]
  %v174 = vld [vmem:[%s1 + $0x4f0] sm:$0xff]
  %v175 = vld [vmem:[%s1 + $0x4f8] sm:$0xff]
  %v176 = vld [vmem:[%s1 + $0x500] sm:$0xff]
  %v177 = vld [vmem:[%s1 + $0x508] sm:$0xff]
  %v178 = vld [vmem:[%s1 + $0x510] sm:$0xff]
  %v179 = vld [vmem:[%s1 + $0x518] sm:$0xff]
  %v180 = vld [vmem:[%s1 + $0x520] sm:$0xff]
  %v181 = vld [vmem:[%s1 + $0x528] sm:$0xff]
  %v182 = vld [vmem:[%s1 + $0x530] sm:$0xff]
  %v183 = vld [vmem:[%s1 + $0x538] sm:$0xff]
  %v184 = vld [vmem:[%s1 + $0x540] sm:$0xff]
  %v185 = vld [vmem:[%s1 + $0x548] sm:$0xff]
  %v186 = vld [vmem:[%s1 + $0x550] sm:$0xff]
  %v187 = vld [vmem:[%s1 + $0x558] sm:$0xff]
  %v188 = vld [vmem:[%s1 + $0x560] sm:$0xff]
  %v189 = vld [vmem:[%s1 + $0x568] sm:$0xff]
  %v190 = vld [vmem:[%s1 + $0x570] sm:$0xff]
  %v191 = vld [vmem:[%s1 + $0x578] sm:$0xff]
  %v192 = vld [vmem:[%s1 + $0x580] sm:$0xff]
  %v193 = vld [vmem:[%s1 + $0x588] sm:$0xff]
  %v194 = vld [vmem:[%s1 + $0x590] sm:$0xff]
  %v195 = vld [vmem:[%s1 + $0x598] sm:$0xff]
  %v196 = vld [vmem:[%s1 + $0x5a0] sm:$0x3f]
  %v197 = vld [vmem:[%s1 + $0x5a8] sm:$0x3f]
  %v198 = vld [vmem:[%s1 + $0x5b0] sm:$0x3f]
  %v199 = vld [vmem:[%s1 + $0x5b8] sm:$0x3f]
  %v200 = vld [vmem:[%s1 + $0x5c0] sm:$0x3f]
  %v201 = vld [vmem:[%s1 + $0x5c8] sm:$0x3f]
  %v202 = vld [vmem:[%s1 + $0x5d0] sm:$0x3f]
  %v203 = vld [vmem:[%s1 + $0x5d8] sm:$0x3f]
  %v204 = vld [vmem:[%s1 + $0x5e0] sm:$0x3f]
  %v205 = vld [vmem:[%s1 + $0x5e8] sm:$0x3f]
  %v206 = vld [vmem:[%s2] sm:$0x3f]
  %208 = vset.pattern.permute.xlu0 0
  %209 = vperm.xlu0 %208, %v206
  %v210 = vpop.permute.xlu0 %209
  %vm212 = vcmask 179200
  %v214 = vsel %vm212, %v15, 0
  %vm216 = vcmask 1045504
  %v218 = vsel %vm216, %v196, 0
  %v221 = vsel %vm216, %v197, 0
  %v224 = vsel %vm216, %v198, 0
  %v227 = vsel %vm216, %v199, 0
  %v230 = vsel %vm216, %v200, 0
  %v233 = vsel %vm216, %v201, 0
  %v236 = vsel %vm216, %v202, 0
  %v239 = vsel %vm216, %v203, 0
  %v242 = vsel %vm216, %v204, 0
  %v245 = vsel %vm216, %v205, 0
  %247 = vmatprep.subr.mxu0 %v17
  %248 = vmatpush1.msra.mxu0 %v16
  %249 = vmatprep.subr.mxu0 %v27
  %250 = vmatpush1.msra.mxu0 %v26
  %251 = vmatprep.subr.mxu0 %v37
  %252 = vmatpush1.msra.mxu0 %v36
  %253 = vmatprep.subr.mxu0 %v47
  %254 = vmatpush1.msra.mxu0 %v46
  %255 = vmatprep.subr.mxu0 %v57
  %256 = vmatpush1.msra.mxu0 %v56
  %257 = vmatprep.subr.mxu0 %v67
  %258 = vmatpush1.msra.mxu0 %v66
  %259 = vmatprep.subr.mxu0 %v77
  %260 = vmatpush1.msra.mxu0 %v76
  %261 = vmatprep.subr.mxu0 %v87
  %262 = vmatpush1.msra.mxu0 %v86
  %263 = vmatprep.subr.mxu0 %v97
  %264 = vmatpush1.msra.mxu0 %v96
  %265 = vmatprep.subr.mxu0 %v107
  %266 = vmatpush1.msra.mxu0 %v106
  %267 = vmatprep.subr.mxu0 %v117
  %268 = vmatpush1.msra.mxu0 %v116
  %269 = vmatprep.subr.mxu0 %v127
  %270 = vmatpush1.msra.mxu0 %v126
  %271 = vmatprep.subr.mxu0 %v137
  %272 = vmatpush1.msra.mxu0 %v136
  %273 = vmatprep.subr.mxu0 %v147
  %274 = vmatpush1.msra.mxu0 %v146
  %275 = vmatprep.subr.mxu0 %v157
  %276 = vmatpush1.msra.mxu0 %v156
  %277 = vmatprep.subr.mxu0 %v167
  %278 = vmatpush1.msra.mxu0 %v166
  %279 = vmatprep.subr.mxu0 %v177
  %280 = vmatpush1.msra.mxu0 %v176
  %281 = vmatprep.subr.mxu0 %v187
  %282 = vmatpush1.msra.mxu0 %v186
  %283 = vmatprep.subr.mxu0 %v221
  %284 = vmatpush1.msra.mxu0 %v218
  %285 = vmatprep.subr.mxu0 0.0
  %286 = vmatpush1.msra.mxu0 0.0
  %287 = vmatprep.subr.mxu0 0.0
  %288 = vmatpush1.msra.mxu0 0.0
  %289 = vmatprep.subr.mxu0 0.0
  %290 = vmatpush1.msra.mxu0 0.0
  %291 = vmatprep.subr.mxu0 0.0
  %292 = vmatpush1.msra.mxu0 0.0
  %293 = vmatprep.subr.mxu0 0.0
  %294 = vmatpush1.msra.mxu0 0.0
  %295 = vmatprep.subr.mxu0 0.0
  %296 = vmatpush1.msra.mxu0 0.0
  %297 = vmatprep.subr.mxu0 0.0
  %298 = vmatpush1.msra.mxu0 0.0
  %299 = vmatprep.subr.mxu0 0.0
  %300 = vmatpush1.msra.mxu0 0.0
  %301 = vmatprep.subr.mxu0 0.0
  %302 = vmatpush1.msra.mxu0 0.0
  %303 = vmatprep.subr.mxu0 0.0
  %304 = vmatpush1.msra.mxu0 0.0
  %305 = vmatprep.subr.mxu0 0.0
  %306 = vmatpush1.msra.mxu0 0.0
  %307 = vmatprep.subr.mxu0 0.0
  %308 = vmatpush1.msra.mxu0 0.0
  %309 = vmatprep.subr.mxu0 0.0
  %310 = vmatpush1.msra.mxu0 0.0
  %311 = vmatprep.mubr.f32.mxu0 %v214
  %312 = vmatmul.mubr.f32.gmra.mrb[0].mxu0 %v14
  %v313 = vpop.f32.mrb[0].mxu0
  %v314 = vadd.f32 %v210, %v313
  %v315 = vpop.f32.mrb[0].mxu0
  %v316 = vadd.f32 %v210, %v315
  %317 = vdwg.mxu0
  %318 = vmatprep.subr.mxu0 %v19
  %319 = vmatpush1.msra.mxu0 %v18
  %320 = vmatprep.subr.mxu0 %v29
  %321 = vmatpush1.msra.mxu0 %v28
  %322 = vmatprep.subr.mxu0 %v39
  %323 = vmatpush1.msra.mxu0 %v38
  %324 = vmatprep.subr.mxu0 %v49
  %325 = vmatpush1.msra.mxu0 %v48
  %326 = vmatprep.subr.mxu0 %v59
  %327 = vmatpush1.msra.mxu0 %v58
  %328 = vmatprep.subr.mxu0 %v69
  %329 = vmatpush1.msra.mxu0 %v68
  %330 = vmatprep.subr.mxu0 %v79
  %331 = vmatpush1.msra.mxu0 %v78
  %332 = vmatprep.subr.mxu0 %v89
  %333 = vmatpush1.msra.mxu0 %v88
  %334 = vmatprep.subr.mxu0 %v99
  %335 = vmatpush1.msra.mxu0 %v98
  %336 = vmatprep.subr.mxu0 %v109
  %337 = vmatpush1.msra.mxu0 %v108
  %338 = vmatprep.subr.mxu0 %v119
  %339 = vmatpush1.msra.mxu0 %v118
  %340 = vmatprep.subr.mxu0 %v129
  %341 = vmatpush1.msra.mxu0 %v128
  %342 = vmatprep.subr.mxu0 %v139
  %343 = vmatpush1.msra.mxu0 %v138
  %344 = vmatprep.subr.mxu0 %v149
  %345 = vmatpush1.msra.mxu0 %v148
  %346 = vmatprep.subr.mxu0 %v159
  %347 = vmatpush1.msra.mxu0 %v158
  %348 = vmatprep.subr.mxu0 %v169
  %349 = vmatpush1.msra.mxu0 %v168
  %350 = vmatprep.subr.mxu0 %v179
  %351 = vmatpush1.msra.mxu0 %v178
  %352 = vmatprep.subr.mxu0 %v189
  %353 = vmatpush1.msra.mxu0 %v188
  %354 = vmatprep.subr.mxu0 %v227
  %355 = vmatpush1.msra.mxu0 %v224
  %356 = vmatprep.subr.mxu0 0.0
  %357 = vmatpush1.msra.mxu0 0.0
  %358 = vmatprep.subr.mxu0 0.0
  %359 = vmatpush1.msra.mxu0 0.0
  %360 = vmatprep.subr.mxu0 0.0
  %361 = vmatpush1.msra.mxu0 0.0
  %362 = vmatprep.subr.mxu0 0.0
  %363 = vmatpush1.msra.mxu0 0.0
  %364 = vmatprep.subr.mxu0 0.0
  %365 = vmatpush1.msra.mxu0 0.0
  %366 = vmatprep.subr.mxu0 0.0
  %367 = vmatpush1.msra.mxu0 0.0
  %368 = vmatprep.subr.mxu0 0.0
  %369 = vmatpush1.msra.mxu0 0.0
  %370 = vmatprep.subr.mxu0 0.0
  %371 = vmatpush1.msra.mxu0 0.0
  %372 = vmatprep.subr.mxu0 0.0
  %373 = vmatpush1.msra.mxu0 0.0
  %374 = vmatprep.subr.mxu0 0.0
  %375 = vmatpush1.msra.mxu0 0.0
  %376 = vmatprep.subr.mxu0 0.0
  %377 = vmatpush1.msra.mxu0 0.0
  %378 = vmatprep.subr.mxu0 0.0
  %379 = vmatpush1.msra.mxu0 0.0
  %380 = vmatprep.subr.mxu0 0.0
  %381 = vmatpush1.msra.mxu0 0.0
  %382 = vmatprep.mubr.f32.mxu0 %v214
  %383 = vmatmul.mubr.f32.gmra.mrb[0].mxu0 %v14
  %v384 = vpop.f32.mrb[0].mxu0
  %v385 = vadd.f32 %v210, %v384
  %v386 = vpop.f32.mrb[0].mxu0
  %v387 = vadd.f32 %v210, %v386
  %388 = vdwg.mxu0
  %389 = vmatprep.subr.mxu0 %v21
  %390 = vmatpush1.msra.mxu0 %v20
  %391 = vmatprep.subr.mxu0 %v31
  %392 = vmatpush1.msra.mxu0 %v30
  %393 = vmatprep.subr.mxu0 %v41
  %394 = vmatpush1.msra.mxu0 %v40
  %395 = vmatprep.subr.mxu0 %v51
  %396 = vmatpush1.msra.mxu0 %v50
  %397 = vmatprep.subr.mxu0 %v61
  %398 = vmatpush1.msra.mxu0 %v60
  %399 = vmatprep.subr.mxu0 %v71
  %400 = vmatpush1.msra.mxu0 %v70
  %401 = vmatprep.subr.mxu0 %v81
  %402 = vmatpush1.msra.mxu0 %v80
  %403 = vmatprep.subr.mxu0 %v91
  %404 = vmatpush1.msra.mxu0 %v90
  %405 = vmatprep.subr.mxu0 %v101
  %406 = vmatpush1.msra.mxu0 %v100
  %407 = vmatprep.subr.mxu0 %v111
  %408 = vmatpush1.msra.mxu0 %v110
  %409 = vmatprep.subr.mxu0 %v121
  %410 = vmatpush1.msra.mxu0 %v120
  %411 = vmatprep.subr.mxu0 %v131
  %412 = vmatpush1.msra.mxu0 %v130
  %413 = vmatprep.subr.mxu0 %v141
  %414 = vmatpush1.msra.mxu0 %v140
  %415 = vmatprep.subr.mxu0 %v151
  %416 = vmatpush1.msra.mxu0 %v150
  %417 = vmatprep.subr.mxu0 %v161
  %418 = vmatpush1.msra.mxu0 %v160
  %419 = vmatprep.subr.mxu0 %v171
  %420 = vmatpush1.msra.mxu0 %v170
  %421 = vmatprep.subr.mxu0 %v181
  %422 = vmatpush1.msra.mxu0 %v180
  %423 = vmatprep.subr.mxu0 %v191
  %424 = vmatpush1.msra.mxu0 %v190
  %425 = vmatprep.subr.mxu0 %v233
  %426 = vmatpush1.msra.mxu0 %v230
  %427 = vmatprep.subr.mxu0 0.0
  %428 = vmatpush1.msra.mxu0 0.0
  %429 = vmatprep.subr.mxu0 0.0
  %430 = vmatpush1.msra.mxu0 0.0
  %431 = vmatprep.subr.mxu0 0.0
  %432 = vmatpush1.msra.mxu0 0.0
  %433 = vmatprep.subr.mxu0 0.0
  %434 = vmatpush1.msra.mxu0 0.0
  %435 = vmatprep.subr.mxu0 0.0
  %436 = vmatpush1.msra.mxu0 0.0
  %437 = vmatprep.subr.mxu0 0.0
  %438 = vmatpush1.msra.mxu0 0.0
  %439 = vmatprep.subr.mxu0 0.0
  %440 = vmatpush1.msra.mxu0 0.0
  %441 = vmatprep.subr.mxu0 0.0
  %442 = vmatpush1.msra.mxu0 0.0
  %443 = vmatprep.subr.mxu0 0.0
  %444 = vmatpush1.msra.mxu0 0.0
  %445 = vmatprep.subr.mxu0 0.0
  %446 = vmatpush1.msra.mxu0 0.0
  %447 = vmatprep.subr.mxu0 0.0
  %448 = vmatpush1.msra.mxu0 0.0
  %449 = vmatprep.subr.mxu0 0.0
  %450 = vmatpush1.msra.mxu0 0.0
  %451 = vmatprep.subr.mxu0 0.0
  %452 = vmatpush1.msra.mxu0 0.0
  %453 = vmatprep.mubr.f32.mxu0 %v214
  %454 = vmatmul.mubr.f32.gmra.mrb[0].mxu0 %v14
  %v455 = vpop.f32.mrb[0].mxu0
  %v456 = vadd.f32 %v210, %v455
  %v457 = vpop.f32.mrb[0].mxu0
  %v458 = vadd.f32 %v210, %v457
  %459 = vdwg.mxu0
  %460 = vmatprep.subr.mxu0 %v23
  %461 = vmatpush1.msra.mxu0 %v22
  %462 = vmatprep.subr.mxu0 %v33
  %463 = vmatpush1.msra.mxu0 %v32
  %464 = vmatprep.subr.mxu0 %v43
  %465 = vmatpush1.msra.mxu0 %v42
  %466 = vmatprep.subr.mxu0 %v53
  %467 = vmatpush1.msra.mxu0 %v52
  %468 = vmatprep.subr.mxu0 %v63
  %469 = vmatpush1.msra.mxu0 %v62
  %470 = vmatprep.subr.mxu0 %v73
  %471 = vmatpush1.msra.mxu0 %v72
  %472 = vmatprep.subr.mxu0 %v83
  %473 = vmatpush1.msra.mxu0 %v82
  %474 = vmatprep.subr.mxu0 %v93
  %475 = vmatpush1.msra.mxu0 %v92
  %476 = vmatprep.subr.mxu0 %v103
  %477 = vmatpush1.msra.mxu0 %v102
  %478 = vmatprep.subr.mxu0 %v113
  %479 = vmatpush1.msra.mxu0 %v112
  %480 = vmatprep.subr.mxu0 %v123
  %481 = vmatpush1.msra.mxu0 %v122
  %482 = vmatprep.subr.mxu0 %v133
  %483 = vmatpush1.msra.mxu0 %v132
  %484 = vmatprep.subr.mxu0 %v143
  %485 = vmatpush1.msra.mxu0 %v142
  %486 = vmatprep.subr.mxu0 %v153
  %487 = vmatpush1.msra.mxu0 %v152
  %488 = vmatprep.subr.mxu0 %v163
  %489 = vmatpush1.msra.mxu0 %v162
  %490 = vmatprep.subr.mxu0 %v173
  %491 = vmatpush1.msra.mxu0 %v172
  %492 = vmatprep.subr.mxu0 %v183
  %493 = vmatpush1.msra.mxu0 %v182
  %494 = vmatprep.subr.mxu0 %v193
  %495 = vmatpush1.msra.mxu0 %v192
  %496 = vmatprep.subr.mxu0 %v239
  %497 = vmatpush1.msra.mxu0 %v236
  %498 = vmatprep.subr.mxu0 0.0
  %499 = vmatpush1.msra.mxu0 0.0
  %500 = vmatprep.subr.mxu0 0.0
  %501 = vmatpush1.msra.mxu0 0.0
  %502 = vmatprep.subr.mxu0 0.0
  %503 = vmatpush1.msra.mxu0 0.0
  %504 = vmatprep.subr.mxu0 0.0
  %505 = vmatpush1.msra.mxu0 0.0
  %506 = vmatprep.subr.mxu0 0.0
  %507 = vmatpush1.msra.mxu0 0.0
  %508 = vmatprep.subr.mxu0 0.0
  %509 = vmatpush1.msra.mxu0 0.0
  %510 = vmatprep.subr.mxu0 0.0
  %511 = vmatpush1.msra.mxu0 0.0
  %512 = vmatprep.subr.mxu0 0.0
  %513 = vmatpush1.msra.mxu0 0.0
  %514 = vmatprep.subr.mxu0 0.0
  %515 = vmatpush1.msra.mxu0 0.0
  %516 = vmatprep.subr.mxu0 0.0
  %517 = vmatpush1.msra.mxu0 0.0
  %518 = vmatprep.subr.mxu0 0.0
  %519 = vmatpush1.msra.mxu0 0.0
  %520 = vmatprep.subr.mxu0 0.0
  %521 = vmatpush1.msra.mxu0 0.0
  %522 = vmatprep.subr.mxu0 0.0
  %523 = vmatpush1.msra.mxu0 0.0
  %524 = vmatprep.mubr.f32.mxu0 %v214
  %525 = vmatmul.mubr.f32.gmra.mrb[0].mxu0 %v14
  %v526 = vpop.f32.mrb[0].mxu0
  %v527 = vadd.f32 %v210, %v526
  %v528 = vpop.f32.mrb[0].mxu0
  %v529 = vadd.f32 %v210, %v528
  %530 = vdwg.mxu0
  %531 = vmatprep.subr.mxu0 %v25
  %532 = vmatpush1.msra.mxu0 %v24
  %533 = vmatprep.subr.mxu0 %v35
  %534 = vmatpush1.msra.mxu0 %v34
  %535 = vmatprep.subr.mxu0 %v45
  %536 = vmatpush1.msra.mxu0 %v44
  %537 = vmatprep.subr.mxu0 %v55
  %538 = vmatpush1.msra.mxu0 %v54
  %539 = vmatprep.subr.mxu0 %v65
  %540 = vmatpush1.msra.mxu0 %v64
  %541 = vmatprep.subr.mxu0 %v75
  %542 = vmatpush1.msra.mxu0 %v74
  %543 = vmatprep.subr.mxu0 %v85
  %544 = vmatpush1.msra.mxu0 %v84
  %545 = vmatprep.subr.mxu0 %v95
  %546 = vmatpush1.msra.mxu0 %v94
  %547 = vmatprep.subr.mxu0 %v105
  %548 = vmatpush1.msra.mxu0 %v104
  %549 = vmatprep.subr.mxu0 %v115
  %550 = vmatpush1.msra.mxu0 %v114
  %551 = vmatprep.subr.mxu0 %v125
  %552 = vmatpush1.msra.mxu0 %v124
  %553 = vmatprep.subr.mxu0 %v135
  %554 = vmatpush1.msra.mxu0 %v134
  %555 = vmatprep.subr.mxu0 %v145
  %556 = vmatpush1.msra.mxu0 %v144
  %557 = vmatprep.subr.mxu0 %v155
  %558 = vmatpush1.msra.mxu0 %v154
  %559 = vmatprep.subr.mxu0 %v165
  %560 = vmatpush1.msra.mxu0 %v164
  %561 = vmatprep.subr.mxu0 %v175
  %562 = vmatpush1.msra.mxu0 %v174
  %563 = vmatprep.subr.mxu0 %v185
  %564 = vmatpush1.msra.mxu0 %v184
  %565 = vmatprep.subr.mxu0 %v195
  %566 = vmatpush1.msra.mxu0 %v194
  %567 = vmatprep.subr.mxu0 %v245
  %568 = vmatpush1.msra.mxu0 %v242
  %569 = vmatprep.subr.mxu0 0.0
  %570 = vmatpush1.msra.mxu0 0.0
  %571 = vmatprep.subr.mxu0 0.0
  %572 = vmatpush1.msra.mxu0 0.0
  %573 = vmatprep.subr.mxu0 0.0
  %574 = vmatpush1.msra.mxu0 0.0
  %575 = vmatprep.subr.mxu0 0.0
  %576 = vmatpush1.msra.mxu0 0.0
  %577 = vmatprep.subr.mxu0 0.0
  %578 = vmatpush1.msra.mxu0 0.0
  %579 = vmatprep.subr.mxu0 0.0
  %580 = vmatpush1.msra.mxu0 0.0
  %581 = vmatprep.subr.mxu0 0.0
  %582 = vmatpush1.msra.mxu0 0.0
  %583 = vmatprep.subr.mxu0 0.0
  %584 = vmatpush1.msra.mxu0 0.0
  %585 = vmatprep.subr.mxu0 0.0
  %586 = vmatpush1.msra.mxu0 0.0
  %587 = vmatprep.subr.mxu0 0.0
  %588 = vmatpush1.msra.mxu0 0.0
  %589 = vmatprep.subr.mxu0 0.0
  %590 = vmatpush1.msra.mxu0 0.0
  %591 = vmatprep.subr.mxu0 0.0
  %592 = vmatpush1.msra.mxu0 0.0
  %593 = vmatprep.subr.mxu0 0.0
  %594 = vmatpush1.msra.mxu0 0.0
  %595 = vmatprep.mubr.f32.mxu0 %v214
  %596 = vmatmul.mubr.f32.gmra.mrb[0].mxu0 %v14
  %v597 = vpop.f32.mrb[0].mxu0
  %v598 = vadd.f32 %v210, %v597
  %v599 = vpop.f32.mrb[0].mxu0
  %v600 = vadd.f32 %v210, %v599
  %601 = vdwg.mxu0
  %v602 = vmax.f32 %v314, 0.0
  %v603 = vmax.f32 %v316, 0.0
  %v604 = vmax.f32 %v385, 0.0
  %v605 = vmax.f32 %v387, 0.0
  %v606 = vmax.f32 %v456, 0.0
  %v607 = vmax.f32 %v458, 0.0
  %v608 = vmax.f32 %v527, 0.0
  %v609 = vmax.f32 %v529, 0.0
  %v610 = vmax.f32 %v598, 0.0
  %v611 = vmax.f32 %v600, 0.0
  %612 = vst [vmem:[%s3] sm:$0x3f] %v602
  %613 = vst [vmem:[%s3 + $0x8] sm:$0x3f] %v603
  %614 = vst [vmem:[%s3 + $0x10] sm:$0x3f] %v604
  %615 = vst [vmem:[%s3 + $0x18] sm:$0x3f] %v605
  %616 = vst [vmem:[%s3 + $0x20] sm:$0x3f] %v606
  %617 = vst [vmem:[%s3 + $0x28] sm:$0x3f] %v607
  %618 = vst [vmem:[%s3 + $0x30] sm:$0x3f] %v608
  %619 = vst [vmem:[%s3 + $0x38] sm:$0x3f] %v609
  %620 = vst [vmem:[%s3 + $0x40] sm:$0x3f] %v610
  %vm621 = vcmask 799744
  %622 = vst.msk [vmem:[%s3 + $0x48] sm:$0x3f] %vm621, %v611
  // Predicated region
  $region14: #{encoder_decoder.21} parent=0 // pred_check
    _
  $region15: #{encoder_decoder.21} parent=0 // pred_check_branch
    %624 = sbr.rel (0) target = $region17
  $region16: #{encoder_decoder.21} parent=0 // pred_region
    _
  $region17: #{encoder_decoder.21} parent=0 // pred_fallthru
    _
  // Predicated region
  $region18: #{encoder_decoder.21} parent=0 // pred_check
    _
  $region19: #{encoder_decoder.21} parent=0 // pred_check_branch
    %626 = sbr.rel (0) target = $region21
  $region20: #{encoder_decoder.21} parent=0 // pred_region
    _
  $region21: #{encoder_decoder.21} parent=0 // pred_fallthru
    _

// kernel: encoder_decoder.22
$region0: #{encoder_decoder.22}
  #allocation0 [shape = 'u32[]', space=smem, size = 0x4, offset = 0x4, fixed_abs, tag = 'smem constant byte address 0x4 - core index']
  #allocation1 [shape = 'u32[144,128]{1,0:T(1,128)}', space=vmem, size = 0x12000, scoped, tag = 'internal scratch']
  %s0 = inlined_call_operand.vmem [shape: f32[6,150], index: 0, kind: input, shape index: {}]
  %s1 = inlined_call_operand.vmem [shape: f32[150,1458], index: 1, kind: input, shape index: {}]
  %s2 = inlined_call_operand.vmem [shape: f32[6,1], index: 2, kind: input, shape index: {}]
  %s3 = inlined_call_operand.vmem [shape: f32[6,1458], index: 3, kind: output, shape index: {}]
  %s4 = sld [smem:[#allocation0]]
  $region22: #{encoder_decoder.22} parent=0
    _
  %s6 = ssub.s32 1, %s4
  %s7 = scalar_select 0, %s6, %s4
  // Predicated region
  $region2: #{encoder_decoder.22} parent=0 // pred_check
    _
  $region3: #{encoder_decoder.22} parent=0 // pred_check_branch
    %9 = sbr.rel (0) target = $region5
  $region4: #{encoder_decoder.22} parent=0 // pred_region
    _
  $region5: #{encoder_decoder.22} parent=0 // pred_fallthru
    _
  // Predicated region
  $region6: #{encoder_decoder.22} parent=0 // pred_check
    _
  $region7: #{encoder_decoder.22} parent=0 // pred_check_branch
    %11 = sbr.rel (0) target = $region9
  $region8: #{encoder_decoder.22} parent=0 // pred_region
    _
  $region9: #{encoder_decoder.22} parent=0 // pred_fallthru
    _
  // Predicated region
  $region10: #{encoder_decoder.22} parent=0 // pred_check
    _
  $region11: #{encoder_decoder.22} parent=0 // pred_check_branch
    %13 = sbr.rel (0) target = $region13
  $region12: #{encoder_decoder.22} parent=0 // pred_region
    _
  $region13: #{encoder_decoder.22} parent=0 // pred_fallthru
    _
  %v14 = vld [vmem:[%s0] sm:$0x3f]
  %v15 = vld [vmem:[%s0 + $0x8] sm:$0x3f]
  %v16 = vld [vmem:[%s1] sm:$0xff]
  %v17 = vld [vmem:[%s1 + $0x8] sm:$0xff]
  %v18 = vld [vmem:[%s1 + $0x10] sm:$0xff]
  %v19 = vld [vmem:[%s1 + $0x18] sm:$0xff]
  %v20 = vld [vmem:[%s1 + $0x20] sm:$0xff]
  %v21 = vld [vmem:[%s1 + $0x28] sm:$0xff]
  %v22 = vld [vmem:[%s1 + $0x30] sm:$0xff]
  %v23 = vld [vmem:[%s1 + $0x38] sm:$0xff]
  %v24 = vld [vmem:[%s1 + $0x40] sm:$0xff]
  %v25 = vld [vmem:[%s1 + $0x48] sm:$0xff]
  %v26 = vld [vmem:[%s1 + $0x50] sm:$0xff]
  %v27 = vld [vmem:[%s1 + $0x58] sm:$0xff]
  %v28 = vld [vmem:[%s1 + $0x60] sm:$0xff]
  %v29 = vld [vmem:[%s1 + $0x68] sm:$0xff]
  %v30 = vld [vmem:[%s1 + $0x70] sm:$0xff]
  %v31 = vld [vmem:[%s1 + $0x78] sm:$0xff]
  %v32 = vld [vmem:[%s1 + $0x80] sm:$0xff]
  %v33 = vld [vmem:[%s1 + $0x88] sm:$0xff]
  %v34 = vld [vmem:[%s1 + $0x90] sm:$0xff]
  %v35 = vld [vmem:[%s1 + $0x98] sm:$0xff]
  %v36 = vld [vmem:[%s1 + $0xa0] sm:$0xff]
  %v37 = vld [vmem:[%s1 + $0xa8] sm:$0xff]
  %v38 = vld [vmem:[%s1 + $0xb0] sm:$0xff]
  %v39 = vld [vmem:[%s1 + $0xb8] sm:$0xff]
  %v40 = vld [vmem:[%s1 + $0xc0] sm:$0xff]
  %v41 = vld [vmem:[%s1 + $0xc8] sm:$0xff]
  %v42 = vld [vmem:[%s1 + $0xd0] sm:$0xff]
  %v43 = vld [vmem:[%s1 + $0xd8] sm:$0xff]
  %v44 = vld [vmem:[%s1 + $0xe0] sm:$0xff]
  %v45 = vld [vmem:[%s1 + $0xe8] sm:$0xff]
  %v46 = vld [vmem:[%s1 + $0xf0] sm:$0xff]
  %v47 = vld [vmem:[%s1 + $0xf8] sm:$0xff]
  %v48 = vld [vmem:[%s1 + $0x100] sm:$0xff]
  %v49 = vld [vmem:[%s1 + $0x108] sm:$0xff]
  %v50 = vld [vmem:[%s1 + $0x110] sm:$0xff]
  %v51 = vld [vmem:[%s1 + $0x118] sm:$0xff]
  %v52 = vld [vmem:[%s1 + $0x120] sm:$0xff]
  %v53 = vld [vmem:[%s1 + $0x128] sm:$0xff]
  %v54 = vld [vmem:[%s1 + $0x130] sm:$0xff]
  %v55 = vld [vmem:[%s1 + $0x138] sm:$0xff]
  %v56 = vld [vmem:[%s1 + $0x140] sm:$0xff]
  %v57 = vld [vmem:[%s1 + $0x148] sm:$0xff]
  %v58 = vld [vmem:[%s1 + $0x150] sm:$0xff]
  %v59 = vld [vmem:[%s1 + $0x158] sm:$0xff]
  %v60 = vld [vmem:[%s1 + $0x160] sm:$0xff]
  %v61 = vld [vmem:[%s1 + $0x168] sm:$0xff]
  %v62 = vld [vmem:[%s1 + $0x170] sm:$0xff]
  %v63 = vld [vmem:[%s1 + $0x178] sm:$0xff]
  %v64 = vld [vmem:[%s1 + $0x180] sm:$0xff]
  %v65 = vld [vmem:[%s1 + $0x188] sm:$0xff]
  %v66 = vld [vmem:[%s1 + $0x190] sm:$0xff]
  %v67 = vld [vmem:[%s1 + $0x198] sm:$0xff]
  %v68 = vld [vmem:[%s1 + $0x1a0] sm:$0xff]
  %v69 = vld [vmem:[%s1 + $0x1a8] sm:$0xff]
  %v70 = vld [vmem:[%s1 + $0x1b0] sm:$0xff]
  %v71 = vld [vmem:[%s1 + $0x1b8] sm:$0xff]
  %v72 = vld [vmem:[%s1 + $0x1c0] sm:$0xff]
  %v73 = vld [vmem:[%s1 + $0x1c8] sm:$0xff]
  %v74 = vld [vmem:[%s1 + $0x1d0] sm:$0xff]
  %v75 = vld [vmem:[%s1 + $0x1d8] sm:$0xff]
  %v76 = vld [vmem:[%s1 + $0x1e0] sm:$0xff]
  %v77 = vld [vmem:[%s1 + $0x1e8] sm:$0xff]
  %v78 = vld [vmem:[%s1 + $0x1f0] sm:$0xff]
  %v79 = vld [vmem:[%s1 + $0x1f8] sm:$0xff]
  %v80 = vld [vmem:[%s1 + $0x200] sm:$0xff]
  %v81 = vld [vmem:[%s1 + $0x208] sm:$0xff]
  %v82 = vld [vmem:[%s1 + $0x210] sm:$0xff]
  %v83 = vld [vmem:[%s1 + $0x218] sm:$0xff]
  %v84 = vld [vmem:[%s1 + $0x220] sm:$0xff]
  %v85 = vld [vmem:[%s1 + $0x228] sm:$0xff]
  %v86 = vld [vmem:[%s1 + $0x230] sm:$0xff]
  %v87 = vld [vmem:[%s1 + $0x238] sm:$0xff]
  %v88 = vld [vmem:[%s1 + $0x240] sm:$0xff]
  %v89 = vld [vmem:[%s1 + $0x248] sm:$0xff]
  %v90 = vld [vmem:[%s1 + $0x250] sm:$0xff]
  %v91 = vld [vmem:[%s1 + $0x258] sm:$0xff]
  %v92 = vld [vmem:[%s1 + $0x260] sm:$0xff]
  %v93 = vld [vmem:[%s1 + $0x268] sm:$0xff]
  %v94 = vld [vmem:[%s1 + $0x270] sm:$0xff]
  %v95 = vld [vmem:[%s1 + $0x278] sm:$0xff]
  %v96 = vld [vmem:[%s1 + $0x280] sm:$0xff]
  %v97 = vld [vmem:[%s1 + $0x288] sm:$0xff]
  %v98 = vld [vmem:[%s1 + $0x290] sm:$0xff]
  %v99 = vld [vmem:[%s1 + $0x298] sm:$0xff]
  %v100 = vld [vmem:[%s1 + $0x2a0] sm:$0xff]
  %v101 = vld [vmem:[%s1 + $0x2a8] sm:$0xff]
  %v102 = vld [vmem:[%s1 + $0x2b0] sm:$0xff]
  %v103 = vld [vmem:[%s1 + $0x2b8] sm:$0xff]
  %v104 = vld [vmem:[%s1 + $0x2c0] sm:$0xff]
  %v105 = vld [vmem:[%s1 + $0x2c8] sm:$0xff]
  %v106 = vld [vmem:[%s1 + $0x2d0] sm:$0xff]
  %v107 = vld [vmem:[%s1 + $0x2d8] sm:$0xff]
  %v108 = vld [vmem:[%s1 + $0x2e0] sm:$0xff]
  %v109 = vld [vmem:[%s1 + $0x2e8] sm:$0xff]
  %v110 = vld [vmem:[%s1 + $0x2f0] sm:$0xff]
  %v111 = vld [vmem:[%s1 + $0x2f8] sm:$0xff]
  %v112 = vld [vmem:[%s1 + $0x300] sm:$0xff]
  %v113 = vld [vmem:[%s1 + $0x308] sm:$0xff]
  %v114 = vld [vmem:[%s1 + $0x310] sm:$0xff]
  %v115 = vld [vmem:[%s1 + $0x318] sm:$0xff]
  %v116 = vld [vmem:[%s1 + $0x320] sm:$0xff]
  %v117 = vld [vmem:[%s1 + $0x328] sm:$0xff]
  %v118 = vld [vmem:[%s1 + $0x330] sm:$0xff]
  %v119 = vld [vmem:[%s1 + $0x338] sm:$0xff]
  %v120 = vld [vmem:[%s1 + $0x340] sm:$0xff]
  %v121 = vld [vmem:[%s1 + $0x348] sm:$0xff]
  %v122 = vld [vmem:[%s1 + $0x350] sm:$0xff]
  %v123 = vld [vmem:[%s1 + $0x358] sm:$0xff]
  %v124 = vld [vmem:[%s1 + $0x360] sm:$0xff]
  %v125 = vld [vmem:[%s1 + $0x368] sm:$0xff]
  %v126 = vld [vmem:[%s1 + $0x370] sm:$0xff]
  %v127 = vld [vmem:[%s1 + $0x378] sm:$0xff]
  %v128 = vld [vmem:[%s1 + $0x380] sm:$0xff]
  %v129 = vld [vmem:[%s1 + $0x388] sm:$0xff]
  %v130 = vld [vmem:[%s1 + $0x390] sm:$0xff]
  %v131 = vld [vmem:[%s1 + $0x398] sm:$0xff]
  %v132 = vld [vmem:[%s1 + $0x3a0] sm:$0xff]
  %v133 = vld [vmem:[%s1 + $0x3a8] sm:$0xff]
  %v134 = vld [vmem:[%s1 + $0x3b0] sm:$0xff]
  %v135 = vld [vmem:[%s1 + $0x3b8] sm:$0xff]
  %v136 = vld [vmem:[%s1 + $0x3c0] sm:$0xff]
  %v137 = vld [vmem:[%s1 + $0x3c8] sm:$0xff]
  %v138 = vld [vmem:[%s1 + $0x3d0] sm:$0xff]
  %v139 = vld [vmem:[%s1 + $0x3d8] sm:$0xff]
  %v140 = vld [vmem:[%s1 + $0x3e0] sm:$0xff]
  %v141 = vld [vmem:[%s1 + $0x3e8] sm:$0xff]
  %v142 = vld [vmem:[%s1 + $0x3f0] sm:$0xff]
  %v143 = vld [vmem:[%s1 + $0x3f8] sm:$0xff]
  %v144 = vld [vmem:[%s1 + $0x400] sm:$0xff]
  %v145 = vld [vmem:[%s1 + $0x408] sm:$0xff]
  %v146 = vld [vmem:[%s1 + $0x410] sm:$0xff]
  %v147 = vld [vmem:[%s1 + $0x418] sm:$0xff]
  %v148 = vld [vmem:[%s1 + $0x420] sm:$0xff]
  %v149 = vld [vmem:[%s1 + $0x428] sm:$0xff]
  %v150 = vld [vmem:[%s1 + $0x430] sm:$0xff]
  %v151 = vld [vmem:[%s1 + $0x438] sm:$0xff]
  %v152 = vld [vmem:[%s1 + $0x440] sm:$0xff]
  %v153 = vld [vmem:[%s1 + $0x448] sm:$0xff]
  %v154 = vld [vmem:[%s1 + $0x450] sm:$0xff]
  %v155 = vld [vmem:[%s1 + $0x458] sm:$0xff]
  %v156 = vld [vmem:[%s1 + $0x460] sm:$0xff]
  %v157 = vld [vmem:[%s1 + $0x468] sm:$0xff]
  %v158 = vld [vmem:[%s1 + $0x470] sm:$0xff]
  %v159 = vld [vmem:[%s1 + $0x478] sm:$0xff]
  %v160 = vld [vmem:[%s1 + $0x480] sm:$0xff]
  %v161 = vld [vmem:[%s1 + $0x488] sm:$0xff]
  %v162 = vld [vmem:[%s1 + $0x490] sm:$0xff]
  %v163 = vld [vmem:[%s1 + $0x498] sm:$0xff]
  %v164 = vld [vmem:[%s1 + $0x4a0] sm:$0xff]
  %v165 = vld [vmem:[%s1 + $0x4a8] sm:$0xff]
  %v166 = vld [vmem:[%s1 + $0x4b0] sm:$0xff]
  %v167 = vld [vmem:[%s1 + $0x4b8] sm:$0xff]
  %v168 = vld [vmem:[%s1 + $0x4c0] sm:$0xff]
  %v169 = vld [vmem:[%s1 + $0x4c8] sm:$0xff]
  %v170 = vld [vmem:[%s1 + $0x4d0] sm:$0xff]
  %v171 = vld [vmem:[%s1 + $0x4d8] sm:$0xff]
  %v172 = vld [vmem:[%s1 + $0x4e0] sm:$0xff]
  %v173 = vld [vmem:[%s1 + $0x4e8] sm:$0xff]
  %v174 = vld [vmem:[%s1 + $0x4f0] sm:$0xff]
  %v175 = vld [vmem:[%s1 + $0x4f8] sm:$0xff]
  %v176 = vld [vmem:[%s1 + $0x500] sm:$0xff]
  %v177 = vld [vmem:[%s1 + $0x508] sm:$0xff]
  %v178 = vld [vmem:[%s1 + $0x510] sm:$0xff]
  %v179 = vld [vmem:[%s1 + $0x518] sm:$0xff]
  %v180 = vld [vmem:[%s1 + $0x520] sm:$0xff]
  %v181 = vld [vmem:[%s1 + $0x528] sm:$0xff]
  %v182 = vld [vmem:[%s1 + $0x530] sm:$0xff]
  %v183 = vld [vmem:[%s1 + $0x538] sm:$0xff]
  %v184 = vld [vmem:[%s1 + $0x540] sm:$0xff]
  %v185 = vld [vmem:[%s1 + $0x548] sm:$0xff]
  %v186 = vld [vmem:[%s1 + $0x550] sm:$0xff]
  %v187 = vld [vmem:[%s1 + $0x558] sm:$0xff]
  %v188 = vld [vmem:[%s1 + $0x560] sm:$0xff]
  %v189 = vld [vmem:[%s1 + $0x568] sm:$0xff]
  %v190 = vld [vmem:[%s1 + $0x570] sm:$0xff]
  %v191 = vld [vmem:[%s1 + $0x578] sm:$0xff]
  %v192 = vld [vmem:[%s1 + $0x580] sm:$0xff]
  %v193 = vld [vmem:[%s1 + $0x588] sm:$0xff]
  %v194 = vld [vmem:[%s1 + $0x590] sm:$0xff]
  %v195 = vld [vmem:[%s1 + $0x598] sm:$0xff]
  %v196 = vld [vmem:[%s1 + $0x5a0] sm:$0xff]
  %v197 = vld [vmem:[%s1 + $0x5a8] sm:$0xff]
  %v198 = vld [vmem:[%s1 + $0x5b0] sm:$0xff]
  %v199 = vld [vmem:[%s1 + $0x5b8] sm:$0xff]
  %v200 = vld [vmem:[%s1 + $0x5c0] sm:$0xff]
  %v201 = vld [vmem:[%s1 + $0x5c8] sm:$0xff]
  %v202 = vld [vmem:[%s1 + $0x5d0] sm:$0xff]
  %v203 = vld [vmem:[%s1 + $0x5d8] sm:$0xff]
  %v204 = vld [vmem:[%s1 + $0x5e0] sm:$0xff]
  %v205 = vld [vmem:[%s1 + $0x5e8] sm:$0xff]
  %v206 = vld [vmem:[%s1 + $0x5f0] sm:$0xff]
  %v207 = vld [vmem:[%s1 + $0x5f8] sm:$0xff]
  %v208 = vld [vmem:[%s1 + $0x600] sm:$0xff]
  %v209 = vld [vmem:[%s1 + $0x608] sm:$0xff]
  %v210 = vld [vmem:[%s1 + $0x610] sm:$0xff]
  %v211 = vld [vmem:[%s1 + $0x618] sm:$0xff]
  %v212 = vld [vmem:[%s1 + $0x620] sm:$0xff]
  %v213 = vld [vmem:[%s1 + $0x628] sm:$0xff]
  %v214 = vld [vmem:[%s1 + $0x630] sm:$0xff]
  %v215 = vld [vmem:[%s1 + $0x638] sm:$0xff]
  %v216 = vld [vmem:[%s1 + $0x640] sm:$0xff]
  %v217 = vld [vmem:[%s1 + $0x648] sm:$0xff]
  %v218 = vld [vmem:[%s1 + $0x650] sm:$0xff]
  %v219 = vld [vmem:[%s1 + $0x658] sm:$0xff]
  %v220 = vld [vmem:[%s1 + $0x660] sm:$0xff]
  %v221 = vld [vmem:[%s1 + $0x668] sm:$0xff]
  %v222 = vld [vmem:[%s1 + $0x670] sm:$0xff]
  %v223 = vld [vmem:[%s1 + $0x678] sm:$0xff]
  %v224 = vld [vmem:[%s1 + $0x680] sm:$0xff]
  %v225 = vld [vmem:[%s1 + $0x688] sm:$0xff]
  %v226 = vld [vmem:[%s1 + $0x690] sm:$0xff]
  %v227 = vld [vmem:[%s1 + $0x698] sm:$0xff]
  %v228 = vld [vmem:[%s1 + $0x6a0] sm:$0xff]
  %v229 = vld [vmem:[%s1 + $0x6a8] sm:$0xff]
  %v230 = vld [vmem:[%s1 + $0x6b0] sm:$0xff]
  %v231 = vld [vmem:[%s1 + $0x6b8] sm:$0xff]
  %v232 = vld [vmem:[%s1 + $0x6c0] sm:$0x3f]
  %v233 = vld [vmem:[%s1 + $0x6c8] sm:$0x3f]
  %v234 = vld [vmem:[%s1 + $0x6d0] sm:$0x3f]
  %v235 = vld [vmem:[%s1 + $0x6d8] sm:$0x3f]
  %v236 = vld [vmem:[%s1 + $0x6e0] sm:$0x3f]
  %v237 = vld [vmem:[%s1 + $0x6e8] sm:$0x3f]
  %v238 = vld [vmem:[%s1 + $0x6f0] sm:$0x3f]
  %v239 = vld [vmem:[%s1 + $0x6f8] sm:$0x3f]
  %v240 = vld [vmem:[%s1 + $0x700] sm:$0x3f]
  %v241 = vld [vmem:[%s1 + $0x708] sm:$0x3f]
  %v242 = vld [vmem:[%s1 + $0x710] sm:$0x3f]
  %v243 = vld [vmem:[%s1 + $0x718] sm:$0x3f]
  %v244 = vld [vmem:[%s2] sm:$0x3f]
  %246 = vset.pattern.permute.xlu0 0
  %247 = vperm.xlu0 %246, %v244
  %v248 = vpop.permute.xlu0 %247
  %vm250 = vcmask 179200
  %v252 = vsel %vm250, %v15, 0
  %vm254 = vcmask 1045504
  %v256 = vsel %vm254, %v232, 0
  %v259 = vsel %vm254, %v233, 0
  %v262 = vsel %vm254, %v234, 0
  %v265 = vsel %vm254, %v235, 0
  %v268 = vsel %vm254, %v236, 0
  %v271 = vsel %vm254, %v237, 0
  %v274 = vsel %vm254, %v238, 0
  %v277 = vsel %vm254, %v239, 0
  %v280 = vsel %vm254, %v240, 0
  %v283 = vsel %vm254, %v241, 0
  %v286 = vsel %vm254, %v242, 0
  %v289 = vsel %vm254, %v243, 0
  %291 = vmatprep.subr.mxu0 %v17
  %292 = vmatpush1.msra.mxu0 %v16
  %293 = vmatprep.subr.mxu0 %v29
  %294 = vmatpush1.msra.mxu0 %v28
  %295 = vmatprep.subr.mxu0 %v41
  %296 = vmatpush1.msra.mxu0 %v40
  %297 = vmatprep.subr.mxu0 %v53
  %298 = vmatpush1.msra.mxu0 %v52
  %299 = vmatprep.subr.mxu0 %v65
  %300 = vmatpush1.msra.mxu0 %v64
  %301 = vmatprep.subr.mxu0 %v77
  %302 = vmatpush1.msra.mxu0 %v76
  %303 = vmatprep.subr.mxu0 %v89
  %304 = vmatpush1.msra.mxu0 %v88
  %305 = vmatprep.subr.mxu0 %v101
  %306 = vmatpush1.msra.mxu0 %v100
  %307 = vmatprep.subr.mxu0 %v113
  %308 = vmatpush1.msra.mxu0 %v112
  %309 = vmatprep.subr.mxu0 %v125
  %310 = vmatpush1.msra.mxu0 %v124
  %311 = vmatprep.subr.mxu0 %v137
  %312 = vmatpush1.msra.mxu0 %v136
  %313 = vmatprep.subr.mxu0 %v149
  %314 = vmatpush1.msra.mxu0 %v148
  %315 = vmatprep.subr.mxu0 %v161
  %316 = vmatpush1.msra.mxu0 %v160
  %317 = vmatprep.subr.mxu0 %v173
  %318 = vmatpush1.msra.mxu0 %v172
  %319 = vmatprep.subr.mxu0 %v185
  %320 = vmatpush1.msra.mxu0 %v184
  %321 = vmatprep.subr.mxu0 %v197
  %322 = vmatpush1.msra.mxu0 %v196
  %323 = vmatprep.subr.mxu0 %v209
  %324 = vmatpush1.msra.mxu0 %v208
  %325 = vmatprep.subr.mxu0 %v221
  %326 = vmatpush1.msra.mxu0 %v220
  %327 = vmatprep.subr.mxu0 %v259
  %328 = vmatpush1.msra.mxu0 %v256
  %329 = vmatprep.subr.mxu0 0.0
  %330 = vmatpush1.msra.mxu0 0.0
  %331 = vmatprep.subr.mxu0 0.0
  %332 = vmatpush1.msra.mxu0 0.0
  %333 = vmatprep.subr.mxu0 0.0
  %334 = vmatpush1.msra.mxu0 0.0
  %335 = vmatprep.subr.mxu0 0.0
  %336 = vmatpush1.msra.mxu0 0.0
  %337 = vmatprep.subr.mxu0 0.0
  %338 = vmatpush1.msra.mxu0 0.0
  %339 = vmatprep.subr.mxu0 0.0
  %340 = vmatpush1.msra.mxu0 0.0
  %341 = vmatprep.subr.mxu0 0.0
  %342 = vmatpush1.msra.mxu0 0.0
  %343 = vmatprep.subr.mxu0 0.0
  %344 = vmatpush1.msra.mxu0 0.0
  %345 = vmatprep.subr.mxu0 0.0
  %346 = vmatpush1.msra.mxu0 0.0
  %347 = vmatprep.subr.mxu0 0.0
  %348 = vmatpush1.msra.mxu0 0.0
  %349 = vmatprep.subr.mxu0 0.0
  %350 = vmatpush1.msra.mxu0 0.0
  %351 = vmatprep.subr.mxu0 0.0
  %352 = vmatpush1.msra.mxu0 0.0
  %353 = vmatprep.subr.mxu0 0.0
  %354 = vmatpush1.msra.mxu0 0.0
  %355 = vmatprep.mubr.f32.mxu0 %v252
  %356 = vmatmul.mubr.f32.gmra.mrb[0].mxu0 %v14
  %v357 = vpop.f32.mrb[0].mxu0
  %v358 = vadd.f32 %v248, %v357
  %v359 = vpop.f32.mrb[0].mxu0
  %v360 = vadd.f32 %v248, %v359
  %361 = vdwg.mxu0
  %362 = vmatprep.subr.mxu0 %v19
  %363 = vmatpush1.msra.mxu0 %v18
  %364 = vmatprep.subr.mxu0 %v31
  %365 = vmatpush1.msra.mxu0 %v30
  %366 = vmatprep.subr.mxu0 %v43
  %367 = vmatpush1.msra.mxu0 %v42
  %368 = vmatprep.subr.mxu0 %v55
  %369 = vmatpush1.msra.mxu0 %v54
  %370 = vmatprep.subr.mxu0 %v67
  %371 = vmatpush1.msra.mxu0 %v66
  %372 = vmatprep.subr.mxu0 %v79
  %373 = vmatpush1.msra.mxu0 %v78
  %374 = vmatprep.subr.mxu0 %v91
  %375 = vmatpush1.msra.mxu0 %v90
  %376 = vmatprep.subr.mxu0 %v103
  %377 = vmatpush1.msra.mxu0 %v102
  %378 = vmatprep.subr.mxu0 %v115
  %379 = vmatpush1.msra.mxu0 %v114
  %380 = vmatprep.subr.mxu0 %v127
  %381 = vmatpush1.msra.mxu0 %v126
  %382 = vmatprep.subr.mxu0 %v139
  %383 = vmatpush1.msra.mxu0 %v138
  %384 = vmatprep.subr.mxu0 %v151
  %385 = vmatpush1.msra.mxu0 %v150
  %386 = vmatprep.subr.mxu0 %v163
  %387 = vmatpush1.msra.mxu0 %v162
  %388 = vmatprep.subr.mxu0 %v175
  %389 = vmatpush1.msra.mxu0 %v174
  %390 = vmatprep.subr.mxu0 %v187
  %391 = vmatpush1.msra.mxu0 %v186
  %392 = vmatprep.subr.mxu0 %v199
  %393 = vmatpush1.msra.mxu0 %v198
  %394 = vmatprep.subr.mxu0 %v211
  %395 = vmatpush1.msra.mxu0 %v210
  %396 = vmatprep.subr.mxu0 %v223
  %397 = vmatpush1.msra.mxu0 %v222
  %398 = vmatprep.subr.mxu0 %v265
  %399 = vmatpush1.msra.mxu0 %v262
  %400 = vmatprep.subr.mxu0 0.0
  %401 = vmatpush1.msra.mxu0 0.0
  %402 = vmatprep.subr.mxu0 0.0
  %403 = vmatpush1.msra.mxu0 0.0
  %404 = vmatprep.subr.mxu0 0.0
  %405 = vmatpush1.msra.mxu0 0.0
  %406 = vmatprep.subr.mxu0 0.0
  %407 = vmatpush1.msra.mxu0 0.0
  %408 = vmatprep.subr.mxu0 0.0
  %409 = vmatpush1.msra.mxu0 0.0
  %410 = vmatprep.subr.mxu0 0.0
  %411 = vmatpush1.msra.mxu0 0.0
  %412 = vmatprep.subr.mxu0 0.0
  %413 = vmatpush1.msra.mxu0 0.0
  %414 = vmatprep.subr.mxu0 0.0
  %415 = vmatpush1.msra.mxu0 0.0
  %416 = vmatprep.subr.mxu0 0.0
  %417 = vmatpush1.msra.mxu0 0.0
  %418 = vmatprep.subr.mxu0 0.0
  %419 = vmatpush1.msra.mxu0 0.0
  %420 = vmatprep.subr.mxu0 0.0
  %421 = vmatpush1.msra.mxu0 0.0
  %422 = vmatprep.subr.mxu0 0.0
  %423 = vmatpush1.msra.mxu0 0.0
  %424 = vmatprep.subr.mxu0 0.0
  %425 = vmatpush1.msra.mxu0 0.0
  %426 = vmatprep.mubr.f32.mxu0 %v252
  %427 = vmatmul.mubr.f32.gmra.mrb[0].mxu0 %v14
  %v428 = vpop.f32.mrb[0].mxu0
  %v429 = vadd.f32 %v248, %v428
  %v430 = vpop.f32.mrb[0].mxu0
  %v431 = vadd.f32 %v248, %v430
  %432 = vdwg.mxu0
  %433 = vmatprep.subr.mxu0 %v21
  %434 = vmatpush1.msra.mxu0 %v20
  %435 = vmatprep.subr.mxu0 %v33
  %436 = vmatpush1.msra.mxu0 %v32
  %437 = vmatprep.subr.mxu0 %v45
  %438 = vmatpush1.msra.mxu0 %v44
  %439 = vmatprep.subr.mxu0 %v57
  %440 = vmatpush1.msra.mxu0 %v56
  %441 = vmatprep.subr.mxu0 %v69
  %442 = vmatpush1.msra.mxu0 %v68
  %443 = vmatprep.subr.mxu0 %v81
  %444 = vmatpush1.msra.mxu0 %v80
  %445 = vmatprep.subr.mxu0 %v93
  %446 = vmatpush1.msra.mxu0 %v92
  %447 = vmatprep.subr.mxu0 %v105
  %448 = vmatpush1.msra.mxu0 %v104
  %449 = vmatprep.subr.mxu0 %v117
  %450 = vmatpush1.msra.mxu0 %v116
  %451 = vmatprep.subr.mxu0 %v129
  %452 = vmatpush1.msra.mxu0 %v128
  %453 = vmatprep.subr.mxu0 %v141
  %454 = vmatpush1.msra.mxu0 %v140
  %455 = vmatprep.subr.mxu0 %v153
  %456 = vmatpush1.msra.mxu0 %v152
  %457 = vmatprep.subr.mxu0 %v165
  %458 = vmatpush1.msra.mxu0 %v164
  %459 = vmatprep.subr.mxu0 %v177
  %460 = vmatpush1.msra.mxu0 %v176
  %461 = vmatprep.subr.mxu0 %v189
  %462 = vmatpush1.msra.mxu0 %v188
  %463 = vmatprep.subr.mxu0 %v201
  %464 = vmatpush1.msra.mxu0 %v200
  %465 = vmatprep.subr.mxu0 %v213
  %466 = vmatpush1.msra.mxu0 %v212
  %467 = vmatprep.subr.mxu0 %v225
  %468 = vmatpush1.msra.mxu0 %v224
  %469 = vmatprep.subr.mxu0 %v271
  %470 = vmatpush1.msra.mxu0 %v268
  %471 = vmatprep.subr.mxu0 0.0
  %472 = vmatpush1.msra.mxu0 0.0
  %473 = vmatprep.subr.mxu0 0.0
  %474 = vmatpush1.msra.mxu0 0.0
  %475 = vmatprep.subr.mxu0 0.0
  %476 = vmatpush1.msra.mxu0 0.0
  %477 = vmatprep.subr.mxu0 0.0
  %478 = vmatpush1.msra.mxu0 0.0
  %479 = vmatprep.subr.mxu0 0.0
  %480 = vmatpush1.msra.mxu0 0.0
  %481 = vmatprep.subr.mxu0 0.0
  %482 = vmatpush1.msra.mxu0 0.0
  %483 = vmatprep.subr.mxu0 0.0
  %484 = vmatpush1.msra.mxu0 0.0
  %485 = vmatprep.subr.mxu0 0.0
  %486 = vmatpush1.msra.mxu0 0.0
  %487 = vmatprep.subr.mxu0 0.0
  %488 = vmatpush1.msra.mxu0 0.0
  %489 = vmatprep.subr.mxu0 0.0
  %490 = vmatpush1.msra.mxu0 0.0
  %491 = vmatprep.subr.mxu0 0.0
  %492 = vmatpush1.msra.mxu0 0.0
  %493 = vmatprep.subr.mxu0 0.0
  %494 = vmatpush1.msra.mxu0 0.0
  %495 = vmatprep.subr.mxu0 0.0
  %496 = vmatpush1.msra.mxu0 0.0
  %497 = vmatprep.mubr.f32.mxu0 %v252
  %498 = vmatmul.mubr.f32.gmra.mrb[0].mxu0 %v14
  %v499 = vpop.f32.mrb[0].mxu0
  %v500 = vadd.f32 %v248, %v499
  %v501 = vpop.f32.mrb[0].mxu0
  %v502 = vadd.f32 %v248, %v501
  %503 = vdwg.mxu0
  %504 = vmatprep.subr.mxu0 %v23
  %505 = vmatpush1.msra.mxu0 %v22
  %506 = vmatprep.subr.mxu0 %v35
  %507 = vmatpush1.msra.mxu0 %v34
  %508 = vmatprep.subr.mxu0 %v47
  %509 = vmatpush1.msra.mxu0 %v46
  %510 = vmatprep.subr.mxu0 %v59
  %511 = vmatpush1.msra.mxu0 %v58
  %512 = vmatprep.subr.mxu0 %v71
  %513 = vmatpush1.msra.mxu0 %v70
  %514 = vmatprep.subr.mxu0 %v83
  %515 = vmatpush1.msra.mxu0 %v82
  %516 = vmatprep.subr.mxu0 %v95
  %517 = vmatpush1.msra.mxu0 %v94
  %518 = vmatprep.subr.mxu0 %v107
  %519 = vmatpush1.msra.mxu0 %v106
  %520 = vmatprep.subr.mxu0 %v119
  %521 = vmatpush1.msra.mxu0 %v118
  %522 = vmatprep.subr.mxu0 %v131
  %523 = vmatpush1.msra.mxu0 %v130
  %524 = vmatprep.subr.mxu0 %v143
  %525 = vmatpush1.msra.mxu0 %v142
  %526 = vmatprep.subr.mxu0 %v155
  %527 = vmatpush1.msra.mxu0 %v154
  %528 = vmatprep.subr.mxu0 %v167
  %529 = vmatpush1.msra.mxu0 %v166
  %530 = vmatprep.subr.mxu0 %v179
  %531 = vmatpush1.msra.mxu0 %v178
  %532 = vmatprep.subr.mxu0 %v191
  %533 = vmatpush1.msra.mxu0 %v190
  %534 = vmatprep.subr.mxu0 %v203
  %535 = vmatpush1.msra.mxu0 %v202
  %536 = vmatprep.subr.mxu0 %v215
  %537 = vmatpush1.msra.mxu0 %v214
  %538 = vmatprep.subr.mxu0 %v227
  %539 = vmatpush1.msra.mxu0 %v226
  %540 = vmatprep.subr.mxu0 %v277
  %541 = vmatpush1.msra.mxu0 %v274
  %542 = vmatprep.subr.mxu0 0.0
  %543 = vmatpush1.msra.mxu0 0.0
  %544 = vmatprep.subr.mxu0 0.0
  %545 = vmatpush1.msra.mxu0 0.0
  %546 = vmatprep.subr.mxu0 0.0
  %547 = vmatpush1.msra.mxu0 0.0
  %548 = vmatprep.subr.mxu0 0.0
  %549 = vmatpush1.msra.mxu0 0.0
  %550 = vmatprep.subr.mxu0 0.0
  %551 = vmatpush1.msra.mxu0 0.0
  %552 = vmatprep.subr.mxu0 0.0
  %553 = vmatpush1.msra.mxu0 0.0
  %554 = vmatprep.subr.mxu0 0.0
  %555 = vmatpush1.msra.mxu0 0.0
  %556 = vmatprep.subr.mxu0 0.0
  %557 = vmatpush1.msra.mxu0 0.0
  %558 = vmatprep.subr.mxu0 0.0
  %559 = vmatpush1.msra.mxu0 0.0
  %560 = vmatprep.subr.mxu0 0.0
  %561 = vmatpush1.msra.mxu0 0.0
  %562 = vmatprep.subr.mxu0 0.0
  %563 = vmatpush1.msra.mxu0 0.0
  %564 = vmatprep.subr.mxu0 0.0
  %565 = vmatpush1.msra.mxu0 0.0
  %566 = vmatprep.subr.mxu0 0.0
  %567 = vmatpush1.msra.mxu0 0.0
  %568 = vmatprep.mubr.f32.mxu0 %v252
  %569 = vmatmul.mubr.f32.gmra.mrb[0].mxu0 %v14
  %v570 = vpop.f32.mrb[0].mxu0
  %v571 = vadd.f32 %v248, %v570
  %v572 = vpop.f32.mrb[0].mxu0
  %v573 = vadd.f32 %v248, %v572
  %574 = vdwg.mxu0
  %575 = vmatprep.subr.mxu0 %v25
  %576 = vmatpush1.msra.mxu0 %v24
  %577 = vmatprep.subr.mxu0 %v37
  %578 = vmatpush1.msra.mxu0 %v36
  %579 = vmatprep.subr.mxu0 %v49
  %580 = vmatpush1.msra.mxu0 %v48
  %581 = vmatprep.subr.mxu0 %v61
  %582 = vmatpush1.msra.mxu0 %v60
  %583 = vmatprep.subr.mxu0 %v73
  %584 = vmatpush1.msra.mxu0 %v72
  %585 = vmatprep.subr.mxu0 %v85
  %586 = vmatpush1.msra.mxu0 %v84
  %587 = vmatprep.subr.mxu0 %v97
  %588 = vmatpush1.msra.mxu0 %v96
  %589 = vmatprep.subr.mxu0 %v109
  %590 = vmatpush1.msra.mxu0 %v108
  %591 = vmatprep.subr.mxu0 %v121
  %592 = vmatpush1.msra.mxu0 %v120
  %593 = vmatprep.subr.mxu0 %v133
  %594 = vmatpush1.msra.mxu0 %v132
  %595 = vmatprep.subr.mxu0 %v145
  %596 = vmatpush1.msra.mxu0 %v144
  %597 = vmatprep.subr.mxu0 %v157
  %598 = vmatpush1.msra.mxu0 %v156
  %599 = vmatprep.subr.mxu0 %v169
  %600 = vmatpush1.msra.mxu0 %v168
  %601 = vmatprep.subr.mxu0 %v181
  %602 = vmatpush1.msra.mxu0 %v180
  %603 = vmatprep.subr.mxu0 %v193
  %604 = vmatpush1.msra.mxu0 %v192
  %605 = vmatprep.subr.mxu0 %v205
  %606 = vmatpush1.msra.mxu0 %v204
  %607 = vmatprep.subr.mxu0 %v217
  %608 = vmatpush1.msra.mxu0 %v216
  %609 = vmatprep.subr.mxu0 %v229
  %610 = vmatpush1.msra.mxu0 %v228
  %611 = vmatprep.subr.mxu0 %v283
  %612 = vmatpush1.msra.mxu0 %v280
  %613 = vmatprep.subr.mxu0 0.0
  %614 = vmatpush1.msra.mxu0 0.0
  %615 = vmatprep.subr.mxu0 0.0
  %616 = vmatpush1.msra.mxu0 0.0
  %617 = vmatprep.subr.mxu0 0.0
  %618 = vmatpush1.msra.mxu0 0.0
  %619 = vmatprep.subr.mxu0 0.0
  %620 = vmatpush1.msra.mxu0 0.0
  %621 = vmatprep.subr.mxu0 0.0
  %622 = vmatpush1.msra.mxu0 0.0
  %623 = vmatprep.subr.mxu0 0.0
  %624 = vmatpush1.msra.mxu0 0.0
  %625 = vmatprep.subr.mxu0 0.0
  %626 = vmatpush1.msra.mxu0 0.0
  %627 = vmatprep.subr.mxu0 0.0
  %628 = vmatpush1.msra.mxu0 0.0
  %629 = vmatprep.subr.mxu0 0.0
  %630 = vmatpush1.msra.mxu0 0.0
  %631 = vmatprep.subr.mxu0 0.0
  %632 = vmatpush1.msra.mxu0 0.0
  %633 = vmatprep.subr.mxu0 0.0
  %634 = vmatpush1.msra.mxu0 0.0
  %635 = vmatprep.subr.mxu0 0.0
  %636 = vmatpush1.msra.mxu0 0.0
  %637 = vmatprep.subr.mxu0 0.0
  %638 = vmatpush1.msra.mxu0 0.0
  %639 = vmatprep.mubr.f32.mxu0 %v252
  %640 = vmatmul.mubr.f32.gmra.mrb[0].mxu0 %v14
  %v641 = vpop.f32.mrb[0].mxu0
  %v642 = vadd.f32 %v248, %v641
  %v643 = vpop.f32.mrb[0].mxu0
  %v644 = vadd.f32 %v248, %v643
  %645 = vdwg.mxu0
  %646 = vmatprep.subr.mxu0 %v27
  %647 = vmatpush1.msra.mxu0 %v26
  %648 = vmatprep.subr.mxu0 %v39
  %649 = vmatpush1.msra.mxu0 %v38
  %650 = vmatprep.subr.mxu0 %v51
  %651 = vmatpush1.msra.mxu0 %v50
  %652 = vmatprep.subr.mxu0 %v63
  %653 = vmatpush1.msra.mxu0 %v62
  %654 = vmatprep.subr.mxu0 %v75
  %655 = vmatpush1.msra.mxu0 %v74
  %656 = vmatprep.subr.mxu0 %v87
  %657 = vmatpush1.msra.mxu0 %v86
  %658 = vmatprep.subr.mxu0 %v99
  %659 = vmatpush1.msra.mxu0 %v98
  %660 = vmatprep.subr.mxu0 %v111
  %661 = vmatpush1.msra.mxu0 %v110
  %662 = vmatprep.subr.mxu0 %v123
  %663 = vmatpush1.msra.mxu0 %v122
  %664 = vmatprep.subr.mxu0 %v135
  %665 = vmatpush1.msra.mxu0 %v134
  %666 = vmatprep.subr.mxu0 %v147
  %667 = vmatpush1.msra.mxu0 %v146
  %668 = vmatprep.subr.mxu0 %v159
  %669 = vmatpush1.msra.mxu0 %v158
  %670 = vmatprep.subr.mxu0 %v171
  %671 = vmatpush1.msra.mxu0 %v170
  %672 = vmatprep.subr.mxu0 %v183
  %673 = vmatpush1.msra.mxu0 %v182
  %674 = vmatprep.subr.mxu0 %v195
  %675 = vmatpush1.msra.mxu0 %v194
  %676 = vmatprep.subr.mxu0 %v207
  %677 = vmatpush1.msra.mxu0 %v206
  %678 = vmatprep.subr.mxu0 %v219
  %679 = vmatpush1.msra.mxu0 %v218
  %680 = vmatprep.subr.mxu0 %v231
  %681 = vmatpush1.msra.mxu0 %v230
  %682 = vmatprep.subr.mxu0 %v289
  %683 = vmatpush1.msra.mxu0 %v286
  %684 = vmatprep.subr.mxu0 0.0
  %685 = vmatpush1.msra.mxu0 0.0
  %686 = vmatprep.subr.mxu0 0.0
  %687 = vmatpush1.msra.mxu0 0.0
  %688 = vmatprep.subr.mxu0 0.0
  %689 = vmatpush1.msra.mxu0 0.0
  %690 = vmatprep.subr.mxu0 0.0
  %691 = vmatpush1.msra.mxu0 0.0
  %692 = vmatprep.subr.mxu0 0.0
  %693 = vmatpush1.msra.mxu0 0.0
  %694 = vmatprep.subr.mxu0 0.0
  %695 = vmatpush1.msra.mxu0 0.0
  %696 = vmatprep.subr.mxu0 0.0
  %697 = vmatpush1.msra.mxu0 0.0
  %698 = vmatprep.subr.mxu0 0.0
  %699 = vmatpush1.msra.mxu0 0.0
  %700 = vmatprep.subr.mxu0 0.0
  %701 = vmatpush1.msra.mxu0 0.0
  %702 = vmatprep.subr.mxu0 0.0
  %703 = vmatpush1.msra.mxu0 0.0
  %704 = vmatprep.subr.mxu0 0.0
  %705 = vmatpush1.msra.mxu0 0.0
  %706 = vmatprep.subr.mxu0 0.0
  %707 = vmatpush1.msra.mxu0 0.0
  %708 = vmatprep.subr.mxu0 0.0
  %709 = vmatpush1.msra.mxu0 0.0
  %710 = vmatprep.mubr.f32.mxu0 %v252
  %711 = vmatmul.mubr.f32.gmra.mrb[0].mxu0 %v14
  %v712 = vpop.f32.mrb[0].mxu0
  %v713 = vadd.f32 %v248, %v712
  %v714 = vpop.f32.mrb[0].mxu0
  %v715 = vadd.f32 %v248, %v714
  %716 = vdwg.mxu0
  %v717 = vmax.f32 %v358, 0.0
  %v718 = vmax.f32 %v360, 0.0
  %v719 = vmax.f32 %v429, 0.0
  %v720 = vmax.f32 %v431, 0.0
  %v721 = vmax.f32 %v500, 0.0
  %v722 = vmax.f32 %v502, 0.0
  %v723 = vmax.f32 %v571, 0.0
  %v724 = vmax.f32 %v573, 0.0
  %v725 = vmax.f32 %v642, 0.0
  %v726 = vmax.f32 %v644, 0.0
  %v727 = vmax.f32 %v713, 0.0
  %v728 = vmax.f32 %v715, 0.0
  %729 = vst [vmem:[%s3] sm:$0x3f] %v717
  %730 = vst [vmem:[%s3 + $0x8] sm:$0x3f] %v718
  %731 = vst [vmem:[%s3 + $0x10] sm:$0x3f] %v719
  %732 = vst [vmem:[%s3 + $0x18] sm:$0x3f] %v720
  %733 = vst [vmem:[%s3 + $0x20] sm:$0x3f] %v721
  %734 = vst [vmem:[%s3 + $0x28] sm:$0x3f] %v722
  %735 = vst [vmem:[%s3 + $0x30] sm:$0x3f] %v723
  %736 = vst [vmem:[%s3 + $0x38] sm:$0x3f] %v724
  %737 = vst [vmem:[%s3 + $0x40] sm:$0x3f] %v725
  %738 = vst [vmem:[%s3 + $0x48] sm:$0x3f] %v726
  %739 = vst [vmem:[%s3 + $0x50] sm:$0x3f] %v727
  %vm740 = vcmask 406528
  %741 = vst.msk [vmem:[%s3 + $0x58] sm:$0x3f] %vm740, %v728
  // Predicated region
  $region14: #{encoder_decoder.22} parent=0 // pred_check
    _
  $region15: #{encoder_decoder.22} parent=0 // pred_check_branch
    %743 = sbr.rel (0) target = $region17
  $region16: #{encoder_decoder.22} parent=0 // pred_region
    _
  $region17: #{encoder_decoder.22} parent=0 // pred_fallthru
    _
  // Predicated region
  $region18: #{encoder_decoder.22} parent=0 // pred_check
    _
  $region19: #{encoder_decoder.22} parent=0 // pred_check_branch
    %745 = sbr.rel (0) target = $region21
  $region20: #{encoder_decoder.22} parent=0 // pred_region
    _
  $region21: #{encoder_decoder.22} parent=0 // pred_fallthru
    _

// kernel: encoder_decoder.23
$region0: #{encoder_decoder.23}
  #allocation0 [shape = 'u32[]', space=smem, size = 0x4, offset = 0x4, fixed_abs, tag = 'smem constant byte address 0x4 - core index']
  #allocation1 [shape = 'u32[144,128]{1,0:T(1,128)}', space=vmem, size = 0x12000, scoped, tag = 'internal scratch']
  %s0 = inlined_call_operand.vmem [shape: f32[6,96], index: 0, kind: input, shape index: {}]
  %s1 = inlined_call_operand.vmem [shape: f32[96,1568], index: 1, kind: input, shape index: {}]
  %s2 = inlined_call_operand.vmem [shape: f32[6,1], index: 2, kind: input, shape index: {}]
  %s3 = inlined_call_operand.vmem [shape: f32[6,1568], index: 3, kind: output, shape index: {}]
  %s4 = sld [smem:[#allocation0]]
  $region22: #{encoder_decoder.23} parent=0
    _
  %s6 = ssub.s32 1, %s4
  %s7 = scalar_select 0, %s6, %s4
  // Predicated region
  $region2: #{encoder_decoder.23} parent=0 // pred_check
    _
  $region3: #{encoder_decoder.23} parent=0 // pred_check_branch
    %9 = sbr.rel (0) target = $region5
  $region4: #{encoder_decoder.23} parent=0 // pred_region
    _
  $region5: #{encoder_decoder.23} parent=0 // pred_fallthru
    _
  // Predicated region
  $region6: #{encoder_decoder.23} parent=0 // pred_check
    _
  $region7: #{encoder_decoder.23} parent=0 // pred_check_branch
    %11 = sbr.rel (0) target = $region9
  $region8: #{encoder_decoder.23} parent=0 // pred_region
    _
  $region9: #{encoder_decoder.23} parent=0 // pred_fallthru
    _
  // Predicated region
  $region10: #{encoder_decoder.23} parent=0 // pred_check
    _
  $region11: #{encoder_decoder.23} parent=0 // pred_check_branch
    %13 = sbr.rel (0) target = $region13
  $region12: #{encoder_decoder.23} parent=0 // pred_region
    _
  $region13: #{encoder_decoder.23} parent=0 // pred_fallthru
    _
  %v14 = vld [vmem:[%s0] sm:$0x3f]
  %v15 = vld [vmem:[%s1] sm:$0xff]
  %v16 = vld [vmem:[%s1 + $0x8] sm:$0xff]
  %v17 = vld [vmem:[%s1 + $0x10] sm:$0xff]
  %v18 = vld [vmem:[%s1 + $0x18] sm:$0xff]
  %v19 = vld [vmem:[%s1 + $0x20] sm:$0xff]
  %v20 = vld [vmem:[%s1 + $0x28] sm:$0xff]
  %v21 = vld [vmem:[%s1 + $0x30] sm:$0xff]
  %v22 = vld [vmem:[%s1 + $0x38] sm:$0xff]
  %v23 = vld [vmem:[%s1 + $0x40] sm:$0xff]
  %v24 = vld [vmem:[%s1 + $0x48] sm:$0xff]
  %v25 = vld [vmem:[%s1 + $0x50] sm:$0xff]
  %v26 = vld [vmem:[%s1 + $0x58] sm:$0xff]
  %v27 = vld [vmem:[%s1 + $0x60] sm:$0xff]
  %v28 = vld [vmem:[%s1 + $0x68] sm:$0xff]
  %v29 = vld [vmem:[%s1 + $0x70] sm:$0xff]
  %v30 = vld [vmem:[%s1 + $0x78] sm:$0xff]
  %v31 = vld [vmem:[%s1 + $0x80] sm:$0xff]
  %v32 = vld [vmem:[%s1 + $0x88] sm:$0xff]
  %v33 = vld [vmem:[%s1 + $0x90] sm:$0xff]
  %v34 = vld [vmem:[%s1 + $0x98] sm:$0xff]
  %v35 = vld [vmem:[%s1 + $0xa0] sm:$0xff]
  %v36 = vld [vmem:[%s1 + $0xa8] sm:$0xff]
  %v37 = vld [vmem:[%s1 + $0xb0] sm:$0xff]
  %v38 = vld [vmem:[%s1 + $0xb8] sm:$0xff]
  %v39 = vld [vmem:[%s1 + $0xc0] sm:$0xff]
  %v40 = vld [vmem:[%s1 + $0xc8] sm:$0xff]
  %v41 = vld [vmem:[%s1 + $0xd0] sm:$0xff]
  %v42 = vld [vmem:[%s1 + $0xd8] sm:$0xff]
  %v43 = vld [vmem:[%s1 + $0xe0] sm:$0xff]
  %v44 = vld [vmem:[%s1 + $0xe8] sm:$0xff]
  %v45 = vld [vmem:[%s1 + $0xf0] sm:$0xff]
  %v46 = vld [vmem:[%s1 + $0xf8] sm:$0xff]
  %v47 = vld [vmem:[%s1 + $0x100] sm:$0xff]
  %v48 = vld [vmem:[%s1 + $0x108] sm:$0xff]
  %v49 = vld [vmem:[%s1 + $0x110] sm:$0xff]
  %v50 = vld [vmem:[%s1 + $0x118] sm:$0xff]
  %v51 = vld [vmem:[%s1 + $0x120] sm:$0xff]
  %v52 = vld [vmem:[%s1 + $0x128] sm:$0xff]
  %v53 = vld [vmem:[%s1 + $0x130] sm:$0xff]
  %v54 = vld [vmem:[%s1 + $0x138] sm:$0xff]
  %v55 = vld [vmem:[%s1 + $0x140] sm:$0xff]
  %v56 = vld [vmem:[%s1 + $0x148] sm:$0xff]
  %v57 = vld [vmem:[%s1 + $0x150] sm:$0xff]
  %v58 = vld [vmem:[%s1 + $0x158] sm:$0xff]
  %v59 = vld [vmem:[%s1 + $0x160] sm:$0xff]
  %v60 = vld [vmem:[%s1 + $0x168] sm:$0xff]
  %v61 = vld [vmem:[%s1 + $0x170] sm:$0xff]
  %v62 = vld [vmem:[%s1 + $0x178] sm:$0xff]
  %v63 = vld [vmem:[%s1 + $0x180] sm:$0xff]
  %v64 = vld [vmem:[%s1 + $0x188] sm:$0xff]
  %v65 = vld [vmem:[%s1 + $0x190] sm:$0xff]
  %v66 = vld [vmem:[%s1 + $0x198] sm:$0xff]
  %v67 = vld [vmem:[%s1 + $0x1a0] sm:$0xff]
  %v68 = vld [vmem:[%s1 + $0x1a8] sm:$0xff]
  %v69 = vld [vmem:[%s1 + $0x1b0] sm:$0xff]
  %v70 = vld [vmem:[%s1 + $0x1b8] sm:$0xff]
  %v71 = vld [vmem:[%s1 + $0x1c0] sm:$0xff]
  %v72 = vld [vmem:[%s1 + $0x1c8] sm:$0xff]
  %v73 = vld [vmem:[%s1 + $0x1d0] sm:$0xff]
  %v74 = vld [vmem:[%s1 + $0x1d8] sm:$0xff]
  %v75 = vld [vmem:[%s1 + $0x1e0] sm:$0xff]
  %v76 = vld [vmem:[%s1 + $0x1e8] sm:$0xff]
  %v77 = vld [vmem:[%s1 + $0x1f0] sm:$0xff]
  %v78 = vld [vmem:[%s1 + $0x1f8] sm:$0xff]
  %v79 = vld [vmem:[%s1 + $0x200] sm:$0xff]
  %v80 = vld [vmem:[%s1 + $0x208] sm:$0xff]
  %v81 = vld [vmem:[%s1 + $0x210] sm:$0xff]
  %v82 = vld [vmem:[%s1 + $0x218] sm:$0xff]
  %v83 = vld [vmem:[%s1 + $0x220] sm:$0xff]
  %v84 = vld [vmem:[%s1 + $0x228] sm:$0xff]
  %v85 = vld [vmem:[%s1 + $0x230] sm:$0xff]
  %v86 = vld [vmem:[%s1 + $0x238] sm:$0xff]
  %v87 = vld [vmem:[%s1 + $0x240] sm:$0xff]
  %v88 = vld [vmem:[%s1 + $0x248] sm:$0xff]
  %v89 = vld [vmem:[%s1 + $0x250] sm:$0xff]
  %v90 = vld [vmem:[%s1 + $0x258] sm:$0xff]
  %v91 = vld [vmem:[%s1 + $0x260] sm:$0xff]
  %v92 = vld [vmem:[%s1 + $0x268] sm:$0xff]
  %v93 = vld [vmem:[%s1 + $0x270] sm:$0xff]
  %v94 = vld [vmem:[%s1 + $0x278] sm:$0xff]
  %v95 = vld [vmem:[%s1 + $0x280] sm:$0xff]
  %v96 = vld [vmem:[%s1 + $0x288] sm:$0xff]
  %v97 = vld [vmem:[%s1 + $0x290] sm:$0xff]
  %v98 = vld [vmem:[%s1 + $0x298] sm:$0xff]
  %v99 = vld [vmem:[%s1 + $0x2a0] sm:$0xff]
  %v100 = vld [vmem:[%s1 + $0x2a8] sm:$0xff]
  %v101 = vld [vmem:[%s1 + $0x2b0] sm:$0xff]
  %v102 = vld [vmem:[%s1 + $0x2b8] sm:$0xff]
  %v103 = vld [vmem:[%s1 + $0x2c0] sm:$0xff]
  %v104 = vld [vmem:[%s1 + $0x2c8] sm:$0xff]
  %v105 = vld [vmem:[%s1 + $0x2d0] sm:$0xff]
  %v106 = vld [vmem:[%s1 + $0x2d8] sm:$0xff]
  %v107 = vld [vmem:[%s1 + $0x2e0] sm:$0xff]
  %v108 = vld [vmem:[%s1 + $0x2e8] sm:$0xff]
  %v109 = vld [vmem:[%s1 + $0x2f0] sm:$0xff]
  %v110 = vld [vmem:[%s1 + $0x2f8] sm:$0xff]
  %v111 = vld [vmem:[%s1 + $0x300] sm:$0xff]
  %v112 = vld [vmem:[%s1 + $0x308] sm:$0xff]
  %v113 = vld [vmem:[%s1 + $0x310] sm:$0xff]
  %v114 = vld [vmem:[%s1 + $0x318] sm:$0xff]
  %v115 = vld [vmem:[%s1 + $0x320] sm:$0xff]
  %v116 = vld [vmem:[%s1 + $0x328] sm:$0xff]
  %v117 = vld [vmem:[%s1 + $0x330] sm:$0xff]
  %v118 = vld [vmem:[%s1 + $0x338] sm:$0xff]
  %v119 = vld [vmem:[%s1 + $0x340] sm:$0xff]
  %v120 = vld [vmem:[%s1 + $0x348] sm:$0xff]
  %v121 = vld [vmem:[%s1 + $0x350] sm:$0xff]
  %v122 = vld [vmem:[%s1 + $0x358] sm:$0xff]
  %v123 = vld [vmem:[%s1 + $0x360] sm:$0xff]
  %v124 = vld [vmem:[%s1 + $0x368] sm:$0xff]
  %v125 = vld [vmem:[%s1 + $0x370] sm:$0xff]
  %v126 = vld [vmem:[%s1 + $0x378] sm:$0xff]
  %v127 = vld [vmem:[%s1 + $0x380] sm:$0xff]
  %v128 = vld [vmem:[%s1 + $0x388] sm:$0xff]
  %v129 = vld [vmem:[%s1 + $0x390] sm:$0xff]
  %v130 = vld [vmem:[%s1 + $0x398] sm:$0xff]
  %v131 = vld [vmem:[%s1 + $0x3a0] sm:$0xff]
  %v132 = vld [vmem:[%s1 + $0x3a8] sm:$0xff]
  %v133 = vld [vmem:[%s1 + $0x3b0] sm:$0xff]
  %v134 = vld [vmem:[%s1 + $0x3b8] sm:$0xff]
  %v135 = vld [vmem:[%s1 + $0x3c0] sm:$0xff]
  %v136 = vld [vmem:[%s1 + $0x3c8] sm:$0xff]
  %v137 = vld [vmem:[%s1 + $0x3d0] sm:$0xff]
  %v138 = vld [vmem:[%s1 + $0x3d8] sm:$0xff]
  %v139 = vld [vmem:[%s1 + $0x3e0] sm:$0xff]
  %v140 = vld [vmem:[%s1 + $0x3e8] sm:$0xff]
  %v141 = vld [vmem:[%s1 + $0x3f0] sm:$0xff]
  %v142 = vld [vmem:[%s1 + $0x3f8] sm:$0xff]
  %v143 = vld [vmem:[%s1 + $0x400] sm:$0xff]
  %v144 = vld [vmem:[%s1 + $0x408] sm:$0xff]
  %v145 = vld [vmem:[%s1 + $0x410] sm:$0xff]
  %v146 = vld [vmem:[%s1 + $0x418] sm:$0xff]
  %v147 = vld [vmem:[%s1 + $0x420] sm:$0xff]
  %v148 = vld [vmem:[%s1 + $0x428] sm:$0xff]
  %v149 = vld [vmem:[%s1 + $0x430] sm:$0xff]
  %v150 = vld [vmem:[%s1 + $0x438] sm:$0xff]
  %v151 = vld [vmem:[%s1 + $0x440] sm:$0xff]
  %v152 = vld [vmem:[%s1 + $0x448] sm:$0xff]
  %v153 = vld [vmem:[%s1 + $0x450] sm:$0xff]
  %v154 = vld [vmem:[%s1 + $0x458] sm:$0xff]
  %v155 = vld [vmem:[%s1 + $0x460] sm:$0xff]
  %v156 = vld [vmem:[%s1 + $0x468] sm:$0xff]
  %v157 = vld [vmem:[%s1 + $0x470] sm:$0xff]
  %v158 = vld [vmem:[%s1 + $0x478] sm:$0xff]
  %v159 = vld [vmem:[%s1 + $0x480] sm:$0xff]
  %v160 = vld [vmem:[%s1 + $0x488] sm:$0xff]
  %v161 = vld [vmem:[%s1 + $0x490] sm:$0xff]
  %v162 = vld [vmem:[%s1 + $0x498] sm:$0xff]
  %v163 = vld [vmem:[%s1 + $0x4a0] sm:$0xff]
  %v164 = vld [vmem:[%s1 + $0x4a8] sm:$0xff]
  %v165 = vld [vmem:[%s1 + $0x4b0] sm:$0xff]
  %v166 = vld [vmem:[%s1 + $0x4b8] sm:$0xff]
  %v167 = vld [vmem:[%s1 + $0x4c0] sm:$0xff]
  %v168 = vld [vmem:[%s1 + $0x4c8] sm:$0xff]
  %v169 = vld [vmem:[%s1 + $0x4d0] sm:$0xff]
  %v170 = vld [vmem:[%s1 + $0x4d8] sm:$0xff]
  %v171 = vld [vmem:[%s2] sm:$0x3f]
  %173 = vset.pattern.permute.xlu0 0
  %174 = vperm.xlu0 %173, %v171
  %v175 = vpop.permute.xlu0 %174
  %vm177 = vcmask 785408
  %v179 = vsel %vm177, %v14, 0
  %181 = vmatprep.subr.mxu0 %v16
  %182 = vmatpush1.msra.mxu0 %v15
  %183 = vmatprep.subr.mxu0 %v29
  %184 = vmatpush1.msra.mxu0 %v28
  %185 = vmatprep.subr.mxu0 %v42
  %186 = vmatpush1.msra.mxu0 %v41
  %187 = vmatprep.subr.mxu0 %v55
  %188 = vmatpush1.msra.mxu0 %v54
  %189 = vmatprep.subr.mxu0 %v68
  %190 = vmatpush1.msra.mxu0 %v67
  %191 = vmatprep.subr.mxu0 %v81
  %192 = vmatpush1.msra.mxu0 %v80
  %193 = vmatprep.subr.mxu0 %v94
  %194 = vmatpush1.msra.mxu0 %v93
  %195 = vmatprep.subr.mxu0 %v107
  %196 = vmatpush1.msra.mxu0 %v106
  %197 = vmatprep.subr.mxu0 %v120
  %198 = vmatpush1.msra.mxu0 %v119
  %199 = vmatprep.subr.mxu0 %v133
  %200 = vmatpush1.msra.mxu0 %v132
  %201 = vmatprep.subr.mxu0 %v146
  %202 = vmatpush1.msra.mxu0 %v145
  %203 = vmatprep.subr.mxu0 %v159
  %204 = vmatpush1.msra.mxu0 %v158
  %205 = vmatprep.subr.mxu0 0.0
  %206 = vmatpush1.msra.mxu0 0.0
  %207 = vmatprep.subr.mxu0 0.0
  %208 = vmatpush1.msra.mxu0 0.0
  %209 = vmatprep.subr.mxu0 0.0
  %210 = vmatpush1.msra.mxu0 0.0
  %211 = vmatprep.subr.mxu0 0.0
  %212 = vmatpush1.msra.mxu0 0.0
  %213 = vmatprep.subr.mxu0 0.0
  %214 = vmatpush1.msra.mxu0 0.0
  %215 = vmatprep.subr.mxu0 0.0
  %216 = vmatpush1.msra.mxu0 0.0
  %217 = vmatprep.subr.mxu0 0.0
  %218 = vmatpush1.msra.mxu0 0.0
  %219 = vmatprep.subr.mxu0 0.0
  %220 = vmatpush1.msra.mxu0 0.0
  %221 = vmatprep.subr.mxu0 0.0
  %222 = vmatpush1.msra.mxu0 0.0
  %223 = vmatprep.subr.mxu0 0.0
  %224 = vmatpush1.msra.mxu0 0.0
  %225 = vmatprep.subr.mxu0 0.0
  %226 = vmatpush1.msra.mxu0 0.0
  %227 = vmatprep.subr.mxu0 0.0
  %228 = vmatpush1.msra.mxu0 0.0
  %229 = vmatprep.subr.mxu0 0.0
  %230 = vmatpush1.msra.mxu0 0.0
  %231 = vmatprep.subr.mxu0 0.0
  %232 = vmatpush1.msra.mxu0 0.0
  %233 = vmatprep.subr.mxu0 0.0
  %234 = vmatpush1.msra.mxu0 0.0
  %235 = vmatprep.subr.mxu0 0.0
  %236 = vmatpush1.msra.mxu0 0.0
  %237 = vmatprep.subr.mxu0 0.0
  %238 = vmatpush1.msra.mxu0 0.0
  %239 = vmatprep.subr.mxu0 0.0
  %240 = vmatpush1.msra.mxu0 0.0
  %241 = vmatprep.subr.mxu0 0.0
  %242 = vmatpush1.msra.mxu0 0.0
  %243 = vmatprep.subr.mxu0 0.0
  %244 = vmatpush1.msra.mxu0 0.0
  %245 = vmatprep.mubr.f32.mxu0 0.0
  %246 = vmatmul.mubr.f32.gmra.mrb[0].mxu0 %v179
  %v247 = vpop.f32.mrb[0].mxu0
  %v248 = vadd.f32 %v175, %v247
  %v249 = vpop.f32.mrb[0].mxu0
  %v250 = vadd.f32 %v175, %v249
  %251 = vdwg.mxu0
  %252 = vmatprep.subr.mxu0 %v18
  %253 = vmatpush1.msra.mxu0 %v17
  %254 = vmatprep.subr.mxu0 %v31
  %255 = vmatpush1.msra.mxu0 %v30
  %256 = vmatprep.subr.mxu0 %v44
  %257 = vmatpush1.msra.mxu0 %v43
  %258 = vmatprep.subr.mxu0 %v57
  %259 = vmatpush1.msra.mxu0 %v56
  %260 = vmatprep.subr.mxu0 %v70
  %261 = vmatpush1.msra.mxu0 %v69
  %262 = vmatprep.subr.mxu0 %v83
  %263 = vmatpush1.msra.mxu0 %v82
  %264 = vmatprep.subr.mxu0 %v96
  %265 = vmatpush1.msra.mxu0 %v95
  %266 = vmatprep.subr.mxu0 %v109
  %267 = vmatpush1.msra.mxu0 %v108
  %268 = vmatprep.subr.mxu0 %v122
  %269 = vmatpush1.msra.mxu0 %v121
  %270 = vmatprep.subr.mxu0 %v135
  %271 = vmatpush1.msra.mxu0 %v134
  %272 = vmatprep.subr.mxu0 %v148
  %273 = vmatpush1.msra.mxu0 %v147
  %274 = vmatprep.subr.mxu0 %v161
  %275 = vmatpush1.msra.mxu0 %v160
  %276 = vmatprep.subr.mxu0 0.0
  %277 = vmatpush1.msra.mxu0 0.0
  %278 = vmatprep.subr.mxu0 0.0
  %279 = vmatpush1.msra.mxu0 0.0
  %280 = vmatprep.subr.mxu0 0.0
  %281 = vmatpush1.msra.mxu0 0.0
  %282 = vmatprep.subr.mxu0 0.0
  %283 = vmatpush1.msra.mxu0 0.0
  %284 = vmatprep.subr.mxu0 0.0
  %285 = vmatpush1.msra.mxu0 0.0
  %286 = vmatprep.subr.mxu0 0.0
  %287 = vmatpush1.msra.mxu0 0.0
  %288 = vmatprep.subr.mxu0 0.0
  %289 = vmatpush1.msra.mxu0 0.0
  %290 = vmatprep.subr.mxu0 0.0
  %291 = vmatpush1.msra.mxu0 0.0
  %292 = vmatprep.subr.mxu0 0.0
  %293 = vmatpush1.msra.mxu0 0.0
  %294 = vmatprep.subr.mxu0 0.0
  %295 = vmatpush1.msra.mxu0 0.0
  %296 = vmatprep.subr.mxu0 0.0
  %297 = vmatpush1.msra.mxu0 0.0
  %298 = vmatprep.subr.mxu0 0.0
  %299 = vmatpush1.msra.mxu0 0.0
  %300 = vmatprep.subr.mxu0 0.0
  %301 = vmatpush1.msra.mxu0 0.0
  %302 = vmatprep.subr.mxu0 0.0
  %303 = vmatpush1.msra.mxu0 0.0
  %304 = vmatprep.subr.mxu0 0.0
  %305 = vmatpush1.msra.mxu0 0.0
  %306 = vmatprep.subr.mxu0 0.0
  %307 = vmatpush1.msra.mxu0 0.0
  %308 = vmatprep.subr.mxu0 0.0
  %309 = vmatpush1.msra.mxu0 0.0
  %310 = vmatprep.subr.mxu0 0.0
  %311 = vmatpush1.msra.mxu0 0.0
  %312 = vmatprep.subr.mxu0 0.0
  %313 = vmatpush1.msra.mxu0 0.0
  %314 = vmatprep.subr.mxu0 0.0
  %315 = vmatpush1.msra.mxu0 0.0
  %316 = vmatprep.mubr.f32.mxu0 0.0
  %317 = vmatmul.mubr.f32.gmra.mrb[0].mxu0 %v179
  %v318 = vpop.f32.mrb[0].mxu0
  %v319 = vadd.f32 %v175, %v318
  %v320 = vpop.f32.mrb[0].mxu0
  %v321 = vadd.f32 %v175, %v320
  %322 = vdwg.mxu0
  %323 = vmatprep.subr.mxu0 %v20
  %324 = vmatpush1.msra.mxu0 %v19
  %325 = vmatprep.subr.mxu0 %v33
  %326 = vmatpush1.msra.mxu0 %v32
  %327 = vmatprep.subr.mxu0 %v46
  %328 = vmatpush1.msra.mxu0 %v45
  %329 = vmatprep.subr.mxu0 %v59
  %330 = vmatpush1.msra.mxu0 %v58
  %331 = vmatprep.subr.mxu0 %v72
  %332 = vmatpush1.msra.mxu0 %v71
  %333 = vmatprep.subr.mxu0 %v85
  %334 = vmatpush1.msra.mxu0 %v84
  %335 = vmatprep.subr.mxu0 %v98
  %336 = vmatpush1.msra.mxu0 %v97
  %337 = vmatprep.subr.mxu0 %v111
  %338 = vmatpush1.msra.mxu0 %v110
  %339 = vmatprep.subr.mxu0 %v124
  %340 = vmatpush1.msra.mxu0 %v123
  %341 = vmatprep.subr.mxu0 %v137
  %342 = vmatpush1.msra.mxu0 %v136
  %343 = vmatprep.subr.mxu0 %v150
  %344 = vmatpush1.msra.mxu0 %v149
  %345 = vmatprep.subr.mxu0 %v163
  %346 = vmatpush1.msra.mxu0 %v162
  %347 = vmatprep.subr.mxu0 0.0
  %348 = vmatpush1.msra.mxu0 0.0
  %349 = vmatprep.subr.mxu0 0.0
  %350 = vmatpush1.msra.mxu0 0.0
  %351 = vmatprep.subr.mxu0 0.0
  %352 = vmatpush1.msra.mxu0 0.0
  %353 = vmatprep.subr.mxu0 0.0
  %354 = vmatpush1.msra.mxu0 0.0
  %355 = vmatprep.subr.mxu0 0.0
  %356 = vmatpush1.msra.mxu0 0.0
  %357 = vmatprep.subr.mxu0 0.0
  %358 = vmatpush1.msra.mxu0 0.0
  %359 = vmatprep.subr.mxu0 0.0
  %360 = vmatpush1.msra.mxu0 0.0
  %361 = vmatprep.subr.mxu0 0.0
  %362 = vmatpush1.msra.mxu0 0.0
  %363 = vmatprep.subr.mxu0 0.0
  %364 = vmatpush1.msra.mxu0 0.0
  %365 = vmatprep.subr.mxu0 0.0
  %366 = vmatpush1.msra.mxu0 0.0
  %367 = vmatprep.subr.mxu0 0.0
  %368 = vmatpush1.msra.mxu0 0.0
  %369 = vmatprep.subr.mxu0 0.0
  %370 = vmatpush1.msra.mxu0 0.0
  %371 = vmatprep.subr.mxu0 0.0
  %372 = vmatpush1.msra.mxu0 0.0
  %373 = vmatprep.subr.mxu0 0.0
  %374 = vmatpush1.msra.mxu0 0.0
  %375 = vmatprep.subr.mxu0 0.0
  %376 = vmatpush1.msra.mxu0 0.0
  %377 = vmatprep.subr.mxu0 0.0
  %378 = vmatpush1.msra.mxu0 0.0
  %379 = vmatprep.subr.mxu0 0.0
  %380 = vmatpush1.msra.mxu0 0.0
  %381 = vmatprep.subr.mxu0 0.0
  %382 = vmatpush1.msra.mxu0 0.0
  %383 = vmatprep.subr.mxu0 0.0
  %384 = vmatpush1.msra.mxu0 0.0
  %385 = vmatprep.subr.mxu0 0.0
  %386 = vmatpush1.msra.mxu0 0.0
  %387 = vmatprep.mubr.f32.mxu0 0.0
  %388 = vmatmul.mubr.f32.gmra.mrb[0].mxu0 %v179
  %v389 = vpop.f32.mrb[0].mxu0
  %v390 = vadd.f32 %v175, %v389
  %v391 = vpop.f32.mrb[0].mxu0
  %v392 = vadd.f32 %v175, %v391
  %393 = vdwg.mxu0
  %394 = vmatprep.subr.mxu0 %v22
  %395 = vmatpush1.msra.mxu0 %v21
  %396 = vmatprep.subr.mxu0 %v35
  %397 = vmatpush1.msra.mxu0 %v34
  %398 = vmatprep.subr.mxu0 %v48
  %399 = vmatpush1.msra.mxu0 %v47
  %400 = vmatprep.subr.mxu0 %v61
  %401 = vmatpush1.msra.mxu0 %v60
  %402 = vmatprep.subr.mxu0 %v74
  %403 = vmatpush1.msra.mxu0 %v73
  %404 = vmatprep.subr.mxu0 %v87
  %405 = vmatpush1.msra.mxu0 %v86
  %406 = vmatprep.subr.mxu0 %v100
  %407 = vmatpush1.msra.mxu0 %v99
  %408 = vmatprep.subr.mxu0 %v113
  %409 = vmatpush1.msra.mxu0 %v112
  %410 = vmatprep.subr.mxu0 %v126
  %411 = vmatpush1.msra.mxu0 %v125
  %412 = vmatprep.subr.mxu0 %v139
  %413 = vmatpush1.msra.mxu0 %v138
  %414 = vmatprep.subr.mxu0 %v152
  %415 = vmatpush1.msra.mxu0 %v151
  %416 = vmatprep.subr.mxu0 %v165
  %417 = vmatpush1.msra.mxu0 %v164
  %418 = vmatprep.subr.mxu0 0.0
  %419 = vmatpush1.msra.mxu0 0.0
  %420 = vmatprep.subr.mxu0 0.0
  %421 = vmatpush1.msra.mxu0 0.0
  %422 = vmatprep.subr.mxu0 0.0
  %423 = vmatpush1.msra.mxu0 0.0
  %424 = vmatprep.subr.mxu0 0.0
  %425 = vmatpush1.msra.mxu0 0.0
  %426 = vmatprep.subr.mxu0 0.0
  %427 = vmatpush1.msra.mxu0 0.0
  %428 = vmatprep.subr.mxu0 0.0
  %429 = vmatpush1.msra.mxu0 0.0
  %430 = vmatprep.subr.mxu0 0.0
  %431 = vmatpush1.msra.mxu0 0.0
  %432 = vmatprep.subr.mxu0 0.0
  %433 = vmatpush1.msra.mxu0 0.0
  %434 = vmatprep.subr.mxu0 0.0
  %435 = vmatpush1.msra.mxu0 0.0
  %436 = vmatprep.subr.mxu0 0.0
  %437 = vmatpush1.msra.mxu0 0.0
  %438 = vmatprep.subr.mxu0 0.0
  %439 = vmatpush1.msra.mxu0 0.0
  %440 = vmatprep.subr.mxu0 0.0
  %441 = vmatpush1.msra.mxu0 0.0
  %442 = vmatprep.subr.mxu0 0.0
  %443 = vmatpush1.msra.mxu0 0.0
  %444 = vmatprep.subr.mxu0 0.0
  %445 = vmatpush1.msra.mxu0 0.0
  %446 = vmatprep.subr.mxu0 0.0
  %447 = vmatpush1.msra.mxu0 0.0
  %448 = vmatprep.subr.mxu0 0.0
  %449 = vmatpush1.msra.mxu0 0.0
  %450 = vmatprep.subr.mxu0 0.0
  %451 = vmatpush1.msra.mxu0 0.0
  %452 = vmatprep.subr.mxu0 0.0
  %453 = vmatpush1.msra.mxu0 0.0
  %454 = vmatprep.subr.mxu0 0.0
  %455 = vmatpush1.msra.mxu0 0.0
  %456 = vmatprep.subr.mxu0 0.0
  %457 = vmatpush1.msra.mxu0 0.0
  %458 = vmatprep.mubr.f32.mxu0 0.0
  %459 = vmatmul.mubr.f32.gmra.mrb[0].mxu0 %v179
  %v460 = vpop.f32.mrb[0].mxu0
  %v461 = vadd.f32 %v175, %v460
  %v462 = vpop.f32.mrb[0].mxu0
  %v463 = vadd.f32 %v175, %v462
  %464 = vdwg.mxu0
  %465 = vmatprep.subr.mxu0 %v24
  %466 = vmatpush1.msra.mxu0 %v23
  %467 = vmatprep.subr.mxu0 %v37
  %468 = vmatpush1.msra.mxu0 %v36
  %469 = vmatprep.subr.mxu0 %v50
  %470 = vmatpush1.msra.mxu0 %v49
  %471 = vmatprep.subr.mxu0 %v63
  %472 = vmatpush1.msra.mxu0 %v62
  %473 = vmatprep.subr.mxu0 %v76
  %474 = vmatpush1.msra.mxu0 %v75
  %475 = vmatprep.subr.mxu0 %v89
  %476 = vmatpush1.msra.mxu0 %v88
  %477 = vmatprep.subr.mxu0 %v102
  %478 = vmatpush1.msra.mxu0 %v101
  %479 = vmatprep.subr.mxu0 %v115
  %480 = vmatpush1.msra.mxu0 %v114
  %481 = vmatprep.subr.mxu0 %v128
  %482 = vmatpush1.msra.mxu0 %v127
  %483 = vmatprep.subr.mxu0 %v141
  %484 = vmatpush1.msra.mxu0 %v140
  %485 = vmatprep.subr.mxu0 %v154
  %486 = vmatpush1.msra.mxu0 %v153
  %487 = vmatprep.subr.mxu0 %v167
  %488 = vmatpush1.msra.mxu0 %v166
  %489 = vmatprep.subr.mxu0 0.0
  %490 = vmatpush1.msra.mxu0 0.0
  %491 = vmatprep.subr.mxu0 0.0
  %492 = vmatpush1.msra.mxu0 0.0
  %493 = vmatprep.subr.mxu0 0.0
  %494 = vmatpush1.msra.mxu0 0.0
  %495 = vmatprep.subr.mxu0 0.0
  %496 = vmatpush1.msra.mxu0 0.0
  %497 = vmatprep.subr.mxu0 0.0
  %498 = vmatpush1.msra.mxu0 0.0
  %499 = vmatprep.subr.mxu0 0.0
  %500 = vmatpush1.msra.mxu0 0.0
  %501 = vmatprep.subr.mxu0 0.0
  %502 = vmatpush1.msra.mxu0 0.0
  %503 = vmatprep.subr.mxu0 0.0
  %504 = vmatpush1.msra.mxu0 0.0
  %505 = vmatprep.subr.mxu0 0.0
  %506 = vmatpush1.msra.mxu0 0.0
  %507 = vmatprep.subr.mxu0 0.0
  %508 = vmatpush1.msra.mxu0 0.0
  %509 = vmatprep.subr.mxu0 0.0
  %510 = vmatpush1.msra.mxu0 0.0
  %511 = vmatprep.subr.mxu0 0.0
  %512 = vmatpush1.msra.mxu0 0.0
  %513 = vmatprep.subr.mxu0 0.0
  %514 = vmatpush1.msra.mxu0 0.0
  %515 = vmatprep.subr.mxu0 0.0
  %516 = vmatpush1.msra.mxu0 0.0
  %517 = vmatprep.subr.mxu0 0.0
  %518 = vmatpush1.msra.mxu0 0.0
  %519 = vmatprep.subr.mxu0 0.0
  %520 = vmatpush1.msra.mxu0 0.0
  %521 = vmatprep.subr.mxu0 0.0
  %522 = vmatpush1.msra.mxu0 0.0
  %523 = vmatprep.subr.mxu0 0.0
  %524 = vmatpush1.msra.mxu0 0.0
  %525 = vmatprep.subr.mxu0 0.0
  %526 = vmatpush1.msra.mxu0 0.0
  %527 = vmatprep.subr.mxu0 0.0
  %528 = vmatpush1.msra.mxu0 0.0
  %529 = vmatprep.mubr.f32.mxu0 0.0
  %530 = vmatmul.mubr.f32.gmra.mrb[0].mxu0 %v179
  %v531 = vpop.f32.mrb[0].mxu0
  %v532 = vadd.f32 %v175, %v531
  %v533 = vpop.f32.mrb[0].mxu0
  %v534 = vadd.f32 %v175, %v533
  %535 = vdwg.mxu0
  %536 = vmatprep.subr.mxu0 %v26
  %537 = vmatpush1.msra.mxu0 %v25
  %538 = vmatprep.subr.mxu0 %v39
  %539 = vmatpush1.msra.mxu0 %v38
  %540 = vmatprep.subr.mxu0 %v52
  %541 = vmatpush1.msra.mxu0 %v51
  %542 = vmatprep.subr.mxu0 %v65
  %543 = vmatpush1.msra.mxu0 %v64
  %544 = vmatprep.subr.mxu0 %v78
  %545 = vmatpush1.msra.mxu0 %v77
  %546 = vmatprep.subr.mxu0 %v91
  %547 = vmatpush1.msra.mxu0 %v90
  %548 = vmatprep.subr.mxu0 %v104
  %549 = vmatpush1.msra.mxu0 %v103
  %550 = vmatprep.subr.mxu0 %v117
  %551 = vmatpush1.msra.mxu0 %v116
  %552 = vmatprep.subr.mxu0 %v130
  %553 = vmatpush1.msra.mxu0 %v129
  %554 = vmatprep.subr.mxu0 %v143
  %555 = vmatpush1.msra.mxu0 %v142
  %556 = vmatprep.subr.mxu0 %v156
  %557 = vmatpush1.msra.mxu0 %v155
  %558 = vmatprep.subr.mxu0 %v169
  %559 = vmatpush1.msra.mxu0 %v168
  %560 = vmatprep.subr.mxu0 0.0
  %561 = vmatpush1.msra.mxu0 0.0
  %562 = vmatprep.subr.mxu0 0.0
  %563 = vmatpush1.msra.mxu0 0.0
  %564 = vmatprep.subr.mxu0 0.0
  %565 = vmatpush1.msra.mxu0 0.0
  %566 = vmatprep.subr.mxu0 0.0
  %567 = vmatpush1.msra.mxu0 0.0
  %568 = vmatprep.subr.mxu0 0.0
  %569 = vmatpush1.msra.mxu0 0.0
  %570 = vmatprep.subr.mxu0 0.0
  %571 = vmatpush1.msra.mxu0 0.0
  %572 = vmatprep.subr.mxu0 0.0
  %573 = vmatpush1.msra.mxu0 0.0
  %574 = vmatprep.subr.mxu0 0.0
  %575 = vmatpush1.msra.mxu0 0.0
  %576 = vmatprep.subr.mxu0 0.0
  %577 = vmatpush1.msra.mxu0 0.0
  %578 = vmatprep.subr.mxu0 0.0
  %579 = vmatpush1.msra.mxu0 0.0
  %580 = vmatprep.subr.mxu0 0.0
  %581 = vmatpush1.msra.mxu0 0.0
  %582 = vmatprep.subr.mxu0 0.0
  %583 = vmatpush1.msra.mxu0 0.0
  %584 = vmatprep.subr.mxu0 0.0
  %585 = vmatpush1.msra.mxu0 0.0
  %586 = vmatprep.subr.mxu0 0.0
  %587 = vmatpush1.msra.mxu0 0.0
  %588 = vmatprep.subr.mxu0 0.0
  %589 = vmatpush1.msra.mxu0 0.0
  %590 = vmatprep.subr.mxu0 0.0
  %591 = vmatpush1.msra.mxu0 0.0
  %592 = vmatprep.subr.mxu0 0.0
  %593 = vmatpush1.msra.mxu0 0.0
  %594 = vmatprep.subr.mxu0 0.0
  %595 = vmatpush1.msra.mxu0 0.0
  %596 = vmatprep.subr.mxu0 0.0
  %597 = vmatpush1.msra.mxu0 0.0
  %598 = vmatprep.subr.mxu0 0.0
  %599 = vmatpush1.msra.mxu0 0.0
  %600 = vmatprep.mubr.f32.mxu0 0.0
  %601 = vmatmul.mubr.f32.gmra.mrb[0].mxu0 %v179
  %v602 = vpop.f32.mrb[0].mxu0
  %v603 = vadd.f32 %v175, %v602
  %v604 = vpop.f32.mrb[0].mxu0
  %v605 = vadd.f32 %v175, %v604
  %606 = vdwg.mxu0
  %607 = vmatprep.subr.mxu0 0.0
  %608 = vmatpush1.msra.mxu0 %v27
  %609 = vmatprep.subr.mxu0 0.0
  %610 = vmatpush1.msra.mxu0 %v40
  %611 = vmatprep.subr.mxu0 0.0
  %612 = vmatpush1.msra.mxu0 %v53
  %613 = vmatprep.subr.mxu0 0.0
  %614 = vmatpush1.msra.mxu0 %v66
  %615 = vmatprep.subr.mxu0 0.0
  %616 = vmatpush1.msra.mxu0 %v79
  %617 = vmatprep.subr.mxu0 0.0
  %618 = vmatpush1.msra.mxu0 %v92
  %619 = vmatprep.subr.mxu0 0.0
  %620 = vmatpush1.msra.mxu0 %v105
  %621 = vmatprep.subr.mxu0 0.0
  %622 = vmatpush1.msra.mxu0 %v118
  %623 = vmatprep.subr.mxu0 0.0
  %624 = vmatpush1.msra.mxu0 %v131
  %625 = vmatprep.subr.mxu0 0.0
  %626 = vmatpush1.msra.mxu0 %v144
  %627 = vmatprep.subr.mxu0 0.0
  %628 = vmatpush1.msra.mxu0 %v157
  %629 = vmatprep.subr.mxu0 0.0
  %630 = vmatpush1.msra.mxu0 %v170
  %631 = vmatprep.subr.mxu0 0.0
  %632 = vmatpush1.msra.mxu0 0.0
  %633 = vmatprep.subr.mxu0 0.0
  %634 = vmatpush1.msra.mxu0 0.0
  %635 = vmatprep.subr.mxu0 0.0
  %636 = vmatpush1.msra.mxu0 0.0
  %637 = vmatprep.subr.mxu0 0.0
  %638 = vmatpush1.msra.mxu0 0.0
  %639 = vmatprep.subr.mxu0 0.0
  %640 = vmatpush1.msra.mxu0 0.0
  %641 = vmatprep.subr.mxu0 0.0
  %642 = vmatpush1.msra.mxu0 0.0
  %643 = vmatprep.subr.mxu0 0.0
  %644 = vmatpush1.msra.mxu0 0.0
  %645 = vmatprep.subr.mxu0 0.0
  %646 = vmatpush1.msra.mxu0 0.0
  %647 = vmatprep.subr.mxu0 0.0
  %648 = vmatpush1.msra.mxu0 0.0
  %649 = vmatprep.subr.mxu0 0.0
  %650 = vmatpush1.msra.mxu0 0.0
  %651 = vmatprep.subr.mxu0 0.0
  %652 = vmatpush1.msra.mxu0 0.0
  %653 = vmatprep.subr.mxu0 0.0
  %654 = vmatpush1.msra.mxu0 0.0
  %655 = vmatprep.subr.mxu0 0.0
  %656 = vmatpush1.msra.mxu0 0.0
  %657 = vmatprep.subr.mxu0 0.0
  %658 = vmatpush1.msra.mxu0 0.0
  %659 = vmatprep.subr.mxu0 0.0
  %660 = vmatpush1.msra.mxu0 0.0
  %661 = vmatprep.subr.mxu0 0.0
  %662 = vmatpush1.msra.mxu0 0.0
  %663 = vmatprep.subr.mxu0 0.0
  %664 = vmatpush1.msra.mxu0 0.0
  %665 = vmatprep.subr.mxu0 0.0
  %666 = vmatpush1.msra.mxu0 0.0
  %667 = vmatprep.subr.mxu0 0.0
  %668 = vmatpush1.msra.mxu0 0.0
  %669 = vmatprep.subr.mxu0 0.0
  %670 = vmatpush1.msra.mxu0 0.0
  %671 = vmatprep.mubr.f32.mxu0 0.0
  %672 = vmatmul.mubr.f32.gmra.mrb[0].mxu0 %v179
  %v673 = vpop.f32.mrb[0].mxu0
  %v674 = vadd.f32 %v175, %v673
  %v675 = vpop.f32.mrb[0].mxu0
  %676 = vdwg.mxu0
  %v677 = vmax.f32 %v248, 0.0
  %v678 = vmax.f32 %v250, 0.0
  %v679 = vmax.f32 %v319, 0.0
  %v680 = vmax.f32 %v321, 0.0
  %v681 = vmax.f32 %v390, 0.0
  %v682 = vmax.f32 %v392, 0.0
  %v683 = vmax.f32 %v461, 0.0
  %v684 = vmax.f32 %v463, 0.0
  %v685 = vmax.f32 %v532, 0.0
  %v686 = vmax.f32 %v534, 0.0
  %v687 = vmax.f32 %v603, 0.0
  %v688 = vmax.f32 %v605, 0.0
  %v689 = vmax.f32 %v674, 0.0
  %690 = vst [vmem:[%s3] sm:$0x3f] %v677
  %691 = vst [vmem:[%s3 + $0x8] sm:$0x3f] %v678
  %692 = vst [vmem:[%s3 + $0x10] sm:$0x3f] %v679
  %693 = vst [vmem:[%s3 + $0x18] sm:$0x3f] %v680
  %694 = vst [vmem:[%s3 + $0x20] sm:$0x3f] %v681
  %695 = vst [vmem:[%s3 + $0x28] sm:$0x3f] %v682
  %696 = vst [vmem:[%s3 + $0x30] sm:$0x3f] %v683
  %697 = vst [vmem:[%s3 + $0x38] sm:$0x3f] %v684
  %698 = vst [vmem:[%s3 + $0x40] sm:$0x3f] %v685
  %699 = vst [vmem:[%s3 + $0x48] sm:$0x3f] %v686
  %700 = vst [vmem:[%s3 + $0x50] sm:$0x3f] %v687
  %701 = vst [vmem:[%s3 + $0x58] sm:$0x3f] %v688
  %vm702 = vcmask 259072
  %703 = vst.msk [vmem:[%s3 + $0x60] sm:$0x3f] %vm702, %v689
  // Predicated region
  $region14: #{encoder_decoder.23} parent=0 // pred_check
    _
  $region15: #{encoder_decoder.23} parent=0 // pred_check_branch
    %705 = sbr.rel (0) target = $region17
  $region16: #{encoder_decoder.23} parent=0 // pred_region
    _
  $region17: #{encoder_decoder.23} parent=0 // pred_fallthru
    _
  // Predicated region
  $region18: #{encoder_decoder.23} parent=0 // pred_check
    _
  $region19: #{encoder_decoder.23} parent=0 // pred_check_branch
    %707 = sbr.rel (0) target = $region21
  $region20: #{encoder_decoder.23} parent=0 // pred_region
    _
  $region21: #{encoder_decoder.23} parent=0 // pred_fallthru
    _

// kernel: encoder_decoder.24
$region0: #{encoder_decoder.24}
  #allocation0 [shape = 'u32[]', space=smem, size = 0x4, offset = 0x4, fixed_abs, tag = 'smem constant byte address 0x4 - core index']
  #allocation1 [shape = 'u32[144,128]{1,0:T(1,128)}', space=vmem, size = 0x12000, scoped, tag = 'internal scratch']
  %s0 = inlined_call_operand.vmem [shape: f32[6,54], index: 0, kind: input, shape index: {}]
  %s1 = inlined_call_operand.vmem [shape: f32[54,1568], index: 1, kind: input, shape index: {}]
  %s2 = inlined_call_operand.vmem [shape: f32[6,1], index: 2, kind: input, shape index: {}]
  %s3 = inlined_call_operand.vmem [shape: f32[6,1568], index: 3, kind: output, shape index: {}]
  %s4 = sld [smem:[#allocation0]]
  $region22: #{encoder_decoder.24} parent=0
    _
  %s6 = ssub.s32 1, %s4
  %s7 = scalar_select 0, %s6, %s4
  // Predicated region
  $region2: #{encoder_decoder.24} parent=0 // pred_check
    _
  $region3: #{encoder_decoder.24} parent=0 // pred_check_branch
    %9 = sbr.rel (0) target = $region5
  $region4: #{encoder_decoder.24} parent=0 // pred_region
    _
  $region5: #{encoder_decoder.24} parent=0 // pred_fallthru
    _
  // Predicated region
  $region6: #{encoder_decoder.24} parent=0 // pred_check
    _
  $region7: #{encoder_decoder.24} parent=0 // pred_check_branch
    %11 = sbr.rel (0) target = $region9
  $region8: #{encoder_decoder.24} parent=0 // pred_region
    _
  $region9: #{encoder_decoder.24} parent=0 // pred_fallthru
    _
  // Predicated region
  $region10: #{encoder_decoder.24} parent=0 // pred_check
    _
  $region11: #{encoder_decoder.24} parent=0 // pred_check_branch
    %13 = sbr.rel (0) target = $region13
  $region12: #{encoder_decoder.24} parent=0 // pred_region
    _
  $region13: #{encoder_decoder.24} parent=0 // pred_fallthru
    _
  %v14 = vld [vmem:[%s0] sm:$0x3f]
  %v15 = vld [vmem:[%s1] sm:$0xff]
  %v16 = vld [vmem:[%s1 + $0x8] sm:$0xff]
  %v17 = vld [vmem:[%s1 + $0x10] sm:$0xff]
  %v18 = vld [vmem:[%s1 + $0x18] sm:$0xff]
  %v19 = vld [vmem:[%s1 + $0x20] sm:$0xff]
  %v20 = vld [vmem:[%s1 + $0x28] sm:$0xff]
  %v21 = vld [vmem:[%s1 + $0x30] sm:$0xff]
  %v22 = vld [vmem:[%s1 + $0x38] sm:$0xff]
  %v23 = vld [vmem:[%s1 + $0x40] sm:$0xff]
  %v24 = vld [vmem:[%s1 + $0x48] sm:$0xff]
  %v25 = vld [vmem:[%s1 + $0x50] sm:$0xff]
  %v26 = vld [vmem:[%s1 + $0x58] sm:$0xff]
  %v27 = vld [vmem:[%s1 + $0x60] sm:$0xff]
  %v28 = vld [vmem:[%s1 + $0x68] sm:$0xff]
  %v29 = vld [vmem:[%s1 + $0x70] sm:$0xff]
  %v30 = vld [vmem:[%s1 + $0x78] sm:$0xff]
  %v31 = vld [vmem:[%s1 + $0x80] sm:$0xff]
  %v32 = vld [vmem:[%s1 + $0x88] sm:$0xff]
  %v33 = vld [vmem:[%s1 + $0x90] sm:$0xff]
  %v34 = vld [vmem:[%s1 + $0x98] sm:$0xff]
  %v35 = vld [vmem:[%s1 + $0xa0] sm:$0xff]
  %v36 = vld [vmem:[%s1 + $0xa8] sm:$0xff]
  %v37 = vld [vmem:[%s1 + $0xb0] sm:$0xff]
  %v38 = vld [vmem:[%s1 + $0xb8] sm:$0xff]
  %v39 = vld [vmem:[%s1 + $0xc0] sm:$0xff]
  %v40 = vld [vmem:[%s1 + $0xc8] sm:$0xff]
  %v41 = vld [vmem:[%s1 + $0xd0] sm:$0xff]
  %v42 = vld [vmem:[%s1 + $0xd8] sm:$0xff]
  %v43 = vld [vmem:[%s1 + $0xe0] sm:$0xff]
  %v44 = vld [vmem:[%s1 + $0xe8] sm:$0xff]
  %v45 = vld [vmem:[%s1 + $0xf0] sm:$0xff]
  %v46 = vld [vmem:[%s1 + $0xf8] sm:$0xff]
  %v47 = vld [vmem:[%s1 + $0x100] sm:$0xff]
  %v48 = vld [vmem:[%s1 + $0x108] sm:$0xff]
  %v49 = vld [vmem:[%s1 + $0x110] sm:$0xff]
  %v50 = vld [vmem:[%s1 + $0x118] sm:$0xff]
  %v51 = vld [vmem:[%s1 + $0x120] sm:$0xff]
  %v52 = vld [vmem:[%s1 + $0x128] sm:$0xff]
  %v53 = vld [vmem:[%s1 + $0x130] sm:$0xff]
  %v54 = vld [vmem:[%s1 + $0x138] sm:$0xff]
  %v55 = vld [vmem:[%s1 + $0x140] sm:$0xff]
  %v56 = vld [vmem:[%s1 + $0x148] sm:$0xff]
  %v57 = vld [vmem:[%s1 + $0x150] sm:$0xff]
  %v58 = vld [vmem:[%s1 + $0x158] sm:$0xff]
  %v59 = vld [vmem:[%s1 + $0x160] sm:$0xff]
  %v60 = vld [vmem:[%s1 + $0x168] sm:$0xff]
  %v61 = vld [vmem:[%s1 + $0x170] sm:$0xff]
  %v62 = vld [vmem:[%s1 + $0x178] sm:$0xff]
  %v63 = vld [vmem:[%s1 + $0x180] sm:$0xff]
  %v64 = vld [vmem:[%s1 + $0x188] sm:$0xff]
  %v65 = vld [vmem:[%s1 + $0x190] sm:$0xff]
  %v66 = vld [vmem:[%s1 + $0x198] sm:$0xff]
  %v67 = vld [vmem:[%s1 + $0x1a0] sm:$0xff]
  %v68 = vld [vmem:[%s1 + $0x1a8] sm:$0xff]
  %v69 = vld [vmem:[%s1 + $0x1b0] sm:$0xff]
  %v70 = vld [vmem:[%s1 + $0x1b8] sm:$0xff]
  %v71 = vld [vmem:[%s1 + $0x1c0] sm:$0xff]
  %v72 = vld [vmem:[%s1 + $0x1c8] sm:$0xff]
  %v73 = vld [vmem:[%s1 + $0x1d0] sm:$0xff]
  %v74 = vld [vmem:[%s1 + $0x1d8] sm:$0xff]
  %v75 = vld [vmem:[%s1 + $0x1e0] sm:$0xff]
  %v76 = vld [vmem:[%s1 + $0x1e8] sm:$0xff]
  %v77 = vld [vmem:[%s1 + $0x1f0] sm:$0xff]
  %v78 = vld [vmem:[%s1 + $0x1f8] sm:$0xff]
  %v79 = vld [vmem:[%s1 + $0x200] sm:$0xff]
  %v80 = vld [vmem:[%s1 + $0x208] sm:$0xff]
  %v81 = vld [vmem:[%s1 + $0x210] sm:$0xff]
  %v82 = vld [vmem:[%s1 + $0x218] sm:$0xff]
  %v83 = vld [vmem:[%s1 + $0x220] sm:$0xff]
  %v84 = vld [vmem:[%s1 + $0x228] sm:$0xff]
  %v85 = vld [vmem:[%s1 + $0x230] sm:$0xff]
  %v86 = vld [vmem:[%s1 + $0x238] sm:$0xff]
  %v87 = vld [vmem:[%s1 + $0x240] sm:$0xff]
  %v88 = vld [vmem:[%s1 + $0x248] sm:$0xff]
  %v89 = vld [vmem:[%s1 + $0x250] sm:$0xff]
  %v90 = vld [vmem:[%s1 + $0x258] sm:$0xff]
  %v91 = vld [vmem:[%s1 + $0x260] sm:$0xff]
  %v92 = vld [vmem:[%s1 + $0x268] sm:$0xff]
  %v93 = vld [vmem:[%s1 + $0x270] sm:$0x3f]
  %v94 = vld [vmem:[%s1 + $0x278] sm:$0x3f]
  %v95 = vld [vmem:[%s1 + $0x280] sm:$0x3f]
  %v96 = vld [vmem:[%s1 + $0x288] sm:$0x3f]
  %v97 = vld [vmem:[%s1 + $0x290] sm:$0x3f]
  %v98 = vld [vmem:[%s1 + $0x298] sm:$0x3f]
  %v99 = vld [vmem:[%s1 + $0x2a0] sm:$0x3f]
  %v100 = vld [vmem:[%s1 + $0x2a8] sm:$0x3f]
  %v101 = vld [vmem:[%s1 + $0x2b0] sm:$0x3f]
  %v102 = vld [vmem:[%s1 + $0x2b8] sm:$0x3f]
  %v103 = vld [vmem:[%s1 + $0x2c0] sm:$0x3f]
  %v104 = vld [vmem:[%s1 + $0x2c8] sm:$0x3f]
  %v105 = vld [vmem:[%s1 + $0x2d0] sm:$0x3f]
  %v106 = vld [vmem:[%s2] sm:$0x3f]
  %108 = vset.pattern.permute.xlu0 0
  %109 = vperm.xlu0 %108, %v106
  %v110 = vpop.permute.xlu0 %109
  %vm112 = vcmask 441344
  %v114 = vsel %vm112, %v14, 0
  %vm116 = vcmask 1045504
  %v118 = vsel %vm116, %v93, 0
  %v121 = vsel %vm116, %v94, 0
  %v124 = vsel %vm116, %v95, 0
  %v127 = vsel %vm116, %v96, 0
  %v130 = vsel %vm116, %v97, 0
  %v133 = vsel %vm116, %v98, 0
  %v136 = vsel %vm116, %v99, 0
  %v139 = vsel %vm116, %v100, 0
  %v142 = vsel %vm116, %v101, 0
  %v145 = vsel %vm116, %v102, 0
  %v148 = vsel %vm116, %v103, 0
  %v151 = vsel %vm116, %v104, 0
  %v154 = vsel %vm116, %v105, 0
  %156 = vmatprep.subr.mxu0 %v16
  %157 = vmatpush1.msra.mxu0 %v15
  %158 = vmatprep.subr.mxu0 %v29
  %159 = vmatpush1.msra.mxu0 %v28
  %160 = vmatprep.subr.mxu0 %v42
  %161 = vmatpush1.msra.mxu0 %v41
  %162 = vmatprep.subr.mxu0 %v55
  %163 = vmatpush1.msra.mxu0 %v54
  %164 = vmatprep.subr.mxu0 %v68
  %165 = vmatpush1.msra.mxu0 %v67
  %166 = vmatprep.subr.mxu0 %v81
  %167 = vmatpush1.msra.mxu0 %v80
  %168 = vmatprep.subr.mxu0 %v121
  %169 = vmatpush1.msra.mxu0 %v118
  %170 = vmatprep.subr.mxu0 0.0
  %171 = vmatpush1.msra.mxu0 0.0
  %172 = vmatprep.subr.mxu0 0.0
  %173 = vmatpush1.msra.mxu0 0.0
  %174 = vmatprep.subr.mxu0 0.0
  %175 = vmatpush1.msra.mxu0 0.0
  %176 = vmatprep.subr.mxu0 0.0
  %177 = vmatpush1.msra.mxu0 0.0
  %178 = vmatprep.subr.mxu0 0.0
  %179 = vmatpush1.msra.mxu0 0.0
  %180 = vmatprep.subr.mxu0 0.0
  %181 = vmatpush1.msra.mxu0 0.0
  %182 = vmatprep.subr.mxu0 0.0
  %183 = vmatpush1.msra.mxu0 0.0
  %184 = vmatprep.subr.mxu0 0.0
  %185 = vmatpush1.msra.mxu0 0.0
  %186 = vmatprep.subr.mxu0 0.0
  %187 = vmatpush1.msra.mxu0 0.0
  %188 = vmatprep.subr.mxu0 0.0
  %189 = vmatpush1.msra.mxu0 0.0
  %190 = vmatprep.subr.mxu0 0.0
  %191 = vmatpush1.msra.mxu0 0.0
  %192 = vmatprep.subr.mxu0 0.0
  %193 = vmatpush1.msra.mxu0 0.0
  %194 = vmatprep.subr.mxu0 0.0
  %195 = vmatpush1.msra.mxu0 0.0
  %196 = vmatprep.subr.mxu0 0.0
  %197 = vmatpush1.msra.mxu0 0.0
  %198 = vmatprep.subr.mxu0 0.0
  %199 = vmatpush1.msra.mxu0 0.0
  %200 = vmatprep.subr.mxu0 0.0
  %201 = vmatpush1.msra.mxu0 0.0
  %202 = vmatprep.subr.mxu0 0.0
  %203 = vmatpush1.msra.mxu0 0.0
  %204 = vmatprep.subr.mxu0 0.0
  %205 = vmatpush1.msra.mxu0 0.0
  %206 = vmatprep.subr.mxu0 0.0
  %207 = vmatpush1.msra.mxu0 0.0
  %208 = vmatprep.subr.mxu0 0.0
  %209 = vmatpush1.msra.mxu0 0.0
  %210 = vmatprep.subr.mxu0 0.0
  %211 = vmatpush1.msra.mxu0 0.0
  %212 = vmatprep.subr.mxu0 0.0
  %213 = vmatpush1.msra.mxu0 0.0
  %214 = vmatprep.subr.mxu0 0.0
  %215 = vmatpush1.msra.mxu0 0.0
  %216 = vmatprep.subr.mxu0 0.0
  %217 = vmatpush1.msra.mxu0 0.0
  %218 = vmatprep.subr.mxu0 0.0
  %219 = vmatpush1.msra.mxu0 0.0
  %220 = vmatprep.mubr.f32.mxu0 0.0
  %221 = vmatmul.mubr.f32.gmra.mrb[0].mxu0 %v114
  %v222 = vpop.f32.mrb[0].mxu0
  %v223 = vadd.f32 %v110, %v222
  %v224 = vpop.f32.mrb[0].mxu0
  %v225 = vadd.f32 %v110, %v224
  %226 = vdwg.mxu0
  %227 = vmatprep.subr.mxu0 %v18
  %228 = vmatpush1.msra.mxu0 %v17
  %229 = vmatprep.subr.mxu0 %v31
  %230 = vmatpush1.msra.mxu0 %v30
  %231 = vmatprep.subr.mxu0 %v44
  %232 = vmatpush1.msra.mxu0 %v43
  %233 = vmatprep.subr.mxu0 %v57
  %234 = vmatpush1.msra.mxu0 %v56
  %235 = vmatprep.subr.mxu0 %v70
  %236 = vmatpush1.msra.mxu0 %v69
  %237 = vmatprep.subr.mxu0 %v83
  %238 = vmatpush1.msra.mxu0 %v82
  %239 = vmatprep.subr.mxu0 %v127
  %240 = vmatpush1.msra.mxu0 %v124
  %241 = vmatprep.subr.mxu0 0.0
  %242 = vmatpush1.msra.mxu0 0.0
  %243 = vmatprep.subr.mxu0 0.0
  %244 = vmatpush1.msra.mxu0 0.0
  %245 = vmatprep.subr.mxu0 0.0
  %246 = vmatpush1.msra.mxu0 0.0
  %247 = vmatprep.subr.mxu0 0.0
  %248 = vmatpush1.msra.mxu0 0.0
  %249 = vmatprep.subr.mxu0 0.0
  %250 = vmatpush1.msra.mxu0 0.0
  %251 = vmatprep.subr.mxu0 0.0
  %252 = vmatpush1.msra.mxu0 0.0
  %253 = vmatprep.subr.mxu0 0.0
  %254 = vmatpush1.msra.mxu0 0.0
  %255 = vmatprep.subr.mxu0 0.0
  %256 = vmatpush1.msra.mxu0 0.0
  %257 = vmatprep.subr.mxu0 0.0
  %258 = vmatpush1.msra.mxu0 0.0
  %259 = vmatprep.subr.mxu0 0.0
  %260 = vmatpush1.msra.mxu0 0.0
  %261 = vmatprep.subr.mxu0 0.0
  %262 = vmatpush1.msra.mxu0 0.0
  %263 = vmatprep.subr.mxu0 0.0
  %264 = vmatpush1.msra.mxu0 0.0
  %265 = vmatprep.subr.mxu0 0.0
  %266 = vmatpush1.msra.mxu0 0.0
  %267 = vmatprep.subr.mxu0 0.0
  %268 = vmatpush1.msra.mxu0 0.0
  %269 = vmatprep.subr.mxu0 0.0
  %270 = vmatpush1.msra.mxu0 0.0
  %271 = vmatprep.subr.mxu0 0.0
  %272 = vmatpush1.msra.mxu0 0.0
  %273 = vmatprep.subr.mxu0 0.0
  %274 = vmatpush1.msra.mxu0 0.0
  %275 = vmatprep.subr.mxu0 0.0
  %276 = vmatpush1.msra.mxu0 0.0
  %277 = vmatprep.subr.mxu0 0.0
  %278 = vmatpush1.msra.mxu0 0.0
  %279 = vmatprep.subr.mxu0 0.0
  %280 = vmatpush1.msra.mxu0 0.0
  %281 = vmatprep.subr.mxu0 0.0
  %282 = vmatpush1.msra.mxu0 0.0
  %283 = vmatprep.subr.mxu0 0.0
  %284 = vmatpush1.msra.mxu0 0.0
  %285 = vmatprep.subr.mxu0 0.0
  %286 = vmatpush1.msra.mxu0 0.0
  %287 = vmatprep.subr.mxu0 0.0
  %288 = vmatpush1.msra.mxu0 0.0
  %289 = vmatprep.subr.mxu0 0.0
  %290 = vmatpush1.msra.mxu0 0.0
  %291 = vmatprep.mubr.f32.mxu0 0.0
  %292 = vmatmul.mubr.f32.gmra.mrb[0].mxu0 %v114
  %v293 = vpop.f32.mrb[0].mxu0
  %v294 = vadd.f32 %v110, %v293
  %v295 = vpop.f32.mrb[0].mxu0
  %v296 = vadd.f32 %v110, %v295
  %297 = vdwg.mxu0
  %298 = vmatprep.subr.mxu0 %v20
  %299 = vmatpush1.msra.mxu0 %v19
  %300 = vmatprep.subr.mxu0 %v33
  %301 = vmatpush1.msra.mxu0 %v32
  %302 = vmatprep.subr.mxu0 %v46
  %303 = vmatpush1.msra.mxu0 %v45
  %304 = vmatprep.subr.mxu0 %v59
  %305 = vmatpush1.msra.mxu0 %v58
  %306 = vmatprep.subr.mxu0 %v72
  %307 = vmatpush1.msra.mxu0 %v71
  %308 = vmatprep.subr.mxu0 %v85
  %309 = vmatpush1.msra.mxu0 %v84
  %310 = vmatprep.subr.mxu0 %v133
  %311 = vmatpush1.msra.mxu0 %v130
  %312 = vmatprep.subr.mxu0 0.0
  %313 = vmatpush1.msra.mxu0 0.0
  %314 = vmatprep.subr.mxu0 0.0
  %315 = vmatpush1.msra.mxu0 0.0
  %316 = vmatprep.subr.mxu0 0.0
  %317 = vmatpush1.msra.mxu0 0.0
  %318 = vmatprep.subr.mxu0 0.0
  %319 = vmatpush1.msra.mxu0 0.0
  %320 = vmatprep.subr.mxu0 0.0
  %321 = vmatpush1.msra.mxu0 0.0
  %322 = vmatprep.subr.mxu0 0.0
  %323 = vmatpush1.msra.mxu0 0.0
  %324 = vmatprep.subr.mxu0 0.0
  %325 = vmatpush1.msra.mxu0 0.0
  %326 = vmatprep.subr.mxu0 0.0
  %327 = vmatpush1.msra.mxu0 0.0
  %328 = vmatprep.subr.mxu0 0.0
  %329 = vmatpush1.msra.mxu0 0.0
  %330 = vmatprep.subr.mxu0 0.0
  %331 = vmatpush1.msra.mxu0 0.0
  %332 = vmatprep.subr.mxu0 0.0
  %333 = vmatpush1.msra.mxu0 0.0
  %334 = vmatprep.subr.mxu0 0.0
  %335 = vmatpush1.msra.mxu0 0.0
  %336 = vmatprep.subr.mxu0 0.0
  %337 = vmatpush1.msra.mxu0 0.0
  %338 = vmatprep.subr.mxu0 0.0
  %339 = vmatpush1.msra.mxu0 0.0
  %340 = vmatprep.subr.mxu0 0.0
  %341 = vmatpush1.msra.mxu0 0.0
  %342 = vmatprep.subr.mxu0 0.0
  %343 = vmatpush1.msra.mxu0 0.0
  %344 = vmatprep.subr.mxu0 0.0
  %345 = vmatpush1.msra.mxu0 0.0
  %346 = vmatprep.subr.mxu0 0.0
  %347 = vmatpush1.msra.mxu0 0.0
  %348 = vmatprep.subr.mxu0 0.0
  %349 = vmatpush1.msra.mxu0 0.0
  %350 = vmatprep.subr.mxu0 0.0
  %351 = vmatpush1.msra.mxu0 0.0
  %352 = vmatprep.subr.mxu0 0.0
  %353 = vmatpush1.msra.mxu0 0.0
  %354 = vmatprep.subr.mxu0 0.0
  %355 = vmatpush1.msra.mxu0 0.0
  %356 = vmatprep.subr.mxu0 0.0
  %357 = vmatpush1.msra.mxu0 0.0
  %358 = vmatprep.subr.mxu0 0.0
  %359 = vmatpush1.msra.mxu0 0.0
  %360 = vmatprep.subr.mxu0 0.0
  %361 = vmatpush1.msra.mxu0 0.0
  %362 = vmatprep.mubr.f32.mxu0 0.0
  %363 = vmatmul.mubr.f32.gmra.mrb[0].mxu0 %v114
  %v364 = vpop.f32.mrb[0].mxu0
  %v365 = vadd.f32 %v110, %v364
  %v366 = vpop.f32.mrb[0].mxu0
  %v367 = vadd.f32 %v110, %v366
  %368 = vdwg.mxu0
  %369 = vmatprep.subr.mxu0 %v22
  %370 = vmatpush1.msra.mxu0 %v21
  %371 = vmatprep.subr.mxu0 %v35
  %372 = vmatpush1.msra.mxu0 %v34
  %373 = vmatprep.subr.mxu0 %v48
  %374 = vmatpush1.msra.mxu0 %v47
  %375 = vmatprep.subr.mxu0 %v61
  %376 = vmatpush1.msra.mxu0 %v60
  %377 = vmatprep.subr.mxu0 %v74
  %378 = vmatpush1.msra.mxu0 %v73
  %379 = vmatprep.subr.mxu0 %v87
  %380 = vmatpush1.msra.mxu0 %v86
  %381 = vmatprep.subr.mxu0 %v139
  %382 = vmatpush1.msra.mxu0 %v136
  %383 = vmatprep.subr.mxu0 0.0
  %384 = vmatpush1.msra.mxu0 0.0
  %385 = vmatprep.subr.mxu0 0.0
  %386 = vmatpush1.msra.mxu0 0.0
  %387 = vmatprep.subr.mxu0 0.0
  %388 = vmatpush1.msra.mxu0 0.0
  %389 = vmatprep.subr.mxu0 0.0
  %390 = vmatpush1.msra.mxu0 0.0
  %391 = vmatprep.subr.mxu0 0.0
  %392 = vmatpush1.msra.mxu0 0.0
  %393 = vmatprep.subr.mxu0 0.0
  %394 = vmatpush1.msra.mxu0 0.0
  %395 = vmatprep.subr.mxu0 0.0
  %396 = vmatpush1.msra.mxu0 0.0
  %397 = vmatprep.subr.mxu0 0.0
  %398 = vmatpush1.msra.mxu0 0.0
  %399 = vmatprep.subr.mxu0 0.0
  %400 = vmatpush1.msra.mxu0 0.0
  %401 = vmatprep.subr.mxu0 0.0
  %402 = vmatpush1.msra.mxu0 0.0
  %403 = vmatprep.subr.mxu0 0.0
  %404 = vmatpush1.msra.mxu0 0.0
  %405 = vmatprep.subr.mxu0 0.0
  %406 = vmatpush1.msra.mxu0 0.0
  %407 = vmatprep.subr.mxu0 0.0
  %408 = vmatpush1.msra.mxu0 0.0
  %409 = vmatprep.subr.mxu0 0.0
  %410 = vmatpush1.msra.mxu0 0.0
  %411 = vmatprep.subr.mxu0 0.0
  %412 = vmatpush1.msra.mxu0 0.0
  %413 = vmatprep.subr.mxu0 0.0
  %414 = vmatpush1.msra.mxu0 0.0
  %415 = vmatprep.subr.mxu0 0.0
  %416 = vmatpush1.msra.mxu0 0.0
  %417 = vmatprep.subr.mxu0 0.0
  %418 = vmatpush1.msra.mxu0 0.0
  %419 = vmatprep.subr.mxu0 0.0
  %420 = vmatpush1.msra.mxu0 0.0
  %421 = vmatprep.subr.mxu0 0.0
  %422 = vmatpush1.msra.mxu0 0.0
  %423 = vmatprep.subr.mxu0 0.0
  %424 = vmatpush1.msra.mxu0 0.0
  %425 = vmatprep.subr.mxu0 0.0
  %426 = vmatpush1.msra.mxu0 0.0
  %427 = vmatprep.subr.mxu0 0.0
  %428 = vmatpush1.msra.mxu0 0.0
  %429 = vmatprep.subr.mxu0 0.0
  %430 = vmatpush1.msra.mxu0 0.0
  %431 = vmatprep.subr.mxu0 0.0
  %432 = vmatpush1.msra.mxu0 0.0
  %433 = vmatprep.mubr.f32.mxu0 0.0
  %434 = vmatmul.mubr.f32.gmra.mrb[0].mxu0 %v114
  %v435 = vpop.f32.mrb[0].mxu0
  %v436 = vadd.f32 %v110, %v435
  %v437 = vpop.f32.mrb[0].mxu0
  %v438 = vadd.f32 %v110, %v437
  %439 = vdwg.mxu0
  %440 = vmatprep.subr.mxu0 %v24
  %441 = vmatpush1.msra.mxu0 %v23
  %442 = vmatprep.subr.mxu0 %v37
  %443 = vmatpush1.msra.mxu0 %v36
  %444 = vmatprep.subr.mxu0 %v50
  %445 = vmatpush1.msra.mxu0 %v49
  %446 = vmatprep.subr.mxu0 %v63
  %447 = vmatpush1.msra.mxu0 %v62
  %448 = vmatprep.subr.mxu0 %v76
  %449 = vmatpush1.msra.mxu0 %v75
  %450 = vmatprep.subr.mxu0 %v89
  %451 = vmatpush1.msra.mxu0 %v88
  %452 = vmatprep.subr.mxu0 %v145
  %453 = vmatpush1.msra.mxu0 %v142
  %454 = vmatprep.subr.mxu0 0.0
  %455 = vmatpush1.msra.mxu0 0.0
  %456 = vmatprep.subr.mxu0 0.0
  %457 = vmatpush1.msra.mxu0 0.0
  %458 = vmatprep.subr.mxu0 0.0
  %459 = vmatpush1.msra.mxu0 0.0
  %460 = vmatprep.subr.mxu0 0.0
  %461 = vmatpush1.msra.mxu0 0.0
  %462 = vmatprep.subr.mxu0 0.0
  %463 = vmatpush1.msra.mxu0 0.0
  %464 = vmatprep.subr.mxu0 0.0
  %465 = vmatpush1.msra.mxu0 0.0
  %466 = vmatprep.subr.mxu0 0.0
  %467 = vmatpush1.msra.mxu0 0.0
  %468 = vmatprep.subr.mxu0 0.0
  %469 = vmatpush1.msra.mxu0 0.0
  %470 = vmatprep.subr.mxu0 0.0
  %471 = vmatpush1.msra.mxu0 0.0
  %472 = vmatprep.subr.mxu0 0.0
  %473 = vmatpush1.msra.mxu0 0.0
  %474 = vmatprep.subr.mxu0 0.0
  %475 = vmatpush1.msra.mxu0 0.0
  %476 = vmatprep.subr.mxu0 0.0
  %477 = vmatpush1.msra.mxu0 0.0
  %478 = vmatprep.subr.mxu0 0.0
  %479 = vmatpush1.msra.mxu0 0.0
  %480 = vmatprep.subr.mxu0 0.0
  %481 = vmatpush1.msra.mxu0 0.0
  %482 = vmatprep.subr.mxu0 0.0
  %483 = vmatpush1.msra.mxu0 0.0
  %484 = vmatprep.subr.mxu0 0.0
  %485 = vmatpush1.msra.mxu0 0.0
  %486 = vmatprep.subr.mxu0 0.0
  %487 = vmatpush1.msra.mxu0 0.0
  %488 = vmatprep.subr.mxu0 0.0
  %489 = vmatpush1.msra.mxu0 0.0
  %490 = vmatprep.subr.mxu0 0.0
  %491 = vmatpush1.msra.mxu0 0.0
  %492 = vmatprep.subr.mxu0 0.0
  %493 = vmatpush1.msra.mxu0 0.0
  %494 = vmatprep.subr.mxu0 0.0
  %495 = vmatpush1.msra.mxu0 0.0
  %496 = vmatprep.subr.mxu0 0.0
  %497 = vmatpush1.msra.mxu0 0.0
  %498 = vmatprep.subr.mxu0 0.0
  %499 = vmatpush1.msra.mxu0 0.0
  %500 = vmatprep.subr.mxu0 0.0
  %501 = vmatpush1.msra.mxu0 0.0
  %502 = vmatprep.subr.mxu0 0.0
  %503 = vmatpush1.msra.mxu0 0.0
  %504 = vmatprep.mubr.f32.mxu0 0.0
  %505 = vmatmul.mubr.f32.gmra.mrb[0].mxu0 %v114
  %v506 = vpop.f32.mrb[0].mxu0
  %v507 = vadd.f32 %v110, %v506
  %v508 = vpop.f32.mrb[0].mxu0
  %v509 = vadd.f32 %v110, %v508
  %510 = vdwg.mxu0
  %511 = vmatprep.subr.mxu0 %v26
  %512 = vmatpush1.msra.mxu0 %v25
  %513 = vmatprep.subr.mxu0 %v39
  %514 = vmatpush1.msra.mxu0 %v38
  %515 = vmatprep.subr.mxu0 %v52
  %516 = vmatpush1.msra.mxu0 %v51
  %517 = vmatprep.subr.mxu0 %v65
  %518 = vmatpush1.msra.mxu0 %v64
  %519 = vmatprep.subr.mxu0 %v78
  %520 = vmatpush1.msra.mxu0 %v77
  %521 = vmatprep.subr.mxu0 %v91
  %522 = vmatpush1.msra.mxu0 %v90
  %523 = vmatprep.subr.mxu0 %v151
  %524 = vmatpush1.msra.mxu0 %v148
  %525 = vmatprep.subr.mxu0 0.0
  %526 = vmatpush1.msra.mxu0 0.0
  %527 = vmatprep.subr.mxu0 0.0
  %528 = vmatpush1.msra.mxu0 0.0
  %529 = vmatprep.subr.mxu0 0.0
  %530 = vmatpush1.msra.mxu0 0.0
  %531 = vmatprep.subr.mxu0 0.0
  %532 = vmatpush1.msra.mxu0 0.0
  %533 = vmatprep.subr.mxu0 0.0
  %534 = vmatpush1.msra.mxu0 0.0
  %535 = vmatprep.subr.mxu0 0.0
  %536 = vmatpush1.msra.mxu0 0.0
  %537 = vmatprep.subr.mxu0 0.0
  %538 = vmatpush1.msra.mxu0 0.0
  %539 = vmatprep.subr.mxu0 0.0
  %540 = vmatpush1.msra.mxu0 0.0
  %541 = vmatprep.subr.mxu0 0.0
  %542 = vmatpush1.msra.mxu0 0.0
  %543 = vmatprep.subr.mxu0 0.0
  %544 = vmatpush1.msra.mxu0 0.0
  %545 = vmatprep.subr.mxu0 0.0
  %546 = vmatpush1.msra.mxu0 0.0
  %547 = vmatprep.subr.mxu0 0.0
  %548 = vmatpush1.msra.mxu0 0.0
  %549 = vmatprep.subr.mxu0 0.0
  %550 = vmatpush1.msra.mxu0 0.0
  %551 = vmatprep.subr.mxu0 0.0
  %552 = vmatpush1.msra.mxu0 0.0
  %553 = vmatprep.subr.mxu0 0.0
  %554 = vmatpush1.msra.mxu0 0.0
  %555 = vmatprep.subr.mxu0 0.0
  %556 = vmatpush1.msra.mxu0 0.0
  %557 = vmatprep.subr.mxu0 0.0
  %558 = vmatpush1.msra.mxu0 0.0
  %559 = vmatprep.subr.mxu0 0.0
  %560 = vmatpush1.msra.mxu0 0.0
  %561 = vmatprep.subr.mxu0 0.0
  %562 = vmatpush1.msra.mxu0 0.0
  %563 = vmatprep.subr.mxu0 0.0
  %564 = vmatpush1.msra.mxu0 0.0
  %565 = vmatprep.subr.mxu0 0.0
  %566 = vmatpush1.msra.mxu0 0.0
  %567 = vmatprep.subr.mxu0 0.0
  %568 = vmatpush1.msra.mxu0 0.0
  %569 = vmatprep.subr.mxu0 0.0
  %570 = vmatpush1.msra.mxu0 0.0
  %571 = vmatprep.subr.mxu0 0.0
  %572 = vmatpush1.msra.mxu0 0.0
  %573 = vmatprep.subr.mxu0 0.0
  %574 = vmatpush1.msra.mxu0 0.0
  %575 = vmatprep.mubr.f32.mxu0 0.0
  %576 = vmatmul.mubr.f32.gmra.mrb[0].mxu0 %v114
  %v577 = vpop.f32.mrb[0].mxu0
  %v578 = vadd.f32 %v110, %v577
  %v579 = vpop.f32.mrb[0].mxu0
  %v580 = vadd.f32 %v110, %v579
  %581 = vdwg.mxu0
  %582 = vmatprep.subr.mxu0 0.0
  %583 = vmatpush1.msra.mxu0 %v27
  %584 = vmatprep.subr.mxu0 0.0
  %585 = vmatpush1.msra.mxu0 %v40
  %586 = vmatprep.subr.mxu0 0.0
  %587 = vmatpush1.msra.mxu0 %v53
  %588 = vmatprep.subr.mxu0 0.0
  %589 = vmatpush1.msra.mxu0 %v66
  %590 = vmatprep.subr.mxu0 0.0
  %591 = vmatpush1.msra.mxu0 %v79
  %592 = vmatprep.subr.mxu0 0.0
  %593 = vmatpush1.msra.mxu0 %v92
  %594 = vmatprep.subr.mxu0 0.0
  %595 = vmatpush1.msra.mxu0 %v154
  %596 = vmatprep.subr.mxu0 0.0
  %597 = vmatpush1.msra.mxu0 0.0
  %598 = vmatprep.subr.mxu0 0.0
  %599 = vmatpush1.msra.mxu0 0.0
  %600 = vmatprep.subr.mxu0 0.0
  %601 = vmatpush1.msra.mxu0 0.0
  %602 = vmatprep.subr.mxu0 0.0
  %603 = vmatpush1.msra.mxu0 0.0
  %604 = vmatprep.subr.mxu0 0.0
  %605 = vmatpush1.msra.mxu0 0.0
  %606 = vmatprep.subr.mxu0 0.0
  %607 = vmatpush1.msra.mxu0 0.0
  %608 = vmatprep.subr.mxu0 0.0
  %609 = vmatpush1.msra.mxu0 0.0
  %610 = vmatprep.subr.mxu0 0.0
  %611 = vmatpush1.msra.mxu0 0.0
  %612 = vmatprep.subr.mxu0 0.0
  %613 = vmatpush1.msra.mxu0 0.0
  %614 = vmatprep.subr.mxu0 0.0
  %615 = vmatpush1.msra.mxu0 0.0
  %616 = vmatprep.subr.mxu0 0.0
  %617 = vmatpush1.msra.mxu0 0.0
  %618 = vmatprep.subr.mxu0 0.0
  %619 = vmatpush1.msra.mxu0 0.0
  %620 = vmatprep.subr.mxu0 0.0
  %621 = vmatpush1.msra.mxu0 0.0
  %622 = vmatprep.subr.mxu0 0.0
  %623 = vmatpush1.msra.mxu0 0.0
  %624 = vmatprep.subr.mxu0 0.0
  %625 = vmatpush1.msra.mxu0 0.0
  %626 = vmatprep.subr.mxu0 0.0
  %627 = vmatpush1.msra.mxu0 0.0
  %628 = vmatprep.subr.mxu0 0.0
  %629 = vmatpush1.msra.mxu0 0.0
  %630 = vmatprep.subr.mxu0 0.0
  %631 = vmatpush1.msra.mxu0 0.0
  %632 = vmatprep.subr.mxu0 0.0
  %633 = vmatpush1.msra.mxu0 0.0
  %634 = vmatprep.subr.mxu0 0.0
  %635 = vmatpush1.msra.mxu0 0.0
  %636 = vmatprep.subr.mxu0 0.0
  %637 = vmatpush1.msra.mxu0 0.0
  %638 = vmatprep.subr.mxu0 0.0
  %639 = vmatpush1.msra.mxu0 0.0
  %640 = vmatprep.subr.mxu0 0.0
  %641 = vmatpush1.msra.mxu0 0.0
  %642 = vmatprep.subr.mxu0 0.0
  %643 = vmatpush1.msra.mxu0 0.0
  %644 = vmatprep.subr.mxu0 0.0
  %645 = vmatpush1.msra.mxu0 0.0
  %646 = vmatprep.mubr.f32.mxu0 0.0
  %647 = vmatmul.mubr.f32.gmra.mrb[0].mxu0 %v114
  %v648 = vpop.f32.mrb[0].mxu0
  %v649 = vadd.f32 %v110, %v648
  %v650 = vpop.f32.mrb[0].mxu0
  %651 = vdwg.mxu0
  %v652 = vmax.f32 %v223, 0.0
  %v653 = vmax.f32 %v225, 0.0
  %v654 = vmax.f32 %v294, 0.0
  %v655 = vmax.f32 %v296, 0.0
  %v656 = vmax.f32 %v365, 0.0
  %v657 = vmax.f32 %v367, 0.0
  %v658 = vmax.f32 %v436, 0.0
  %v659 = vmax.f32 %v438, 0.0
  %v660 = vmax.f32 %v507, 0.0
  %v661 = vmax.f32 %v509, 0.0
  %v662 = vmax.f32 %v578, 0.0
  %v663 = vmax.f32 %v580, 0.0
  %v664 = vmax.f32 %v649, 0.0
  %665 = vst [vmem:[%s3] sm:$0x3f] %v652
  %666 = vst [vmem:[%s3 + $0x8] sm:$0x3f] %v653
  %667 = vst [vmem:[%s3 + $0x10] sm:$0x3f] %v654
  %668 = vst [vmem:[%s3 + $0x18] sm:$0x3f] %v655
  %669 = vst [vmem:[%s3 + $0x20] sm:$0x3f] %v656
  %670 = vst [vmem:[%s3 + $0x28] sm:$0x3f] %v657
  %671 = vst [vmem:[%s3 + $0x30] sm:$0x3f] %v658
  %672 = vst [vmem:[%s3 + $0x38] sm:$0x3f] %v659
  %673 = vst [vmem:[%s3 + $0x40] sm:$0x3f] %v660
  %674 = vst [vmem:[%s3 + $0x48] sm:$0x3f] %v661
  %675 = vst [vmem:[%s3 + $0x50] sm:$0x3f] %v662
  %676 = vst [vmem:[%s3 + $0x58] sm:$0x3f] %v663
  %vm677 = vcmask 259072
  %678 = vst.msk [vmem:[%s3 + $0x60] sm:$0x3f] %vm677, %v664
  // Predicated region
  $region14: #{encoder_decoder.24} parent=0 // pred_check
    _
  $region15: #{encoder_decoder.24} parent=0 // pred_check_branch
    %680 = sbr.rel (0) target = $region17
  $region16: #{encoder_decoder.24} parent=0 // pred_region
    _
  $region17: #{encoder_decoder.24} parent=0 // pred_fallthru
    _
  // Predicated region
  $region18: #{encoder_decoder.24} parent=0 // pred_check
    _
  $region19: #{encoder_decoder.24} parent=0 // pred_check_branch
    %682 = sbr.rel (0) target = $region21
  $region20: #{encoder_decoder.24} parent=0 // pred_region
    _
  $region21: #{encoder_decoder.24} parent=0 // pred_fallthru
    _

// kernel: encoder_decoder.25
$region0: #{encoder_decoder.25}
  #allocation0 [shape = 'u32[]', space=smem, size = 0x4, offset = 0x4, fixed_abs, tag = 'smem constant byte address 0x4 - core index']
  #allocation1 [shape = 'u32[144,128]{1,0:T(1,128)}', space=vmem, size = 0x12000, scoped, tag = 'internal scratch']
  #allocation2 [shape = 'f32[1,1]{1,0:T(1,128)S(1)}', space=vmem, size = 0x200, scoped, tag = 'scoped memory for encoder_decoder.25']
  %s0 = inlined_call_operand.vmem [shape: f32[1,54], index: 0, kind: input, shape index: {}]
  %s1 = inlined_call_operand.vmem [shape: f32[54,1568], index: 1, kind: input, shape index: {}]
  %s2 = inlined_call_operand.<no memory space> [shape: f32[1,1], index: 2, kind: input, shape index: {}]
  %s3 = inlined_call_operand.vmem [shape: f32[1,1568], index: 3, kind: output, shape index: {}]
  %s4 = sld [smem:[#allocation0]]
  $region22: #{encoder_decoder.25} parent=0
    _
  %s6 = ssub.s32 1, %s4
  %s7 = scalar_select 0, %s6, %s4
  %v8 = vstv %s2
  %9 = vst [vmem:[#allocation2] sm:$0x1] %v8
  // Predicated region
  $region2: #{encoder_decoder.25} parent=0 // pred_check
    _
  $region3: #{encoder_decoder.25} parent=0 // pred_check_branch
    %11 = sbr.rel (0) target = $region5
  $region4: #{encoder_decoder.25} parent=0 // pred_region
    _
  $region5: #{encoder_decoder.25} parent=0 // pred_fallthru
    _
  // Predicated region
  $region6: #{encoder_decoder.25} parent=0 // pred_check
    _
  $region7: #{encoder_decoder.25} parent=0 // pred_check_branch
    %13 = sbr.rel (0) target = $region9
  $region8: #{encoder_decoder.25} parent=0 // pred_region
    _
  $region9: #{encoder_decoder.25} parent=0 // pred_fallthru
    _
  // Predicated region
  $region10: #{encoder_decoder.25} parent=0 // pred_check
    _
  $region11: #{encoder_decoder.25} parent=0 // pred_check_branch
    %15 = sbr.rel (0) target = $region13
  $region12: #{encoder_decoder.25} parent=0 // pred_region
    _
  $region13: #{encoder_decoder.25} parent=0 // pred_fallthru
    _
  %v16 = vld [vmem:[%s0] sm:$0x1]
  %v17 = vld [vmem:[%s1] sm:$0xff]
  %v18 = vld [vmem:[%s1 + $0x8] sm:$0xff]
  %v19 = vld [vmem:[%s1 + $0x10] sm:$0xff]
  %v20 = vld [vmem:[%s1 + $0x18] sm:$0xff]
  %v21 = vld [vmem:[%s1 + $0x20] sm:$0xff]
  %v22 = vld [vmem:[%s1 + $0x28] sm:$0xff]
  %v23 = vld [vmem:[%s1 + $0x30] sm:$0xff]
  %v24 = vld [vmem:[%s1 + $0x38] sm:$0xff]
  %v25 = vld [vmem:[%s1 + $0x40] sm:$0xff]
  %v26 = vld [vmem:[%s1 + $0x48] sm:$0xff]
  %v27 = vld [vmem:[%s1 + $0x50] sm:$0xff]
  %v28 = vld [vmem:[%s1 + $0x58] sm:$0xff]
  %v29 = vld [vmem:[%s1 + $0x60] sm:$0xff]
  %v30 = vld [vmem:[%s1 + $0x68] sm:$0xff]
  %v31 = vld [vmem:[%s1 + $0x70] sm:$0xff]
  %v32 = vld [vmem:[%s1 + $0x78] sm:$0xff]
  %v33 = vld [vmem:[%s1 + $0x80] sm:$0xff]
  %v34 = vld [vmem:[%s1 + $0x88] sm:$0xff]
  %v35 = vld [vmem:[%s1 + $0x90] sm:$0xff]
  %v36 = vld [vmem:[%s1 + $0x98] sm:$0xff]
  %v37 = vld [vmem:[%s1 + $0xa0] sm:$0xff]
  %v38 = vld [vmem:[%s1 + $0xa8] sm:$0xff]
  %v39 = vld [vmem:[%s1 + $0xb0] sm:$0xff]
  %v40 = vld [vmem:[%s1 + $0xb8] sm:$0xff]
  %v41 = vld [vmem:[%s1 + $0xc0] sm:$0xff]
  %v42 = vld [vmem:[%s1 + $0xc8] sm:$0xff]
  %v43 = vld [vmem:[%s1 + $0xd0] sm:$0xff]
  %v44 = vld [vmem:[%s1 + $0xd8] sm:$0xff]
  %v45 = vld [vmem:[%s1 + $0xe0] sm:$0xff]
  %v46 = vld [vmem:[%s1 + $0xe8] sm:$0xff]
  %v47 = vld [vmem:[%s1 + $0xf0] sm:$0xff]
  %v48 = vld [vmem:[%s1 + $0xf8] sm:$0xff]
  %v49 = vld [vmem:[%s1 + $0x100] sm:$0xff]
  %v50 = vld [vmem:[%s1 + $0x108] sm:$0xff]
  %v51 = vld [vmem:[%s1 + $0x110] sm:$0xff]
  %v52 = vld [vmem:[%s1 + $0x118] sm:$0xff]
  %v53 = vld [vmem:[%s1 + $0x120] sm:$0xff]
  %v54 = vld [vmem:[%s1 + $0x128] sm:$0xff]
  %v55 = vld [vmem:[%s1 + $0x130] sm:$0xff]
  %v56 = vld [vmem:[%s1 + $0x138] sm:$0xff]
  %v57 = vld [vmem:[%s1 + $0x140] sm:$0xff]
  %v58 = vld [vmem:[%s1 + $0x148] sm:$0xff]
  %v59 = vld [vmem:[%s1 + $0x150] sm:$0xff]
  %v60 = vld [vmem:[%s1 + $0x158] sm:$0xff]
  %v61 = vld [vmem:[%s1 + $0x160] sm:$0xff]
  %v62 = vld [vmem:[%s1 + $0x168] sm:$0xff]
  %v63 = vld [vmem:[%s1 + $0x170] sm:$0xff]
  %v64 = vld [vmem:[%s1 + $0x178] sm:$0xff]
  %v65 = vld [vmem:[%s1 + $0x180] sm:$0xff]
  %v66 = vld [vmem:[%s1 + $0x188] sm:$0xff]
  %v67 = vld [vmem:[%s1 + $0x190] sm:$0xff]
  %v68 = vld [vmem:[%s1 + $0x198] sm:$0xff]
  %v69 = vld [vmem:[%s1 + $0x1a0] sm:$0xff]
  %v70 = vld [vmem:[%s1 + $0x1a8] sm:$0xff]
  %v71 = vld [vmem:[%s1 + $0x1b0] sm:$0xff]
  %v72 = vld [vmem:[%s1 + $0x1b8] sm:$0xff]
  %v73 = vld [vmem:[%s1 + $0x1c0] sm:$0xff]
  %v74 = vld [vmem:[%s1 + $0x1c8] sm:$0xff]
  %v75 = vld [vmem:[%s1 + $0x1d0] sm:$0xff]
  %v76 = vld [vmem:[%s1 + $0x1d8] sm:$0xff]
  %v77 = vld [vmem:[%s1 + $0x1e0] sm:$0xff]
  %v78 = vld [vmem:[%s1 + $0x1e8] sm:$0xff]
  %v79 = vld [vmem:[%s1 + $0x1f0] sm:$0xff]
  %v80 = vld [vmem:[%s1 + $0x1f8] sm:$0xff]
  %v81 = vld [vmem:[%s1 + $0x200] sm:$0xff]
  %v82 = vld [vmem:[%s1 + $0x208] sm:$0xff]
  %v83 = vld [vmem:[%s1 + $0x210] sm:$0xff]
  %v84 = vld [vmem:[%s1 + $0x218] sm:$0xff]
  %v85 = vld [vmem:[%s1 + $0x220] sm:$0xff]
  %v86 = vld [vmem:[%s1 + $0x228] sm:$0xff]
  %v87 = vld [vmem:[%s1 + $0x230] sm:$0xff]
  %v88 = vld [vmem:[%s1 + $0x238] sm:$0xff]
  %v89 = vld [vmem:[%s1 + $0x240] sm:$0xff]
  %v90 = vld [vmem:[%s1 + $0x248] sm:$0xff]
  %v91 = vld [vmem:[%s1 + $0x250] sm:$0xff]
  %v92 = vld [vmem:[%s1 + $0x258] sm:$0xff]
  %v93 = vld [vmem:[%s1 + $0x260] sm:$0xff]
  %v94 = vld [vmem:[%s1 + $0x268] sm:$0xff]
  %v95 = vld [vmem:[%s1 + $0x270] sm:$0x3f]
  %v96 = vld [vmem:[%s1 + $0x278] sm:$0x3f]
  %v97 = vld [vmem:[%s1 + $0x280] sm:$0x3f]
  %v98 = vld [vmem:[%s1 + $0x288] sm:$0x3f]
  %v99 = vld [vmem:[%s1 + $0x290] sm:$0x3f]
  %v100 = vld [vmem:[%s1 + $0x298] sm:$0x3f]
  %v101 = vld [vmem:[%s1 + $0x2a0] sm:$0x3f]
  %v102 = vld [vmem:[%s1 + $0x2a8] sm:$0x3f]
  %v103 = vld [vmem:[%s1 + $0x2b0] sm:$0x3f]
  %v104 = vld [vmem:[%s1 + $0x2b8] sm:$0x3f]
  %v105 = vld [vmem:[%s1 + $0x2c0] sm:$0x3f]
  %v106 = vld [vmem:[%s1 + $0x2c8] sm:$0x3f]
  %v107 = vld [vmem:[%s1 + $0x2d0] sm:$0x3f]
  %v108 = vld [vmem:[#allocation2] sm:$0x1]
  %110 = vset.pattern.permute.xlu0 0
  %111 = vperm.xlu0 %110, %v108
  %v112 = vpop.permute.xlu0 %111
  %v114 = vlaneseq
  %v115 = vshrl.u32 %v114, 7
  %v116 = vsub.s32 0, %v115
  %v117 = vrot.slane %v112, %v116
  %vm118 = vcmask 441344
  %v120 = vsel %vm118, %v16, 0
  %vm122 = vcmask 1045504
  %v124 = vsel %vm122, %v95, 0
  %v127 = vsel %vm122, %v96, 0
  %v130 = vsel %vm122, %v97, 0
  %v133 = vsel %vm122, %v98, 0
  %v136 = vsel %vm122, %v99, 0
  %v139 = vsel %vm122, %v100, 0
  %v142 = vsel %vm122, %v101, 0
  %v145 = vsel %vm122, %v102, 0
  %v148 = vsel %vm122, %v103, 0
  %v151 = vsel %vm122, %v104, 0
  %v154 = vsel %vm122, %v105, 0
  %v157 = vsel %vm122, %v106, 0
  %v160 = vsel %vm122, %v107, 0
  %162 = vmatprep.subr.mxu0 %v18
  %163 = vmatpush1.msra.mxu0 %v17
  %164 = vmatprep.subr.mxu0 %v31
  %165 = vmatpush1.msra.mxu0 %v30
  %166 = vmatprep.subr.mxu0 %v44
  %167 = vmatpush1.msra.mxu0 %v43
  %168 = vmatprep.subr.mxu0 %v57
  %169 = vmatpush1.msra.mxu0 %v56
  %170 = vmatprep.subr.mxu0 %v70
  %171 = vmatpush1.msra.mxu0 %v69
  %172 = vmatprep.subr.mxu0 %v83
  %173 = vmatpush1.msra.mxu0 %v82
  %174 = vmatprep.subr.mxu0 %v127
  %175 = vmatpush1.msra.mxu0 %v124
  %176 = vmatprep.subr.mxu0 0.0
  %177 = vmatpush1.msra.mxu0 0.0
  %178 = vmatprep.subr.mxu0 0.0
  %179 = vmatpush1.msra.mxu0 0.0
  %180 = vmatprep.subr.mxu0 0.0
  %181 = vmatpush1.msra.mxu0 0.0
  %182 = vmatprep.subr.mxu0 0.0
  %183 = vmatpush1.msra.mxu0 0.0
  %184 = vmatprep.subr.mxu0 0.0
  %185 = vmatpush1.msra.mxu0 0.0
  %186 = vmatprep.subr.mxu0 0.0
  %187 = vmatpush1.msra.mxu0 0.0
  %188 = vmatprep.subr.mxu0 0.0
  %189 = vmatpush1.msra.mxu0 0.0
  %190 = vmatprep.subr.mxu0 0.0
  %191 = vmatpush1.msra.mxu0 0.0
  %192 = vmatprep.subr.mxu0 0.0
  %193 = vmatpush1.msra.mxu0 0.0
  %194 = vmatprep.subr.mxu0 0.0
  %195 = vmatpush1.msra.mxu0 0.0
  %196 = vmatprep.subr.mxu0 0.0
  %197 = vmatpush1.msra.mxu0 0.0
  %198 = vmatprep.subr.mxu0 0.0
  %199 = vmatpush1.msra.mxu0 0.0
  %200 = vmatprep.subr.mxu0 0.0
  %201 = vmatpush1.msra.mxu0 0.0
  %202 = vmatprep.subr.mxu0 0.0
  %203 = vmatpush1.msra.mxu0 0.0
  %204 = vmatprep.subr.mxu0 0.0
  %205 = vmatpush1.msra.mxu0 0.0
  %206 = vmatprep.subr.mxu0 0.0
  %207 = vmatpush1.msra.mxu0 0.0
  %208 = vmatprep.subr.mxu0 0.0
  %209 = vmatpush1.msra.mxu0 0.0
  %210 = vmatprep.subr.mxu0 0.0
  %211 = vmatpush1.msra.mxu0 0.0
  %212 = vmatprep.subr.mxu0 0.0
  %213 = vmatpush1.msra.mxu0 0.0
  %214 = vmatprep.subr.mxu0 0.0
  %215 = vmatpush1.msra.mxu0 0.0
  %216 = vmatprep.subr.mxu0 0.0
  %217 = vmatpush1.msra.mxu0 0.0
  %218 = vmatprep.subr.mxu0 0.0
  %219 = vmatpush1.msra.mxu0 0.0
  %220 = vmatprep.subr.mxu0 0.0
  %221 = vmatpush1.msra.mxu0 0.0
  %222 = vmatprep.subr.mxu0 0.0
  %223 = vmatpush1.msra.mxu0 0.0
  %224 = vmatprep.subr.mxu0 0.0
  %225 = vmatpush1.msra.mxu0 0.0
  %226 = vmatprep.mubr.f32.mxu0 0.0
  %227 = vmatmul.mubr.f32.gmra.mrb[0].mxu0 %v120
  %v228 = vpop.f32.mrb[0].mxu0
  %v229 = vadd.f32 %v117, %v228
  %v230 = vpop.f32.mrb[0].mxu0
  %v231 = vadd.f32 %v117, %v230
  %232 = vdwg.mxu0
  %233 = vmatprep.subr.mxu0 %v20
  %234 = vmatpush1.msra.mxu0 %v19
  %235 = vmatprep.subr.mxu0 %v33
  %236 = vmatpush1.msra.mxu0 %v32
  %237 = vmatprep.subr.mxu0 %v46
  %238 = vmatpush1.msra.mxu0 %v45
  %239 = vmatprep.subr.mxu0 %v59
  %240 = vmatpush1.msra.mxu0 %v58
  %241 = vmatprep.subr.mxu0 %v72
  %242 = vmatpush1.msra.mxu0 %v71
  %243 = vmatprep.subr.mxu0 %v85
  %244 = vmatpush1.msra.mxu0 %v84
  %245 = vmatprep.subr.mxu0 %v133
  %246 = vmatpush1.msra.mxu0 %v130
  %247 = vmatprep.subr.mxu0 0.0
  %248 = vmatpush1.msra.mxu0 0.0
  %249 = vmatprep.subr.mxu0 0.0
  %250 = vmatpush1.msra.mxu0 0.0
  %251 = vmatprep.subr.mxu0 0.0
  %252 = vmatpush1.msra.mxu0 0.0
  %253 = vmatprep.subr.mxu0 0.0
  %254 = vmatpush1.msra.mxu0 0.0
  %255 = vmatprep.subr.mxu0 0.0
  %256 = vmatpush1.msra.mxu0 0.0
  %257 = vmatprep.subr.mxu0 0.0
  %258 = vmatpush1.msra.mxu0 0.0
  %259 = vmatprep.subr.mxu0 0.0
  %260 = vmatpush1.msra.mxu0 0.0
  %261 = vmatprep.subr.mxu0 0.0
  %262 = vmatpush1.msra.mxu0 0.0
  %263 = vmatprep.subr.mxu0 0.0
  %264 = vmatpush1.msra.mxu0 0.0
  %265 = vmatprep.subr.mxu0 0.0
  %266 = vmatpush1.msra.mxu0 0.0
  %267 = vmatprep.subr.mxu0 0.0
  %268 = vmatpush1.msra.mxu0 0.0
  %269 = vmatprep.subr.mxu0 0.0
  %270 = vmatpush1.msra.mxu0 0.0
  %271 = vmatprep.subr.mxu0 0.0
  %272 = vmatpush1.msra.mxu0 0.0
  %273 = vmatprep.subr.mxu0 0.0
  %274 = vmatpush1.msra.mxu0 0.0
  %275 = vmatprep.subr.mxu0 0.0
  %276 = vmatpush1.msra.mxu0 0.0
  %277 = vmatprep.subr.mxu0 0.0
  %278 = vmatpush1.msra.mxu0 0.0
  %279 = vmatprep.subr.mxu0 0.0
  %280 = vmatpush1.msra.mxu0 0.0
  %281 = vmatprep.subr.mxu0 0.0
  %282 = vmatpush1.msra.mxu0 0.0
  %283 = vmatprep.subr.mxu0 0.0
  %284 = vmatpush1.msra.mxu0 0.0
  %285 = vmatprep.subr.mxu0 0.0
  %286 = vmatpush1.msra.mxu0 0.0
  %287 = vmatprep.subr.mxu0 0.0
  %288 = vmatpush1.msra.mxu0 0.0
  %289 = vmatprep.subr.mxu0 0.0
  %290 = vmatpush1.msra.mxu0 0.0
  %291 = vmatprep.subr.mxu0 0.0
  %292 = vmatpush1.msra.mxu0 0.0
  %293 = vmatprep.subr.mxu0 0.0
  %294 = vmatpush1.msra.mxu0 0.0
  %295 = vmatprep.subr.mxu0 0.0
  %296 = vmatpush1.msra.mxu0 0.0
  %297 = vmatprep.mubr.f32.mxu0 0.0
  %298 = vmatmul.mubr.f32.gmra.mrb[0].mxu0 %v120
  %v299 = vpop.f32.mrb[0].mxu0
  %v300 = vadd.f32 %v117, %v299
  %v301 = vpop.f32.mrb[0].mxu0
  %v302 = vadd.f32 %v117, %v301
  %303 = vdwg.mxu0
  %304 = vmatprep.subr.mxu0 %v22
  %305 = vmatpush1.msra.mxu0 %v21
  %306 = vmatprep.subr.mxu0 %v35
  %307 = vmatpush1.msra.mxu0 %v34
  %308 = vmatprep.subr.mxu0 %v48
  %309 = vmatpush1.msra.mxu0 %v47
  %310 = vmatprep.subr.mxu0 %v61
  %311 = vmatpush1.msra.mxu0 %v60
  %312 = vmatprep.subr.mxu0 %v74
  %313 = vmatpush1.msra.mxu0 %v73
  %314 = vmatprep.subr.mxu0 %v87
  %315 = vmatpush1.msra.mxu0 %v86
  %316 = vmatprep.subr.mxu0 %v139
  %317 = vmatpush1.msra.mxu0 %v136
  %318 = vmatprep.subr.mxu0 0.0
  %319 = vmatpush1.msra.mxu0 0.0
  %320 = vmatprep.subr.mxu0 0.0
  %321 = vmatpush1.msra.mxu0 0.0
  %322 = vmatprep.subr.mxu0 0.0
  %323 = vmatpush1.msra.mxu0 0.0
  %324 = vmatprep.subr.mxu0 0.0
  %325 = vmatpush1.msra.mxu0 0.0
  %326 = vmatprep.subr.mxu0 0.0
  %327 = vmatpush1.msra.mxu0 0.0
  %328 = vmatprep.subr.mxu0 0.0
  %329 = vmatpush1.msra.mxu0 0.0
  %330 = vmatprep.subr.mxu0 0.0
  %331 = vmatpush1.msra.mxu0 0.0
  %332 = vmatprep.subr.mxu0 0.0
  %333 = vmatpush1.msra.mxu0 0.0
  %334 = vmatprep.subr.mxu0 0.0
  %335 = vmatpush1.msra.mxu0 0.0
  %336 = vmatprep.subr.mxu0 0.0
  %337 = vmatpush1.msra.mxu0 0.0
  %338 = vmatprep.subr.mxu0 0.0
  %339 = vmatpush1.msra.mxu0 0.0
  %340 = vmatprep.subr.mxu0 0.0
  %341 = vmatpush1.msra.mxu0 0.0
  %342 = vmatprep.subr.mxu0 0.0
  %343 = vmatpush1.msra.mxu0 0.0
  %344 = vmatprep.subr.mxu0 0.0
  %345 = vmatpush1.msra.mxu0 0.0
  %346 = vmatprep.subr.mxu0 0.0
  %347 = vmatpush1.msra.mxu0 0.0
  %348 = vmatprep.subr.mxu0 0.0
  %349 = vmatpush1.msra.mxu0 0.0
  %350 = vmatprep.subr.mxu0 0.0
  %351 = vmatpush1.msra.mxu0 0.0
  %352 = vmatprep.subr.mxu0 0.0
  %353 = vmatpush1.msra.mxu0 0.0
  %354 = vmatprep.subr.mxu0 0.0
  %355 = vmatpush1.msra.mxu0 0.0
  %356 = vmatprep.subr.mxu0 0.0
  %357 = vmatpush1.msra.mxu0 0.0
  %358 = vmatprep.subr.mxu0 0.0
  %359 = vmatpush1.msra.mxu0 0.0
  %360 = vmatprep.subr.mxu0 0.0
  %361 = vmatpush1.msra.mxu0 0.0
  %362 = vmatprep.subr.mxu0 0.0
  %363 = vmatpush1.msra.mxu0 0.0
  %364 = vmatprep.subr.mxu0 0.0
  %365 = vmatpush1.msra.mxu0 0.0
  %366 = vmatprep.subr.mxu0 0.0
  %367 = vmatpush1.msra.mxu0 0.0
  %368 = vmatprep.mubr.f32.mxu0 0.0
  %369 = vmatmul.mubr.f32.gmra.mrb[0].mxu0 %v120
  %v370 = vpop.f32.mrb[0].mxu0
  %v371 = vadd.f32 %v117, %v370
  %v372 = vpop.f32.mrb[0].mxu0
  %v373 = vadd.f32 %v117, %v372
  %374 = vdwg.mxu0
  %375 = vmatprep.subr.mxu0 %v24
  %376 = vmatpush1.msra.mxu0 %v23
  %377 = vmatprep.subr.mxu0 %v37
  %378 = vmatpush1.msra.mxu0 %v36
  %379 = vmatprep.subr.mxu0 %v50
  %380 = vmatpush1.msra.mxu0 %v49
  %381 = vmatprep.subr.mxu0 %v63
  %382 = vmatpush1.msra.mxu0 %v62
  %383 = vmatprep.subr.mxu0 %v76
  %384 = vmatpush1.msra.mxu0 %v75
  %385 = vmatprep.subr.mxu0 %v89
  %386 = vmatpush1.msra.mxu0 %v88
  %387 = vmatprep.subr.mxu0 %v145
  %388 = vmatpush1.msra.mxu0 %v142
  %389 = vmatprep.subr.mxu0 0.0
  %390 = vmatpush1.msra.mxu0 0.0
  %391 = vmatprep.subr.mxu0 0.0
  %392 = vmatpush1.msra.mxu0 0.0
  %393 = vmatprep.subr.mxu0 0.0
  %394 = vmatpush1.msra.mxu0 0.0
  %395 = vmatprep.subr.mxu0 0.0
  %396 = vmatpush1.msra.mxu0 0.0
  %397 = vmatprep.subr.mxu0 0.0
  %398 = vmatpush1.msra.mxu0 0.0
  %399 = vmatprep.subr.mxu0 0.0
  %400 = vmatpush1.msra.mxu0 0.0
  %401 = vmatprep.subr.mxu0 0.0
  %402 = vmatpush1.msra.mxu0 0.0
  %403 = vmatprep.subr.mxu0 0.0
  %404 = vmatpush1.msra.mxu0 0.0
  %405 = vmatprep.subr.mxu0 0.0
  %406 = vmatpush1.msra.mxu0 0.0
  %407 = vmatprep.subr.mxu0 0.0
  %408 = vmatpush1.msra.mxu0 0.0
  %409 = vmatprep.subr.mxu0 0.0
  %410 = vmatpush1.msra.mxu0 0.0
  %411 = vmatprep.subr.mxu0 0.0
  %412 = vmatpush1.msra.mxu0 0.0
  %413 = vmatprep.subr.mxu0 0.0
  %414 = vmatpush1.msra.mxu0 0.0
  %415 = vmatprep.subr.mxu0 0.0
  %416 = vmatpush1.msra.mxu0 0.0
  %417 = vmatprep.subr.mxu0 0.0
  %418 = vmatpush1.msra.mxu0 0.0
  %419 = vmatprep.subr.mxu0 0.0
  %420 = vmatpush1.msra.mxu0 0.0
  %421 = vmatprep.subr.mxu0 0.0
  %422 = vmatpush1.msra.mxu0 0.0
  %423 = vmatprep.subr.mxu0 0.0
  %424 = vmatpush1.msra.mxu0 0.0
  %425 = vmatprep.subr.mxu0 0.0
  %426 = vmatpush1.msra.mxu0 0.0
  %427 = vmatprep.subr.mxu0 0.0
  %428 = vmatpush1.msra.mxu0 0.0
  %429 = vmatprep.subr.mxu0 0.0
  %430 = vmatpush1.msra.mxu0 0.0
  %431 = vmatprep.subr.mxu0 0.0
  %432 = vmatpush1.msra.mxu0 0.0
  %433 = vmatprep.subr.mxu0 0.0
  %434 = vmatpush1.msra.mxu0 0.0
  %435 = vmatprep.subr.mxu0 0.0
  %436 = vmatpush1.msra.mxu0 0.0
  %437 = vmatprep.subr.mxu0 0.0
  %438 = vmatpush1.msra.mxu0 0.0
  %439 = vmatprep.mubr.f32.mxu0 0.0
  %440 = vmatmul.mubr.f32.gmra.mrb[0].mxu0 %v120
  %v441 = vpop.f32.mrb[0].mxu0
  %v442 = vadd.f32 %v117, %v441
  %v443 = vpop.f32.mrb[0].mxu0
  %v444 = vadd.f32 %v117, %v443
  %445 = vdwg.mxu0
  %446 = vmatprep.subr.mxu0 %v26
  %447 = vmatpush1.msra.mxu0 %v25
  %448 = vmatprep.subr.mxu0 %v39
  %449 = vmatpush1.msra.mxu0 %v38
  %450 = vmatprep.subr.mxu0 %v52
  %451 = vmatpush1.msra.mxu0 %v51
  %452 = vmatprep.subr.mxu0 %v65
  %453 = vmatpush1.msra.mxu0 %v64
  %454 = vmatprep.subr.mxu0 %v78
  %455 = vmatpush1.msra.mxu0 %v77
  %456 = vmatprep.subr.mxu0 %v91
  %457 = vmatpush1.msra.mxu0 %v90
  %458 = vmatprep.subr.mxu0 %v151
  %459 = vmatpush1.msra.mxu0 %v148
  %460 = vmatprep.subr.mxu0 0.0
  %461 = vmatpush1.msra.mxu0 0.0
  %462 = vmatprep.subr.mxu0 0.0
  %463 = vmatpush1.msra.mxu0 0.0
  %464 = vmatprep.subr.mxu0 0.0
  %465 = vmatpush1.msra.mxu0 0.0
  %466 = vmatprep.subr.mxu0 0.0
  %467 = vmatpush1.msra.mxu0 0.0
  %468 = vmatprep.subr.mxu0 0.0
  %469 = vmatpush1.msra.mxu0 0.0
  %470 = vmatprep.subr.mxu0 0.0
  %471 = vmatpush1.msra.mxu0 0.0
  %472 = vmatprep.subr.mxu0 0.0
  %473 = vmatpush1.msra.mxu0 0.0
  %474 = vmatprep.subr.mxu0 0.0
  %475 = vmatpush1.msra.mxu0 0.0
  %476 = vmatprep.subr.mxu0 0.0
  %477 = vmatpush1.msra.mxu0 0.0
  %478 = vmatprep.subr.mxu0 0.0
  %479 = vmatpush1.msra.mxu0 0.0
  %480 = vmatprep.subr.mxu0 0.0
  %481 = vmatpush1.msra.mxu0 0.0
  %482 = vmatprep.subr.mxu0 0.0
  %483 = vmatpush1.msra.mxu0 0.0
  %484 = vmatprep.subr.mxu0 0.0
  %485 = vmatpush1.msra.mxu0 0.0
  %486 = vmatprep.subr.mxu0 0.0
  %487 = vmatpush1.msra.mxu0 0.0
  %488 = vmatprep.subr.mxu0 0.0
  %489 = vmatpush1.msra.mxu0 0.0
  %490 = vmatprep.subr.mxu0 0.0
  %491 = vmatpush1.msra.mxu0 0.0
  %492 = vmatprep.subr.mxu0 0.0
  %493 = vmatpush1.msra.mxu0 0.0
  %494 = vmatprep.subr.mxu0 0.0
  %495 = vmatpush1.msra.mxu0 0.0
  %496 = vmatprep.subr.mxu0 0.0
  %497 = vmatpush1.msra.mxu0 0.0
  %498 = vmatprep.subr.mxu0 0.0
  %499 = vmatpush1.msra.mxu0 0.0
  %500 = vmatprep.subr.mxu0 0.0
  %501 = vmatpush1.msra.mxu0 0.0
  %502 = vmatprep.subr.mxu0 0.0
  %503 = vmatpush1.msra.mxu0 0.0
  %504 = vmatprep.subr.mxu0 0.0
  %505 = vmatpush1.msra.mxu0 0.0
  %506 = vmatprep.subr.mxu0 0.0
  %507 = vmatpush1.msra.mxu0 0.0
  %508 = vmatprep.subr.mxu0 0.0
  %509 = vmatpush1.msra.mxu0 0.0
  %510 = vmatprep.mubr.f32.mxu0 0.0
  %511 = vmatmul.mubr.f32.gmra.mrb[0].mxu0 %v120
  %v512 = vpop.f32.mrb[0].mxu0
  %v513 = vadd.f32 %v117, %v512
  %v514 = vpop.f32.mrb[0].mxu0
  %v515 = vadd.f32 %v117, %v514
  %516 = vdwg.mxu0
  %517 = vmatprep.subr.mxu0 %v28
  %518 = vmatpush1.msra.mxu0 %v27
  %519 = vmatprep.subr.mxu0 %v41
  %520 = vmatpush1.msra.mxu0 %v40
  %521 = vmatprep.subr.mxu0 %v54
  %522 = vmatpush1.msra.mxu0 %v53
  %523 = vmatprep.subr.mxu0 %v67
  %524 = vmatpush1.msra.mxu0 %v66
  %525 = vmatprep.subr.mxu0 %v80
  %526 = vmatpush1.msra.mxu0 %v79
  %527 = vmatprep.subr.mxu0 %v93
  %528 = vmatpush1.msra.mxu0 %v92
  %529 = vmatprep.subr.mxu0 %v157
  %530 = vmatpush1.msra.mxu0 %v154
  %531 = vmatprep.subr.mxu0 0.0
  %532 = vmatpush1.msra.mxu0 0.0
  %533 = vmatprep.subr.mxu0 0.0
  %534 = vmatpush1.msra.mxu0 0.0
  %535 = vmatprep.subr.mxu0 0.0
  %536 = vmatpush1.msra.mxu0 0.0
  %537 = vmatprep.subr.mxu0 0.0
  %538 = vmatpush1.msra.mxu0 0.0
  %539 = vmatprep.subr.mxu0 0.0
  %540 = vmatpush1.msra.mxu0 0.0
  %541 = vmatprep.subr.mxu0 0.0
  %542 = vmatpush1.msra.mxu0 0.0
  %543 = vmatprep.subr.mxu0 0.0
  %544 = vmatpush1.msra.mxu0 0.0
  %545 = vmatprep.subr.mxu0 0.0
  %546 = vmatpush1.msra.mxu0 0.0
  %547 = vmatprep.subr.mxu0 0.0
  %548 = vmatpush1.msra.mxu0 0.0
  %549 = vmatprep.subr.mxu0 0.0
  %550 = vmatpush1.msra.mxu0 0.0
  %551 = vmatprep.subr.mxu0 0.0
  %552 = vmatpush1.msra.mxu0 0.0
  %553 = vmatprep.subr.mxu0 0.0
  %554 = vmatpush1.msra.mxu0 0.0
  %555 = vmatprep.subr.mxu0 0.0
  %556 = vmatpush1.msra.mxu0 0.0
  %557 = vmatprep.subr.mxu0 0.0
  %558 = vmatpush1.msra.mxu0 0.0
  %559 = vmatprep.subr.mxu0 0.0
  %560 = vmatpush1.msra.mxu0 0.0
  %561 = vmatprep.subr.mxu0 0.0
  %562 = vmatpush1.msra.mxu0 0.0
  %563 = vmatprep.subr.mxu0 0.0
  %564 = vmatpush1.msra.mxu0 0.0
  %565 = vmatprep.subr.mxu0 0.0
  %566 = vmatpush1.msra.mxu0 0.0
  %567 = vmatprep.subr.mxu0 0.0
  %568 = vmatpush1.msra.mxu0 0.0
  %569 = vmatprep.subr.mxu0 0.0
  %570 = vmatpush1.msra.mxu0 0.0
  %571 = vmatprep.subr.mxu0 0.0
  %572 = vmatpush1.msra.mxu0 0.0
  %573 = vmatprep.subr.mxu0 0.0
  %574 = vmatpush1.msra.mxu0 0.0
  %575 = vmatprep.subr.mxu0 0.0
  %576 = vmatpush1.msra.mxu0 0.0
  %577 = vmatprep.subr.mxu0 0.0
  %578 = vmatpush1.msra.mxu0 0.0
  %579 = vmatprep.subr.mxu0 0.0
  %580 = vmatpush1.msra.mxu0 0.0
  %581 = vmatprep.mubr.f32.mxu0 0.0
  %582 = vmatmul.mubr.f32.gmra.mrb[0].mxu0 %v120
  %v583 = vpop.f32.mrb[0].mxu0
  %v584 = vadd.f32 %v117, %v583
  %v585 = vpop.f32.mrb[0].mxu0
  %v586 = vadd.f32 %v117, %v585
  %587 = vdwg.mxu0
  %588 = vmatprep.subr.mxu0 0.0
  %589 = vmatpush1.msra.mxu0 %v29
  %590 = vmatprep.subr.mxu0 0.0
  %591 = vmatpush1.msra.mxu0 %v42
  %592 = vmatprep.subr.mxu0 0.0
  %593 = vmatpush1.msra.mxu0 %v55
  %594 = vmatprep.subr.mxu0 0.0
  %595 = vmatpush1.msra.mxu0 %v68
  %596 = vmatprep.subr.mxu0 0.0
  %597 = vmatpush1.msra.mxu0 %v81
  %598 = vmatprep.subr.mxu0 0.0
  %599 = vmatpush1.msra.mxu0 %v94
  %600 = vmatprep.subr.mxu0 0.0
  %601 = vmatpush1.msra.mxu0 %v160
  %602 = vmatprep.subr.mxu0 0.0
  %603 = vmatpush1.msra.mxu0 0.0
  %604 = vmatprep.subr.mxu0 0.0
  %605 = vmatpush1.msra.mxu0 0.0
  %606 = vmatprep.subr.mxu0 0.0
  %607 = vmatpush1.msra.mxu0 0.0
  %608 = vmatprep.subr.mxu0 0.0
  %609 = vmatpush1.msra.mxu0 0.0
  %610 = vmatprep.subr.mxu0 0.0
  %611 = vmatpush1.msra.mxu0 0.0
  %612 = vmatprep.subr.mxu0 0.0
  %613 = vmatpush1.msra.mxu0 0.0
  %614 = vmatprep.subr.mxu0 0.0
  %615 = vmatpush1.msra.mxu0 0.0
  %616 = vmatprep.subr.mxu0 0.0
  %617 = vmatpush1.msra.mxu0 0.0
  %618 = vmatprep.subr.mxu0 0.0
  %619 = vmatpush1.msra.mxu0 0.0
  %620 = vmatprep.subr.mxu0 0.0
  %621 = vmatpush1.msra.mxu0 0.0
  %622 = vmatprep.subr.mxu0 0.0
  %623 = vmatpush1.msra.mxu0 0.0
  %624 = vmatprep.subr.mxu0 0.0
  %625 = vmatpush1.msra.mxu0 0.0
  %626 = vmatprep.subr.mxu0 0.0
  %627 = vmatpush1.msra.mxu0 0.0
  %628 = vmatprep.subr.mxu0 0.0
  %629 = vmatpush1.msra.mxu0 0.0
  %630 = vmatprep.subr.mxu0 0.0
  %631 = vmatpush1.msra.mxu0 0.0
  %632 = vmatprep.subr.mxu0 0.0
  %633 = vmatpush1.msra.mxu0 0.0
  %634 = vmatprep.subr.mxu0 0.0
  %635 = vmatpush1.msra.mxu0 0.0
  %636 = vmatprep.subr.mxu0 0.0
  %637 = vmatpush1.msra.mxu0 0.0
  %638 = vmatprep.subr.mxu0 0.0
  %639 = vmatpush1.msra.mxu0 0.0
  %640 = vmatprep.subr.mxu0 0.0
  %641 = vmatpush1.msra.mxu0 0.0
  %642 = vmatprep.subr.mxu0 0.0
  %643 = vmatpush1.msra.mxu0 0.0
  %644 = vmatprep.subr.mxu0 0.0
  %645 = vmatpush1.msra.mxu0 0.0
  %646 = vmatprep.subr.mxu0 0.0
  %647 = vmatpush1.msra.mxu0 0.0
  %648 = vmatprep.subr.mxu0 0.0
  %649 = vmatpush1.msra.mxu0 0.0
  %650 = vmatprep.subr.mxu0 0.0
  %651 = vmatpush1.msra.mxu0 0.0
  %652 = vmatprep.mubr.f32.mxu0 0.0
  %653 = vmatmul.mubr.f32.gmra.mrb[0].mxu0 %v120
  %v654 = vpop.f32.mrb[0].mxu0
  %v655 = vadd.f32 %v117, %v654
  %v656 = vpop.f32.mrb[0].mxu0
  %657 = vdwg.mxu0
  %v658 = vtanh.pop %v229
  %v659 = vtanh.pop %v231
  %v660 = vtanh.pop %v300
  %v661 = vtanh.pop %v302
  %v662 = vtanh.pop %v371
  %v663 = vtanh.pop %v373
  %v664 = vtanh.pop %v442
  %v665 = vtanh.pop %v444
  %v666 = vtanh.pop %v513
  %v667 = vtanh.pop %v515
  %v668 = vtanh.pop %v584
  %v669 = vtanh.pop %v586
  %v670 = vtanh.pop %v655
  %v684 = vcombine.low %v658, %v659
  %v685 = vcombine.low %v660, %v661
  %v686 = vcombine.low %v662, %v663
  %v687 = vcombine.low %v664, %v665
  %v689 = vunpack.c.l.s4 1966171168
  %v690 = vunpack.c.0.s8 %v689
  %v691 = vlaneseq
  %v692 = vshrl.u32 %v691, 7
  %v693 = vsub.s32 %v690, %v692
  %v694 = vrot.slane %v684, %v693
  %v696 = vunpack.c.l.s4 1966171168
  %v697 = vunpack.c.0.s8 %v696
  %v698 = vlaneseq
  %v699 = vshrl.u32 %v698, 7
  %v700 = vsub.s32 %v697, %v699
  %v701 = vrot.slane %v685, %v700
  %v703 = vunpack.c.l.s4 1966171168
  %v704 = vunpack.c.0.s8 %v703
  %v705 = vlaneseq
  %v706 = vshrl.u32 %v705, 7
  %v707 = vsub.s32 %v704, %v706
  %v708 = vrot.slane %v686, %v707
  %v710 = vunpack.c.l.s4 1966171168
  %v711 = vunpack.c.0.s8 %v710
  %v712 = vlaneseq
  %v713 = vshrl.u32 %v712, 7
  %v714 = vsub.s32 %v711, %v713
  %v715 = vrot.slane %v687, %v714
  %v716 = vcombine.low %v694, %v701
  %v717 = vcombine.low %v708, %v715
  %v719 = vunpack.c.l.s4 1966171168
  %v720 = vunpack.c.0.s8 %v719
  %v721 = vlaneseq
  %v722 = vshrl.u32 %v721, 7
  %v723 = vsub.s32 %v720, %v722
  %v724 = vrot.slane %v716, %v723
  %v726 = vunpack.c.l.s4 1966171168
  %v727 = vunpack.c.0.s8 %v726
  %v728 = vlaneseq
  %v729 = vshrl.u32 %v728, 7
  %v730 = vsub.s32 %v727, %v729
  %v731 = vrot.slane %v717, %v730
  %v732 = vcombine.low %v724, %v731
  %v733 = vcombine.low %v666, %v667
  %v734 = vcombine.low %v668, %v669
  %v736 = vunpack.c.l.s4 1966171168
  %v737 = vunpack.c.0.s8 %v736
  %v738 = vlaneseq
  %v739 = vshrl.u32 %v738, 7
  %v740 = vsub.s32 %v737, %v739
  %v741 = vrot.slane %v733, %v740
  %v743 = vunpack.c.l.s4 1966171168
  %v744 = vunpack.c.0.s8 %v743
  %v745 = vlaneseq
  %v746 = vshrl.u32 %v745, 7
  %v747 = vsub.s32 %v744, %v746
  %v748 = vrot.slane %v734, %v747
  %v750 = vunpack.c.l.s4 1966171168
  %v751 = vunpack.c.0.s8 %v750
  %v752 = vlaneseq
  %v753 = vshrl.u32 %v752, 7
  %v754 = vsub.s32 %v751, %v753
  %v755 = vrot.slane %v670, %v754
  %v756 = vcombine.low %v741, %v748
  %v758 = vunpack.c.l.s4 1966171168
  %v759 = vunpack.c.0.s8 %v758
  %v760 = vlaneseq
  %v761 = vshrl.u32 %v760, 7
  %v762 = vsub.s32 %v759, %v761
  %v763 = vrot.slane %v756, %v762
  %v765 = vunpack.c.l.s4 1966171168
  %v766 = vunpack.c.0.s8 %v765
  %v767 = vlaneseq
  %v768 = vshrl.u32 %v767, 7
  %v769 = vsub.s32 %v766, %v768
  %v770 = vrot.slane %v755, %v769
  %v771 = vcombine.low %v763, %v770
  %774 = vst [vmem:[%s3] sm:$0xff] %v732
  %v775 = vlaneseq
  %vm776 = vcmp.ge.s32.totalorder %v775, 0
  %vm777 = vcmp.lt.s32.totalorder %v775, 544
  %vm778 = vmand %vm776, %vm777
  %779 = vst.msk [vmem:[%s3 + $0x8] sm:$0x1f] %vm778, %v771
  // Predicated region
  $region14: #{encoder_decoder.25} parent=0 // pred_check
    _
  $region15: #{encoder_decoder.25} parent=0 // pred_check_branch
    %781 = sbr.rel (0) target = $region17
  $region16: #{encoder_decoder.25} parent=0 // pred_region
    _
  $region17: #{encoder_decoder.25} parent=0 // pred_fallthru
    _
  // Predicated region
  $region18: #{encoder_decoder.25} parent=0 // pred_check
    _
  $region19: #{encoder_decoder.25} parent=0 // pred_check_branch
    %783 = sbr.rel (0) target = $region21
  $region20: #{encoder_decoder.25} parent=0 // pred_region
    _
  $region21: #{encoder_decoder.25} parent=0 // pred_fallthru
    _

</llo_original>
